<compile_context>
chip_gen: v6e
topology: v6e:2x2x1
jax: 0.10.0
libtpu: 0.0.40
codegen_flags: <defaults>
</compile_context>

<pallas_src>
import functools

import jax
import jax.numpy as jnp
from jax.experimental import pallas as pl
from jax.experimental.pallas import tpu as pltpu


# ----------------------------------------------------------------------------
# Fused Pallas kernel: the entire ResnetBlock forward
# ----------------------------------------------------------------------------
def _resnet_block_kernel(x_ref, w1_ref, g1_ref, b1_ref, w2_ref, g2_ref, b2_ref,
                         o_ref, xp_ref, *, eps):
    # x_ref : [N, H, W, C]      input activation (NHWC, f32), VMEM resident
    # w*_ref: [3, 3C, C] bf16   taps, w[kw][kh*C + ic, oc] = W_torch[oc,ic,kh,kw]
    # g*/b* : [1, C] f32        BN gamma / beta
    # o_ref : [N, H, W, C] f32  output (lane-dense, sublane-aligned)
    # xp_ref: [N, H+2, W+2, C] bf16  reflect-padded activation scratch (reused)
    N, H, W, C = x_ref.shape
    M = N * H * W

    def reflect_pad_into(a):
        # a: [N,H,W,C] bf16.  nn.ReflectionPad2d(1): padded idx -1 -> 1, H -> H-2.
        # Every padded region is written directly from `a` (no xp_ref re-read),
        # so the stores carry no RAW dependency on each other.
        xp_ref[:, 1:H + 1, 1:W + 1, :] = a
        xp_ref[:, 0:1, 1:W + 1, :] = a[:, 1:2, :, :]
        xp_ref[:, H + 1:H + 2, 1:W + 1, :] = a[:, H - 2:H - 1, :, :]
        xp_ref[:, 1:H + 1, 0:1, :] = a[:, :, 1:2, :]
        xp_ref[:, 1:H + 1, W + 1:W + 2, :] = a[:, :, W - 2:W - 1, :]
        xp_ref[:, 0:1, 0:1, :] = a[:, 1:2, 1:2, :]
        xp_ref[:, 0:1, W + 1:W + 2, :] = a[:, 1:2, W - 2:W - 1, :]
        xp_ref[:, H + 1:H + 2, 0:1, :] = a[:, H - 2:H - 1, 1:2, :]
        xp_ref[:, H + 1:H + 2, W + 1:W + 2, :] = a[:, H - 2:H - 1, W - 2:W - 1, :]

    def conv3x3(w_ref):
        # 3x3 conv (no bias): one kw-shifted read of the padded buffer per kw,
        # the 3 kh taps fused along K (K = 3C) -> 3 bf16 MXU matmuls per conv
        # with f32 accumulation.  No per-tap [M,C] patch materialization.
        acc = jnp.zeros((M, C), jnp.float32)
        for kw in range(3):
            xs = xp_ref[:, :, kw:kw + W, :]                     # [N,H+2,W,C] bf16
            op = jnp.concatenate(
                [xs[:, kh:kh + H, :, :] for kh in range(3)], axis=-1
            ).reshape(M, 3 * C)                                 # [M, 3C] bf16
            acc = acc + jnp.dot(op, w_ref[kw],
                                preferred_element_type=jnp.float32)
        return acc

    def batchnorm(y, g_ref, b_ref):
        # training-mode batch statistics (biased var over N*H*W), one pass:
        # E[y], E[y^2] in f32, then folded per-channel affine y*scale + shift.
        m1 = jnp.mean(y, axis=0, keepdims=True)
        m2 = jnp.mean(y * y, axis=0, keepdims=True)
        var = m2 - m1 * m1
        scale = g_ref[...] * jax.lax.rsqrt(var + eps)
        shift = b_ref[...] - m1 * scale
        return y * scale + shift

    # stage 1: reflect-pad -> conv3x3 -> BN -> ReLU
    reflect_pad_into(x_ref[...].astype(jnp.bfloat16))
    y = conv3x3(w1_ref)
    y = batchnorm(y, g1_ref, b1_ref)
    y = jnp.maximum(y, 0.0)

    # stage 2: reflect-pad -> conv3x3 -> BN
    reflect_pad_into(y.reshape(N, H, W, C).astype(jnp.bfloat16))
    y = conv3x3(w2_ref)
    y = batchnorm(y, g2_ref, b2_ref)

    # residual connection, stored directly as [N,H,W,C]
    o_ref[...] = (x_ref[...] + y.reshape(N, H, W, C)).astype(o_ref.dtype)


# ----------------------------------------------------------------------------
# Wrappers
# ----------------------------------------------------------------------------
def resnet_block_nhwc(x_nhwc, params, *, eps=1e-5):
    """Main entry: NHWC in -> NHWC out, no layout transposes in the hot path."""
    N, H, W, C = x_nhwc.shape

    def row(v):  # (C,) -> (1, C) for clean in-kernel broadcast
        return v.reshape(1, -1).astype(jnp.float32)

    vmem = pl.BlockSpec(memory_space=pltpu.MemorySpace.VMEM)
    flops = 2 * (2 * N * H * W * (9 * C) * C)                    # two 3x3 convs
    bytes_accessed = (2 * N * H * W * C * 4                      # x in + out
                      + 2 * 9 * C * C * 2                        # bf16 tap sets
                      + 4 * C * 4)                               # gamma / beta
    kernel = functools.partial(_resnet_block_kernel, eps=eps)
    return pl.pallas_call(
        kernel,
        out_shape=jax.ShapeDtypeStruct((N, H, W, C), jnp.float32),
        in_specs=[vmem] * 7,
        out_specs=vmem,
        scratch_shapes=[pltpu.VMEM((N, H + 2, W + 2, C), jnp.bfloat16)],
        cost_estimate=pl.CostEstimate(flops=flops, transcendentals=2 * C,
                                      bytes_accessed=bytes_accessed),
    )(x_nhwc.astype(jnp.float32),
      params["w1_taps"], row(params["g1"]), row(params["b1"]),
      params["w2_taps"], row(params["g2"]), row(params["b2"]))


def resnet_block_forward(x_nchw, params):
    """NCHW convenience wrapper (adds 2 transposes; prefer resnet_block_nhwc)."""
    x = jnp.transpose(x_nchw, (0, 2, 3, 1))
    y = resnet_block_nhwc(x, params)
    return jnp.transpose(y, (0, 3, 1, 2))


# ----------------------------------------------------------------------------
# Parameter init (deterministic, synthetic).  bf16 MXU taps precomputed once.
# ----------------------------------------------------------------------------
def init_params(dim, key):
    k1, k2 = jax.random.split(key)
    scale = 1.0 / (3.0 * float(dim) ** 0.5)
    w1 = jax.random.normal(k1, (dim, dim, 3, 3), jnp.float32) * scale
    w2 = jax.random.normal(k2, (dim, dim, 3, 3), jnp.float32) * scale

    def taps(w):
        # [OC, IC, KH, KW] -> [KW, KH, IC, OC] -> [3, 3*IC, OC] (bf16):
        # per kw block, rows are kh-major then IC, matching the kernel's
        # channel-wise concat of the three kh-shifted views.
        return jnp.transpose(w, (3, 2, 1, 0)).reshape(3, 3 * dim, dim) \
                  .astype(jnp.bfloat16)

    return {
        "w1": w1, "w2": w2,                      # f32 OIHW (reference only)
        "w1_taps": taps(w1), "w2_taps": taps(w2),
        "g1": jnp.ones((dim,), jnp.float32), "b1": jnp.zeros((dim,), jnp.float32),
        "g2": jnp.ones((dim,), jnp.float32), "b2": jnp.zeros((dim,), jnp.float32),
    }


# ----------------------------------------------------------------------------
# Pure-JAX reference (for a correctness sanity check)
# ----------------------------------------------------------------------------
def resnet_block_ref(x_nchw, p, eps=1e-5):
    x = x_nchw.astype(jnp.float32)

    def conv(h, w):
        hp = jnp.pad(h, ((0, 0), (0, 0), (1, 1), (1, 1)), mode="reflect")
        return jax.lax.conv_general_dilated(
            hp, w, (1, 1), "VALID",
            dimension_numbers=("NCHW", "OIHW", "NCHW"),
            precision=jax.lax.Precision.HIGHEST)

    def bn(h, g, b):
        mean = jnp.mean(h, axis=(0, 2, 3), keepdims=True)
        var = jnp.mean((h - mean) ** 2, axis=(0, 2, 3), keepdims=True)
        return ((h - mean) * jax.lax.rsqrt(var + eps)
                * g.reshape(1, -1, 1, 1) + b.reshape(1, -1, 1, 1))

    y = conv(x, p["w1"]); y = bn(y, p["g1"], p["b1"]); y = jnp.maximum(y, 0.0)
    y = conv(y, p["w2"]); y = bn(y, p["g2"], p["b2"])
    return x + y


if __name__ == "__main__":
    dim, batch, hw = 128, 2, 16   # C=128 keeps every load/store 128-lane dense
    key = jax.random.PRNGKey(0)
    k_param, k_x = jax.random.split(key)

    params = init_params(dim, k_param)
    x_nhwc = jax.random.normal(k_x, (batch, hw, hw, dim), jnp.float32)

    fwd = jax.jit(resnet_block_nhwc)
    out = jax.block_until_ready(fwd(x_nhwc, params))

    assert out.shape == x_nhwc.shape, out.shape
    assert bool(jnp.all(jnp.isfinite(out)))

    # Correctness check vs. the NCHW pure-JAX reference (transposes only here).
    x_nchw = jnp.transpose(x_nhwc, (0, 3, 1, 2))
    ref_nhwc = jnp.transpose(resnet_block_ref(x_nchw, params), (0, 2, 3, 1))
    err = float(jnp.max(jnp.abs(out - ref_nhwc)))
    assert err < 1e-1, f"max abs error vs reference: {err}"

    print("KERNEL_OK")
</pallas_src>

<mosaic_0001>
module attributes {stable_mosaic.version = 11 : i64} {
  func.func @_resnet_block_kernel(%arg0: memref<2x16x16x128xf32, #tpu.memory_space<vmem>>, %arg1: memref<3x384x128xbf16, #tpu.memory_space<vmem>>, %arg2: memref<1x128xf32, #tpu.memory_space<vmem>>, %arg3: memref<1x128xf32, #tpu.memory_space<vmem>>, %arg4: memref<3x384x128xbf16, #tpu.memory_space<vmem>>, %arg5: memref<1x128xf32, #tpu.memory_space<vmem>>, %arg6: memref<1x128xf32, #tpu.memory_space<vmem>>, %arg7: memref<2x16x16x128xf32, #tpu.memory_space<vmem>>, %arg8: memref<2x18x18x128xbf16, #tpu.memory_space<vmem>>) attributes {dimension_semantics = [], scalar_prefetch = 0 : i64, scratch_operands = 1 : i64, tpu.core_type = #tpu.core_type<tc>} {
    %c0 = arith.constant 0 : index
    %c0_0 = arith.constant 0 : index
    %c0_1 = arith.constant 0 : index
    %c0_2 = arith.constant 0 : index
    %0 = vector.load %arg0[%c0, %c0_0, %c0_1, %c0_2] : memref<2x16x16x128xf32, #tpu.memory_space<vmem>>, vector<2x16x16x128xf32>
    %1 = arith.truncf %0 : vector<2x16x16x128xf32> to vector<2x16x16x128xbf16>
    %c0_3 = arith.constant 0 : index
    %c1 = arith.constant 1 : index
    %c1_4 = arith.constant 1 : index
    %c0_5 = arith.constant 0 : index
    %2 = vector.load %arg8[%c0_3, %c1, %c1_4, %c0_5] : memref<2x18x18x128xbf16, #tpu.memory_space<vmem>>, vector<2x16x16x128xbf16>
    tpu.vector_store %arg8[%c0_3, %c1, %c1_4, %c0_5], %1 {strides = array<i32>} : memref<2x18x18x128xbf16, #tpu.memory_space<vmem>>, vector<2x16x16x128xbf16>,
    %3 = vector.extract_strided_slice %1 {offsets = [0, 1, 0, 0], sizes = [2, 1, 16, 128], strides = [1, 1, 1, 1]} : vector<2x16x16x128xbf16> to vector<2x1x16x128xbf16>
    %c0_6 = arith.constant 0 : index
    %c0_7 = arith.constant 0 : index
    %c1_8 = arith.constant 1 : index
    %c0_9 = arith.constant 0 : index
    %4 = vector.load %arg8[%c0_6, %c0_7, %c1_8, %c0_9] : memref<2x18x18x128xbf16, #tpu.memory_space<vmem>>, vector<2x1x16x128xbf16>
    tpu.vector_store %arg8[%c0_6, %c0_7, %c1_8, %c0_9], %3 {strides = array<i32>} : memref<2x18x18x128xbf16, #tpu.memory_space<vmem>>, vector<2x1x16x128xbf16>,
    %5 = vector.extract_strided_slice %1 {offsets = [0, 14, 0, 0], sizes = [2, 1, 16, 128], strides = [1, 1, 1, 1]} : vector<2x16x16x128xbf16> to vector<2x1x16x128xbf16>
    %c0_10 = arith.constant 0 : index
    %c17 = arith.constant 17 : index
    %c1_11 = arith.constant 1 : index
    %c0_12 = arith.constant 0 : index
    %6 = vector.load %arg8[%c0_10, %c17, %c1_11, %c0_12] : memref<2x18x18x128xbf16, #tpu.memory_space<vmem>>, vector<2x1x16x128xbf16>
    tpu.vector_store %arg8[%c0_10, %c17, %c1_11, %c0_12], %5 {strides = array<i32>} : memref<2x18x18x128xbf16, #tpu.memory_space<vmem>>, vector<2x1x16x128xbf16>,
    %7 = vector.extract_strided_slice %1 {offsets = [0, 0, 1, 0], sizes = [2, 16, 1, 128], strides = [1, 1, 1, 1]} : vector<2x16x16x128xbf16> to vector<2x16x1x128xbf16>
    %c0_13 = arith.constant 0 : index
    %c1_14 = arith.constant 1 : index
    %c0_15 = arith.constant 0 : index
    %c0_16 = arith.constant 0 : index
    %8 = vector.load %arg8[%c0_13, %c1_14, %c0_15, %c0_16] : memref<2x18x18x128xbf16, #tpu.memory_space<vmem>>, vector<2x16x1x128xbf16>
    tpu.vector_store %arg8[%c0_13, %c1_14, %c0_15, %c0_16], %7 {strides = array<i32>} : memref<2x18x18x128xbf16, #tpu.memory_space<vmem>>, vector<2x16x1x128xbf16>,
    %9 = vector.extract_strided_slice %1 {offsets = [0, 0, 14, 0], sizes = [2, 16, 1, 128], strides = [1, 1, 1, 1]} : vector<2x16x16x128xbf16> to vector<2x16x1x128xbf16>
    %c0_17 = arith.constant 0 : index
    %c1_18 = arith.constant 1 : index
    %c17_19 = arith.constant 17 : index
    %c0_20 = arith.constant 0 : index
    %10 = vector.load %arg8[%c0_17, %c1_18, %c17_19, %c0_20] : memref<2x18x18x128xbf16, #tpu.memory_space<vmem>>, vector<2x16x1x128xbf16>
    tpu.vector_store %arg8[%c0_17, %c1_18, %c17_19, %c0_20], %9 {strides = array<i32>} : memref<2x18x18x128xbf16, #tpu.memory_space<vmem>>, vector<2x16x1x128xbf16>,
    %11 = vector.extract_strided_slice %1 {offsets = [0, 1, 1, 0], sizes = [2, 1, 1, 128], strides = [1, 1, 1, 1]} : vector<2x16x16x128xbf16> to vector<2x1x1x128xbf16>
    %c0_21 = arith.constant 0 : index
    %c0_22 = arith.constant 0 : index
    %c0_23 = arith.constant 0 : index
    %c0_24 = arith.constant 0 : index
    %12 = vector.load %arg8[%c0_21, %c0_22, %c0_23, %c0_24] : memref<2x18x18x128xbf16, #tpu.memory_space<vmem>>, vector<2x1x1x128xbf16>
    tpu.vector_store %arg8[%c0_21, %c0_22, %c0_23, %c0_24], %11 {strides = array<i32>} : memref<2x18x18x128xbf16, #tpu.memory_space<vmem>>, vector<2x1x1x128xbf16>,
    %13 = vector.extract_strided_slice %1 {offsets = [0, 1, 14, 0], sizes = [2, 1, 1, 128], strides = [1, 1, 1, 1]} : vector<2x16x16x128xbf16> to vector<2x1x1x128xbf16>
    %c0_25 = arith.constant 0 : index
    %c0_26 = arith.constant 0 : index
    %c17_27 = arith.constant 17 : index
    %c0_28 = arith.constant 0 : index
    %14 = vector.load %arg8[%c0_25, %c0_26, %c17_27, %c0_28] : memref<2x18x18x128xbf16, #tpu.memory_space<vmem>>, vector<2x1x1x128xbf16>
    tpu.vector_store %arg8[%c0_25, %c0_26, %c17_27, %c0_28], %13 {strides = array<i32>} : memref<2x18x18x128xbf16, #tpu.memory_space<vmem>>, vector<2x1x1x128xbf16>,
    %15 = vector.extract_strided_slice %1 {offsets = [0, 14, 1, 0], sizes = [2, 1, 1, 128], strides = [1, 1, 1, 1]} : vector<2x16x16x128xbf16> to vector<2x1x1x128xbf16>
    %c0_29 = arith.constant 0 : index
    %c17_30 = arith.constant 17 : index
    %c0_31 = arith.constant 0 : index
    %c0_32 = arith.constant 0 : index
    %16 = vector.load %arg8[%c0_29, %c17_30, %c0_31, %c0_32] : memref<2x18x18x128xbf16, #tpu.memory_space<vmem>>, vector<2x1x1x128xbf16>
    tpu.vector_store %arg8[%c0_29, %c17_30, %c0_31, %c0_32], %15 {strides = array<i32>} : memref<2x18x18x128xbf16, #tpu.memory_space<vmem>>, vector<2x1x1x128xbf16>,
    %17 = vector.extract_strided_slice %1 {offsets = [0, 14, 14, 0], sizes = [2, 1, 1, 128], strides = [1, 1, 1, 1]} : vector<2x16x16x128xbf16> to vector<2x1x1x128xbf16>
    %c0_33 = arith.constant 0 : index
    %c17_34 = arith.constant 17 : index
    %c17_35 = arith.constant 17 : index
    %c0_36 = arith.constant 0 : index
    %18 = vector.load %arg8[%c0_33, %c17_34, %c17_35, %c0_36] : memref<2x18x18x128xbf16, #tpu.memory_space<vmem>>, vector<2x1x1x128xbf16>
    tpu.vector_store %arg8[%c0_33, %c17_34, %c17_35, %c0_36], %17 {strides = array<i32>} : memref<2x18x18x128xbf16, #tpu.memory_space<vmem>>, vector<2x1x1x128xbf16>,
    %cst = arith.constant 0.000000e+00 : f32
    %19 = vector.broadcast %cst : f32 to vector<512x128xf32>
    %c0_37 = arith.constant 0 : index
    %c0_38 = arith.constant 0 : index
    %c0_39 = arith.constant 0 : index
    %c0_40 = arith.constant 0 : index
    %20 = vector.load %arg8[%c0_37, %c0_38, %c0_39, %c0_40] : memref<2x18x18x128xbf16, #tpu.memory_space<vmem>>, vector<2x18x16x128xbf16>
    %21 = vector.extract_strided_slice %20 {offsets = [0, 0, 0, 0], sizes = [2, 16, 16, 128], strides = [1, 1, 1, 1]} : vector<2x18x16x128xbf16> to vector<2x16x16x128xbf16>
    %22 = vector.extract_strided_slice %20 {offsets = [0, 1, 0, 0], sizes = [2, 16, 16, 128], strides = [1, 1, 1, 1]} : vector<2x18x16x128xbf16> to vector<2x16x16x128xbf16>
    %23 = vector.extract_strided_slice %20 {offsets = [0, 2, 0, 0], sizes = [2, 16, 16, 128], strides = [1, 1, 1, 1]} : vector<2x18x16x128xbf16> to vector<2x16x16x128xbf16>
    %24 = tpu.concatenate %21, %22, %23 in 3 : vector<2x16x16x128xbf16>, vector<2x16x16x128xbf16>, vector<2x16x16x128xbf16> -> vector<2x16x16x384xbf16>
    %25 = vector.shape_cast %24 : vector<2x16x16x384xbf16> to vector<512x384xbf16>
    %c0_41 = arith.constant 0 : index
    %c0_42 = arith.constant 0 : index
    %c0_43 = arith.constant 0 : index
    %26 = vector.load %arg1[%c0_41, %c0_42, %c0_43] : memref<3x384x128xbf16, #tpu.memory_space<vmem>>, vector<1x384x128xbf16>
    %27 = vector.shape_cast %26 : vector<1x384x128xbf16> to vector<384x128xbf16>
    %cst_44 = arith.constant dense<0.000000e+00> : vector<512x128xf32>
    %28 = tpu.matmul %25, %27, %cst_44 {dimension_numbers = #tpu.dot_dimension_numbers<[1], [0], [0], [1], [0, 0, 1, 1], [], []>} : vector<512x384xbf16>, vector<384x128xbf16>, vector<512x128xf32> -> vector<512x128xf32>
    %29 = arith.addf %19, %28 : vector<512x128xf32>
    %c0_45 = arith.constant 0 : index
    %c0_46 = arith.constant 0 : index
    %c1_47 = arith.constant 1 : index
    %c0_48 = arith.constant 0 : index
    %30 = vector.load %arg8[%c0_45, %c0_46, %c1_47, %c0_48] : memref<2x18x18x128xbf16, #tpu.memory_space<vmem>>, vector<2x18x16x128xbf16>
    %31 = vector.extract_strided_slice %30 {offsets = [0, 0, 0, 0], sizes = [2, 16, 16, 128], strides = [1, 1, 1, 1]} : vector<2x18x16x128xbf16> to vector<2x16x16x128xbf16>
    %32 = vector.extract_strided_slice %30 {offsets = [0, 1, 0, 0], sizes = [2, 16, 16, 128], strides = [1, 1, 1, 1]} : vector<2x18x16x128xbf16> to vector<2x16x16x128xbf16>
    %33 = vector.extract_strided_slice %30 {offsets = [0, 2, 0, 0], sizes = [2, 16, 16, 128], strides = [1, 1, 1, 1]} : vector<2x18x16x128xbf16> to vector<2x16x16x128xbf16>
    %34 = tpu.concatenate %31, %32, %33 in 3 : vector<2x16x16x128xbf16>, vector<2x16x16x128xbf16>, vector<2x16x16x128xbf16> -> vector<2x16x16x384xbf16>
    %35 = vector.shape_cast %34 : vector<2x16x16x384xbf16> to vector<512x384xbf16>
    %c1_49 = arith.constant 1 : index
    %c0_50 = arith.constant 0 : index
    %c0_51 = arith.constant 0 : index
    %36 = vector.load %arg1[%c1_49, %c0_50, %c0_51] : memref<3x384x128xbf16, #tpu.memory_space<vmem>>, vector<1x384x128xbf16>
    %37 = vector.shape_cast %36 : vector<1x384x128xbf16> to vector<384x128xbf16>
    %cst_52 = arith.constant dense<0.000000e+00> : vector<512x128xf32>
    %38 = tpu.matmul %35, %37, %cst_52 {dimension_numbers = #tpu.dot_dimension_numbers<[1], [0], [0], [1], [0, 0, 1, 1], [], []>} : vector<512x384xbf16>, vector<384x128xbf16>, vector<512x128xf32> -> vector<512x128xf32>
    %39 = arith.addf %29, %38 : vector<512x128xf32>
    %c0_53 = arith.constant 0 : index
    %c0_54 = arith.constant 0 : index
    %c2 = arith.constant 2 : index
    %c0_55 = arith.constant 0 : index
    %40 = vector.load %arg8[%c0_53, %c0_54, %c2, %c0_55] : memref<2x18x18x128xbf16, #tpu.memory_space<vmem>>, vector<2x18x16x128xbf16>
    %41 = vector.extract_strided_slice %40 {offsets = [0, 0, 0, 0], sizes = [2, 16, 16, 128], strides = [1, 1, 1, 1]} : vector<2x18x16x128xbf16> to vector<2x16x16x128xbf16>
    %42 = vector.extract_strided_slice %40 {offsets = [0, 1, 0, 0], sizes = [2, 16, 16, 128], strides = [1, 1, 1, 1]} : vector<2x18x16x128xbf16> to vector<2x16x16x128xbf16>
    %43 = vector.extract_strided_slice %40 {offsets = [0, 2, 0, 0], sizes = [2, 16, 16, 128], strides = [1, 1, 1, 1]} : vector<2x18x16x128xbf16> to vector<2x16x16x128xbf16>
    %44 = tpu.concatenate %41, %42, %43 in 3 : vector<2x16x16x128xbf16>, vector<2x16x16x128xbf16>, vector<2x16x16x128xbf16> -> vector<2x16x16x384xbf16>
    %45 = vector.shape_cast %44 : vector<2x16x16x384xbf16> to vector<512x384xbf16>
    %c2_56 = arith.constant 2 : index
    %c0_57 = arith.constant 0 : index
    %c0_58 = arith.constant 0 : index
    %46 = vector.load %arg1[%c2_56, %c0_57, %c0_58] : memref<3x384x128xbf16, #tpu.memory_space<vmem>>, vector<1x384x128xbf16>
    %47 = vector.shape_cast %46 : vector<1x384x128xbf16> to vector<384x128xbf16>
    %cst_59 = arith.constant dense<0.000000e+00> : vector<512x128xf32>
    %48 = tpu.matmul %45, %47, %cst_59 {dimension_numbers = #tpu.dot_dimension_numbers<[1], [0], [0], [1], [0, 0, 1, 1], [], []>} : vector<512x384xbf16>, vector<384x128xbf16>, vector<512x128xf32> -> vector<512x128xf32>
    %49 = arith.addf %39, %48 : vector<512x128xf32>
    %cst_60 = arith.constant dense<0.000000e+00> : vector<128xf32>
    %50 = vector.multi_reduction <add>, %49, %cst_60 [0] : vector<512x128xf32> to vector<128xf32>
    %51 = vector.shape_cast %50 : vector<128xf32> to vector<1x128xf32>
    %cst_61 = arith.constant 5.120000e+02 : f32
    %52 = vector.broadcast %cst_61 : f32 to vector<1x128xf32>
    %53 = arith.divf %51, %52 : vector<1x128xf32>
    %54 = arith.mulf %49, %49 : vector<512x128xf32>
    %cst_62 = arith.constant dense<0.000000e+00> : vector<128xf32>
    %55 = vector.multi_reduction <add>, %54, %cst_62 [0] : vector<512x128xf32> to vector<128xf32>
    %56 = vector.shape_cast %55 : vector<128xf32> to vector<1x128xf32>
    %cst_63 = arith.constant 5.120000e+02 : f32
    %57 = vector.broadcast %cst_63 : f32 to vector<1x128xf32>
    %58 = arith.divf %56, %57 : vector<1x128xf32>
    %59 = arith.mulf %53, %53 : vector<1x128xf32>
    %60 = arith.subf %58, %59 : vector<1x128xf32>
    %c0_64 = arith.constant 0 : index
    %c0_65 = arith.constant 0 : index
    %61 = vector.load %arg2[%c0_64, %c0_65] : memref<1x128xf32, #tpu.memory_space<vmem>>, vector<1x128xf32>
    %cst_66 = arith.constant 9.99999974E-6 : f32
    %62 = vector.broadcast %cst_66 : f32 to vector<1x128xf32>
    %63 = arith.addf %60, %62 : vector<1x128xf32>
    %64 = math.rsqrt %63 : vector<1x128xf32>
    %65 = arith.mulf %61, %64 : vector<1x128xf32>
    %c0_67 = arith.constant 0 : index
    %c0_68 = arith.constant 0 : index
    %66 = vector.load %arg3[%c0_67, %c0_68] : memref<1x128xf32, #tpu.memory_space<vmem>>, vector<1x128xf32>
    %67 = arith.mulf %53, %65 : vector<1x128xf32>
    %68 = arith.subf %66, %67 : vector<1x128xf32>
    %69 = vector.broadcast %65 : vector<1x128xf32> to vector<512x128xf32>
    %70 = arith.mulf %49, %69 : vector<512x128xf32>
    %71 = vector.broadcast %68 : vector<1x128xf32> to vector<512x128xf32>
    %72 = arith.addf %70, %71 : vector<512x128xf32>
    %cst_69 = arith.constant 0.000000e+00 : f32
    %73 = vector.broadcast %cst_69 : f32 to vector<512x128xf32>
    %74 = arith.maximumf %72, %73 : vector<512x128xf32>
    %75 = vector.shape_cast %74 : vector<512x128xf32> to vector<2x16x16x128xf32>
    %76 = arith.truncf %75 : vector<2x16x16x128xf32> to vector<2x16x16x128xbf16>
    %c0_70 = arith.constant 0 : index
    %c1_71 = arith.constant 1 : index
    %c1_72 = arith.constant 1 : index
    %c0_73 = arith.constant 0 : index
    %77 = vector.load %arg8[%c0_70, %c1_71, %c1_72, %c0_73] : memref<2x18x18x128xbf16, #tpu.memory_space<vmem>>, vector<2x16x16x128xbf16>
    tpu.vector_store %arg8[%c0_70, %c1_71, %c1_72, %c0_73], %76 {strides = array<i32>} : memref<2x18x18x128xbf16, #tpu.memory_space<vmem>>, vector<2x16x16x128xbf16>,
    %78 = vector.extract_strided_slice %76 {offsets = [0, 1, 0, 0], sizes = [2, 1, 16, 128], strides = [1, 1, 1, 1]} : vector<2x16x16x128xbf16> to vector<2x1x16x128xbf16>
    %c0_74 = arith.constant 0 : index
    %c0_75 = arith.constant 0 : index
    %c1_76 = arith.constant 1 : index
    %c0_77 = arith.constant 0 : index
    %79 = vector.load %arg8[%c0_74, %c0_75, %c1_76, %c0_77] : memref<2x18x18x128xbf16, #tpu.memory_space<vmem>>, vector<2x1x16x128xbf16>
    tpu.vector_store %arg8[%c0_74, %c0_75, %c1_76, %c0_77], %78 {strides = array<i32>} : memref<2x18x18x128xbf16, #tpu.memory_space<vmem>>, vector<2x1x16x128xbf16>,
    %80 = vector.extract_strided_slice %76 {offsets = [0, 14, 0, 0], sizes = [2, 1, 16, 128], strides = [1, 1, 1, 1]} : vector<2x16x16x128xbf16> to vector<2x1x16x128xbf16>
    %c0_78 = arith.constant 0 : index
    %c17_79 = arith.constant 17 : index
    %c1_80 = arith.constant 1 : index
    %c0_81 = arith.constant 0 : index
    %81 = vector.load %arg8[%c0_78, %c17_79, %c1_80, %c0_81] : memref<2x18x18x128xbf16, #tpu.memory_space<vmem>>, vector<2x1x16x128xbf16>
    tpu.vector_store %arg8[%c0_78, %c17_79, %c1_80, %c0_81], %80 {strides = array<i32>} : memref<2x18x18x128xbf16, #tpu.memory_space<vmem>>, vector<2x1x16x128xbf16>,
    %82 = vector.extract_strided_slice %76 {offsets = [0, 0, 1, 0], sizes = [2, 16, 1, 128], strides = [1, 1, 1, 1]} : vector<2x16x16x128xbf16> to vector<2x16x1x128xbf16>
    %c0_82 = arith.constant 0 : index
    %c1_83 = arith.constant 1 : index
    %c0_84 = arith.constant 0 : index
    %c0_85 = arith.constant 0 : index
    %83 = vector.load %arg8[%c0_82, %c1_83, %c0_84, %c0_85] : memref<2x18x18x128xbf16, #tpu.memory_space<vmem>>, vector<2x16x1x128xbf16>
    tpu.vector_store %arg8[%c0_82, %c1_83, %c0_84, %c0_85], %82 {strides = array<i32>} : memref<2x18x18x128xbf16, #tpu.memory_space<vmem>>, vector<2x16x1x128xbf16>,
    %84 = vector.extract_strided_slice %76 {offsets = [0, 0, 14, 0], sizes = [2, 16, 1, 128], strides = [1, 1, 1, 1]} : vector<2x16x16x128xbf16> to vector<2x16x1x128xbf16>
    %c0_86 = arith.constant 0 : index
    %c1_87 = arith.constant 1 : index
    %c17_88 = arith.constant 17 : index
    %c0_89 = arith.constant 0 : index
    %85 = vector.load %arg8[%c0_86, %c1_87, %c17_88, %c0_89] : memref<2x18x18x128xbf16, #tpu.memory_space<vmem>>, vector<2x16x1x128xbf16>
    tpu.vector_store %arg8[%c0_86, %c1_87, %c17_88, %c0_89], %84 {strides = array<i32>} : memref<2x18x18x128xbf16, #tpu.memory_space<vmem>>, vector<2x16x1x128xbf16>,
    %86 = vector.extract_strided_slice %76 {offsets = [0, 1, 1, 0], sizes = [2, 1, 1, 128], strides = [1, 1, 1, 1]} : vector<2x16x16x128xbf16> to vector<2x1x1x128xbf16>
    %c0_90 = arith.constant 0 : index
    %c0_91 = arith.constant 0 : index
    %c0_92 = arith.constant 0 : index
    %c0_93 = arith.constant 0 : index
    %87 = vector.load %arg8[%c0_90, %c0_91, %c0_92, %c0_93] : memref<2x18x18x128xbf16, #tpu.memory_space<vmem>>, vector<2x1x1x128xbf16>
    tpu.vector_store %arg8[%c0_90, %c0_91, %c0_92, %c0_93], %86 {strides = array<i32>} : memref<2x18x18x128xbf16, #tpu.memory_space<vmem>>, vector<2x1x1x128xbf16>,
    %88 = vector.extract_strided_slice %76 {offsets = [0, 1, 14, 0], sizes = [2, 1, 1, 128], strides = [1, 1, 1, 1]} : vector<2x16x16x128xbf16> to vector<2x1x1x128xbf16>
    %c0_94 = arith.constant 0 : index
    %c0_95 = arith.constant 0 : index
    %c17_96 = arith.constant 17 : index
    %c0_97 = arith.constant 0 : index
    %89 = vector.load %arg8[%c0_94, %c0_95, %c17_96, %c0_97] : memref<2x18x18x128xbf16, #tpu.memory_space<vmem>>, vector<2x1x1x128xbf16>
    tpu.vector_store %arg8[%c0_94, %c0_95, %c17_96, %c0_97], %88 {strides = array<i32>} : memref<2x18x18x128xbf16, #tpu.memory_space<vmem>>, vector<2x1x1x128xbf16>,
    %90 = vector.extract_strided_slice %76 {offsets = [0, 14, 1, 0], sizes = [2, 1, 1, 128], strides = [1, 1, 1, 1]} : vector<2x16x16x128xbf16> to vector<2x1x1x128xbf16>
    %c0_98 = arith.constant 0 : index
    %c17_99 = arith.constant 17 : index
    %c0_100 = arith.constant 0 : index
    %c0_101 = arith.constant 0 : index
    %91 = vector.load %arg8[%c0_98, %c17_99, %c0_100, %c0_101] : memref<2x18x18x128xbf16, #tpu.memory_space<vmem>>, vector<2x1x1x128xbf16>
    tpu.vector_store %arg8[%c0_98, %c17_99, %c0_100, %c0_101], %90 {strides = array<i32>} : memref<2x18x18x128xbf16, #tpu.memory_space<vmem>>, vector<2x1x1x128xbf16>,
    %92 = vector.extract_strided_slice %76 {offsets = [0, 14, 14, 0], sizes = [2, 1, 1, 128], strides = [1, 1, 1, 1]} : vector<2x16x16x128xbf16> to vector<2x1x1x128xbf16>
    %c0_102 = arith.constant 0 : index
    %c17_103 = arith.constant 17 : index
    %c17_104 = arith.constant 17 : index
    %c0_105 = arith.constant 0 : index
    %93 = vector.load %arg8[%c0_102, %c17_103, %c17_104, %c0_105] : memref<2x18x18x128xbf16, #tpu.memory_space<vmem>>, vector<2x1x1x128xbf16>
    tpu.vector_store %arg8[%c0_102, %c17_103, %c17_104, %c0_105], %92 {strides = array<i32>} : memref<2x18x18x128xbf16, #tpu.memory_space<vmem>>, vector<2x1x1x128xbf16>,
    %cst_106 = arith.constant 0.000000e+00 : f32
    %94 = vector.broadcast %cst_106 : f32 to vector<512x128xf32>
    %c0_107 = arith.constant 0 : index
    %c0_108 = arith.constant 0 : index
    %c0_109 = arith.constant 0 : index
    %c0_110 = arith.constant 0 : index
    %95 = vector.load %arg8[%c0_107, %c0_108, %c0_109, %c0_110] : memref<2x18x18x128xbf16, #tpu.memory_space<vmem>>, vector<2x18x16x128xbf16>
    %96 = vector.extract_strided_slice %95 {offsets = [0, 0, 0, 0], sizes = [2, 16, 16, 128], strides = [1, 1, 1, 1]} : vector<2x18x16x128xbf16> to vector<2x16x16x128xbf16>
    %97 = vector.extract_strided_slice %95 {offsets = [0, 1, 0, 0], sizes = [2, 16, 16, 128], strides = [1, 1, 1, 1]} : vector<2x18x16x128xbf16> to vector<2x16x16x128xbf16>
    %98 = vector.extract_strided_slice %95 {offsets = [0, 2, 0, 0], sizes = [2, 16, 16, 128], strides = [1, 1, 1, 1]} : vector<2x18x16x128xbf16> to vector<2x16x16x128xbf16>
    %99 = tpu.concatenate %96, %97, %98 in 3 : vector<2x16x16x128xbf16>, vector<2x16x16x128xbf16>, vector<2x16x16x128xbf16> -> vector<2x16x16x384xbf16>
    %100 = vector.shape_cast %99 : vector<2x16x16x384xbf16> to vector<512x384xbf16>
    %c0_111 = arith.constant 0 : index
    %c0_112 = arith.constant 0 : index
    %c0_113 = arith.constant 0 : index
    %101 = vector.load %arg4[%c0_111, %c0_112, %c0_113] : memref<3x384x128xbf16, #tpu.memory_space<vmem>>, vector<1x384x128xbf16>
    %102 = vector.shape_cast %101 : vector<1x384x128xbf16> to vector<384x128xbf16>
    %cst_114 = arith.constant dense<0.000000e+00> : vector<512x128xf32>
    %103 = tpu.matmul %100, %102, %cst_114 {dimension_numbers = #tpu.dot_dimension_numbers<[1], [0], [0], [1], [0, 0, 1, 1], [], []>} : vector<512x384xbf16>, vector<384x128xbf16>, vector<512x128xf32> -> vector<512x128xf32>
    %104 = arith.addf %94, %103 : vector<512x128xf32>
    %c0_115 = arith.constant 0 : index
    %c0_116 = arith.constant 0 : index
    %c1_117 = arith.constant 1 : index
    %c0_118 = arith.constant 0 : index
    %105 = vector.load %arg8[%c0_115, %c0_116, %c1_117, %c0_118] : memref<2x18x18x128xbf16, #tpu.memory_space<vmem>>, vector<2x18x16x128xbf16>
    %106 = vector.extract_strided_slice %105 {offsets = [0, 0, 0, 0], sizes = [2, 16, 16, 128], strides = [1, 1, 1, 1]} : vector<2x18x16x128xbf16> to vector<2x16x16x128xbf16>
    %107 = vector.extract_strided_slice %105 {offsets = [0, 1, 0, 0], sizes = [2, 16, 16, 128], strides = [1, 1, 1, 1]} : vector<2x18x16x128xbf16> to vector<2x16x16x128xbf16>
    %108 = vector.extract_strided_slice %105 {offsets = [0, 2, 0, 0], sizes = [2, 16, 16, 128], strides = [1, 1, 1, 1]} : vector<2x18x16x128xbf16> to vector<2x16x16x128xbf16>
    %109 = tpu.concatenate %106, %107, %108 in 3 : vector<2x16x16x128xbf16>, vector<2x16x16x128xbf16>, vector<2x16x16x128xbf16> -> vector<2x16x16x384xbf16>
    %110 = vector.shape_cast %109 : vector<2x16x16x384xbf16> to vector<512x384xbf16>
    %c1_119 = arith.constant 1 : index
    %c0_120 = arith.constant 0 : index
    %c0_121 = arith.constant 0 : index
    %111 = vector.load %arg4[%c1_119, %c0_120, %c0_121] : memref<3x384x128xbf16, #tpu.memory_space<vmem>>, vector<1x384x128xbf16>
    %112 = vector.shape_cast %111 : vector<1x384x128xbf16> to vector<384x128xbf16>
    %cst_122 = arith.constant dense<0.000000e+00> : vector<512x128xf32>
    %113 = tpu.matmul %110, %112, %cst_122 {dimension_numbers = #tpu.dot_dimension_numbers<[1], [0], [0], [1], [0, 0, 1, 1], [], []>} : vector<512x384xbf16>, vector<384x128xbf16>, vector<512x128xf32> -> vector<512x128xf32>
    %114 = arith.addf %104, %113 : vector<512x128xf32>
    %c0_123 = arith.constant 0 : index
    %c0_124 = arith.constant 0 : index
    %c2_125 = arith.constant 2 : index
    %c0_126 = arith.constant 0 : index
    %115 = vector.load %arg8[%c0_123, %c0_124, %c2_125, %c0_126] : memref<2x18x18x128xbf16, #tpu.memory_space<vmem>>, vector<2x18x16x128xbf16>
    %116 = vector.extract_strided_slice %115 {offsets = [0, 0, 0, 0], sizes = [2, 16, 16, 128], strides = [1, 1, 1, 1]} : vector<2x18x16x128xbf16> to vector<2x16x16x128xbf16>
    %117 = vector.extract_strided_slice %115 {offsets = [0, 1, 0, 0], sizes = [2, 16, 16, 128], strides = [1, 1, 1, 1]} : vector<2x18x16x128xbf16> to vector<2x16x16x128xbf16>
    %118 = vector.extract_strided_slice %115 {offsets = [0, 2, 0, 0], sizes = [2, 16, 16, 128], strides = [1, 1, 1, 1]} : vector<2x18x16x128xbf16> to vector<2x16x16x128xbf16>
    %119 = tpu.concatenate %116, %117, %118 in 3 : vector<2x16x16x128xbf16>, vector<2x16x16x128xbf16>, vector<2x16x16x128xbf16> -> vector<2x16x16x384xbf16>
    %120 = vector.shape_cast %119 : vector<2x16x16x384xbf16> to vector<512x384xbf16>
    %c2_127 = arith.constant 2 : index
    %c0_128 = arith.constant 0 : index
    %c0_129 = arith.constant 0 : index
    %121 = vector.load %arg4[%c2_127, %c0_128, %c0_129] : memref<3x384x128xbf16, #tpu.memory_space<vmem>>, vector<1x384x128xbf16>
    %122 = vector.shape_cast %121 : vector<1x384x128xbf16> to vector<384x128xbf16>
    %cst_130 = arith.constant dense<0.000000e+00> : vector<512x128xf32>
    %123 = tpu.matmul %120, %122, %cst_130 {dimension_numbers = #tpu.dot_dimension_numbers<[1], [0], [0], [1], [0, 0, 1, 1], [], []>} : vector<512x384xbf16>, vector<384x128xbf16>, vector<512x128xf32> -> vector<512x128xf32>
    %124 = arith.addf %114, %123 : vector<512x128xf32>
    %cst_131 = arith.constant dense<0.000000e+00> : vector<128xf32>
    %125 = vector.multi_reduction <add>, %124, %cst_131 [0] : vector<512x128xf32> to vector<128xf32>
    %126 = vector.shape_cast %125 : vector<128xf32> to vector<1x128xf32>
    %cst_132 = arith.constant 5.120000e+02 : f32
    %127 = vector.broadcast %cst_132 : f32 to vector<1x128xf32>
    %128 = arith.divf %126, %127 : vector<1x128xf32>
    %129 = arith.mulf %124, %124 : vector<512x128xf32>
    %cst_133 = arith.constant dense<0.000000e+00> : vector<128xf32>
    %130 = vector.multi_reduction <add>, %129, %cst_133 [0] : vector<512x128xf32> to vector<128xf32>
    %131 = vector.shape_cast %130 : vector<128xf32> to vector<1x128xf32>
    %cst_134 = arith.constant 5.120000e+02 : f32
    %132 = vector.broadcast %cst_134 : f32 to vector<1x128xf32>
    %133 = arith.divf %131, %132 : vector<1x128xf32>
    %134 = arith.mulf %128, %128 : vector<1x128xf32>
    %135 = arith.subf %133, %134 : vector<1x128xf32>
    %c0_135 = arith.constant 0 : index
    %c0_136 = arith.constant 0 : index
    %136 = vector.load %arg5[%c0_135, %c0_136] : memref<1x128xf32, #tpu.memory_space<vmem>>, vector<1x128xf32>
    %cst_137 = arith.constant 9.99999974E-6 : f32
    %137 = vector.broadcast %cst_137 : f32 to vector<1x128xf32>
    %138 = arith.addf %135, %137 : vector<1x128xf32>
    %139 = math.rsqrt %138 : vector<1x128xf32>
    %140 = arith.mulf %136, %139 : vector<1x128xf32>
    %c0_138 = arith.constant 0 : index
    %c0_139 = arith.constant 0 : index
    %141 = vector.load %arg6[%c0_138, %c0_139] : memref<1x128xf32, #tpu.memory_space<vmem>>, vector<1x128xf32>
    %142 = arith.mulf %128, %140 : vector<1x128xf32>
    %143 = arith.subf %141, %142 : vector<1x128xf32>
    %144 = vector.broadcast %140 : vector<1x128xf32> to vector<512x128xf32>
    %145 = arith.mulf %124, %144 : vector<512x128xf32>
    %146 = vector.broadcast %143 : vector<1x128xf32> to vector<512x128xf32>
    %147 = arith.addf %145, %146 : vector<512x128xf32>
    %c0_140 = arith.constant 0 : index
    %c0_141 = arith.constant 0 : index
    %c0_142 = arith.constant 0 : index
    %c0_143 = arith.constant 0 : index
    %148 = vector.load %arg0[%c0_140, %c0_141, %c0_142, %c0_143] : memref<2x16x16x128xf32, #tpu.memory_space<vmem>>, vector<2x16x16x128xf32>
    %149 = vector.shape_cast %147 : vector<512x128xf32> to vector<2x16x16x128xf32>
    %150 = arith.addf %148, %149 : vector<2x16x16x128xf32>
    %c0_144 = arith.constant 0 : index
    %c0_145 = arith.constant 0 : index
    %c0_146 = arith.constant 0 : index
    %c0_147 = arith.constant 0 : index
    %151 = vector.load %arg7[%c0_144, %c0_145, %c0_146, %c0_147] : memref<2x16x16x128xf32, #tpu.memory_space<vmem>>, vector<2x16x16x128xf32>
    tpu.vector_store %arg7[%c0_144, %c0_145, %c0_146, %c0_147], %150 {strides = array<i32>} : memref<2x16x16x128xf32, #tpu.memory_space<vmem>>, vector<2x16x16x128xf32>,
    return
  }
}

</mosaic_0001>

<llo_original>
// kernel: resnet_block_nhwc.1
$region0: #{resnet_block_nhwc.1}
  #allocation0 [shape = 'u32[]', space=smem, size = 0x4, offset = 0x4, fixed_abs, tag = 'smem constant byte address 0x4 - core index']
  #allocation1 [shape = 'u32[144,128]{1,0:T(1,128)}', space=vmem, size = 0x12000, scoped, tag = 'internal scratch']
  #allocation2 [shape = 'bf16[2,18,18,128]{3,2,1,0:T(8,128)(2,1)}', space=vmem, size = 0x36000, scoped, tag = 'scratch operand']
  %s0 = inlined_call_operand.hbm [shape: f32[2,16,16,128], index: 0, kind: input, shape index: {}]
  %s1 = inlined_call_operand.hbm [shape: bf16[3,384,128], index: 1, kind: input, shape index: {}]
  %s2 = inlined_call_operand.vmem [shape: f32[1,128], index: 2, kind: input, shape index: {}]
  %s3 = inlined_call_operand.vmem [shape: f32[1,128], index: 3, kind: input, shape index: {}]
  %s4 = inlined_call_operand.hbm [shape: bf16[3,384,128], index: 4, kind: input, shape index: {}]
  %s5 = inlined_call_operand.vmem [shape: f32[1,128], index: 5, kind: input, shape index: {}]
  %s6 = inlined_call_operand.vmem [shape: f32[1,128], index: 6, kind: input, shape index: {}]
  %s7 = inlined_call_operand.hbm [shape: f32[2,16,16,128], index: 7, kind: output, shape index: {}]
  %s8 = sld [smem:[#allocation0]]
  $region50: #{resnet_block_nhwc.1} parent=0
    _
  %s10 = ssub.s32 1, %s8
  %s11 = scalar_select 0, %s10, %s8
  $region1: #{resnet_block_nhwc.1} parent=0
    #allocation3 [shape = 'u8[262144]{0}', space=vmem, size = 0x40000, scoped, tag = 'input window, operand 0, single buffered']
    #allocation4 [shape = 's32[1]{0}', space=sflag, size = 0x4, scoped, tag = 'scoped memory for resnet_block_nhwc.1']
    #allocation5 [shape = 's32[1]{0}', space=sflag, size = 0x4, scoped, tag = 'scoped memory for resnet_block_nhwc.1']
    #allocation6 [shape = 'u8[294912]{0}', space=vmem, size = 0x48000, scoped, tag = 'input window, operand 1, single buffered']
    #allocation7 [shape = 's32[1]{0}', space=sflag, size = 0x4, scoped, tag = 'scoped memory for resnet_block_nhwc.1']
    #allocation8 [shape = 'u8[294912]{0}', space=vmem, size = 0x48000, scoped, tag = 'input window, operand 4, single buffered']
    #allocation9 [shape = 'u8[262144]{0}', space=vmem, size = 0x40000, scoped, tag = 'output window, operand 0, single buffered']
    %12 = vsyncpa [#allocation4], 0
    %13 = vsyncpa [#allocation7], 0
    %14 = vsyncpa [#allocation5], 0
    // Predicated region
    $region2: #{resnet_block_nhwc.1} parent=1 // pred_check
      _
    $region3: #{resnet_block_nhwc.1} parent=1 // pred_check_branch
      %16 = sbr.rel (0) target = $region5
    $region4: #{resnet_block_nhwc.1} parent=1 // pred_region
      %s18 = ssub.s32 8192, 8192
      %19 = vsyncadd [#allocation4], %s18
      %s20 = sshll.u32 [#allocation3], 4
      %s21 = int_to_ptr.vmem [resolvable:$true] %s20
      %26 = dma.hbm_to_vmem [thread:$0]  %s0, 8192, %s21, [#allocation4], 128, 128, 8
    $region5: #{resnet_block_nhwc.1} parent=1 // pred_fallthru
      _
    // Predicated region
    $region6: #{resnet_block_nhwc.1} parent=1 // pred_check
      _
    $region7: #{resnet_block_nhwc.1} parent=1 // pred_check_branch
      %28 = sbr.rel (0) target = $region9
    $region8: #{resnet_block_nhwc.1} parent=1 // pred_region
      %s30 = ssub.s32 9216, 9216
      %31 = vsyncadd [#allocation7], %s30
      %s32 = sshll.u32 [#allocation6], 4
      %s33 = int_to_ptr.vmem [resolvable:$true] %s32
      %38 = dma.hbm_to_vmem [thread:$0]  %s1, 9216, %s33, [#allocation7], 64, 64, 4
    $region9: #{resnet_block_nhwc.1} parent=1 // pred_fallthru
      _
    // Predicated region
    $region10: #{resnet_block_nhwc.1} parent=1 // pred_check
      _
    $region11: #{resnet_block_nhwc.1} parent=1 // pred_check_branch
      %40 = sbr.rel (0) target = $region13
    $region12: #{resnet_block_nhwc.1} parent=1 // pred_region
      _
    $region13: #{resnet_block_nhwc.1} parent=1 // pred_fallthru
      _
    // Predicated region
    $region14: #{resnet_block_nhwc.1} parent=1 // pred_check
      _
    $region15: #{resnet_block_nhwc.1} parent=1 // pred_check_branch
      %42 = sbr.rel (0) target = $region17
    $region16: #{resnet_block_nhwc.1} parent=1 // pred_region
      _
    $region17: #{resnet_block_nhwc.1} parent=1 // pred_fallthru
      _
    // Predicated region
    $region18: #{resnet_block_nhwc.1} parent=1 // pred_check
      _
    $region19: #{resnet_block_nhwc.1} parent=1 // pred_check_branch
      %44 = sbr.rel (0) target = $region21
    $region20: #{resnet_block_nhwc.1} parent=1 // pred_region
      %s46 = ssub.s32 9216, 9216
      %47 = vsyncadd [#allocation7], %s46
      %s48 = sshll.u32 [#allocation8], 4
      %s49 = int_to_ptr.vmem [resolvable:$true] %s48
      %54 = dma.hbm_to_vmem [thread:$0]  %s4, 9216, %s49, [#allocation7], 64, 64, 4
    $region21: #{resnet_block_nhwc.1} parent=1 // pred_fallthru
      _
    // Predicated region
    $region22: #{resnet_block_nhwc.1} parent=1 // pred_check
      _
    $region23: #{resnet_block_nhwc.1} parent=1 // pred_check_branch
      %56 = sbr.rel (0) target = $region25
    $region24: #{resnet_block_nhwc.1} parent=1 // pred_region
      _
    $region25: #{resnet_block_nhwc.1} parent=1 // pred_fallthru
      _
    // Predicated region
    $region26: #{resnet_block_nhwc.1} parent=1 // pred_check
      _
    $region27: #{resnet_block_nhwc.1} parent=1 // pred_check_branch
      %58 = sbr.rel (0) target = $region29
    $region28: #{resnet_block_nhwc.1} parent=1 // pred_region
      _
    $region29: #{resnet_block_nhwc.1} parent=1 // pred_fallthru
      _
    // Predicated region
    $region30: #{resnet_block_nhwc.1} parent=1 // pred_check
      _
    $region31: #{resnet_block_nhwc.1} parent=1 // pred_check_branch
      %60 = sbr.rel (0) target = $region33
    $region32: #{resnet_block_nhwc.1} parent=1 // pred_region
      %61 = dma.done [#allocation4], 8192
    $region33: #{resnet_block_nhwc.1} parent=1 // pred_fallthru
      _
    // Predicated region
    $region34: #{resnet_block_nhwc.1} parent=1 // pred_check
      _
    $region35: #{resnet_block_nhwc.1} parent=1 // pred_check_branch
      %63 = sbr.rel (0) target = $region37
    $region36: #{resnet_block_nhwc.1} parent=1 // pred_region
      %64 = dma.done [#allocation7], 9216
    $region37: #{resnet_block_nhwc.1} parent=1 // pred_fallthru
      _
    // Predicated region
    $region38: #{resnet_block_nhwc.1} parent=1 // pred_check
      _
    $region39: #{resnet_block_nhwc.1} parent=1 // pred_check_branch
      %66 = sbr.rel (0) target = $region41
    $region40: #{resnet_block_nhwc.1} parent=1 // pred_region
      %67 = dma.done [#allocation7], 9216
    $region41: #{resnet_block_nhwc.1} parent=1 // pred_fallthru
      _
    %v69 = vld [vmem:[#allocation3] sm:$0xff]
    %v70 = vld [vmem:[#allocation3 + $0x8] sm:$0xff]
    %v71 = vld [vmem:[#allocation3 + $0x10] sm:$0xff]
    %v72 = vld [vmem:[#allocation3 + $0x18] sm:$0xff]
    %v73 = vld [vmem:[#allocation3 + $0x20] sm:$0xff]
    %v74 = vld [vmem:[#allocation3 + $0x28] sm:$0xff]
    %v75 = vld [vmem:[#allocation3 + $0x30] sm:$0xff]
    %v76 = vld [vmem:[#allocation3 + $0x38] sm:$0xff]
    %v77 = vld [vmem:[#allocation3 + $0x40] sm:$0xff]
    %v78 = vld [vmem:[#allocation3 + $0x48] sm:$0xff]
    %v79 = vld [vmem:[#allocation3 + $0x50] sm:$0xff]
    %v80 = vld [vmem:[#allocation3 + $0x58] sm:$0xff]
    %v81 = vld [vmem:[#allocation3 + $0x60] sm:$0xff]
    %v82 = vld [vmem:[#allocation3 + $0x68] sm:$0xff]
    %v83 = vld [vmem:[#allocation3 + $0x70] sm:$0xff]
    %v84 = vld [vmem:[#allocation3 + $0x78] sm:$0xff]
    %v85 = vld [vmem:[#allocation3 + $0x80] sm:$0xff]
    %v86 = vld [vmem:[#allocation3 + $0x88] sm:$0xff]
    %v87 = vld [vmem:[#allocation3 + $0x90] sm:$0xff]
    %v88 = vld [vmem:[#allocation3 + $0x98] sm:$0xff]
    %v89 = vld [vmem:[#allocation3 + $0xa0] sm:$0xff]
    %v90 = vld [vmem:[#allocation3 + $0xa8] sm:$0xff]
    %v91 = vld [vmem:[#allocation3 + $0xb0] sm:$0xff]
    %v92 = vld [vmem:[#allocation3 + $0xb8] sm:$0xff]
    %v93 = vld [vmem:[#allocation3 + $0xc0] sm:$0xff]
    %v94 = vld [vmem:[#allocation3 + $0xc8] sm:$0xff]
    %v95 = vld [vmem:[#allocation3 + $0xd0] sm:$0xff]
    %v96 = vld [vmem:[#allocation3 + $0xd8] sm:$0xff]
    %v97 = vld [vmem:[#allocation3 + $0xe0] sm:$0xff]
    %v98 = vld [vmem:[#allocation3 + $0xe8] sm:$0xff]
    %v99 = vld [vmem:[#allocation3 + $0xf0] sm:$0xff]
    %v100 = vld [vmem:[#allocation3 + $0xf8] sm:$0xff]
    %v101 = vld [vmem:[#allocation3 + $0x100] sm:$0xff]
    %v102 = vld [vmem:[#allocation3 + $0x108] sm:$0xff]
    %v103 = vld [vmem:[#allocation3 + $0x110] sm:$0xff]
    %v104 = vld [vmem:[#allocation3 + $0x118] sm:$0xff]
    %v105 = vld [vmem:[#allocation3 + $0x120] sm:$0xff]
    %v106 = vld [vmem:[#allocation3 + $0x128] sm:$0xff]
    %v107 = vld [vmem:[#allocation3 + $0x130] sm:$0xff]
    %v108 = vld [vmem:[#allocation3 + $0x138] sm:$0xff]
    %v109 = vld [vmem:[#allocation3 + $0x140] sm:$0xff]
    %v110 = vld [vmem:[#allocation3 + $0x148] sm:$0xff]
    %v111 = vld [vmem:[#allocation3 + $0x150] sm:$0xff]
    %v112 = vld [vmem:[#allocation3 + $0x158] sm:$0xff]
    %v113 = vld [vmem:[#allocation3 + $0x160] sm:$0xff]
    %v114 = vld [vmem:[#allocation3 + $0x168] sm:$0xff]
    %v115 = vld [vmem:[#allocation3 + $0x170] sm:$0xff]
    %v116 = vld [vmem:[#allocation3 + $0x178] sm:$0xff]
    %v117 = vld [vmem:[#allocation3 + $0x180] sm:$0xff]
    %v118 = vld [vmem:[#allocation3 + $0x188] sm:$0xff]
    %v119 = vld [vmem:[#allocation3 + $0x190] sm:$0xff]
    %v120 = vld [vmem:[#allocation3 + $0x198] sm:$0xff]
    %v121 = vld [vmem:[#allocation3 + $0x1a0] sm:$0xff]
    %v122 = vld [vmem:[#allocation3 + $0x1a8] sm:$0xff]
    %v123 = vld [vmem:[#allocation3 + $0x1b0] sm:$0xff]
    %v124 = vld [vmem:[#allocation3 + $0x1b8] sm:$0xff]
    %v125 = vld [vmem:[#allocation3 + $0x1c0] sm:$0xff]
    %v126 = vld [vmem:[#allocation3 + $0x1c8] sm:$0xff]
    %v127 = vld [vmem:[#allocation3 + $0x1d0] sm:$0xff]
    %v128 = vld [vmem:[#allocation3 + $0x1d8] sm:$0xff]
    %v129 = vld [vmem:[#allocation3 + $0x1e0] sm:$0xff]
    %v130 = vld [vmem:[#allocation3 + $0x1e8] sm:$0xff]
    %v131 = vld [vmem:[#allocation3 + $0x1f0] sm:$0xff]
    %v132 = vld [vmem:[#allocation3 + $0x1f8] sm:$0xff]
    %v133 = vpack.c.bf16 %v70, %v69
    %v134 = vpack.c.bf16 %v72, %v71
    %v135 = vpack.c.bf16 %v74, %v73
    %v136 = vpack.c.bf16 %v76, %v75
    %v137 = vpack.c.bf16 %v78, %v77
    %v138 = vpack.c.bf16 %v80, %v79
    %v139 = vpack.c.bf16 %v82, %v81
    %v140 = vpack.c.bf16 %v84, %v83
    %v141 = vpack.c.bf16 %v86, %v85
    %v142 = vpack.c.bf16 %v88, %v87
    %v143 = vpack.c.bf16 %v90, %v89
    %v144 = vpack.c.bf16 %v92, %v91
    %v145 = vpack.c.bf16 %v94, %v93
    %v146 = vpack.c.bf16 %v96, %v95
    %v147 = vpack.c.bf16 %v98, %v97
    %v148 = vpack.c.bf16 %v100, %v99
    %v149 = vpack.c.bf16 %v102, %v101
    %v150 = vpack.c.bf16 %v104, %v103
    %v151 = vpack.c.bf16 %v106, %v105
    %v152 = vpack.c.bf16 %v108, %v107
    %v153 = vpack.c.bf16 %v110, %v109
    %v154 = vpack.c.bf16 %v112, %v111
    %v155 = vpack.c.bf16 %v114, %v113
    %v156 = vpack.c.bf16 %v116, %v115
    %v157 = vpack.c.bf16 %v118, %v117
    %v158 = vpack.c.bf16 %v120, %v119
    %v159 = vpack.c.bf16 %v122, %v121
    %v160 = vpack.c.bf16 %v124, %v123
    %v161 = vpack.c.bf16 %v126, %v125
    %v162 = vpack.c.bf16 %v128, %v127
    %v163 = vpack.c.bf16 %v130, %v129
    %v164 = vpack.c.bf16 %v132, %v131
    %v197 = vunpack.c.l.b16 %v133
    %v198 = vunpack.c.h.b16 %v133
    %v199 = vunpack.c.l.b16 %v134
    %v200 = vunpack.c.h.b16 %v134
    %v201 = vunpack.c.l.b16 %v135
    %v202 = vunpack.c.h.b16 %v135
    %v203 = vunpack.c.l.b16 %v136
    %v204 = vunpack.c.h.b16 %v136
    %v205 = vunpack.c.l.b16 %v137
    %v206 = vunpack.c.h.b16 %v137
    %v207 = vunpack.c.l.b16 %v138
    %v208 = vunpack.c.h.b16 %v138
    %v209 = vunpack.c.l.b16 %v139
    %v210 = vunpack.c.h.b16 %v139
    %v211 = vunpack.c.l.b16 %v140
    %v212 = vunpack.c.h.b16 %v140
    %v213 = vunpack.c.l.b16 %v141
    %v214 = vunpack.c.h.b16 %v141
    %v215 = vunpack.c.l.b16 %v142
    %v216 = vunpack.c.h.b16 %v142
    %v217 = vunpack.c.l.b16 %v143
    %v218 = vunpack.c.h.b16 %v143
    %v219 = vunpack.c.l.b16 %v144
    %v220 = vunpack.c.h.b16 %v144
    %v221 = vunpack.c.l.b16 %v145
    %v222 = vunpack.c.h.b16 %v145
    %v223 = vunpack.c.l.b16 %v146
    %v224 = vunpack.c.h.b16 %v146
    %v225 = vunpack.c.l.b16 %v147
    %v226 = vunpack.c.h.b16 %v147
    %v227 = vunpack.c.l.b16 %v148
    %v228 = vunpack.c.h.b16 %v148
    %v229 = vunpack.c.l.b16 %v149
    %v230 = vunpack.c.h.b16 %v149
    %v231 = vunpack.c.l.b16 %v150
    %v232 = vunpack.c.h.b16 %v150
    %v233 = vunpack.c.l.b16 %v151
    %v234 = vunpack.c.h.b16 %v151
    %v235 = vunpack.c.l.b16 %v152
    %v236 = vunpack.c.h.b16 %v152
    %v237 = vunpack.c.l.b16 %v153
    %v238 = vunpack.c.h.b16 %v153
    %v239 = vunpack.c.l.b16 %v154
    %v240 = vunpack.c.h.b16 %v154
    %v241 = vunpack.c.l.b16 %v155
    %v242 = vunpack.c.h.b16 %v155
    %v243 = vunpack.c.l.b16 %v156
    %v244 = vunpack.c.h.b16 %v156
    %v245 = vunpack.c.l.b16 %v157
    %v246 = vunpack.c.h.b16 %v157
    %v247 = vunpack.c.l.b16 %v158
    %v248 = vunpack.c.h.b16 %v158
    %v249 = vunpack.c.l.b16 %v159
    %v250 = vunpack.c.h.b16 %v159
    %v251 = vunpack.c.l.b16 %v160
    %v252 = vunpack.c.h.b16 %v160
    %v253 = vunpack.c.l.b16 %v161
    %v254 = vunpack.c.h.b16 %v161
    %v255 = vunpack.c.l.b16 %v162
    %v256 = vunpack.c.h.b16 %v162
    %v257 = vunpack.c.l.b16 %v163
    %v258 = vunpack.c.h.b16 %v163
    %v259 = vunpack.c.l.b16 %v164
    %v260 = vunpack.c.h.b16 %v164
    %v261 = vpack.c.b16 %v197, %v197
    %v262 = vpack.c.b16 %v198, %v198
    %v263 = vpack.c.b16 %v199, %v199
    %v264 = vpack.c.b16 %v200, %v200
    %v265 = vpack.c.b16 %v201, %v201
    %v266 = vpack.c.b16 %v202, %v202
    %v267 = vpack.c.b16 %v203, %v203
    %v268 = vpack.c.b16 %v204, %v204
    %v269 = vpack.c.b16 %v205, %v205
    %v270 = vpack.c.b16 %v206, %v206
    %v271 = vpack.c.b16 %v207, %v207
    %v272 = vpack.c.b16 %v208, %v208
    %v273 = vpack.c.b16 %v209, %v209
    %v274 = vpack.c.b16 %v210, %v210
    %v275 = vpack.c.b16 %v211, %v211
    %v276 = vpack.c.b16 %v212, %v212
    %v277 = vpack.c.b16 %v213, %v213
    %v278 = vpack.c.b16 %v214, %v214
    %v279 = vpack.c.b16 %v215, %v215
    %v280 = vpack.c.b16 %v216, %v216
    %v281 = vpack.c.b16 %v217, %v217
    %v282 = vpack.c.b16 %v218, %v218
    %v283 = vpack.c.b16 %v219, %v219
    %v284 = vpack.c.b16 %v220, %v220
    %v285 = vpack.c.b16 %v221, %v221
    %v286 = vpack.c.b16 %v222, %v222
    %v287 = vpack.c.b16 %v223, %v223
    %v288 = vpack.c.b16 %v224, %v224
    %v289 = vpack.c.b16 %v225, %v225
    %v290 = vpack.c.b16 %v226, %v226
    %v291 = vpack.c.b16 %v227, %v227
    %v292 = vpack.c.b16 %v228, %v228
    %v293 = vpack.c.b16 %v229, %v229
    %v294 = vpack.c.b16 %v230, %v230
    %v295 = vpack.c.b16 %v231, %v231
    %v296 = vpack.c.b16 %v232, %v232
    %v297 = vpack.c.b16 %v233, %v233
    %v298 = vpack.c.b16 %v234, %v234
    %v299 = vpack.c.b16 %v235, %v235
    %v300 = vpack.c.b16 %v236, %v236
    %v301 = vpack.c.b16 %v237, %v237
    %v302 = vpack.c.b16 %v238, %v238
    %v303 = vpack.c.b16 %v239, %v239
    %v304 = vpack.c.b16 %v240, %v240
    %v305 = vpack.c.b16 %v241, %v241
    %v306 = vpack.c.b16 %v242, %v242
    %v307 = vpack.c.b16 %v243, %v243
    %v308 = vpack.c.b16 %v244, %v244
    %v309 = vpack.c.b16 %v245, %v245
    %v310 = vpack.c.b16 %v246, %v246
    %v311 = vpack.c.b16 %v247, %v247
    %v312 = vpack.c.b16 %v248, %v248
    %v313 = vpack.c.b16 %v249, %v249
    %v314 = vpack.c.b16 %v250, %v250
    %v315 = vpack.c.b16 %v251, %v251
    %v316 = vpack.c.b16 %v252, %v252
    %v317 = vpack.c.b16 %v253, %v253
    %v318 = vpack.c.b16 %v254, %v254
    %v319 = vpack.c.b16 %v255, %v255
    %v320 = vpack.c.b16 %v256, %v256
    %v321 = vpack.c.b16 %v257, %v257
    %v322 = vpack.c.b16 %v258, %v258
    %v323 = vpack.c.b16 %v259, %v259
    %v324 = vpack.c.b16 %v260, %v260
    %vm325 = vsmask.f32 256
    %vm326 = vsmask.f32 4368
    %vm327 = vmor %vm325, %vm326
    %v329 = vshrl.u32 %v261, 16
    %v331 = vrot.slane %v329, 7
    %v332 = vshll.u32 %v261, 16
    %v334 = vor.u32 %v331, %v332
    %v335 = vrot.slane %v331, 4
    %v337 = vshrl.u32 %v262, 16
    %v339 = vrot.slane %v337, 7
    %v340 = vshll.u32 %v262, 16
    %v342 = vor.u32 %v339, %v340
    %v343 = vsel %vm327, %v335, %v342
    %v344 = vrot.slane %v339, 4
    %v346 = vshrl.u32 %v263, 16
    %v348 = vrot.slane %v346, 7
    %v349 = vshll.u32 %v263, 16
    %v351 = vor.u32 %v348, %v349
    %v352 = vrot.slane %v348, 4
    %v354 = vshrl.u32 %v264, 16
    %v356 = vrot.slane %v354, 7
    %v357 = vshll.u32 %v264, 16
    %v359 = vor.u32 %v356, %v357
    %v360 = vsel %vm327, %v352, %v359
    %v361 = vrot.slane %v356, 4
    %v363 = vshrl.u32 %v265, 16
    %v365 = vrot.slane %v363, 7
    %v366 = vshll.u32 %v265, 16
    %v368 = vor.u32 %v365, %v366
    %v369 = vrot.slane %v365, 4
    %v371 = vshrl.u32 %v266, 16
    %v373 = vrot.slane %v371, 7
    %v374 = vshll.u32 %v266, 16
    %v376 = vor.u32 %v373, %v374
    %v377 = vsel %vm327, %v369, %v376
    %v378 = vrot.slane %v373, 4
    %v380 = vshrl.u32 %v267, 16
    %v382 = vrot.slane %v380, 7
    %v383 = vshll.u32 %v267, 16
    %v385 = vor.u32 %v382, %v383
    %v386 = vrot.slane %v382, 4
    %v388 = vshrl.u32 %v268, 16
    %v390 = vrot.slane %v388, 7
    %v391 = vshll.u32 %v268, 16
    %v393 = vor.u32 %v390, %v391
    %v394 = vsel %vm327, %v386, %v393
    %v395 = vrot.slane %v390, 4
    %v397 = vshrl.u32 %v269, 16
    %v399 = vrot.slane %v397, 7
    %v400 = vshll.u32 %v269, 16
    %v402 = vor.u32 %v399, %v400
    %v403 = vrot.slane %v399, 4
    %v405 = vshrl.u32 %v270, 16
    %v407 = vrot.slane %v405, 7
    %v408 = vshll.u32 %v270, 16
    %v410 = vor.u32 %v407, %v408
    %v411 = vsel %vm327, %v403, %v410
    %v412 = vrot.slane %v407, 4
    %v414 = vshrl.u32 %v271, 16
    %v416 = vrot.slane %v414, 7
    %v417 = vshll.u32 %v271, 16
    %v419 = vor.u32 %v416, %v417
    %v420 = vrot.slane %v416, 4
    %v422 = vshrl.u32 %v272, 16
    %v424 = vrot.slane %v422, 7
    %v425 = vshll.u32 %v272, 16
    %v427 = vor.u32 %v424, %v425
    %v428 = vsel %vm327, %v420, %v427
    %v429 = vrot.slane %v424, 4
    %v431 = vshrl.u32 %v273, 16
    %v433 = vrot.slane %v431, 7
    %v434 = vshll.u32 %v273, 16
    %v436 = vor.u32 %v433, %v434
    %v437 = vrot.slane %v433, 4
    %v439 = vshrl.u32 %v274, 16
    %v441 = vrot.slane %v439, 7
    %v442 = vshll.u32 %v274, 16
    %v444 = vor.u32 %v441, %v442
    %v445 = vsel %vm327, %v437, %v444
    %v446 = vrot.slane %v441, 4
    %v448 = vshrl.u32 %v275, 16
    %v450 = vrot.slane %v448, 7
    %v451 = vshll.u32 %v275, 16
    %v453 = vor.u32 %v450, %v451
    %v454 = vrot.slane %v450, 4
    %v456 = vshrl.u32 %v276, 16
    %v458 = vrot.slane %v456, 7
    %v459 = vshll.u32 %v276, 16
    %v461 = vor.u32 %v458, %v459
    %v462 = vsel %vm327, %v454, %v461
    %v463 = vrot.slane %v458, 4
    %v465 = vshrl.u32 %v277, 16
    %v467 = vrot.slane %v465, 7
    %v468 = vshll.u32 %v277, 16
    %v470 = vor.u32 %v467, %v468
    %v471 = vrot.slane %v467, 4
    %v473 = vshrl.u32 %v278, 16
    %v475 = vrot.slane %v473, 7
    %v476 = vshll.u32 %v278, 16
    %v478 = vor.u32 %v475, %v476
    %v479 = vsel %vm327, %v471, %v478
    %v480 = vrot.slane %v475, 4
    %v482 = vshrl.u32 %v279, 16
    %v484 = vrot.slane %v482, 7
    %v485 = vshll.u32 %v279, 16
    %v487 = vor.u32 %v484, %v485
    %v488 = vrot.slane %v484, 4
    %v490 = vshrl.u32 %v280, 16
    %v492 = vrot.slane %v490, 7
    %v493 = vshll.u32 %v280, 16
    %v495 = vor.u32 %v492, %v493
    %v496 = vsel %vm327, %v488, %v495
    %v497 = vrot.slane %v492, 4
    %v499 = vshrl.u32 %v281, 16
    %v501 = vrot.slane %v499, 7
    %v502 = vshll.u32 %v281, 16
    %v504 = vor.u32 %v501, %v502
    %v505 = vrot.slane %v501, 4
    %v507 = vshrl.u32 %v282, 16
    %v509 = vrot.slane %v507, 7
    %v510 = vshll.u32 %v282, 16
    %v512 = vor.u32 %v509, %v510
    %v513 = vsel %vm327, %v505, %v512
    %v514 = vrot.slane %v509, 4
    %v516 = vshrl.u32 %v283, 16
    %v518 = vrot.slane %v516, 7
    %v519 = vshll.u32 %v283, 16
    %v521 = vor.u32 %v518, %v519
    %v522 = vrot.slane %v518, 4
    %v524 = vshrl.u32 %v284, 16
    %v526 = vrot.slane %v524, 7
    %v527 = vshll.u32 %v284, 16
    %v529 = vor.u32 %v526, %v527
    %v530 = vsel %vm327, %v522, %v529
    %v531 = vrot.slane %v526, 4
    %v533 = vshrl.u32 %v285, 16
    %v535 = vrot.slane %v533, 7
    %v536 = vshll.u32 %v285, 16
    %v538 = vor.u32 %v535, %v536
    %v539 = vrot.slane %v535, 4
    %v541 = vshrl.u32 %v286, 16
    %v543 = vrot.slane %v541, 7
    %v544 = vshll.u32 %v286, 16
    %v546 = vor.u32 %v543, %v544
    %v547 = vsel %vm327, %v539, %v546
    %v548 = vrot.slane %v543, 4
    %v550 = vshrl.u32 %v287, 16
    %v552 = vrot.slane %v550, 7
    %v553 = vshll.u32 %v287, 16
    %v555 = vor.u32 %v552, %v553
    %v556 = vrot.slane %v552, 4
    %v558 = vshrl.u32 %v288, 16
    %v560 = vrot.slane %v558, 7
    %v561 = vshll.u32 %v288, 16
    %v563 = vor.u32 %v560, %v561
    %v564 = vsel %vm327, %v556, %v563
    %v565 = vrot.slane %v560, 4
    %v567 = vshrl.u32 %v289, 16
    %v569 = vrot.slane %v567, 7
    %v570 = vshll.u32 %v289, 16
    %v572 = vor.u32 %v569, %v570
    %v573 = vrot.slane %v569, 4
    %v575 = vshrl.u32 %v290, 16
    %v577 = vrot.slane %v575, 7
    %v578 = vshll.u32 %v290, 16
    %v580 = vor.u32 %v577, %v578
    %v581 = vsel %vm327, %v573, %v580
    %v582 = vrot.slane %v577, 4
    %v584 = vshrl.u32 %v291, 16
    %v586 = vrot.slane %v584, 7
    %v587 = vshll.u32 %v291, 16
    %v589 = vor.u32 %v586, %v587
    %v590 = vrot.slane %v586, 4
    %v592 = vshrl.u32 %v292, 16
    %v594 = vrot.slane %v592, 7
    %v595 = vshll.u32 %v292, 16
    %v597 = vor.u32 %v594, %v595
    %v598 = vsel %vm327, %v590, %v597
    %v599 = vrot.slane %v594, 4
    %v601 = vshrl.u32 %v293, 16
    %v603 = vrot.slane %v601, 7
    %v604 = vshll.u32 %v293, 16
    %v606 = vor.u32 %v603, %v604
    %v607 = vrot.slane %v603, 4
    %v609 = vshrl.u32 %v294, 16
    %v611 = vrot.slane %v609, 7
    %v612 = vshll.u32 %v294, 16
    %v614 = vor.u32 %v611, %v612
    %v615 = vsel %vm327, %v607, %v614
    %v616 = vrot.slane %v611, 4
    %v618 = vshrl.u32 %v295, 16
    %v620 = vrot.slane %v618, 7
    %v621 = vshll.u32 %v295, 16
    %v623 = vor.u32 %v620, %v621
    %v624 = vrot.slane %v620, 4
    %v626 = vshrl.u32 %v296, 16
    %v628 = vrot.slane %v626, 7
    %v629 = vshll.u32 %v296, 16
    %v631 = vor.u32 %v628, %v629
    %v632 = vsel %vm327, %v624, %v631
    %v633 = vrot.slane %v628, 4
    %v635 = vshrl.u32 %v297, 16
    %v637 = vrot.slane %v635, 7
    %v638 = vshll.u32 %v297, 16
    %v640 = vor.u32 %v637, %v638
    %v641 = vrot.slane %v637, 4
    %v643 = vshrl.u32 %v298, 16
    %v645 = vrot.slane %v643, 7
    %v646 = vshll.u32 %v298, 16
    %v648 = vor.u32 %v645, %v646
    %v649 = vsel %vm327, %v641, %v648
    %v650 = vrot.slane %v645, 4
    %v652 = vshrl.u32 %v299, 16
    %v654 = vrot.slane %v652, 7
    %v655 = vshll.u32 %v299, 16
    %v657 = vor.u32 %v654, %v655
    %v658 = vrot.slane %v654, 4
    %v660 = vshrl.u32 %v300, 16
    %v662 = vrot.slane %v660, 7
    %v663 = vshll.u32 %v300, 16
    %v665 = vor.u32 %v662, %v663
    %v666 = vsel %vm327, %v658, %v665
    %v667 = vrot.slane %v662, 4
    %v669 = vshrl.u32 %v301, 16
    %v671 = vrot.slane %v669, 7
    %v672 = vshll.u32 %v301, 16
    %v674 = vor.u32 %v671, %v672
    %v675 = vrot.slane %v671, 4
    %v677 = vshrl.u32 %v302, 16
    %v679 = vrot.slane %v677, 7
    %v680 = vshll.u32 %v302, 16
    %v682 = vor.u32 %v679, %v680
    %v683 = vsel %vm327, %v675, %v682
    %v684 = vrot.slane %v679, 4
    %v686 = vshrl.u32 %v303, 16
    %v688 = vrot.slane %v686, 7
    %v689 = vshll.u32 %v303, 16
    %v691 = vor.u32 %v688, %v689
    %v692 = vrot.slane %v688, 4
    %v694 = vshrl.u32 %v304, 16
    %v696 = vrot.slane %v694, 7
    %v697 = vshll.u32 %v304, 16
    %v699 = vor.u32 %v696, %v697
    %v700 = vsel %vm327, %v692, %v699
    %v701 = vrot.slane %v696, 4
    %v703 = vshrl.u32 %v305, 16
    %v705 = vrot.slane %v703, 7
    %v706 = vshll.u32 %v305, 16
    %v708 = vor.u32 %v705, %v706
    %v709 = vrot.slane %v705, 4
    %v711 = vshrl.u32 %v306, 16
    %v713 = vrot.slane %v711, 7
    %v714 = vshll.u32 %v306, 16
    %v716 = vor.u32 %v713, %v714
    %v717 = vsel %vm327, %v709, %v716
    %v718 = vrot.slane %v713, 4
    %v720 = vshrl.u32 %v307, 16
    %v722 = vrot.slane %v720, 7
    %v723 = vshll.u32 %v307, 16
    %v725 = vor.u32 %v722, %v723
    %v726 = vrot.slane %v722, 4
    %v728 = vshrl.u32 %v308, 16
    %v730 = vrot.slane %v728, 7
    %v731 = vshll.u32 %v308, 16
    %v733 = vor.u32 %v730, %v731
    %v734 = vsel %vm327, %v726, %v733
    %v735 = vrot.slane %v730, 4
    %v737 = vshrl.u32 %v309, 16
    %v739 = vrot.slane %v737, 7
    %v740 = vshll.u32 %v309, 16
    %v742 = vor.u32 %v739, %v740
    %v743 = vrot.slane %v739, 4
    %v745 = vshrl.u32 %v310, 16
    %v747 = vrot.slane %v745, 7
    %v748 = vshll.u32 %v310, 16
    %v750 = vor.u32 %v747, %v748
    %v751 = vsel %vm327, %v743, %v750
    %v752 = vrot.slane %v747, 4
    %v754 = vshrl.u32 %v311, 16
    %v756 = vrot.slane %v754, 7
    %v757 = vshll.u32 %v311, 16
    %v759 = vor.u32 %v756, %v757
    %v760 = vrot.slane %v756, 4
    %v762 = vshrl.u32 %v312, 16
    %v764 = vrot.slane %v762, 7
    %v765 = vshll.u32 %v312, 16
    %v767 = vor.u32 %v764, %v765
    %v768 = vsel %vm327, %v760, %v767
    %v769 = vrot.slane %v764, 4
    %v771 = vshrl.u32 %v313, 16
    %v773 = vrot.slane %v771, 7
    %v774 = vshll.u32 %v313, 16
    %v776 = vor.u32 %v773, %v774
    %v777 = vrot.slane %v773, 4
    %v779 = vshrl.u32 %v314, 16
    %v781 = vrot.slane %v779, 7
    %v782 = vshll.u32 %v314, 16
    %v784 = vor.u32 %v781, %v782
    %v785 = vsel %vm327, %v777, %v784
    %v786 = vrot.slane %v781, 4
    %v788 = vshrl.u32 %v315, 16
    %v790 = vrot.slane %v788, 7
    %v791 = vshll.u32 %v315, 16
    %v793 = vor.u32 %v790, %v791
    %v794 = vrot.slane %v790, 4
    %v796 = vshrl.u32 %v316, 16
    %v798 = vrot.slane %v796, 7
    %v799 = vshll.u32 %v316, 16
    %v801 = vor.u32 %v798, %v799
    %v802 = vsel %vm327, %v794, %v801
    %v803 = vrot.slane %v798, 4
    %v805 = vshrl.u32 %v317, 16
    %v807 = vrot.slane %v805, 7
    %v808 = vshll.u32 %v317, 16
    %v810 = vor.u32 %v807, %v808
    %v811 = vrot.slane %v807, 4
    %v813 = vshrl.u32 %v318, 16
    %v815 = vrot.slane %v813, 7
    %v816 = vshll.u32 %v318, 16
    %v818 = vor.u32 %v815, %v816
    %v819 = vsel %vm327, %v811, %v818
    %v820 = vrot.slane %v815, 4
    %v822 = vshrl.u32 %v319, 16
    %v824 = vrot.slane %v822, 7
    %v825 = vshll.u32 %v319, 16
    %v827 = vor.u32 %v824, %v825
    %v828 = vrot.slane %v824, 4
    %v830 = vshrl.u32 %v320, 16
    %v832 = vrot.slane %v830, 7
    %v833 = vshll.u32 %v320, 16
    %v835 = vor.u32 %v832, %v833
    %v836 = vsel %vm327, %v828, %v835
    %v837 = vrot.slane %v832, 4
    %v839 = vshrl.u32 %v321, 16
    %v841 = vrot.slane %v839, 7
    %v842 = vshll.u32 %v321, 16
    %v844 = vor.u32 %v841, %v842
    %v845 = vrot.slane %v841, 4
    %v847 = vshrl.u32 %v322, 16
    %v849 = vrot.slane %v847, 7
    %v850 = vshll.u32 %v322, 16
    %v852 = vor.u32 %v849, %v850
    %v853 = vsel %vm327, %v845, %v852
    %v854 = vrot.slane %v849, 4
    %v856 = vshrl.u32 %v323, 16
    %v858 = vrot.slane %v856, 7
    %v859 = vshll.u32 %v323, 16
    %v861 = vor.u32 %v858, %v859
    %v862 = vrot.slane %v858, 4
    %v864 = vshrl.u32 %v324, 16
    %v866 = vrot.slane %v864, 7
    %v867 = vshll.u32 %v324, 16
    %v869 = vor.u32 %v866, %v867
    %v870 = vsel %vm327, %v862, %v869
    %v871 = vrot.slane %v866, 4
    %s968 = scalar_lea.vmem [#allocation2], 12
    %vm969 = vcmask 1043456
    %vm970 = vsmask.f32 7938
    %vm971 = vmand %vm969, %vm970
    %v972 = vld [vmem:[%s968] sm:$0xf]
    %v973 = vsel %vm971, %v334, %v972
    %974 = vst [vmem:[%s968] sm:$0xf] %v973
    %975 = vst [vmem:[%s968 + $0x4] sm:$0xf] %v343
    %vm976 = vcmask 1040384
    %vm977 = vmand %vm976, %vm325
    %v978 = vld [vmem:[%s968 + $0x8] sm:$0x1]
    %v979 = vsel %vm977, %v344, %v978
    %980 = vst [vmem:[%s968 + $0x8] sm:$0x1] %v979
    %v981 = vld [vmem:[%s968 + $0xc] sm:$0xf]
    %v982 = vsel %vm971, %v351, %v981
    %983 = vst [vmem:[%s968 + $0xc] sm:$0xf] %v982
    %984 = vst [vmem:[%s968 + $0x10] sm:$0xf] %v360
    %v985 = vld [vmem:[%s968 + $0x14] sm:$0x1]
    %v986 = vsel %vm977, %v361, %v985
    %987 = vst [vmem:[%s968 + $0x14] sm:$0x1] %v986
    %v988 = vld [vmem:[%s968 + $0x18] sm:$0xf]
    %v989 = vsel %vm971, %v368, %v988
    %990 = vst [vmem:[%s968 + $0x18] sm:$0xf] %v989
    %991 = vst [vmem:[%s968 + $0x1c] sm:$0xf] %v377
    %v992 = vld [vmem:[%s968 + $0x20] sm:$0x1]
    %v993 = vsel %vm977, %v378, %v992
    %994 = vst [vmem:[%s968 + $0x20] sm:$0x1] %v993
    %v995 = vld [vmem:[%s968 + $0x24] sm:$0xf]
    %v996 = vsel %vm971, %v385, %v995
    %997 = vst [vmem:[%s968 + $0x24] sm:$0xf] %v996
    %998 = vst [vmem:[%s968 + $0x28] sm:$0xf] %v394
    %v999 = vld [vmem:[%s968 + $0x2c] sm:$0x1]
    %v1000 = vsel %vm977, %v395, %v999
    %1001 = vst [vmem:[%s968 + $0x2c] sm:$0x1] %v1000
    %v1002 = vld [vmem:[%s968 + $0x30] sm:$0xf]
    %v1003 = vsel %vm971, %v402, %v1002
    %1004 = vst [vmem:[%s968 + $0x30] sm:$0xf] %v1003
    %1005 = vst [vmem:[%s968 + $0x34] sm:$0xf] %v411
    %v1006 = vld [vmem:[%s968 + $0x38] sm:$0x1]
    %v1007 = vsel %vm977, %v412, %v1006
    %1008 = vst [vmem:[%s968 + $0x38] sm:$0x1] %v1007
    %v1009 = vld [vmem:[%s968 + $0x3c] sm:$0xf]
    %v1010 = vsel %vm971, %v419, %v1009
    %1011 = vst [vmem:[%s968 + $0x3c] sm:$0xf] %v1010
    %1012 = vst [vmem:[%s968 + $0x40] sm:$0xf] %v428
    %v1013 = vld [vmem:[%s968 + $0x44] sm:$0x1]
    %v1014 = vsel %vm977, %v429, %v1013
    %1015 = vst [vmem:[%s968 + $0x44] sm:$0x1] %v1014
    %v1016 = vld [vmem:[%s968 + $0x48] sm:$0xf]
    %v1017 = vsel %vm971, %v436, %v1016
    %1018 = vst [vmem:[%s968 + $0x48] sm:$0xf] %v1017
    %1019 = vst [vmem:[%s968 + $0x4c] sm:$0xf] %v445
    %v1020 = vld [vmem:[%s968 + $0x50] sm:$0x1]
    %v1021 = vsel %vm977, %v446, %v1020
    %1022 = vst [vmem:[%s968 + $0x50] sm:$0x1] %v1021
    %v1023 = vld [vmem:[%s968 + $0x54] sm:$0xf]
    %v1024 = vsel %vm971, %v453, %v1023
    %1025 = vst [vmem:[%s968 + $0x54] sm:$0xf] %v1024
    %1026 = vst [vmem:[%s968 + $0x58] sm:$0xf] %v462
    %v1027 = vld [vmem:[%s968 + $0x5c] sm:$0x1]
    %v1028 = vsel %vm977, %v463, %v1027
    %1029 = vst [vmem:[%s968 + $0x5c] sm:$0x1] %v1028
    %v1030 = vld [vmem:[%s968 + $0x60] sm:$0xf]
    %v1031 = vsel %vm971, %v470, %v1030
    %1032 = vst [vmem:[%s968 + $0x60] sm:$0xf] %v1031
    %1033 = vst [vmem:[%s968 + $0x64] sm:$0xf] %v479
    %v1034 = vld [vmem:[%s968 + $0x68] sm:$0x1]
    %v1035 = vsel %vm977, %v480, %v1034
    %1036 = vst [vmem:[%s968 + $0x68] sm:$0x1] %v1035
    %v1037 = vld [vmem:[%s968 + $0x6c] sm:$0xf]
    %v1038 = vsel %vm971, %v487, %v1037
    %1039 = vst [vmem:[%s968 + $0x6c] sm:$0xf] %v1038
    %1040 = vst [vmem:[%s968 + $0x70] sm:$0xf] %v496
    %v1041 = vld [vmem:[%s968 + $0x74] sm:$0x1]
    %v1042 = vsel %vm977, %v497, %v1041
    %1043 = vst [vmem:[%s968 + $0x74] sm:$0x1] %v1042
    %v1044 = vld [vmem:[%s968 + $0x78] sm:$0xf]
    %v1045 = vsel %vm971, %v504, %v1044
    %1046 = vst [vmem:[%s968 + $0x78] sm:$0xf] %v1045
    %1047 = vst [vmem:[%s968 + $0x7c] sm:$0xf] %v513
    %v1048 = vld [vmem:[%s968 + $0x80] sm:$0x1]
    %v1049 = vsel %vm977, %v514, %v1048
    %1050 = vst [vmem:[%s968 + $0x80] sm:$0x1] %v1049
    %v1051 = vld [vmem:[%s968 + $0x84] sm:$0xf]
    %v1052 = vsel %vm971, %v521, %v1051
    %1053 = vst [vmem:[%s968 + $0x84] sm:$0xf] %v1052
    %1054 = vst [vmem:[%s968 + $0x88] sm:$0xf] %v530
    %v1055 = vld [vmem:[%s968 + $0x8c] sm:$0x1]
    %v1056 = vsel %vm977, %v531, %v1055
    %1057 = vst [vmem:[%s968 + $0x8c] sm:$0x1] %v1056
    %v1058 = vld [vmem:[%s968 + $0x90] sm:$0xf]
    %v1059 = vsel %vm971, %v538, %v1058
    %1060 = vst [vmem:[%s968 + $0x90] sm:$0xf] %v1059
    %1061 = vst [vmem:[%s968 + $0x94] sm:$0xf] %v547
    %v1062 = vld [vmem:[%s968 + $0x98] sm:$0x1]
    %v1063 = vsel %vm977, %v548, %v1062
    %1064 = vst [vmem:[%s968 + $0x98] sm:$0x1] %v1063
    %v1065 = vld [vmem:[%s968 + $0x9c] sm:$0xf]
    %v1066 = vsel %vm971, %v555, %v1065
    %1067 = vst [vmem:[%s968 + $0x9c] sm:$0xf] %v1066
    %1068 = vst [vmem:[%s968 + $0xa0] sm:$0xf] %v564
    %v1069 = vld [vmem:[%s968 + $0xa4] sm:$0x1]
    %v1070 = vsel %vm977, %v565, %v1069
    %1071 = vst [vmem:[%s968 + $0xa4] sm:$0x1] %v1070
    %v1072 = vld [vmem:[%s968 + $0xa8] sm:$0xf]
    %v1073 = vsel %vm971, %v572, %v1072
    %1074 = vst [vmem:[%s968 + $0xa8] sm:$0xf] %v1073
    %1075 = vst [vmem:[%s968 + $0xac] sm:$0xf] %v581
    %v1076 = vld [vmem:[%s968 + $0xb0] sm:$0x1]
    %v1077 = vsel %vm977, %v582, %v1076
    %1078 = vst [vmem:[%s968 + $0xb0] sm:$0x1] %v1077
    %v1079 = vld [vmem:[%s968 + $0xb4] sm:$0xf]
    %v1080 = vsel %vm971, %v589, %v1079
    %1081 = vst [vmem:[%s968 + $0xb4] sm:$0xf] %v1080
    %1082 = vst [vmem:[%s968 + $0xb8] sm:$0xf] %v598
    %v1083 = vld [vmem:[%s968 + $0xbc] sm:$0x1]
    %v1084 = vsel %vm977, %v599, %v1083
    %1085 = vst [vmem:[%s968 + $0xbc] sm:$0x1] %v1084
    %v1086 = vld [vmem:[%s968 + $0xd8] sm:$0xf]
    %v1087 = vsel %vm971, %v606, %v1086
    %1088 = vst [vmem:[%s968 + $0xd8] sm:$0xf] %v1087
    %1089 = vst [vmem:[%s968 + $0xdc] sm:$0xf] %v615
    %v1090 = vld [vmem:[%s968 + $0xe0] sm:$0x1]
    %v1091 = vsel %vm977, %v616, %v1090
    %1092 = vst [vmem:[%s968 + $0xe0] sm:$0x1] %v1091
    %v1093 = vld [vmem:[%s968 + $0xe4] sm:$0xf]
    %v1094 = vsel %vm971, %v623, %v1093
    %1095 = vst [vmem:[%s968 + $0xe4] sm:$0xf] %v1094
    %1096 = vst [vmem:[%s968 + $0xe8] sm:$0xf] %v632
    %v1097 = vld [vmem:[%s968 + $0xec] sm:$0x1]
    %v1098 = vsel %vm977, %v633, %v1097
    %1099 = vst [vmem:[%s968 + $0xec] sm:$0x1] %v1098
    %v1100 = vld [vmem:[%s968 + $0xf0] sm:$0xf]
    %v1101 = vsel %vm971, %v640, %v1100
    %1102 = vst [vmem:[%s968 + $0xf0] sm:$0xf] %v1101
    %1103 = vst [vmem:[%s968 + $0xf4] sm:$0xf] %v649
    %v1104 = vld [vmem:[%s968 + $0xf8] sm:$0x1]
    %v1105 = vsel %vm977, %v650, %v1104
    %1106 = vst [vmem:[%s968 + $0xf8] sm:$0x1] %v1105
    %v1107 = vld [vmem:[%s968 + $0xfc] sm:$0xf]
    %v1108 = vsel %vm971, %v657, %v1107
    %1109 = vst [vmem:[%s968 + $0xfc] sm:$0xf] %v1108
    %1110 = vst [vmem:[%s968 + $0x100] sm:$0xf] %v666
    %v1111 = vld [vmem:[%s968 + $0x104] sm:$0x1]
    %v1112 = vsel %vm977, %v667, %v1111
    %1113 = vst [vmem:[%s968 + $0x104] sm:$0x1] %v1112
    %v1114 = vld [vmem:[%s968 + $0x108] sm:$0xf]
    %v1115 = vsel %vm971, %v674, %v1114
    %1116 = vst [vmem:[%s968 + $0x108] sm:$0xf] %v1115
    %1117 = vst [vmem:[%s968 + $0x10c] sm:$0xf] %v683
    %v1118 = vld [vmem:[%s968 + $0x110] sm:$0x1]
    %v1119 = vsel %vm977, %v684, %v1118
    %1120 = vst [vmem:[%s968 + $0x110] sm:$0x1] %v1119
    %v1121 = vld [vmem:[%s968 + $0x114] sm:$0xf]
    %v1122 = vsel %vm971, %v691, %v1121
    %1123 = vst [vmem:[%s968 + $0x114] sm:$0xf] %v1122
    %1124 = vst [vmem:[%s968 + $0x118] sm:$0xf] %v700
    %v1125 = vld [vmem:[%s968 + $0x11c] sm:$0x1]
    %v1126 = vsel %vm977, %v701, %v1125
    %1127 = vst [vmem:[%s968 + $0x11c] sm:$0x1] %v1126
    %v1128 = vld [vmem:[%s968 + $0x120] sm:$0xf]
    %v1129 = vsel %vm971, %v708, %v1128
    %1130 = vst [vmem:[%s968 + $0x120] sm:$0xf] %v1129
    %1131 = vst [vmem:[%s968 + $0x124] sm:$0xf] %v717
    %v1132 = vld [vmem:[%s968 + $0x128] sm:$0x1]
    %v1133 = vsel %vm977, %v718, %v1132
    %1134 = vst [vmem:[%s968 + $0x128] sm:$0x1] %v1133
    %v1135 = vld [vmem:[%s968 + $0x12c] sm:$0xf]
    %v1136 = vsel %vm971, %v725, %v1135
    %1137 = vst [vmem:[%s968 + $0x12c] sm:$0xf] %v1136
    %1138 = vst [vmem:[%s968 + $0x130] sm:$0xf] %v734
    %v1139 = vld [vmem:[%s968 + $0x134] sm:$0x1]
    %v1140 = vsel %vm977, %v735, %v1139
    %1141 = vst [vmem:[%s968 + $0x134] sm:$0x1] %v1140
    %v1142 = vld [vmem:[%s968 + $0x138] sm:$0xf]
    %v1143 = vsel %vm971, %v742, %v1142
    %1144 = vst [vmem:[%s968 + $0x138] sm:$0xf] %v1143
    %1145 = vst [vmem:[%s968 + $0x13c] sm:$0xf] %v751
    %v1146 = vld [vmem:[%s968 + $0x140] sm:$0x1]
    %v1147 = vsel %vm977, %v752, %v1146
    %1148 = vst [vmem:[%s968 + $0x140] sm:$0x1] %v1147
    %v1149 = vld [vmem:[%s968 + $0x144] sm:$0xf]
    %v1150 = vsel %vm971, %v759, %v1149
    %1151 = vst [vmem:[%s968 + $0x144] sm:$0xf] %v1150
    %1152 = vst [vmem:[%s968 + $0x148] sm:$0xf] %v768
    %v1153 = vld [vmem:[%s968 + $0x14c] sm:$0x1]
    %v1154 = vsel %vm977, %v769, %v1153
    %1155 = vst [vmem:[%s968 + $0x14c] sm:$0x1] %v1154
    %v1156 = vld [vmem:[%s968 + $0x150] sm:$0xf]
    %v1157 = vsel %vm971, %v776, %v1156
    %1158 = vst [vmem:[%s968 + $0x150] sm:$0xf] %v1157
    %1159 = vst [vmem:[%s968 + $0x154] sm:$0xf] %v785
    %v1160 = vld [vmem:[%s968 + $0x158] sm:$0x1]
    %v1161 = vsel %vm977, %v786, %v1160
    %1162 = vst [vmem:[%s968 + $0x158] sm:$0x1] %v1161
    %v1163 = vld [vmem:[%s968 + $0x15c] sm:$0xf]
    %v1164 = vsel %vm971, %v793, %v1163
    %1165 = vst [vmem:[%s968 + $0x15c] sm:$0xf] %v1164
    %1166 = vst [vmem:[%s968 + $0x160] sm:$0xf] %v802
    %v1167 = vld [vmem:[%s968 + $0x164] sm:$0x1]
    %v1168 = vsel %vm977, %v803, %v1167
    %1169 = vst [vmem:[%s968 + $0x164] sm:$0x1] %v1168
    %v1170 = vld [vmem:[%s968 + $0x168] sm:$0xf]
    %v1171 = vsel %vm971, %v810, %v1170
    %1172 = vst [vmem:[%s968 + $0x168] sm:$0xf] %v1171
    %1173 = vst [vmem:[%s968 + $0x16c] sm:$0xf] %v819
    %v1174 = vld [vmem:[%s968 + $0x170] sm:$0x1]
    %v1175 = vsel %vm977, %v820, %v1174
    %1176 = vst [vmem:[%s968 + $0x170] sm:$0x1] %v1175
    %v1177 = vld [vmem:[%s968 + $0x174] sm:$0xf]
    %v1178 = vsel %vm971, %v827, %v1177
    %1179 = vst [vmem:[%s968 + $0x174] sm:$0xf] %v1178
    %1180 = vst [vmem:[%s968 + $0x178] sm:$0xf] %v836
    %v1181 = vld [vmem:[%s968 + $0x17c] sm:$0x1]
    %v1182 = vsel %vm977, %v837, %v1181
    %1183 = vst [vmem:[%s968 + $0x17c] sm:$0x1] %v1182
    %v1184 = vld [vmem:[%s968 + $0x180] sm:$0xf]
    %v1185 = vsel %vm971, %v844, %v1184
    %1186 = vst [vmem:[%s968 + $0x180] sm:$0xf] %v1185
    %1187 = vst [vmem:[%s968 + $0x184] sm:$0xf] %v853
    %v1188 = vld [vmem:[%s968 + $0x188] sm:$0x1]
    %v1189 = vsel %vm977, %v854, %v1188
    %1190 = vst [vmem:[%s968 + $0x188] sm:$0x1] %v1189
    %v1191 = vld [vmem:[%s968 + $0x18c] sm:$0xf]
    %v1192 = vsel %vm971, %v861, %v1191
    %1193 = vst [vmem:[%s968 + $0x18c] sm:$0xf] %v1192
    %1194 = vst [vmem:[%s968 + $0x190] sm:$0xf] %v870
    %v1195 = vld [vmem:[%s968 + $0x194] sm:$0x1]
    %v1196 = vsel %vm977, %v871, %v1195
    %1197 = vst [vmem:[%s968 + $0x194] sm:$0x1] %v1196
    %v1198 = vld [vmem:[#allocation2] sm:$0xf]
    %v1199 = vsel %vm971, %v351, %v1198
    %1200 = vst [vmem:[#allocation2] sm:$0xf] %v1199
    %1201 = vst [vmem:[#allocation2 + $0x4] sm:$0xf] %v360
    %v1202 = vld [vmem:[#allocation2 + $0x8] sm:$0x1]
    %v1203 = vsel %vm977, %v361, %v1202
    %1204 = vst [vmem:[#allocation2 + $0x8] sm:$0x1] %v1203
    %v1205 = vld [vmem:[#allocation2 + $0xd8] sm:$0xf]
    %v1206 = vsel %vm971, %v623, %v1205
    %1207 = vst [vmem:[#allocation2 + $0xd8] sm:$0xf] %v1206
    %1208 = vst [vmem:[#allocation2 + $0xdc] sm:$0xf] %v632
    %v1209 = vld [vmem:[#allocation2 + $0xe0] sm:$0x1]
    %v1210 = vsel %vm977, %v633, %v1209
    %1211 = vst [vmem:[#allocation2 + $0xe0] sm:$0x1] %v1210
    %s1212 = scalar_lea.vmem [#allocation2], 204
    %v1213 = vld [vmem:[%s1212] sm:$0xf]
    %v1214 = vsel %vm971, %v572, %v1213
    %1215 = vst [vmem:[%s1212] sm:$0xf] %v1214
    %1216 = vst [vmem:[%s1212 + $0x4] sm:$0xf] %v581
    %v1217 = vld [vmem:[%s1212 + $0x8] sm:$0x1]
    %v1218 = vsel %vm977, %v582, %v1217
    %1219 = vst [vmem:[%s1212 + $0x8] sm:$0x1] %v1218
    %v1220 = vld [vmem:[%s1212 + $0xd8] sm:$0xf]
    %v1221 = vsel %vm971, %v844, %v1220
    %1222 = vst [vmem:[%s1212 + $0xd8] sm:$0xf] %v1221
    %1223 = vst [vmem:[%s1212 + $0xdc] sm:$0xf] %v853
    %v1224 = vld [vmem:[%s1212 + $0xe0] sm:$0x1]
    %v1225 = vsel %vm977, %v854, %v1224
    %1226 = vst [vmem:[%s1212 + $0xe0] sm:$0x1] %v1225
    %v1227 = vrot.slane %v329, 4
    %v1228 = vrot.slane %v1227, 4
    %v1229 = vrot.slane %v346, 4
    %v1230 = vrot.slane %v1229, 4
    %v1231 = vrot.slane %v363, 4
    %v1232 = vrot.slane %v1231, 4
    %v1233 = vrot.slane %v380, 4
    %v1234 = vrot.slane %v1233, 4
    %v1235 = vrot.slane %v397, 4
    %v1236 = vrot.slane %v1235, 4
    %v1237 = vrot.slane %v414, 4
    %v1238 = vrot.slane %v1237, 4
    %v1239 = vrot.slane %v431, 4
    %v1240 = vrot.slane %v1239, 4
    %v1241 = vrot.slane %v448, 4
    %v1242 = vrot.slane %v1241, 4
    %v1243 = vrot.slane %v465, 4
    %v1244 = vrot.slane %v1243, 4
    %v1245 = vrot.slane %v482, 4
    %v1246 = vrot.slane %v1245, 4
    %v1247 = vrot.slane %v499, 4
    %v1248 = vrot.slane %v1247, 4
    %v1249 = vrot.slane %v516, 4
    %v1250 = vrot.slane %v1249, 4
    %v1251 = vrot.slane %v533, 4
    %v1252 = vrot.slane %v1251, 4
    %v1253 = vrot.slane %v550, 4
    %v1254 = vrot.slane %v1253, 4
    %v1255 = vrot.slane %v567, 4
    %v1256 = vrot.slane %v1255, 4
    %v1257 = vrot.slane %v584, 4
    %v1258 = vrot.slane %v1257, 4
    %v1259 = vrot.slane %v601, 4
    %v1260 = vrot.slane %v1259, 4
    %v1261 = vrot.slane %v618, 4
    %v1262 = vrot.slane %v1261, 4
    %v1263 = vrot.slane %v635, 4
    %v1264 = vrot.slane %v1263, 4
    %v1265 = vrot.slane %v652, 4
    %v1266 = vrot.slane %v1265, 4
    %v1267 = vrot.slane %v669, 4
    %v1268 = vrot.slane %v1267, 4
    %v1269 = vrot.slane %v686, 4
    %v1270 = vrot.slane %v1269, 4
    %v1271 = vrot.slane %v703, 4
    %v1272 = vrot.slane %v1271, 4
    %v1273 = vrot.slane %v720, 4
    %v1274 = vrot.slane %v1273, 4
    %v1275 = vrot.slane %v737, 4
    %v1276 = vrot.slane %v1275, 4
    %v1277 = vrot.slane %v754, 4
    %v1278 = vrot.slane %v1277, 4
    %v1279 = vrot.slane %v771, 4
    %v1280 = vrot.slane %v1279, 4
    %v1281 = vrot.slane %v788, 4
    %v1282 = vrot.slane %v1281, 4
    %v1283 = vrot.slane %v805, 4
    %v1284 = vrot.slane %v1283, 4
    %v1285 = vrot.slane %v822, 4
    %v1286 = vrot.slane %v1285, 4
    %v1287 = vrot.slane %v839, 4
    %v1288 = vrot.slane %v1287, 4
    %v1289 = vrot.slane %v856, 4
    %v1290 = vrot.slane %v1289, 4
    %v1323 = vld [vmem:[%s968] sm:$0x1]
    %v1324 = vsel %vm977, %v1228, %v1323
    %1325 = vst [vmem:[%s968] sm:$0x1] %v1324
    %v1326 = vld [vmem:[%s968 + $0xc] sm:$0x1]
    %v1327 = vsel %vm977, %v1230, %v1326
    %1328 = vst [vmem:[%s968 + $0xc] sm:$0x1] %v1327
    %v1329 = vld [vmem:[%s968 + $0x18] sm:$0x1]
    %v1330 = vsel %vm977, %v1232, %v1329
    %1331 = vst [vmem:[%s968 + $0x18] sm:$0x1] %v1330
    %v1332 = vld [vmem:[%s968 + $0x24] sm:$0x1]
    %v1333 = vsel %vm977, %v1234, %v1332
    %1334 = vst [vmem:[%s968 + $0x24] sm:$0x1] %v1333
    %v1335 = vld [vmem:[%s968 + $0x30] sm:$0x1]
    %v1336 = vsel %vm977, %v1236, %v1335
    %1337 = vst [vmem:[%s968 + $0x30] sm:$0x1] %v1336
    %v1338 = vld [vmem:[%s968 + $0x3c] sm:$0x1]
    %v1339 = vsel %vm977, %v1238, %v1338
    %1340 = vst [vmem:[%s968 + $0x3c] sm:$0x1] %v1339
    %v1341 = vld [vmem:[%s968 + $0x48] sm:$0x1]
    %v1342 = vsel %vm977, %v1240, %v1341
    %1343 = vst [vmem:[%s968 + $0x48] sm:$0x1] %v1342
    %v1344 = vld [vmem:[%s968 + $0x54] sm:$0x1]
    %v1345 = vsel %vm977, %v1242, %v1344
    %1346 = vst [vmem:[%s968 + $0x54] sm:$0x1] %v1345
    %v1347 = vld [vmem:[%s968 + $0x60] sm:$0x1]
    %v1348 = vsel %vm977, %v1244, %v1347
    %1349 = vst [vmem:[%s968 + $0x60] sm:$0x1] %v1348
    %v1350 = vld [vmem:[%s968 + $0x6c] sm:$0x1]
    %v1351 = vsel %vm977, %v1246, %v1350
    %1352 = vst [vmem:[%s968 + $0x6c] sm:$0x1] %v1351
    %v1353 = vld [vmem:[%s968 + $0x78] sm:$0x1]
    %v1354 = vsel %vm977, %v1248, %v1353
    %1355 = vst [vmem:[%s968 + $0x78] sm:$0x1] %v1354
    %v1356 = vld [vmem:[%s968 + $0x84] sm:$0x1]
    %v1357 = vsel %vm977, %v1250, %v1356
    %1358 = vst [vmem:[%s968 + $0x84] sm:$0x1] %v1357
    %v1359 = vld [vmem:[%s968 + $0x90] sm:$0x1]
    %v1360 = vsel %vm977, %v1252, %v1359
    %1361 = vst [vmem:[%s968 + $0x90] sm:$0x1] %v1360
    %v1362 = vld [vmem:[%s968 + $0x9c] sm:$0x1]
    %v1363 = vsel %vm977, %v1254, %v1362
    %1364 = vst [vmem:[%s968 + $0x9c] sm:$0x1] %v1363
    %v1365 = vld [vmem:[%s968 + $0xa8] sm:$0x1]
    %v1366 = vsel %vm977, %v1256, %v1365
    %1367 = vst [vmem:[%s968 + $0xa8] sm:$0x1] %v1366
    %v1368 = vld [vmem:[%s968 + $0xb4] sm:$0x1]
    %v1369 = vsel %vm977, %v1258, %v1368
    %1370 = vst [vmem:[%s968 + $0xb4] sm:$0x1] %v1369
    %v1371 = vld [vmem:[%s968 + $0xd8] sm:$0x1]
    %v1372 = vsel %vm977, %v1260, %v1371
    %1373 = vst [vmem:[%s968 + $0xd8] sm:$0x1] %v1372
    %v1374 = vld [vmem:[%s968 + $0xe4] sm:$0x1]
    %v1375 = vsel %vm977, %v1262, %v1374
    %1376 = vst [vmem:[%s968 + $0xe4] sm:$0x1] %v1375
    %v1377 = vld [vmem:[%s968 + $0xf0] sm:$0x1]
    %v1378 = vsel %vm977, %v1264, %v1377
    %1379 = vst [vmem:[%s968 + $0xf0] sm:$0x1] %v1378
    %v1380 = vld [vmem:[%s968 + $0xfc] sm:$0x1]
    %v1381 = vsel %vm977, %v1266, %v1380
    %1382 = vst [vmem:[%s968 + $0xfc] sm:$0x1] %v1381
    %v1383 = vld [vmem:[%s968 + $0x108] sm:$0x1]
    %v1384 = vsel %vm977, %v1268, %v1383
    %1385 = vst [vmem:[%s968 + $0x108] sm:$0x1] %v1384
    %v1386 = vld [vmem:[%s968 + $0x114] sm:$0x1]
    %v1387 = vsel %vm977, %v1270, %v1386
    %1388 = vst [vmem:[%s968 + $0x114] sm:$0x1] %v1387
    %v1389 = vld [vmem:[%s968 + $0x120] sm:$0x1]
    %v1390 = vsel %vm977, %v1272, %v1389
    %1391 = vst [vmem:[%s968 + $0x120] sm:$0x1] %v1390
    %v1392 = vld [vmem:[%s968 + $0x12c] sm:$0x1]
    %v1393 = vsel %vm977, %v1274, %v1392
    %1394 = vst [vmem:[%s968 + $0x12c] sm:$0x1] %v1393
    %v1395 = vld [vmem:[%s968 + $0x138] sm:$0x1]
    %v1396 = vsel %vm977, %v1276, %v1395
    %1397 = vst [vmem:[%s968 + $0x138] sm:$0x1] %v1396
    %v1398 = vld [vmem:[%s968 + $0x144] sm:$0x1]
    %v1399 = vsel %vm977, %v1278, %v1398
    %1400 = vst [vmem:[%s968 + $0x144] sm:$0x1] %v1399
    %v1401 = vld [vmem:[%s968 + $0x150] sm:$0x1]
    %v1402 = vsel %vm977, %v1280, %v1401
    %1403 = vst [vmem:[%s968 + $0x150] sm:$0x1] %v1402
    %v1404 = vld [vmem:[%s968 + $0x15c] sm:$0x1]
    %v1405 = vsel %vm977, %v1282, %v1404
    %1406 = vst [vmem:[%s968 + $0x15c] sm:$0x1] %v1405
    %v1407 = vld [vmem:[%s968 + $0x168] sm:$0x1]
    %v1408 = vsel %vm977, %v1284, %v1407
    %1409 = vst [vmem:[%s968 + $0x168] sm:$0x1] %v1408
    %v1410 = vld [vmem:[%s968 + $0x174] sm:$0x1]
    %v1411 = vsel %vm977, %v1286, %v1410
    %1412 = vst [vmem:[%s968 + $0x174] sm:$0x1] %v1411
    %v1413 = vld [vmem:[%s968 + $0x180] sm:$0x1]
    %v1414 = vsel %vm977, %v1288, %v1413
    %1415 = vst [vmem:[%s968 + $0x180] sm:$0x1] %v1414
    %v1416 = vld [vmem:[%s968 + $0x18c] sm:$0x1]
    %v1417 = vsel %vm977, %v1290, %v1416
    %1418 = vst [vmem:[%s968 + $0x18c] sm:$0x1] %v1417
    %v1419 = vrot.slane %v340, 7
    %v1420 = vrot.slane %v1419, 4
    %v1421 = vrot.slane %v357, 7
    %v1422 = vrot.slane %v1421, 4
    %v1423 = vrot.slane %v374, 7
    %v1424 = vrot.slane %v1423, 4
    %v1425 = vrot.slane %v391, 7
    %v1426 = vrot.slane %v1425, 4
    %v1427 = vrot.slane %v408, 7
    %v1428 = vrot.slane %v1427, 4
    %v1429 = vrot.slane %v425, 7
    %v1430 = vrot.slane %v1429, 4
    %v1431 = vrot.slane %v442, 7
    %v1432 = vrot.slane %v1431, 4
    %v1433 = vrot.slane %v459, 7
    %v1434 = vrot.slane %v1433, 4
    %v1435 = vrot.slane %v476, 7
    %v1436 = vrot.slane %v1435, 4
    %v1437 = vrot.slane %v493, 7
    %v1438 = vrot.slane %v1437, 4
    %v1439 = vrot.slane %v510, 7
    %v1440 = vrot.slane %v1439, 4
    %v1441 = vrot.slane %v527, 7
    %v1442 = vrot.slane %v1441, 4
    %v1443 = vrot.slane %v544, 7
    %v1444 = vrot.slane %v1443, 4
    %v1445 = vrot.slane %v561, 7
    %v1446 = vrot.slane %v1445, 4
    %v1447 = vrot.slane %v578, 7
    %v1448 = vrot.slane %v1447, 4
    %v1449 = vrot.slane %v595, 7
    %v1450 = vrot.slane %v1449, 4
    %v1451 = vrot.slane %v612, 7
    %v1452 = vrot.slane %v1451, 4
    %v1453 = vrot.slane %v629, 7
    %v1454 = vrot.slane %v1453, 4
    %v1455 = vrot.slane %v646, 7
    %v1456 = vrot.slane %v1455, 4
    %v1457 = vrot.slane %v663, 7
    %v1458 = vrot.slane %v1457, 4
    %v1459 = vrot.slane %v680, 7
    %v1460 = vrot.slane %v1459, 4
    %v1461 = vrot.slane %v697, 7
    %v1462 = vrot.slane %v1461, 4
    %v1463 = vrot.slane %v714, 7
    %v1464 = vrot.slane %v1463, 4
    %v1465 = vrot.slane %v731, 7
    %v1466 = vrot.slane %v1465, 4
    %v1467 = vrot.slane %v748, 7
    %v1468 = vrot.slane %v1467, 4
    %v1469 = vrot.slane %v765, 7
    %v1470 = vrot.slane %v1469, 4
    %v1471 = vrot.slane %v782, 7
    %v1472 = vrot.slane %v1471, 4
    %v1473 = vrot.slane %v799, 7
    %v1474 = vrot.slane %v1473, 4
    %v1475 = vrot.slane %v816, 7
    %v1476 = vrot.slane %v1475, 4
    %v1477 = vrot.slane %v833, 7
    %v1478 = vrot.slane %v1477, 4
    %v1479 = vrot.slane %v850, 7
    %v1480 = vrot.slane %v1479, 4
    %v1481 = vrot.slane %v867, 7
    %v1482 = vrot.slane %v1481, 4
    %vm1515 = vmand %vm976, %vm970
    %v1516 = vld [vmem:[%s968 + $0x8] sm:$0x1]
    %v1517 = vsel %vm1515, %v1420, %v1516
    %1518 = vst [vmem:[%s968 + $0x8] sm:$0x1] %v1517
    %v1519 = vld [vmem:[%s968 + $0x14] sm:$0x1]
    %v1520 = vsel %vm1515, %v1422, %v1519
    %1521 = vst [vmem:[%s968 + $0x14] sm:$0x1] %v1520
    %v1522 = vld [vmem:[%s968 + $0x20] sm:$0x1]
    %v1523 = vsel %vm1515, %v1424, %v1522
    %1524 = vst [vmem:[%s968 + $0x20] sm:$0x1] %v1523
    %v1525 = vld [vmem:[%s968 + $0x2c] sm:$0x1]
    %v1526 = vsel %vm1515, %v1426, %v1525
    %1527 = vst [vmem:[%s968 + $0x2c] sm:$0x1] %v1526
    %v1528 = vld [vmem:[%s968 + $0x38] sm:$0x1]
    %v1529 = vsel %vm1515, %v1428, %v1528
    %1530 = vst [vmem:[%s968 + $0x38] sm:$0x1] %v1529
    %v1531 = vld [vmem:[%s968 + $0x44] sm:$0x1]
    %v1532 = vsel %vm1515, %v1430, %v1531
    %1533 = vst [vmem:[%s968 + $0x44] sm:$0x1] %v1532
    %v1534 = vld [vmem:[%s968 + $0x50] sm:$0x1]
    %v1535 = vsel %vm1515, %v1432, %v1534
    %1536 = vst [vmem:[%s968 + $0x50] sm:$0x1] %v1535
    %v1537 = vld [vmem:[%s968 + $0x5c] sm:$0x1]
    %v1538 = vsel %vm1515, %v1434, %v1537
    %1539 = vst [vmem:[%s968 + $0x5c] sm:$0x1] %v1538
    %v1540 = vld [vmem:[%s968 + $0x68] sm:$0x1]
    %v1541 = vsel %vm1515, %v1436, %v1540
    %1542 = vst [vmem:[%s968 + $0x68] sm:$0x1] %v1541
    %v1543 = vld [vmem:[%s968 + $0x74] sm:$0x1]
    %v1544 = vsel %vm1515, %v1438, %v1543
    %1545 = vst [vmem:[%s968 + $0x74] sm:$0x1] %v1544
    %v1546 = vld [vmem:[%s968 + $0x80] sm:$0x1]
    %v1547 = vsel %vm1515, %v1440, %v1546
    %1548 = vst [vmem:[%s968 + $0x80] sm:$0x1] %v1547
    %v1549 = vld [vmem:[%s968 + $0x8c] sm:$0x1]
    %v1550 = vsel %vm1515, %v1442, %v1549
    %1551 = vst [vmem:[%s968 + $0x8c] sm:$0x1] %v1550
    %v1552 = vld [vmem:[%s968 + $0x98] sm:$0x1]
    %v1553 = vsel %vm1515, %v1444, %v1552
    %1554 = vst [vmem:[%s968 + $0x98] sm:$0x1] %v1553
    %v1555 = vld [vmem:[%s968 + $0xa4] sm:$0x1]
    %v1556 = vsel %vm1515, %v1446, %v1555
    %1557 = vst [vmem:[%s968 + $0xa4] sm:$0x1] %v1556
    %v1558 = vld [vmem:[%s968 + $0xb0] sm:$0x1]
    %v1559 = vsel %vm1515, %v1448, %v1558
    %1560 = vst [vmem:[%s968 + $0xb0] sm:$0x1] %v1559
    %v1561 = vld [vmem:[%s968 + $0xbc] sm:$0x1]
    %v1562 = vsel %vm1515, %v1450, %v1561
    %1563 = vst [vmem:[%s968 + $0xbc] sm:$0x1] %v1562
    %v1564 = vld [vmem:[%s968 + $0xe0] sm:$0x1]
    %v1565 = vsel %vm1515, %v1452, %v1564
    %1566 = vst [vmem:[%s968 + $0xe0] sm:$0x1] %v1565
    %v1567 = vld [vmem:[%s968 + $0xec] sm:$0x1]
    %v1568 = vsel %vm1515, %v1454, %v1567
    %1569 = vst [vmem:[%s968 + $0xec] sm:$0x1] %v1568
    %v1570 = vld [vmem:[%s968 + $0xf8] sm:$0x1]
    %v1571 = vsel %vm1515, %v1456, %v1570
    %1572 = vst [vmem:[%s968 + $0xf8] sm:$0x1] %v1571
    %v1573 = vld [vmem:[%s968 + $0x104] sm:$0x1]
    %v1574 = vsel %vm1515, %v1458, %v1573
    %1575 = vst [vmem:[%s968 + $0x104] sm:$0x1] %v1574
    %v1576 = vld [vmem:[%s968 + $0x110] sm:$0x1]
    %v1577 = vsel %vm1515, %v1460, %v1576
    %1578 = vst [vmem:[%s968 + $0x110] sm:$0x1] %v1577
    %v1579 = vld [vmem:[%s968 + $0x11c] sm:$0x1]
    %v1580 = vsel %vm1515, %v1462, %v1579
    %1581 = vst [vmem:[%s968 + $0x11c] sm:$0x1] %v1580
    %v1582 = vld [vmem:[%s968 + $0x128] sm:$0x1]
    %v1583 = vsel %vm1515, %v1464, %v1582
    %1584 = vst [vmem:[%s968 + $0x128] sm:$0x1] %v1583
    %v1585 = vld [vmem:[%s968 + $0x134] sm:$0x1]
    %v1586 = vsel %vm1515, %v1466, %v1585
    %1587 = vst [vmem:[%s968 + $0x134] sm:$0x1] %v1586
    %v1588 = vld [vmem:[%s968 + $0x140] sm:$0x1]
    %v1589 = vsel %vm1515, %v1468, %v1588
    %1590 = vst [vmem:[%s968 + $0x140] sm:$0x1] %v1589
    %v1591 = vld [vmem:[%s968 + $0x14c] sm:$0x1]
    %v1592 = vsel %vm1515, %v1470, %v1591
    %1593 = vst [vmem:[%s968 + $0x14c] sm:$0x1] %v1592
    %v1594 = vld [vmem:[%s968 + $0x158] sm:$0x1]
    %v1595 = vsel %vm1515, %v1472, %v1594
    %1596 = vst [vmem:[%s968 + $0x158] sm:$0x1] %v1595
    %v1597 = vld [vmem:[%s968 + $0x164] sm:$0x1]
    %v1598 = vsel %vm1515, %v1474, %v1597
    %1599 = vst [vmem:[%s968 + $0x164] sm:$0x1] %v1598
    %v1600 = vld [vmem:[%s968 + $0x170] sm:$0x1]
    %v1601 = vsel %vm1515, %v1476, %v1600
    %1602 = vst [vmem:[%s968 + $0x170] sm:$0x1] %v1601
    %v1603 = vld [vmem:[%s968 + $0x17c] sm:$0x1]
    %v1604 = vsel %vm1515, %v1478, %v1603
    %1605 = vst [vmem:[%s968 + $0x17c] sm:$0x1] %v1604
    %v1606 = vld [vmem:[%s968 + $0x188] sm:$0x1]
    %v1607 = vsel %vm1515, %v1480, %v1606
    %1608 = vst [vmem:[%s968 + $0x188] sm:$0x1] %v1607
    %v1609 = vld [vmem:[%s968 + $0x194] sm:$0x1]
    %v1610 = vsel %vm1515, %v1482, %v1609
    %1611 = vst [vmem:[%s968 + $0x194] sm:$0x1] %v1610
    %v1612 = vld [vmem:[#allocation2] sm:$0x1]
    %v1613 = vsel %vm977, %v1230, %v1612
    %1614 = vst [vmem:[#allocation2] sm:$0x1] %v1613
    %v1615 = vld [vmem:[#allocation2 + $0xd8] sm:$0x1]
    %v1616 = vsel %vm977, %v1262, %v1615
    %1617 = vst [vmem:[#allocation2 + $0xd8] sm:$0x1] %v1616
    %v1618 = vld [vmem:[#allocation2 + $0x8] sm:$0x1]
    %v1619 = vsel %vm1515, %v1422, %v1618
    %1620 = vst [vmem:[#allocation2 + $0x8] sm:$0x1] %v1619
    %v1621 = vld [vmem:[#allocation2 + $0xe0] sm:$0x1]
    %v1622 = vsel %vm1515, %v1454, %v1621
    %1623 = vst [vmem:[#allocation2 + $0xe0] sm:$0x1] %v1622
    %v1624 = vld [vmem:[%s1212] sm:$0x1]
    %v1625 = vsel %vm977, %v1256, %v1624
    %1626 = vst [vmem:[%s1212] sm:$0x1] %v1625
    %v1627 = vld [vmem:[%s1212 + $0xd8] sm:$0x1]
    %v1628 = vsel %vm977, %v1288, %v1627
    %1629 = vst [vmem:[%s1212 + $0xd8] sm:$0x1] %v1628
    %v1630 = vld [vmem:[%s1212 + $0x8] sm:$0x1]
    %v1631 = vsel %vm1515, %v1448, %v1630
    %1632 = vst [vmem:[%s1212 + $0x8] sm:$0x1] %v1631
    %v1633 = vld [vmem:[%s1212 + $0xe0] sm:$0x1]
    %v1634 = vsel %vm1515, %v1480, %v1633
    %1635 = vst [vmem:[%s1212 + $0xe0] sm:$0x1] %v1634
    %v1636 = vld [vmem:[#allocation2] sm:$0xf]
    %v1637 = vld [vmem:[#allocation2 + $0x4] sm:$0xf]
    %v1638 = vld [vmem:[#allocation2 + $0xc] sm:$0xf]
    %v1639 = vld [vmem:[#allocation2 + $0x10] sm:$0xf]
    %v1640 = vld [vmem:[#allocation2 + $0x18] sm:$0xf]
    %v1641 = vld [vmem:[#allocation2 + $0x1c] sm:$0xf]
    %v1642 = vld [vmem:[#allocation2 + $0x24] sm:$0xf]
    %v1643 = vld [vmem:[#allocation2 + $0x28] sm:$0xf]
    %v1644 = vld [vmem:[#allocation2 + $0x30] sm:$0xf]
    %v1645 = vld [vmem:[#allocation2 + $0x34] sm:$0xf]
    %v1646 = vld [vmem:[#allocation2 + $0x3c] sm:$0xf]
    %v1647 = vld [vmem:[#allocation2 + $0x40] sm:$0xf]
    %v1648 = vld [vmem:[#allocation2 + $0x48] sm:$0xf]
    %v1649 = vld [vmem:[#allocation2 + $0x4c] sm:$0xf]
    %v1650 = vld [vmem:[#allocation2 + $0x54] sm:$0xf]
    %v1651 = vld [vmem:[#allocation2 + $0x58] sm:$0xf]
    %v1652 = vld [vmem:[#allocation2 + $0x60] sm:$0xf]
    %v1653 = vld [vmem:[#allocation2 + $0x64] sm:$0xf]
    %v1654 = vld [vmem:[#allocation2 + $0x6c] sm:$0xf]
    %v1655 = vld [vmem:[#allocation2 + $0x70] sm:$0xf]
    %v1656 = vld [vmem:[#allocation2 + $0x78] sm:$0xf]
    %v1657 = vld [vmem:[#allocation2 + $0x7c] sm:$0xf]
    %v1658 = vld [vmem:[#allocation2 + $0x84] sm:$0xf]
    %v1659 = vld [vmem:[#allocation2 + $0x88] sm:$0xf]
    %v1660 = vld [vmem:[#allocation2 + $0x90] sm:$0xf]
    %v1661 = vld [vmem:[#allocation2 + $0x94] sm:$0xf]
    %v1662 = vld [vmem:[#allocation2 + $0x9c] sm:$0xf]
    %v1663 = vld [vmem:[#allocation2 + $0xa0] sm:$0xf]
    %v1664 = vld [vmem:[#allocation2 + $0xa8] sm:$0xf]
    %v1665 = vld [vmem:[#allocation2 + $0xac] sm:$0xf]
    %v1666 = vld [vmem:[#allocation2 + $0xb4] sm:$0xf]
    %v1667 = vld [vmem:[#allocation2 + $0xb8] sm:$0xf]
    %v1668 = vld [vmem:[#allocation2 + $0xc0] sm:$0xf]
    %v1669 = vld [vmem:[#allocation2 + $0xc4] sm:$0xf]
    %v1670 = vld [vmem:[#allocation2 + $0xcc] sm:$0xf]
    %v1671 = vld [vmem:[#allocation2 + $0xd0] sm:$0xf]
    %v1672 = vld [vmem:[#allocation2 + $0xd8] sm:$0xf]
    %v1673 = vld [vmem:[#allocation2 + $0xdc] sm:$0xf]
    %v1674 = vld [vmem:[#allocation2 + $0xe4] sm:$0xf]
    %v1675 = vld [vmem:[#allocation2 + $0xe8] sm:$0xf]
    %v1676 = vld [vmem:[#allocation2 + $0xf0] sm:$0xf]
    %v1677 = vld [vmem:[#allocation2 + $0xf4] sm:$0xf]
    %v1678 = vld [vmem:[#allocation2 + $0xfc] sm:$0xf]
    %v1679 = vld [vmem:[#allocation2 + $0x100] sm:$0xf]
    %v1680 = vld [vmem:[#allocation2 + $0x108] sm:$0xf]
    %v1681 = vld [vmem:[#allocation2 + $0x10c] sm:$0xf]
    %v1682 = vld [vmem:[#allocation2 + $0x114] sm:$0xf]
    %v1683 = vld [vmem:[#allocation2 + $0x118] sm:$0xf]
    %v1684 = vld [vmem:[#allocation2 + $0x120] sm:$0xf]
    %v1685 = vld [vmem:[#allocation2 + $0x124] sm:$0xf]
    %v1686 = vld [vmem:[#allocation2 + $0x12c] sm:$0xf]
    %v1687 = vld [vmem:[#allocation2 + $0x130] sm:$0xf]
    %v1688 = vld [vmem:[#allocation2 + $0x138] sm:$0xf]
    %v1689 = vld [vmem:[#allocation2 + $0x13c] sm:$0xf]
    %v1690 = vld [vmem:[#allocation2 + $0x144] sm:$0xf]
    %v1691 = vld [vmem:[#allocation2 + $0x148] sm:$0xf]
    %v1692 = vld [vmem:[#allocation2 + $0x150] sm:$0xf]
    %v1693 = vld [vmem:[#allocation2 + $0x154] sm:$0xf]
    %v1694 = vld [vmem:[#allocation2 + $0x15c] sm:$0xf]
    %v1695 = vld [vmem:[#allocation2 + $0x160] sm:$0xf]
    %v1696 = vld [vmem:[#allocation2 + $0x168] sm:$0xf]
    %v1697 = vld [vmem:[#allocation2 + $0x16c] sm:$0xf]
    %v1698 = vld [vmem:[#allocation2 + $0x174] sm:$0xf]
    %v1699 = vld [vmem:[#allocation2 + $0x178] sm:$0xf]
    %v1700 = vld [vmem:[#allocation2 + $0x180] sm:$0xf]
    %v1701 = vld [vmem:[#allocation2 + $0x184] sm:$0xf]
    %v1702 = vld [vmem:[#allocation2 + $0x18c] sm:$0xf]
    %v1703 = vld [vmem:[#allocation2 + $0x190] sm:$0xf]
    %v1704 = vld [vmem:[#allocation2 + $0x198] sm:$0xf]
    %v1705 = vld [vmem:[#allocation2 + $0x19c] sm:$0xf]
    %v1706 = vld [vmem:[#allocation2 + $0x1a4] sm:$0xf]
    %v1707 = vld [vmem:[#allocation2 + $0x1a8] sm:$0xf]
    %v1772 = vunpack.c.l.b16 %v1636
    %v1773 = vunpack.c.l.b16 %v1637
    %v1774 = vunpack.c.l.b16 %v1638
    %v1775 = vunpack.c.l.b16 %v1639
    %v1776 = vunpack.c.l.b16 %v1640
    %v1777 = vunpack.c.l.b16 %v1641
    %v1778 = vunpack.c.l.b16 %v1642
    %v1779 = vunpack.c.l.b16 %v1643
    %v1780 = vunpack.c.l.b16 %v1644
    %v1781 = vunpack.c.l.b16 %v1645
    %v1782 = vunpack.c.l.b16 %v1646
    %v1783 = vunpack.c.l.b16 %v1647
    %v1784 = vunpack.c.l.b16 %v1648
    %v1785 = vunpack.c.l.b16 %v1649
    %v1786 = vunpack.c.l.b16 %v1650
    %v1787 = vunpack.c.l.b16 %v1651
    %v1788 = vunpack.c.l.b16 %v1652
    %v1789 = vunpack.c.l.b16 %v1653
    %v1790 = vunpack.c.l.b16 %v1654
    %v1791 = vunpack.c.l.b16 %v1655
    %v1792 = vunpack.c.l.b16 %v1656
    %v1793 = vunpack.c.l.b16 %v1657
    %v1794 = vunpack.c.l.b16 %v1658
    %v1795 = vunpack.c.l.b16 %v1659
    %v1796 = vunpack.c.l.b16 %v1660
    %v1797 = vunpack.c.l.b16 %v1661
    %v1798 = vunpack.c.l.b16 %v1662
    %v1799 = vunpack.c.l.b16 %v1663
    %v1800 = vunpack.c.l.b16 %v1664
    %v1801 = vunpack.c.l.b16 %v1665
    %v1802 = vunpack.c.l.b16 %v1666
    %v1803 = vunpack.c.l.b16 %v1667
    %v1804 = vunpack.c.l.b16 %v1672
    %v1805 = vunpack.c.l.b16 %v1673
    %v1806 = vunpack.c.l.b16 %v1674
    %v1807 = vunpack.c.l.b16 %v1675
    %v1808 = vunpack.c.l.b16 %v1676
    %v1809 = vunpack.c.l.b16 %v1677
    %v1810 = vunpack.c.l.b16 %v1678
    %v1811 = vunpack.c.l.b16 %v1679
    %v1812 = vunpack.c.l.b16 %v1680
    %v1813 = vunpack.c.l.b16 %v1681
    %v1814 = vunpack.c.l.b16 %v1682
    %v1815 = vunpack.c.l.b16 %v1683
    %v1816 = vunpack.c.l.b16 %v1684
    %v1817 = vunpack.c.l.b16 %v1685
    %v1818 = vunpack.c.l.b16 %v1686
    %v1819 = vunpack.c.l.b16 %v1687
    %v1820 = vunpack.c.l.b16 %v1688
    %v1821 = vunpack.c.l.b16 %v1689
    %v1822 = vunpack.c.l.b16 %v1690
    %v1823 = vunpack.c.l.b16 %v1691
    %v1824 = vunpack.c.l.b16 %v1692
    %v1825 = vunpack.c.l.b16 %v1693
    %v1826 = vunpack.c.l.b16 %v1694
    %v1827 = vunpack.c.l.b16 %v1695
    %v1828 = vunpack.c.l.b16 %v1696
    %v1829 = vunpack.c.l.b16 %v1697
    %v1830 = vunpack.c.l.b16 %v1698
    %v1831 = vunpack.c.l.b16 %v1699
    %v1832 = vunpack.c.l.b16 %v1700
    %v1833 = vunpack.c.l.b16 %v1701
    %v1834 = vunpack.c.l.b16 %v1702
    %v1835 = vunpack.c.l.b16 %v1703
    %v1836 = vpack.c.b16 %v1773, %v1772
    %v1837 = vpack.c.b16 %v1775, %v1774
    %v1838 = vpack.c.b16 %v1777, %v1776
    %v1839 = vpack.c.b16 %v1779, %v1778
    %v1840 = vpack.c.b16 %v1781, %v1780
    %v1841 = vpack.c.b16 %v1783, %v1782
    %v1842 = vpack.c.b16 %v1785, %v1784
    %v1843 = vpack.c.b16 %v1787, %v1786
    %v1844 = vpack.c.b16 %v1789, %v1788
    %v1845 = vpack.c.b16 %v1791, %v1790
    %v1846 = vpack.c.b16 %v1793, %v1792
    %v1847 = vpack.c.b16 %v1795, %v1794
    %v1848 = vpack.c.b16 %v1797, %v1796
    %v1849 = vpack.c.b16 %v1799, %v1798
    %v1850 = vpack.c.b16 %v1801, %v1800
    %v1851 = vpack.c.b16 %v1803, %v1802
    %v1852 = vpack.c.b16 %v1805, %v1804
    %v1853 = vpack.c.b16 %v1807, %v1806
    %v1854 = vpack.c.b16 %v1809, %v1808
    %v1855 = vpack.c.b16 %v1811, %v1810
    %v1856 = vpack.c.b16 %v1813, %v1812
    %v1857 = vpack.c.b16 %v1815, %v1814
    %v1858 = vpack.c.b16 %v1817, %v1816
    %v1859 = vpack.c.b16 %v1819, %v1818
    %v1860 = vpack.c.b16 %v1821, %v1820
    %v1861 = vpack.c.b16 %v1823, %v1822
    %v1862 = vpack.c.b16 %v1825, %v1824
    %v1863 = vpack.c.b16 %v1827, %v1826
    %v1864 = vpack.c.b16 %v1829, %v1828
    %v1865 = vpack.c.b16 %v1831, %v1830
    %v1866 = vpack.c.b16 %v1833, %v1832
    %v1867 = vpack.c.b16 %v1835, %v1834
    %v1904 = vunpack.c.l.b16 %v1668
    %v1905 = vunpack.c.l.b16 %v1669
    %v1906 = vunpack.c.l.b16 %v1704
    %v1907 = vunpack.c.l.b16 %v1705
    %v1908 = vpack.c.b16 %v1905, %v1904
    %v1909 = vpack.c.b16 %v1907, %v1906
    %v1916 = vunpack.c.l.b16 %v1670
    %v1917 = vunpack.c.l.b16 %v1671
    %v1918 = vunpack.c.l.b16 %v1706
    %v1919 = vunpack.c.l.b16 %v1707
    %v1920 = vpack.c.b16 %v1917, %v1916
    %v1921 = vpack.c.b16 %v1919, %v1918
    %v1924 = vld [vmem:[#allocation6] sm:$0xf]
    %v1925 = vld [vmem:[#allocation6 + $0x4] sm:$0xf]
    %v1926 = vld [vmem:[#allocation6 + $0x8] sm:$0xf]
    %v1927 = vld [vmem:[#allocation6 + $0xc] sm:$0xf]
    %v1928 = vld [vmem:[#allocation6 + $0x10] sm:$0xf]
    %v1929 = vld [vmem:[#allocation6 + $0x14] sm:$0xf]
    %v1930 = vld [vmem:[#allocation6 + $0x18] sm:$0xf]
    %v1931 = vld [vmem:[#allocation6 + $0x1c] sm:$0xf]
    %v1932 = vld [vmem:[#allocation6 + $0x20] sm:$0xf]
    %v1933 = vld [vmem:[#allocation6 + $0x24] sm:$0xf]
    %v1934 = vld [vmem:[#allocation6 + $0x28] sm:$0xf]
    %v1935 = vld [vmem:[#allocation6 + $0x2c] sm:$0xf]
    %v1936 = vld [vmem:[#allocation6 + $0x30] sm:$0xf]
    %v1937 = vld [vmem:[#allocation6 + $0x34] sm:$0xf]
    %v1938 = vld [vmem:[#allocation6 + $0x38] sm:$0xf]
    %v1939 = vld [vmem:[#allocation6 + $0x3c] sm:$0xf]
    %v1940 = vld [vmem:[#allocation6 + $0x40] sm:$0xf]
    %v1941 = vld [vmem:[#allocation6 + $0x44] sm:$0xf]
    %v1942 = vld [vmem:[#allocation6 + $0x48] sm:$0xf]
    %v1943 = vld [vmem:[#allocation6 + $0x4c] sm:$0xf]
    %v1944 = vld [vmem:[#allocation6 + $0x50] sm:$0xf]
    %v1945 = vld [vmem:[#allocation6 + $0x54] sm:$0xf]
    %v1946 = vld [vmem:[#allocation6 + $0x58] sm:$0xf]
    %v1947 = vld [vmem:[#allocation6 + $0x5c] sm:$0xf]
    %v1948 = vld [vmem:[#allocation6 + $0x60] sm:$0xf]
    %v1949 = vld [vmem:[#allocation6 + $0x64] sm:$0xf]
    %v1950 = vld [vmem:[#allocation6 + $0x68] sm:$0xf]
    %v1951 = vld [vmem:[#allocation6 + $0x6c] sm:$0xf]
    %v1952 = vld [vmem:[#allocation6 + $0x70] sm:$0xf]
    %v1953 = vld [vmem:[#allocation6 + $0x74] sm:$0xf]
    %v1954 = vld [vmem:[#allocation6 + $0x78] sm:$0xf]
    %v1955 = vld [vmem:[#allocation6 + $0x7c] sm:$0xf]
    %v1956 = vld [vmem:[#allocation6 + $0x80] sm:$0xf]
    %v1957 = vld [vmem:[#allocation6 + $0x84] sm:$0xf]
    %v1958 = vld [vmem:[#allocation6 + $0x88] sm:$0xf]
    %v1959 = vld [vmem:[#allocation6 + $0x8c] sm:$0xf]
    %v1960 = vld [vmem:[#allocation6 + $0x90] sm:$0xf]
    %v1961 = vld [vmem:[#allocation6 + $0x94] sm:$0xf]
    %v1962 = vld [vmem:[#allocation6 + $0x98] sm:$0xf]
    %v1963 = vld [vmem:[#allocation6 + $0x9c] sm:$0xf]
    %v1964 = vld [vmem:[#allocation6 + $0xa0] sm:$0xf]
    %v1965 = vld [vmem:[#allocation6 + $0xa4] sm:$0xf]
    %v1966 = vld [vmem:[#allocation6 + $0xa8] sm:$0xf]
    %v1967 = vld [vmem:[#allocation6 + $0xac] sm:$0xf]
    %v1968 = vld [vmem:[#allocation6 + $0xb0] sm:$0xf]
    %v1969 = vld [vmem:[#allocation6 + $0xb4] sm:$0xf]
    %v1970 = vld [vmem:[#allocation6 + $0xb8] sm:$0xf]
    %v1971 = vld [vmem:[#allocation6 + $0xbc] sm:$0xf]
    %v1972 = vld [vmem:[#allocation2 + $0x8] sm:$0x1]
    %v1973 = vld [vmem:[#allocation2 + $0x14] sm:$0x1]
    %v1974 = vld [vmem:[#allocation2 + $0x20] sm:$0x1]
    %v1975 = vld [vmem:[#allocation2 + $0x2c] sm:$0x1]
    %v1976 = vld [vmem:[#allocation2 + $0x38] sm:$0x1]
    %v1977 = vld [vmem:[#allocation2 + $0x44] sm:$0x1]
    %v1978 = vld [vmem:[#allocation2 + $0x50] sm:$0x1]
    %v1979 = vld [vmem:[#allocation2 + $0x5c] sm:$0x1]
    %v1980 = vld [vmem:[#allocation2 + $0x68] sm:$0x1]
    %v1981 = vld [vmem:[#allocation2 + $0x74] sm:$0x1]
    %v1982 = vld [vmem:[#allocation2 + $0x80] sm:$0x1]
    %v1983 = vld [vmem:[#allocation2 + $0x8c] sm:$0x1]
    %v1984 = vld [vmem:[#allocation2 + $0x98] sm:$0x1]
    %v1985 = vld [vmem:[#allocation2 + $0xa4] sm:$0x1]
    %v1986 = vld [vmem:[#allocation2 + $0xb0] sm:$0x1]
    %v1987 = vld [vmem:[#allocation2 + $0xbc] sm:$0x1]
    %v1988 = vld [vmem:[#allocation2 + $0xc8] sm:$0x1]
    %v1989 = vld [vmem:[#allocation2 + $0xd4] sm:$0x1]
    %v1990 = vld [vmem:[#allocation2 + $0xe0] sm:$0x1]
    %v1991 = vld [vmem:[#allocation2 + $0xec] sm:$0x1]
    %v1992 = vld [vmem:[#allocation2 + $0xf8] sm:$0x1]
    %v1993 = vld [vmem:[#allocation2 + $0x104] sm:$0x1]
    %v1994 = vld [vmem:[#allocation2 + $0x110] sm:$0x1]
    %v1995 = vld [vmem:[#allocation2 + $0x11c] sm:$0x1]
    %v1996 = vld [vmem:[#allocation2 + $0x128] sm:$0x1]
    %v1997 = vld [vmem:[#allocation2 + $0x134] sm:$0x1]
    %v1998 = vld [vmem:[#allocation2 + $0x140] sm:$0x1]
    %v1999 = vld [vmem:[#allocation2 + $0x14c] sm:$0x1]
    %v2000 = vld [vmem:[#allocation2 + $0x158] sm:$0x1]
    %v2001 = vld [vmem:[#allocation2 + $0x164] sm:$0x1]
    %v2002 = vld [vmem:[#allocation2 + $0x170] sm:$0x1]
    %v2003 = vld [vmem:[#allocation2 + $0x17c] sm:$0x1]
    %v2004 = vld [vmem:[#allocation2 + $0x188] sm:$0x1]
    %v2005 = vld [vmem:[#allocation2 + $0x194] sm:$0x1]
    %v2006 = vld [vmem:[#allocation2 + $0x1a0] sm:$0x1]
    %v2007 = vld [vmem:[#allocation2 + $0x1ac] sm:$0x1]
    %v2040 = vunpack.c.l.b16 %v1972
    %v2041 = vunpack.c.l.b16 %v1973
    %v2042 = vunpack.c.l.b16 %v1974
    %v2043 = vunpack.c.l.b16 %v1975
    %v2044 = vunpack.c.l.b16 %v1976
    %v2045 = vunpack.c.l.b16 %v1977
    %v2046 = vunpack.c.l.b16 %v1978
    %v2047 = vunpack.c.l.b16 %v1979
    %v2048 = vunpack.c.l.b16 %v1980
    %v2049 = vunpack.c.l.b16 %v1981
    %v2050 = vunpack.c.l.b16 %v1982
    %v2051 = vunpack.c.l.b16 %v1983
    %v2052 = vunpack.c.l.b16 %v1984
    %v2053 = vunpack.c.l.b16 %v1985
    %v2054 = vunpack.c.l.b16 %v1986
    %v2055 = vunpack.c.l.b16 %v1987
    %v2056 = vunpack.c.l.b16 %v1990
    %v2057 = vunpack.c.l.b16 %v1991
    %v2058 = vunpack.c.l.b16 %v1992
    %v2059 = vunpack.c.l.b16 %v1993
    %v2060 = vunpack.c.l.b16 %v1994
    %v2061 = vunpack.c.l.b16 %v1995
    %v2062 = vunpack.c.l.b16 %v1996
    %v2063 = vunpack.c.l.b16 %v1997
    %v2064 = vunpack.c.l.b16 %v1998
    %v2065 = vunpack.c.l.b16 %v1999
    %v2066 = vunpack.c.l.b16 %v2000
    %v2067 = vunpack.c.l.b16 %v2001
    %v2068 = vunpack.c.l.b16 %v2002
    %v2069 = vunpack.c.l.b16 %v2003
    %v2070 = vunpack.c.l.b16 %v2004
    %v2071 = vunpack.c.l.b16 %v2005
    %v2072 = vpack.c.b16 %v2040, %v2040
    %v2073 = vpack.c.b16 %v2041, %v2041
    %v2074 = vpack.c.b16 %v2042, %v2042
    %v2075 = vpack.c.b16 %v2043, %v2043
    %v2076 = vpack.c.b16 %v2044, %v2044
    %v2077 = vpack.c.b16 %v2045, %v2045
    %v2078 = vpack.c.b16 %v2046, %v2046
    %v2079 = vpack.c.b16 %v2047, %v2047
    %v2080 = vpack.c.b16 %v2048, %v2048
    %v2081 = vpack.c.b16 %v2049, %v2049
    %v2082 = vpack.c.b16 %v2050, %v2050
    %v2083 = vpack.c.b16 %v2051, %v2051
    %v2084 = vpack.c.b16 %v2052, %v2052
    %v2085 = vpack.c.b16 %v2053, %v2053
    %v2086 = vpack.c.b16 %v2054, %v2054
    %v2087 = vpack.c.b16 %v2055, %v2055
    %v2088 = vpack.c.b16 %v2056, %v2056
    %v2089 = vpack.c.b16 %v2057, %v2057
    %v2090 = vpack.c.b16 %v2058, %v2058
    %v2091 = vpack.c.b16 %v2059, %v2059
    %v2092 = vpack.c.b16 %v2060, %v2060
    %v2093 = vpack.c.b16 %v2061, %v2061
    %v2094 = vpack.c.b16 %v2062, %v2062
    %v2095 = vpack.c.b16 %v2063, %v2063
    %v2096 = vpack.c.b16 %v2064, %v2064
    %v2097 = vpack.c.b16 %v2065, %v2065
    %v2098 = vpack.c.b16 %v2066, %v2066
    %v2099 = vpack.c.b16 %v2067, %v2067
    %v2100 = vpack.c.b16 %v2068, %v2068
    %v2101 = vpack.c.b16 %v2069, %v2069
    %v2102 = vpack.c.b16 %v2070, %v2070
    %v2103 = vpack.c.b16 %v2071, %v2071
    %v2106 = vunpack.c.l.b16 %v1988
    %v2107 = vunpack.c.l.b16 %v2006
    %v2108 = vpack.c.b16 %v2106, %v2106
    %v2109 = vpack.c.b16 %v2107, %v2107
    %v2112 = vunpack.c.l.b16 %v1989
    %v2113 = vunpack.c.l.b16 %v2007
    %v2114 = vpack.c.b16 %v2112, %v2112
    %v2115 = vpack.c.b16 %v2113, %v2113
    %vm2116 = vsmask.f32 7424
    %v2118 = vshrl.u32 %v1836, 16
    %v2120 = vshll.u32 %v1836, 16
    %v2122 = vrot.slane %v2120, 1
    %v2123 = vor.u32 %v2118, %v2122
    %v2125 = vshll.u32 %v2072, 16
    %v2127 = vrot.slane %v2125, 1
    %v2128 = vsel %vm2116, %v2123, %v2127
    %v2130 = vshrl.u32 %v1837, 16
    %v2132 = vshll.u32 %v1837, 16
    %v2134 = vrot.slane %v2132, 1
    %v2135 = vor.u32 %v2130, %v2134
    %v2137 = vshll.u32 %v2073, 16
    %v2139 = vrot.slane %v2137, 1
    %v2140 = vsel %vm2116, %v2135, %v2139
    %v2142 = vshrl.u32 %v1838, 16
    %v2144 = vshll.u32 %v1838, 16
    %v2146 = vrot.slane %v2144, 1
    %v2147 = vor.u32 %v2142, %v2146
    %v2149 = vshll.u32 %v2074, 16
    %v2151 = vrot.slane %v2149, 1
    %v2152 = vsel %vm2116, %v2147, %v2151
    %v2154 = vshrl.u32 %v1839, 16
    %v2156 = vshll.u32 %v1839, 16
    %v2158 = vrot.slane %v2156, 1
    %v2159 = vor.u32 %v2154, %v2158
    %v2161 = vshll.u32 %v2075, 16
    %v2163 = vrot.slane %v2161, 1
    %v2164 = vsel %vm2116, %v2159, %v2163
    %v2166 = vshrl.u32 %v1840, 16
    %v2168 = vshll.u32 %v1840, 16
    %v2170 = vrot.slane %v2168, 1
    %v2171 = vor.u32 %v2166, %v2170
    %v2173 = vshll.u32 %v2076, 16
    %v2175 = vrot.slane %v2173, 1
    %v2176 = vsel %vm2116, %v2171, %v2175
    %v2178 = vshrl.u32 %v1841, 16
    %v2180 = vshll.u32 %v1841, 16
    %v2182 = vrot.slane %v2180, 1
    %v2183 = vor.u32 %v2178, %v2182
    %v2185 = vshll.u32 %v2077, 16
    %v2187 = vrot.slane %v2185, 1
    %v2188 = vsel %vm2116, %v2183, %v2187
    %v2190 = vshrl.u32 %v1842, 16
    %v2192 = vshll.u32 %v1842, 16
    %v2194 = vrot.slane %v2192, 1
    %v2195 = vor.u32 %v2190, %v2194
    %v2197 = vshll.u32 %v2078, 16
    %v2199 = vrot.slane %v2197, 1
    %v2200 = vsel %vm2116, %v2195, %v2199
    %v2202 = vshrl.u32 %v1843, 16
    %v2204 = vshll.u32 %v1843, 16
    %v2206 = vrot.slane %v2204, 1
    %v2207 = vor.u32 %v2202, %v2206
    %v2209 = vshll.u32 %v2079, 16
    %v2211 = vrot.slane %v2209, 1
    %v2212 = vsel %vm2116, %v2207, %v2211
    %v2214 = vshrl.u32 %v1844, 16
    %v2216 = vshll.u32 %v1844, 16
    %v2218 = vrot.slane %v2216, 1
    %v2219 = vor.u32 %v2214, %v2218
    %v2221 = vshll.u32 %v2080, 16
    %v2223 = vrot.slane %v2221, 1
    %v2224 = vsel %vm2116, %v2219, %v2223
    %v2226 = vshrl.u32 %v1845, 16
    %v2228 = vshll.u32 %v1845, 16
    %v2230 = vrot.slane %v2228, 1
    %v2231 = vor.u32 %v2226, %v2230
    %v2233 = vshll.u32 %v2081, 16
    %v2235 = vrot.slane %v2233, 1
    %v2236 = vsel %vm2116, %v2231, %v2235
    %v2238 = vshrl.u32 %v1846, 16
    %v2240 = vshll.u32 %v1846, 16
    %v2242 = vrot.slane %v2240, 1
    %v2243 = vor.u32 %v2238, %v2242
    %v2245 = vshll.u32 %v2082, 16
    %v2247 = vrot.slane %v2245, 1
    %v2248 = vsel %vm2116, %v2243, %v2247
    %v2250 = vshrl.u32 %v1847, 16
    %v2252 = vshll.u32 %v1847, 16
    %v2254 = vrot.slane %v2252, 1
    %v2255 = vor.u32 %v2250, %v2254
    %v2257 = vshll.u32 %v2083, 16
    %v2259 = vrot.slane %v2257, 1
    %v2260 = vsel %vm2116, %v2255, %v2259
    %v2262 = vshrl.u32 %v1848, 16
    %v2264 = vshll.u32 %v1848, 16
    %v2266 = vrot.slane %v2264, 1
    %v2267 = vor.u32 %v2262, %v2266
    %v2269 = vshll.u32 %v2084, 16
    %v2271 = vrot.slane %v2269, 1
    %v2272 = vsel %vm2116, %v2267, %v2271
    %v2274 = vshrl.u32 %v1849, 16
    %v2276 = vshll.u32 %v1849, 16
    %v2278 = vrot.slane %v2276, 1
    %v2279 = vor.u32 %v2274, %v2278
    %v2281 = vshll.u32 %v2085, 16
    %v2283 = vrot.slane %v2281, 1
    %v2284 = vsel %vm2116, %v2279, %v2283
    %v2286 = vshrl.u32 %v1850, 16
    %v2288 = vshll.u32 %v1850, 16
    %v2290 = vrot.slane %v2288, 1
    %v2291 = vor.u32 %v2286, %v2290
    %v2293 = vshll.u32 %v2086, 16
    %v2295 = vrot.slane %v2293, 1
    %v2296 = vsel %vm2116, %v2291, %v2295
    %v2298 = vshrl.u32 %v1851, 16
    %v2300 = vshll.u32 %v1851, 16
    %v2302 = vrot.slane %v2300, 1
    %v2303 = vor.u32 %v2298, %v2302
    %v2305 = vshll.u32 %v2087, 16
    %v2307 = vrot.slane %v2305, 1
    %v2308 = vsel %vm2116, %v2303, %v2307
    %v2310 = vshrl.u32 %v1908, 16
    %v2312 = vshll.u32 %v1908, 16
    %v2314 = vrot.slane %v2312, 1
    %v2315 = vor.u32 %v2310, %v2314
    %v2317 = vshll.u32 %v2108, 16
    %v2319 = vrot.slane %v2317, 1
    %v2320 = vsel %vm2116, %v2315, %v2319
    %v2322 = vshrl.u32 %v1920, 16
    %v2324 = vshll.u32 %v1920, 16
    %v2326 = vrot.slane %v2324, 1
    %v2327 = vor.u32 %v2322, %v2326
    %v2329 = vshll.u32 %v2114, 16
    %v2331 = vrot.slane %v2329, 1
    %v2332 = vsel %vm2116, %v2327, %v2331
    %v2334 = vshrl.u32 %v1852, 16
    %v2336 = vshll.u32 %v1852, 16
    %v2338 = vrot.slane %v2336, 1
    %v2339 = vor.u32 %v2334, %v2338
    %v2341 = vshll.u32 %v2088, 16
    %v2343 = vrot.slane %v2341, 1
    %v2344 = vsel %vm2116, %v2339, %v2343
    %v2346 = vshrl.u32 %v1853, 16
    %v2348 = vshll.u32 %v1853, 16
    %v2350 = vrot.slane %v2348, 1
    %v2351 = vor.u32 %v2346, %v2350
    %v2353 = vshll.u32 %v2089, 16
    %v2355 = vrot.slane %v2353, 1
    %v2356 = vsel %vm2116, %v2351, %v2355
    %v2358 = vshrl.u32 %v1854, 16
    %v2360 = vshll.u32 %v1854, 16
    %v2362 = vrot.slane %v2360, 1
    %v2363 = vor.u32 %v2358, %v2362
    %v2365 = vshll.u32 %v2090, 16
    %v2367 = vrot.slane %v2365, 1
    %v2368 = vsel %vm2116, %v2363, %v2367
    %v2370 = vshrl.u32 %v1855, 16
    %v2372 = vshll.u32 %v1855, 16
    %v2374 = vrot.slane %v2372, 1
    %v2375 = vor.u32 %v2370, %v2374
    %v2377 = vshll.u32 %v2091, 16
    %v2379 = vrot.slane %v2377, 1
    %v2380 = vsel %vm2116, %v2375, %v2379
    %v2382 = vshrl.u32 %v1856, 16
    %v2384 = vshll.u32 %v1856, 16
    %v2386 = vrot.slane %v2384, 1
    %v2387 = vor.u32 %v2382, %v2386
    %v2389 = vshll.u32 %v2092, 16
    %v2391 = vrot.slane %v2389, 1
    %v2392 = vsel %vm2116, %v2387, %v2391
    %v2394 = vshrl.u32 %v1857, 16
    %v2396 = vshll.u32 %v1857, 16
    %v2398 = vrot.slane %v2396, 1
    %v2399 = vor.u32 %v2394, %v2398
    %v2401 = vshll.u32 %v2093, 16
    %v2403 = vrot.slane %v2401, 1
    %v2404 = vsel %vm2116, %v2399, %v2403
    %v2406 = vshrl.u32 %v1858, 16
    %v2408 = vshll.u32 %v1858, 16
    %v2410 = vrot.slane %v2408, 1
    %v2411 = vor.u32 %v2406, %v2410
    %v2413 = vshll.u32 %v2094, 16
    %v2415 = vrot.slane %v2413, 1
    %v2416 = vsel %vm2116, %v2411, %v2415
    %v2418 = vshrl.u32 %v1859, 16
    %v2420 = vshll.u32 %v1859, 16
    %v2422 = vrot.slane %v2420, 1
    %v2423 = vor.u32 %v2418, %v2422
    %v2425 = vshll.u32 %v2095, 16
    %v2427 = vrot.slane %v2425, 1
    %v2428 = vsel %vm2116, %v2423, %v2427
    %v2430 = vshrl.u32 %v1860, 16
    %v2432 = vshll.u32 %v1860, 16
    %v2434 = vrot.slane %v2432, 1
    %v2435 = vor.u32 %v2430, %v2434
    %v2437 = vshll.u32 %v2096, 16
    %v2439 = vrot.slane %v2437, 1
    %v2440 = vsel %vm2116, %v2435, %v2439
    %v2442 = vshrl.u32 %v1861, 16
    %v2444 = vshll.u32 %v1861, 16
    %v2446 = vrot.slane %v2444, 1
    %v2447 = vor.u32 %v2442, %v2446
    %v2449 = vshll.u32 %v2097, 16
    %v2451 = vrot.slane %v2449, 1
    %v2452 = vsel %vm2116, %v2447, %v2451
    %v2454 = vshrl.u32 %v1862, 16
    %v2456 = vshll.u32 %v1862, 16
    %v2458 = vrot.slane %v2456, 1
    %v2459 = vor.u32 %v2454, %v2458
    %v2461 = vshll.u32 %v2098, 16
    %v2463 = vrot.slane %v2461, 1
    %v2464 = vsel %vm2116, %v2459, %v2463
    %v2466 = vshrl.u32 %v1863, 16
    %v2468 = vshll.u32 %v1863, 16
    %v2470 = vrot.slane %v2468, 1
    %v2471 = vor.u32 %v2466, %v2470
    %v2473 = vshll.u32 %v2099, 16
    %v2475 = vrot.slane %v2473, 1
    %v2476 = vsel %vm2116, %v2471, %v2475
    %v2478 = vshrl.u32 %v1864, 16
    %v2480 = vshll.u32 %v1864, 16
    %v2482 = vrot.slane %v2480, 1
    %v2483 = vor.u32 %v2478, %v2482
    %v2485 = vshll.u32 %v2100, 16
    %v2487 = vrot.slane %v2485, 1
    %v2488 = vsel %vm2116, %v2483, %v2487
    %v2490 = vshrl.u32 %v1865, 16
    %v2492 = vshll.u32 %v1865, 16
    %v2494 = vrot.slane %v2492, 1
    %v2495 = vor.u32 %v2490, %v2494
    %v2497 = vshll.u32 %v2101, 16
    %v2499 = vrot.slane %v2497, 1
    %v2500 = vsel %vm2116, %v2495, %v2499
    %v2502 = vshrl.u32 %v1866, 16
    %v2504 = vshll.u32 %v1866, 16
    %v2506 = vrot.slane %v2504, 1
    %v2507 = vor.u32 %v2502, %v2506
    %v2509 = vshll.u32 %v2102, 16
    %v2511 = vrot.slane %v2509, 1
    %v2512 = vsel %vm2116, %v2507, %v2511
    %v2514 = vshrl.u32 %v1867, 16
    %v2516 = vshll.u32 %v1867, 16
    %v2518 = vrot.slane %v2516, 1
    %v2519 = vor.u32 %v2514, %v2518
    %v2521 = vshll.u32 %v2103, 16
    %v2523 = vrot.slane %v2521, 1
    %v2524 = vsel %vm2116, %v2519, %v2523
    %v2526 = vshrl.u32 %v1909, 16
    %v2528 = vshll.u32 %v1909, 16
    %v2530 = vrot.slane %v2528, 1
    %v2531 = vor.u32 %v2526, %v2530
    %v2533 = vshll.u32 %v2109, 16
    %v2535 = vrot.slane %v2533, 1
    %v2536 = vsel %vm2116, %v2531, %v2535
    %v2538 = vshrl.u32 %v1921, 16
    %v2540 = vshll.u32 %v1921, 16
    %v2542 = vrot.slane %v2540, 1
    %v2543 = vor.u32 %v2538, %v2542
    %v2545 = vshll.u32 %v2115, 16
    %v2547 = vrot.slane %v2545, 1
    %v2548 = vsel %vm2116, %v2543, %v2547
    %s2585 = scalar_lea.vmem [#allocation6], 192
    %v2586 = vld [vmem:[%s2585] sm:$0xf]
    %v2587 = vld [vmem:[%s2585 + $0x4] sm:$0xf]
    %v2588 = vld [vmem:[%s2585 + $0x8] sm:$0xf]
    %v2589 = vld [vmem:[%s2585 + $0xc] sm:$0xf]
    %v2590 = vld [vmem:[%s2585 + $0x10] sm:$0xf]
    %v2591 = vld [vmem:[%s2585 + $0x14] sm:$0xf]
    %v2592 = vld [vmem:[%s2585 + $0x18] sm:$0xf]
    %v2593 = vld [vmem:[%s2585 + $0x1c] sm:$0xf]
    %v2594 = vld [vmem:[%s2585 + $0x20] sm:$0xf]
    %v2595 = vld [vmem:[%s2585 + $0x24] sm:$0xf]
    %v2596 = vld [vmem:[%s2585 + $0x28] sm:$0xf]
    %v2597 = vld [vmem:[%s2585 + $0x2c] sm:$0xf]
    %v2598 = vld [vmem:[%s2585 + $0x30] sm:$0xf]
    %v2599 = vld [vmem:[%s2585 + $0x34] sm:$0xf]
    %v2600 = vld [vmem:[%s2585 + $0x38] sm:$0xf]
    %v2601 = vld [vmem:[%s2585 + $0x3c] sm:$0xf]
    %v2602 = vld [vmem:[%s2585 + $0x40] sm:$0xf]
    %v2603 = vld [vmem:[%s2585 + $0x44] sm:$0xf]
    %v2604 = vld [vmem:[%s2585 + $0x48] sm:$0xf]
    %v2605 = vld [vmem:[%s2585 + $0x4c] sm:$0xf]
    %v2606 = vld [vmem:[%s2585 + $0x50] sm:$0xf]
    %v2607 = vld [vmem:[%s2585 + $0x54] sm:$0xf]
    %v2608 = vld [vmem:[%s2585 + $0x58] sm:$0xf]
    %v2609 = vld [vmem:[%s2585 + $0x5c] sm:$0xf]
    %v2610 = vld [vmem:[%s2585 + $0x60] sm:$0xf]
    %v2611 = vld [vmem:[%s2585 + $0x64] sm:$0xf]
    %v2612 = vld [vmem:[%s2585 + $0x68] sm:$0xf]
    %v2613 = vld [vmem:[%s2585 + $0x6c] sm:$0xf]
    %v2614 = vld [vmem:[%s2585 + $0x70] sm:$0xf]
    %v2615 = vld [vmem:[%s2585 + $0x74] sm:$0xf]
    %v2616 = vld [vmem:[%s2585 + $0x78] sm:$0xf]
    %v2617 = vld [vmem:[%s2585 + $0x7c] sm:$0xf]
    %v2618 = vld [vmem:[%s2585 + $0x80] sm:$0xf]
    %v2619 = vld [vmem:[%s2585 + $0x84] sm:$0xf]
    %v2620 = vld [vmem:[%s2585 + $0x88] sm:$0xf]
    %v2621 = vld [vmem:[%s2585 + $0x8c] sm:$0xf]
    %v2622 = vld [vmem:[%s2585 + $0x90] sm:$0xf]
    %v2623 = vld [vmem:[%s2585 + $0x94] sm:$0xf]
    %v2624 = vld [vmem:[%s2585 + $0x98] sm:$0xf]
    %v2625 = vld [vmem:[%s2585 + $0x9c] sm:$0xf]
    %v2626 = vld [vmem:[%s2585 + $0xa0] sm:$0xf]
    %v2627 = vld [vmem:[%s2585 + $0xa4] sm:$0xf]
    %v2628 = vld [vmem:[%s2585 + $0xa8] sm:$0xf]
    %v2629 = vld [vmem:[%s2585 + $0xac] sm:$0xf]
    %v2630 = vld [vmem:[%s2585 + $0xb0] sm:$0xf]
    %v2631 = vld [vmem:[%s2585 + $0xb4] sm:$0xf]
    %v2632 = vld [vmem:[%s2585 + $0xb8] sm:$0xf]
    %v2633 = vld [vmem:[%s2585 + $0xbc] sm:$0xf]
    %v2682 = vunpack.c.l.b16 %v2586
    %v2683 = vunpack.c.l.b16 %v2587
    %v2684 = vunpack.c.l.b16 %v2588
    %v2685 = vunpack.c.l.b16 %v2589
    %v2686 = vunpack.c.l.b16 %v2590
    %v2687 = vunpack.c.l.b16 %v2591
    %v2688 = vunpack.c.l.b16 %v2592
    %v2689 = vunpack.c.l.b16 %v2593
    %v2690 = vunpack.c.l.b16 %v2594
    %v2691 = vunpack.c.l.b16 %v2595
    %v2692 = vunpack.c.l.b16 %v2596
    %v2693 = vunpack.c.l.b16 %v2597
    %v2694 = vunpack.c.l.b16 %v2598
    %v2695 = vunpack.c.l.b16 %v2599
    %v2696 = vunpack.c.l.b16 %v2600
    %v2697 = vunpack.c.l.b16 %v2601
    %v2698 = vunpack.c.l.b16 %v2602
    %v2699 = vunpack.c.l.b16 %v2603
    %v2700 = vunpack.c.l.b16 %v2604
    %v2701 = vunpack.c.l.b16 %v2605
    %v2702 = vunpack.c.l.b16 %v2606
    %v2703 = vunpack.c.l.b16 %v2607
    %v2704 = vunpack.c.l.b16 %v2608
    %v2705 = vunpack.c.l.b16 %v2609
    %v2706 = vunpack.c.l.b16 %v2610
    %v2707 = vunpack.c.l.b16 %v2611
    %v2708 = vunpack.c.l.b16 %v2612
    %v2709 = vunpack.c.l.b16 %v2613
    %v2710 = vunpack.c.l.b16 %v2614
    %v2711 = vunpack.c.l.b16 %v2615
    %v2712 = vunpack.c.l.b16 %v2616
    %v2713 = vunpack.c.l.b16 %v2617
    %v2714 = vunpack.c.l.b16 %v2618
    %v2715 = vunpack.c.l.b16 %v2619
    %v2716 = vunpack.c.l.b16 %v2620
    %v2717 = vunpack.c.l.b16 %v2621
    %v2718 = vunpack.c.l.b16 %v2622
    %v2719 = vunpack.c.l.b16 %v2623
    %v2720 = vunpack.c.l.b16 %v2624
    %v2721 = vunpack.c.l.b16 %v2625
    %v2722 = vunpack.c.l.b16 %v2626
    %v2723 = vunpack.c.l.b16 %v2627
    %v2724 = vunpack.c.l.b16 %v2628
    %v2725 = vunpack.c.l.b16 %v2629
    %v2726 = vunpack.c.l.b16 %v2630
    %v2727 = vunpack.c.l.b16 %v2631
    %v2728 = vunpack.c.l.b16 %v2632
    %v2729 = vunpack.c.l.b16 %v2633
    %v2730 = vpack.c.b16 %v2683, %v2682
    %v2731 = vpack.c.b16 %v2685, %v2684
    %v2732 = vpack.c.b16 %v2687, %v2686
    %v2733 = vpack.c.b16 %v2689, %v2688
    %v2734 = vpack.c.b16 %v2691, %v2690
    %v2735 = vpack.c.b16 %v2693, %v2692
    %v2736 = vpack.c.b16 %v2695, %v2694
    %v2737 = vpack.c.b16 %v2697, %v2696
    %v2738 = vpack.c.b16 %v2699, %v2698
    %v2739 = vpack.c.b16 %v2701, %v2700
    %v2740 = vpack.c.b16 %v2703, %v2702
    %v2741 = vpack.c.b16 %v2705, %v2704
    %v2742 = vpack.c.b16 %v2707, %v2706
    %v2743 = vpack.c.b16 %v2709, %v2708
    %v2744 = vpack.c.b16 %v2711, %v2710
    %v2745 = vpack.c.b16 %v2713, %v2712
    %v2746 = vpack.c.b16 %v2715, %v2714
    %v2747 = vpack.c.b16 %v2717, %v2716
    %v2748 = vpack.c.b16 %v2719, %v2718
    %v2749 = vpack.c.b16 %v2721, %v2720
    %v2750 = vpack.c.b16 %v2723, %v2722
    %v2751 = vpack.c.b16 %v2725, %v2724
    %v2752 = vpack.c.b16 %v2727, %v2726
    %v2753 = vpack.c.b16 %v2729, %v2728
    %2778 = vmatprep.subr.bf16.mxu0 0
    %2779 = vmatpush1.bf16.msra.mxu0 %v2737
    %2780 = vmatprep.subr.bf16.mxu0 0
    %2781 = vmatpush1.bf16.msra.mxu0 %v2736
    %2782 = vmatprep.subr.bf16.mxu0 0
    %2783 = vmatpush1.bf16.msra.mxu0 %v2735
    %2784 = vmatprep.subr.bf16.mxu0 0
    %2785 = vmatpush1.bf16.msra.mxu0 %v2734
    %2786 = vmatprep.subr.bf16.mxu0 0
    %2787 = vmatpush1.bf16.msra.mxu0 %v2733
    %2788 = vmatprep.subr.bf16.mxu0 0
    %2789 = vmatpush1.bf16.msra.mxu0 %v2732
    %2790 = vmatprep.subr.bf16.mxu0 0
    %2791 = vmatpush1.bf16.msra.mxu0 %v2731
    %2792 = vmatprep.subr.bf16.mxu0 0
    %2793 = vmatpush1.bf16.msra.mxu0 %v2730
    %2794 = vmatprep.subr.bf16.mxu0 0
    %2795 = vmatpush2.bf16.msra.mxu0 %v2745
    %2796 = vmatprep.subr.bf16.mxu0 0
    %2797 = vmatpush2.bf16.msra.mxu0 %v2744
    %2798 = vmatprep.subr.bf16.mxu0 0
    %2799 = vmatpush2.bf16.msra.mxu0 %v2743
    %2800 = vmatprep.subr.bf16.mxu0 0
    %2801 = vmatpush2.bf16.msra.mxu0 %v2742
    %2802 = vmatprep.subr.bf16.mxu0 0
    %2803 = vmatpush2.bf16.msra.mxu0 %v2741
    %2804 = vmatprep.subr.bf16.mxu0 0
    %2805 = vmatpush2.bf16.msra.mxu0 %v2740
    %2806 = vmatprep.subr.bf16.mxu0 0
    %2807 = vmatpush2.bf16.msra.mxu0 %v2739
    %2808 = vmatprep.subr.bf16.mxu0 0
    %2809 = vmatpush2.bf16.msra.mxu0 %v2738
    %2810 = vmatprep.mubr.bf16.mxu0 %v2140
    %2811 = vmatmul.mubr.bf16.gmra.mxu0 %v2128
    %v2812 = vpop.f32.mrf.mxu0
    %v2813 = vadd.f32 0.0, %v2812
    %v2814 = vpop.f32.mrf.mxu0
    %v2815 = vpop.f32.mrf.mxu0
    %v2816 = vadd.f32 0.0, %v2815
    %v2817 = vpop.f32.mrf.mxu0
    %2818 = vmatprep.mubr.bf16.mxu0 %v2152
    %2819 = vmatmul.mubr.bf16.gmra.mxu0 %v2140
    %v2820 = vpop.f32.mrf.mxu0
    %v2821 = vadd.f32 0.0, %v2820
    %v2822 = vpop.f32.mrf.mxu0
    %v2823 = vpop.f32.mrf.mxu0
    %v2824 = vadd.f32 0.0, %v2823
    %v2825 = vpop.f32.mrf.mxu0
    %2826 = vmatprep.mubr.bf16.mxu0 %v2164
    %2827 = vmatmul.mubr.bf16.gmra.mxu0 %v2152
    %v2828 = vpop.f32.mrf.mxu0
    %v2829 = vadd.f32 0.0, %v2828
    %v2830 = vpop.f32.mrf.mxu0
    %v2831 = vpop.f32.mrf.mxu0
    %v2832 = vadd.f32 0.0, %v2831
    %v2833 = vpop.f32.mrf.mxu0
    %2834 = vmatprep.mubr.bf16.mxu0 %v2176
    %2835 = vmatmul.mubr.bf16.gmra.mxu0 %v2164
    %v2836 = vpop.f32.mrf.mxu0
    %v2837 = vadd.f32 0.0, %v2836
    %v2838 = vpop.f32.mrf.mxu0
    %v2839 = vpop.f32.mrf.mxu0
    %v2840 = vadd.f32 0.0, %v2839
    %v2841 = vpop.f32.mrf.mxu0
    %2842 = vmatprep.mubr.bf16.mxu0 %v2188
    %2843 = vmatmul.mubr.bf16.gmra.mxu0 %v2176
    %v2844 = vpop.f32.mrf.mxu0
    %v2845 = vadd.f32 0.0, %v2844
    %v2846 = vpop.f32.mrf.mxu0
    %v2847 = vpop.f32.mrf.mxu0
    %v2848 = vadd.f32 0.0, %v2847
    %v2849 = vpop.f32.mrf.mxu0
    %2850 = vmatprep.mubr.bf16.mxu0 %v2200
    %2851 = vmatmul.mubr.bf16.gmra.mxu0 %v2188
    %v2852 = vpop.f32.mrf.mxu0
    %v2853 = vadd.f32 0.0, %v2852
    %v2854 = vpop.f32.mrf.mxu0
    %v2855 = vpop.f32.mrf.mxu0
    %v2856 = vadd.f32 0.0, %v2855
    %v2857 = vpop.f32.mrf.mxu0
    %2858 = vmatprep.mubr.bf16.mxu0 %v2212
    %2859 = vmatmul.mubr.bf16.gmra.mxu0 %v2200
    %v2860 = vpop.f32.mrf.mxu0
    %v2861 = vadd.f32 0.0, %v2860
    %v2862 = vpop.f32.mrf.mxu0
    %v2863 = vpop.f32.mrf.mxu0
    %v2864 = vadd.f32 0.0, %v2863
    %v2865 = vpop.f32.mrf.mxu0
    %2866 = vmatprep.mubr.bf16.mxu0 %v2224
    %2867 = vmatmul.mubr.bf16.gmra.mxu0 %v2212
    %v2868 = vpop.f32.mrf.mxu0
    %v2869 = vadd.f32 0.0, %v2868
    %v2870 = vpop.f32.mrf.mxu0
    %v2871 = vpop.f32.mrf.mxu0
    %v2872 = vadd.f32 0.0, %v2871
    %v2873 = vpop.f32.mrf.mxu0
    %2874 = vmatprep.mubr.bf16.mxu0 %v2236
    %2875 = vmatmul.mubr.bf16.gmra.mxu0 %v2224
    %v2876 = vpop.f32.mrf.mxu0
    %v2877 = vadd.f32 0.0, %v2876
    %v2878 = vpop.f32.mrf.mxu0
    %v2879 = vpop.f32.mrf.mxu0
    %v2880 = vadd.f32 0.0, %v2879
    %v2881 = vpop.f32.mrf.mxu0
    %2882 = vmatprep.mubr.bf16.mxu0 %v2248
    %2883 = vmatmul.mubr.bf16.gmra.mxu0 %v2236
    %v2884 = vpop.f32.mrf.mxu0
    %v2885 = vadd.f32 0.0, %v2884
    %v2886 = vpop.f32.mrf.mxu0
    %v2887 = vpop.f32.mrf.mxu0
    %v2888 = vadd.f32 0.0, %v2887
    %v2889 = vpop.f32.mrf.mxu0
    %2890 = vmatprep.mubr.bf16.mxu0 %v2260
    %2891 = vmatmul.mubr.bf16.gmra.mxu0 %v2248
    %v2892 = vpop.f32.mrf.mxu0
    %v2893 = vadd.f32 0.0, %v2892
    %v2894 = vpop.f32.mrf.mxu0
    %v2895 = vpop.f32.mrf.mxu0
    %v2896 = vadd.f32 0.0, %v2895
    %v2897 = vpop.f32.mrf.mxu0
    %2898 = vmatprep.mubr.bf16.mxu0 %v2272
    %2899 = vmatmul.mubr.bf16.gmra.mxu0 %v2260
    %v2900 = vpop.f32.mrf.mxu0
    %v2901 = vadd.f32 0.0, %v2900
    %v2902 = vpop.f32.mrf.mxu0
    %v2903 = vpop.f32.mrf.mxu0
    %v2904 = vadd.f32 0.0, %v2903
    %v2905 = vpop.f32.mrf.mxu0
    %2906 = vmatprep.mubr.bf16.mxu0 %v2284
    %2907 = vmatmul.mubr.bf16.gmra.mxu0 %v2272
    %v2908 = vpop.f32.mrf.mxu0
    %v2909 = vadd.f32 0.0, %v2908
    %v2910 = vpop.f32.mrf.mxu0
    %v2911 = vpop.f32.mrf.mxu0
    %v2912 = vadd.f32 0.0, %v2911
    %v2913 = vpop.f32.mrf.mxu0
    %2914 = vmatprep.mubr.bf16.mxu0 %v2296
    %2915 = vmatmul.mubr.bf16.gmra.mxu0 %v2284
    %v2916 = vpop.f32.mrf.mxu0
    %v2917 = vadd.f32 0.0, %v2916
    %v2918 = vpop.f32.mrf.mxu0
    %v2919 = vpop.f32.mrf.mxu0
    %v2920 = vadd.f32 0.0, %v2919
    %v2921 = vpop.f32.mrf.mxu0
    %2922 = vmatprep.mubr.bf16.mxu0 %v2308
    %2923 = vmatmul.mubr.bf16.gmra.mxu0 %v2296
    %v2924 = vpop.f32.mrf.mxu0
    %v2925 = vadd.f32 0.0, %v2924
    %v2926 = vpop.f32.mrf.mxu0
    %v2927 = vpop.f32.mrf.mxu0
    %v2928 = vadd.f32 0.0, %v2927
    %v2929 = vpop.f32.mrf.mxu0
    %2930 = vmatprep.mubr.bf16.mxu0 %v2320
    %2931 = vmatmul.mubr.bf16.gmra.mxu0 %v2308
    %v2932 = vpop.f32.mrf.mxu0
    %v2933 = vadd.f32 0.0, %v2932
    %v2934 = vpop.f32.mrf.mxu0
    %v2935 = vpop.f32.mrf.mxu0
    %v2936 = vadd.f32 0.0, %v2935
    %v2937 = vpop.f32.mrf.mxu0
    %2938 = vmatprep.mubr.bf16.mxu0 %v2356
    %2939 = vmatmul.mubr.bf16.gmra.mxu0 %v2344
    %v2940 = vpop.f32.mrf.mxu0
    %v2941 = vadd.f32 0.0, %v2940
    %v2942 = vpop.f32.mrf.mxu0
    %v2943 = vpop.f32.mrf.mxu0
    %v2944 = vadd.f32 0.0, %v2943
    %v2945 = vpop.f32.mrf.mxu0
    %2946 = vmatprep.mubr.bf16.mxu0 %v2368
    %2947 = vmatmul.mubr.bf16.gmra.mxu0 %v2356
    %v2948 = vpop.f32.mrf.mxu0
    %v2949 = vadd.f32 0.0, %v2948
    %v2950 = vpop.f32.mrf.mxu0
    %v2951 = vpop.f32.mrf.mxu0
    %v2952 = vadd.f32 0.0, %v2951
    %v2953 = vpop.f32.mrf.mxu0
    %2954 = vmatprep.mubr.bf16.mxu0 %v2380
    %2955 = vmatmul.mubr.bf16.gmra.mxu0 %v2368
    %v2956 = vpop.f32.mrf.mxu0
    %v2957 = vadd.f32 0.0, %v2956
    %v2958 = vpop.f32.mrf.mxu0
    %v2959 = vpop.f32.mrf.mxu0
    %v2960 = vadd.f32 0.0, %v2959
    %v2961 = vpop.f32.mrf.mxu0
    %2962 = vmatprep.mubr.bf16.mxu0 %v2392
    %2963 = vmatmul.mubr.bf16.gmra.mxu0 %v2380
    %v2964 = vpop.f32.mrf.mxu0
    %v2965 = vadd.f32 0.0, %v2964
    %v2966 = vpop.f32.mrf.mxu0
    %v2967 = vpop.f32.mrf.mxu0
    %v2968 = vadd.f32 0.0, %v2967
    %v2969 = vpop.f32.mrf.mxu0
    %2970 = vmatprep.mubr.bf16.mxu0 %v2404
    %2971 = vmatmul.mubr.bf16.gmra.mxu0 %v2392
    %v2972 = vpop.f32.mrf.mxu0
    %v2973 = vadd.f32 0.0, %v2972
    %v2974 = vpop.f32.mrf.mxu0
    %v2975 = vpop.f32.mrf.mxu0
    %v2976 = vadd.f32 0.0, %v2975
    %v2977 = vpop.f32.mrf.mxu0
    %2978 = vmatprep.mubr.bf16.mxu0 %v2416
    %2979 = vmatmul.mubr.bf16.gmra.mxu0 %v2404
    %v2980 = vpop.f32.mrf.mxu0
    %v2981 = vadd.f32 0.0, %v2980
    %v2982 = vpop.f32.mrf.mxu0
    %v2983 = vpop.f32.mrf.mxu0
    %v2984 = vadd.f32 0.0, %v2983
    %v2985 = vpop.f32.mrf.mxu0
    %2986 = vmatprep.mubr.bf16.mxu0 %v2428
    %2987 = vmatmul.mubr.bf16.gmra.mxu0 %v2416
    %v2988 = vpop.f32.mrf.mxu0
    %v2989 = vadd.f32 0.0, %v2988
    %v2990 = vpop.f32.mrf.mxu0
    %v2991 = vpop.f32.mrf.mxu0
    %v2992 = vadd.f32 0.0, %v2991
    %v2993 = vpop.f32.mrf.mxu0
    %2994 = vmatprep.mubr.bf16.mxu0 %v2440
    %2995 = vmatmul.mubr.bf16.gmra.mxu0 %v2428
    %v2996 = vpop.f32.mrf.mxu0
    %v2997 = vadd.f32 0.0, %v2996
    %v2998 = vpop.f32.mrf.mxu0
    %v2999 = vpop.f32.mrf.mxu0
    %v3000 = vadd.f32 0.0, %v2999
    %v3001 = vpop.f32.mrf.mxu0
    %3002 = vmatprep.mubr.bf16.mxu0 %v2452
    %3003 = vmatmul.mubr.bf16.gmra.mxu0 %v2440
    %v3004 = vpop.f32.mrf.mxu0
    %v3005 = vadd.f32 0.0, %v3004
    %v3006 = vpop.f32.mrf.mxu0
    %v3007 = vpop.f32.mrf.mxu0
    %v3008 = vadd.f32 0.0, %v3007
    %v3009 = vpop.f32.mrf.mxu0
    %3010 = vmatprep.mubr.bf16.mxu0 %v2464
    %3011 = vmatmul.mubr.bf16.gmra.mxu0 %v2452
    %v3012 = vpop.f32.mrf.mxu0
    %v3013 = vadd.f32 0.0, %v3012
    %v3014 = vpop.f32.mrf.mxu0
    %v3015 = vpop.f32.mrf.mxu0
    %v3016 = vadd.f32 0.0, %v3015
    %v3017 = vpop.f32.mrf.mxu0
    %3018 = vmatprep.mubr.bf16.mxu0 %v2476
    %3019 = vmatmul.mubr.bf16.gmra.mxu0 %v2464
    %v3020 = vpop.f32.mrf.mxu0
    %v3021 = vadd.f32 0.0, %v3020
    %v3022 = vpop.f32.mrf.mxu0
    %v3023 = vpop.f32.mrf.mxu0
    %v3024 = vadd.f32 0.0, %v3023
    %v3025 = vpop.f32.mrf.mxu0
    %3026 = vmatprep.mubr.bf16.mxu0 %v2488
    %3027 = vmatmul.mubr.bf16.gmra.mxu0 %v2476
    %v3028 = vpop.f32.mrf.mxu0
    %v3029 = vadd.f32 0.0, %v3028
    %v3030 = vpop.f32.mrf.mxu0
    %v3031 = vpop.f32.mrf.mxu0
    %v3032 = vadd.f32 0.0, %v3031
    %v3033 = vpop.f32.mrf.mxu0
    %3034 = vmatprep.mubr.bf16.mxu0 %v2500
    %3035 = vmatmul.mubr.bf16.gmra.mxu0 %v2488
    %v3036 = vpop.f32.mrf.mxu0
    %v3037 = vadd.f32 0.0, %v3036
    %v3038 = vpop.f32.mrf.mxu0
    %v3039 = vpop.f32.mrf.mxu0
    %v3040 = vadd.f32 0.0, %v3039
    %v3041 = vpop.f32.mrf.mxu0
    %3042 = vmatprep.mubr.bf16.mxu0 %v2512
    %3043 = vmatmul.mubr.bf16.gmra.mxu0 %v2500
    %v3044 = vpop.f32.mrf.mxu0
    %v3045 = vadd.f32 0.0, %v3044
    %v3046 = vpop.f32.mrf.mxu0
    %v3047 = vpop.f32.mrf.mxu0
    %v3048 = vadd.f32 0.0, %v3047
    %v3049 = vpop.f32.mrf.mxu0
    %3050 = vmatprep.mubr.bf16.mxu0 %v2524
    %3051 = vmatmul.mubr.bf16.gmra.mxu0 %v2512
    %v3052 = vpop.f32.mrf.mxu0
    %v3053 = vadd.f32 0.0, %v3052
    %v3054 = vpop.f32.mrf.mxu0
    %v3055 = vpop.f32.mrf.mxu0
    %v3056 = vadd.f32 0.0, %v3055
    %v3057 = vpop.f32.mrf.mxu0
    %3058 = vmatprep.mubr.bf16.mxu0 %v2536
    %3059 = vmatmul.mubr.bf16.gmra.mxu0 %v2524
    %v3060 = vpop.f32.mrf.mxu0
    %v3061 = vadd.f32 0.0, %v3060
    %v3062 = vpop.f32.mrf.mxu0
    %v3063 = vpop.f32.mrf.mxu0
    %v3064 = vadd.f32 0.0, %v3063
    %v3065 = vpop.f32.mrf.mxu0
    %3066 = vdwg.mxu0
    %3067 = vmatprep.subr.bf16.mxu0 0
    %3068 = vmatpush1.bf16.msra.mxu0 %v2753
    %3069 = vmatprep.subr.bf16.mxu0 0
    %3070 = vmatpush1.bf16.msra.mxu0 %v2752
    %3071 = vmatprep.subr.bf16.mxu0 0
    %3072 = vmatpush1.bf16.msra.mxu0 %v2751
    %3073 = vmatprep.subr.bf16.mxu0 0
    %3074 = vmatpush1.bf16.msra.mxu0 %v2750
    %3075 = vmatprep.subr.bf16.mxu0 0
    %3076 = vmatpush1.bf16.msra.mxu0 %v2749
    %3077 = vmatprep.subr.bf16.mxu0 0
    %3078 = vmatpush1.bf16.msra.mxu0 %v2748
    %3079 = vmatprep.subr.bf16.mxu0 0
    %3080 = vmatpush1.bf16.msra.mxu0 %v2747
    %3081 = vmatprep.subr.bf16.mxu0 0
    %3082 = vmatpush1.bf16.msra.mxu0 %v2746
    %3083 = vmatprep.subr.bf16.mxu0 0
    %3084 = vmatpush2.bf16.msra.mxu0 0
    %3085 = vmatprep.subr.bf16.mxu0 0
    %3086 = vmatpush2.bf16.msra.mxu0 0
    %3087 = vmatprep.subr.bf16.mxu0 0
    %3088 = vmatpush2.bf16.msra.mxu0 0
    %3089 = vmatprep.subr.bf16.mxu0 0
    %3090 = vmatpush2.bf16.msra.mxu0 0
    %3091 = vmatprep.subr.bf16.mxu0 0
    %3092 = vmatpush2.bf16.msra.mxu0 0
    %3093 = vmatprep.subr.bf16.mxu0 0
    %3094 = vmatpush2.bf16.msra.mxu0 0
    %3095 = vmatprep.subr.bf16.mxu0 0
    %3096 = vmatpush2.bf16.msra.mxu0 0
    %3097 = vmatprep.subr.bf16.mxu0 0
    %3098 = vmatpush2.bf16.msra.mxu0 0
    %3099 = vmatprep.mubr.bf16.mxu0 0
    %3100 = vmatmul.mubr.bf16.gmra.mxu0 %v2152
    %v3101 = vpop.f32.mrf.mxu0
    %v3102 = vadd.f32 %v2813, %v3101
    %v3103 = vpop.f32.mrf.mxu0
    %v3104 = vpop.f32.mrf.mxu0
    %v3105 = vadd.f32 %v2816, %v3104
    %v3106 = vpop.f32.mrf.mxu0
    %3107 = vmatprep.mubr.bf16.mxu0 0
    %3108 = vmatmul.mubr.bf16.gmra.mxu0 %v2164
    %v3109 = vpop.f32.mrf.mxu0
    %v3110 = vadd.f32 %v2821, %v3109
    %v3111 = vpop.f32.mrf.mxu0
    %v3112 = vpop.f32.mrf.mxu0
    %v3113 = vadd.f32 %v2824, %v3112
    %v3114 = vpop.f32.mrf.mxu0
    %3115 = vmatprep.mubr.bf16.mxu0 0
    %3116 = vmatmul.mubr.bf16.gmra.mxu0 %v2176
    %v3117 = vpop.f32.mrf.mxu0
    %v3118 = vadd.f32 %v2829, %v3117
    %v3119 = vpop.f32.mrf.mxu0
    %v3120 = vpop.f32.mrf.mxu0
    %v3121 = vadd.f32 %v2832, %v3120
    %v3122 = vpop.f32.mrf.mxu0
    %3123 = vmatprep.mubr.bf16.mxu0 0
    %3124 = vmatmul.mubr.bf16.gmra.mxu0 %v2188
    %v3125 = vpop.f32.mrf.mxu0
    %v3126 = vadd.f32 %v2837, %v3125
    %v3127 = vpop.f32.mrf.mxu0
    %v3128 = vpop.f32.mrf.mxu0
    %v3129 = vadd.f32 %v2840, %v3128
    %v3130 = vpop.f32.mrf.mxu0
    %3131 = vmatprep.mubr.bf16.mxu0 0
    %3132 = vmatmul.mubr.bf16.gmra.mxu0 %v2200
    %v3133 = vpop.f32.mrf.mxu0
    %v3134 = vadd.f32 %v2845, %v3133
    %v3135 = vpop.f32.mrf.mxu0
    %v3136 = vpop.f32.mrf.mxu0
    %v3137 = vadd.f32 %v2848, %v3136
    %v3138 = vpop.f32.mrf.mxu0
    %3139 = vmatprep.mubr.bf16.mxu0 0
    %3140 = vmatmul.mubr.bf16.gmra.mxu0 %v2212
    %v3141 = vpop.f32.mrf.mxu0
    %v3142 = vadd.f32 %v2853, %v3141
    %v3143 = vpop.f32.mrf.mxu0
    %v3144 = vpop.f32.mrf.mxu0
    %v3145 = vadd.f32 %v2856, %v3144
    %v3146 = vpop.f32.mrf.mxu0
    %3147 = vmatprep.mubr.bf16.mxu0 0
    %3148 = vmatmul.mubr.bf16.gmra.mxu0 %v2224
    %v3149 = vpop.f32.mrf.mxu0
    %v3150 = vadd.f32 %v2861, %v3149
    %v3151 = vpop.f32.mrf.mxu0
    %v3152 = vpop.f32.mrf.mxu0
    %v3153 = vadd.f32 %v2864, %v3152
    %v3154 = vpop.f32.mrf.mxu0
    %3155 = vmatprep.mubr.bf16.mxu0 0
    %3156 = vmatmul.mubr.bf16.gmra.mxu0 %v2236
    %v3157 = vpop.f32.mrf.mxu0
    %v3158 = vadd.f32 %v2869, %v3157
    %v3159 = vpop.f32.mrf.mxu0
    %v3160 = vpop.f32.mrf.mxu0
    %v3161 = vadd.f32 %v2872, %v3160
    %v3162 = vpop.f32.mrf.mxu0
    %3163 = vmatprep.mubr.bf16.mxu0 0
    %3164 = vmatmul.mubr.bf16.gmra.mxu0 %v2248
    %v3165 = vpop.f32.mrf.mxu0
    %v3166 = vadd.f32 %v2877, %v3165
    %v3167 = vpop.f32.mrf.mxu0
    %v3168 = vpop.f32.mrf.mxu0
    %v3169 = vadd.f32 %v2880, %v3168
    %v3170 = vpop.f32.mrf.mxu0
    %3171 = vmatprep.mubr.bf16.mxu0 0
    %3172 = vmatmul.mubr.bf16.gmra.mxu0 %v2260
    %v3173 = vpop.f32.mrf.mxu0
    %v3174 = vadd.f32 %v2885, %v3173
    %v3175 = vpop.f32.mrf.mxu0
    %v3176 = vpop.f32.mrf.mxu0
    %v3177 = vadd.f32 %v2888, %v3176
    %v3178 = vpop.f32.mrf.mxu0
    %3179 = vmatprep.mubr.bf16.mxu0 0
    %3180 = vmatmul.mubr.bf16.gmra.mxu0 %v2272
    %v3181 = vpop.f32.mrf.mxu0
    %v3182 = vadd.f32 %v2893, %v3181
    %v3183 = vpop.f32.mrf.mxu0
    %v3184 = vpop.f32.mrf.mxu0
    %v3185 = vadd.f32 %v2896, %v3184
    %v3186 = vpop.f32.mrf.mxu0
    %3187 = vmatprep.mubr.bf16.mxu0 0
    %3188 = vmatmul.mubr.bf16.gmra.mxu0 %v2284
    %v3189 = vpop.f32.mrf.mxu0
    %v3190 = vadd.f32 %v2901, %v3189
    %v3191 = vpop.f32.mrf.mxu0
    %v3192 = vpop.f32.mrf.mxu0
    %v3193 = vadd.f32 %v2904, %v3192
    %v3194 = vpop.f32.mrf.mxu0
    %3195 = vmatprep.mubr.bf16.mxu0 0
    %3196 = vmatmul.mubr.bf16.gmra.mxu0 %v2296
    %v3197 = vpop.f32.mrf.mxu0
    %v3198 = vadd.f32 %v2909, %v3197
    %v3199 = vpop.f32.mrf.mxu0
    %v3200 = vpop.f32.mrf.mxu0
    %v3201 = vadd.f32 %v2912, %v3200
    %v3202 = vpop.f32.mrf.mxu0
    %3203 = vmatprep.mubr.bf16.mxu0 0
    %3204 = vmatmul.mubr.bf16.gmra.mxu0 %v2308
    %v3205 = vpop.f32.mrf.mxu0
    %v3206 = vadd.f32 %v2917, %v3205
    %v3207 = vpop.f32.mrf.mxu0
    %v3208 = vpop.f32.mrf.mxu0
    %v3209 = vadd.f32 %v2920, %v3208
    %v3210 = vpop.f32.mrf.mxu0
    %3211 = vmatprep.mubr.bf16.mxu0 0
    %3212 = vmatmul.mubr.bf16.gmra.mxu0 %v2320
    %v3213 = vpop.f32.mrf.mxu0
    %v3214 = vadd.f32 %v2925, %v3213
    %v3215 = vpop.f32.mrf.mxu0
    %v3216 = vpop.f32.mrf.mxu0
    %v3217 = vadd.f32 %v2928, %v3216
    %v3218 = vpop.f32.mrf.mxu0
    %3219 = vmatprep.mubr.bf16.mxu0 0
    %3220 = vmatmul.mubr.bf16.gmra.mxu0 %v2332
    %v3221 = vpop.f32.mrf.mxu0
    %v3222 = vadd.f32 %v2933, %v3221
    %v3223 = vpop.f32.mrf.mxu0
    %v3224 = vpop.f32.mrf.mxu0
    %v3225 = vadd.f32 %v2936, %v3224
    %v3226 = vpop.f32.mrf.mxu0
    %3227 = vmatprep.mubr.bf16.mxu0 0
    %3228 = vmatmul.mubr.bf16.gmra.mxu0 %v2368
    %v3229 = vpop.f32.mrf.mxu0
    %v3230 = vadd.f32 %v2941, %v3229
    %v3231 = vpop.f32.mrf.mxu0
    %v3232 = vpop.f32.mrf.mxu0
    %v3233 = vadd.f32 %v2944, %v3232
    %v3234 = vpop.f32.mrf.mxu0
    %3235 = vmatprep.mubr.bf16.mxu0 0
    %3236 = vmatmul.mubr.bf16.gmra.mxu0 %v2380
    %v3237 = vpop.f32.mrf.mxu0
    %v3238 = vadd.f32 %v2949, %v3237
    %v3239 = vpop.f32.mrf.mxu0
    %v3240 = vpop.f32.mrf.mxu0
    %v3241 = vadd.f32 %v2952, %v3240
    %v3242 = vpop.f32.mrf.mxu0
    %3243 = vmatprep.mubr.bf16.mxu0 0
    %3244 = vmatmul.mubr.bf16.gmra.mxu0 %v2392
    %v3245 = vpop.f32.mrf.mxu0
    %v3246 = vadd.f32 %v2957, %v3245
    %v3247 = vpop.f32.mrf.mxu0
    %v3248 = vpop.f32.mrf.mxu0
    %v3249 = vadd.f32 %v2960, %v3248
    %v3250 = vpop.f32.mrf.mxu0
    %3251 = vmatprep.mubr.bf16.mxu0 0
    %3252 = vmatmul.mubr.bf16.gmra.mxu0 %v2404
    %v3253 = vpop.f32.mrf.mxu0
    %v3254 = vadd.f32 %v2965, %v3253
    %v3255 = vpop.f32.mrf.mxu0
    %v3256 = vpop.f32.mrf.mxu0
    %v3257 = vadd.f32 %v2968, %v3256
    %v3258 = vpop.f32.mrf.mxu0
    %3259 = vmatprep.mubr.bf16.mxu0 0
    %3260 = vmatmul.mubr.bf16.gmra.mxu0 %v2416
    %v3261 = vpop.f32.mrf.mxu0
    %v3262 = vadd.f32 %v2973, %v3261
    %v3263 = vpop.f32.mrf.mxu0
    %v3264 = vpop.f32.mrf.mxu0
    %v3265 = vadd.f32 %v2976, %v3264
    %v3266 = vpop.f32.mrf.mxu0
    %3267 = vmatprep.mubr.bf16.mxu0 0
    %3268 = vmatmul.mubr.bf16.gmra.mxu0 %v2428
    %v3269 = vpop.f32.mrf.mxu0
    %v3270 = vadd.f32 %v2981, %v3269
    %v3271 = vpop.f32.mrf.mxu0
    %v3272 = vpop.f32.mrf.mxu0
    %v3273 = vadd.f32 %v2984, %v3272
    %v3274 = vpop.f32.mrf.mxu0
    %3275 = vmatprep.mubr.bf16.mxu0 0
    %3276 = vmatmul.mubr.bf16.gmra.mxu0 %v2440
    %v3277 = vpop.f32.mrf.mxu0
    %v3278 = vadd.f32 %v2989, %v3277
    %v3279 = vpop.f32.mrf.mxu0
    %v3280 = vpop.f32.mrf.mxu0
    %v3281 = vadd.f32 %v2992, %v3280
    %v3282 = vpop.f32.mrf.mxu0
    %3283 = vmatprep.mubr.bf16.mxu0 0
    %3284 = vmatmul.mubr.bf16.gmra.mxu0 %v2452
    %v3285 = vpop.f32.mrf.mxu0
    %v3286 = vadd.f32 %v2997, %v3285
    %v3287 = vpop.f32.mrf.mxu0
    %v3288 = vpop.f32.mrf.mxu0
    %v3289 = vadd.f32 %v3000, %v3288
    %v3290 = vpop.f32.mrf.mxu0
    %3291 = vmatprep.mubr.bf16.mxu0 0
    %3292 = vmatmul.mubr.bf16.gmra.mxu0 %v2464
    %v3293 = vpop.f32.mrf.mxu0
    %v3294 = vadd.f32 %v3005, %v3293
    %v3295 = vpop.f32.mrf.mxu0
    %v3296 = vpop.f32.mrf.mxu0
    %v3297 = vadd.f32 %v3008, %v3296
    %v3298 = vpop.f32.mrf.mxu0
    %3299 = vmatprep.mubr.bf16.mxu0 0
    %3300 = vmatmul.mubr.bf16.gmra.mxu0 %v2476
    %v3301 = vpop.f32.mrf.mxu0
    %v3302 = vadd.f32 %v3013, %v3301
    %v3303 = vpop.f32.mrf.mxu0
    %v3304 = vpop.f32.mrf.mxu0
    %v3305 = vadd.f32 %v3016, %v3304
    %v3306 = vpop.f32.mrf.mxu0
    %3307 = vmatprep.mubr.bf16.mxu0 0
    %3308 = vmatmul.mubr.bf16.gmra.mxu0 %v2488
    %v3309 = vpop.f32.mrf.mxu0
    %v3310 = vadd.f32 %v3021, %v3309
    %v3311 = vpop.f32.mrf.mxu0
    %v3312 = vpop.f32.mrf.mxu0
    %v3313 = vadd.f32 %v3024, %v3312
    %v3314 = vpop.f32.mrf.mxu0
    %3315 = vmatprep.mubr.bf16.mxu0 0
    %3316 = vmatmul.mubr.bf16.gmra.mxu0 %v2500
    %v3317 = vpop.f32.mrf.mxu0
    %v3318 = vadd.f32 %v3029, %v3317
    %v3319 = vpop.f32.mrf.mxu0
    %v3320 = vpop.f32.mrf.mxu0
    %v3321 = vadd.f32 %v3032, %v3320
    %v3322 = vpop.f32.mrf.mxu0
    %3323 = vmatprep.mubr.bf16.mxu0 0
    %3324 = vmatmul.mubr.bf16.gmra.mxu0 %v2512
    %v3325 = vpop.f32.mrf.mxu0
    %v3326 = vadd.f32 %v3037, %v3325
    %v3327 = vpop.f32.mrf.mxu0
    %v3328 = vpop.f32.mrf.mxu0
    %v3329 = vadd.f32 %v3040, %v3328
    %v3330 = vpop.f32.mrf.mxu0
    %3331 = vmatprep.mubr.bf16.mxu0 0
    %3332 = vmatmul.mubr.bf16.gmra.mxu0 %v2524
    %v3333 = vpop.f32.mrf.mxu0
    %v3334 = vadd.f32 %v3045, %v3333
    %v3335 = vpop.f32.mrf.mxu0
    %v3336 = vpop.f32.mrf.mxu0
    %v3337 = vadd.f32 %v3048, %v3336
    %v3338 = vpop.f32.mrf.mxu0
    %3339 = vmatprep.mubr.bf16.mxu0 0
    %3340 = vmatmul.mubr.bf16.gmra.mxu0 %v2536
    %v3341 = vpop.f32.mrf.mxu0
    %v3342 = vadd.f32 %v3053, %v3341
    %v3343 = vpop.f32.mrf.mxu0
    %v3344 = vpop.f32.mrf.mxu0
    %v3345 = vadd.f32 %v3056, %v3344
    %v3346 = vpop.f32.mrf.mxu0
    %3347 = vmatprep.mubr.bf16.mxu0 0
    %3348 = vmatmul.mubr.bf16.gmra.mxu0 %v2548
    %v3349 = vpop.f32.mrf.mxu0
    %v3350 = vadd.f32 %v3061, %v3349
    %v3351 = vpop.f32.mrf.mxu0
    %v3352 = vpop.f32.mrf.mxu0
    %v3353 = vadd.f32 %v3064, %v3352
    %v3354 = vpop.f32.mrf.mxu0
    %3355 = vdwg.mxu0
    %v3404 = vunpack.c.l.b16 %v1924
    %v3405 = vunpack.c.l.b16 %v1925
    %v3406 = vunpack.c.l.b16 %v1926
    %v3407 = vunpack.c.l.b16 %v1927
    %v3408 = vunpack.c.l.b16 %v1928
    %v3409 = vunpack.c.l.b16 %v1929
    %v3410 = vunpack.c.l.b16 %v1930
    %v3411 = vunpack.c.l.b16 %v1931
    %v3412 = vunpack.c.l.b16 %v1932
    %v3413 = vunpack.c.l.b16 %v1933
    %v3414 = vunpack.c.l.b16 %v1934
    %v3415 = vunpack.c.l.b16 %v1935
    %v3416 = vunpack.c.l.b16 %v1936
    %v3417 = vunpack.c.l.b16 %v1937
    %v3418 = vunpack.c.l.b16 %v1938
    %v3419 = vunpack.c.l.b16 %v1939
    %v3420 = vunpack.c.l.b16 %v1940
    %v3421 = vunpack.c.l.b16 %v1941
    %v3422 = vunpack.c.l.b16 %v1942
    %v3423 = vunpack.c.l.b16 %v1943
    %v3424 = vunpack.c.l.b16 %v1944
    %v3425 = vunpack.c.l.b16 %v1945
    %v3426 = vunpack.c.l.b16 %v1946
    %v3427 = vunpack.c.l.b16 %v1947
    %v3428 = vunpack.c.l.b16 %v1948
    %v3429 = vunpack.c.l.b16 %v1949
    %v3430 = vunpack.c.l.b16 %v1950
    %v3431 = vunpack.c.l.b16 %v1951
    %v3432 = vunpack.c.l.b16 %v1952
    %v3433 = vunpack.c.l.b16 %v1953
    %v3434 = vunpack.c.l.b16 %v1954
    %v3435 = vunpack.c.l.b16 %v1955
    %v3436 = vunpack.c.l.b16 %v1956
    %v3437 = vunpack.c.l.b16 %v1957
    %v3438 = vunpack.c.l.b16 %v1958
    %v3439 = vunpack.c.l.b16 %v1959
    %v3440 = vunpack.c.l.b16 %v1960
    %v3441 = vunpack.c.l.b16 %v1961
    %v3442 = vunpack.c.l.b16 %v1962
    %v3443 = vunpack.c.l.b16 %v1963
    %v3444 = vunpack.c.l.b16 %v1964
    %v3445 = vunpack.c.l.b16 %v1965
    %v3446 = vunpack.c.l.b16 %v1966
    %v3447 = vunpack.c.l.b16 %v1967
    %v3448 = vunpack.c.l.b16 %v1968
    %v3449 = vunpack.c.l.b16 %v1969
    %v3450 = vunpack.c.l.b16 %v1970
    %v3451 = vunpack.c.l.b16 %v1971
    %v3452 = vpack.c.b16 %v3405, %v3404
    %v3453 = vpack.c.b16 %v3407, %v3406
    %v3454 = vpack.c.b16 %v3409, %v3408
    %v3455 = vpack.c.b16 %v3411, %v3410
    %v3456 = vpack.c.b16 %v3413, %v3412
    %v3457 = vpack.c.b16 %v3415, %v3414
    %v3458 = vpack.c.b16 %v3417, %v3416
    %v3459 = vpack.c.b16 %v3419, %v3418
    %v3460 = vpack.c.b16 %v3421, %v3420
    %v3461 = vpack.c.b16 %v3423, %v3422
    %v3462 = vpack.c.b16 %v3425, %v3424
    %v3463 = vpack.c.b16 %v3427, %v3426
    %v3464 = vpack.c.b16 %v3429, %v3428
    %v3465 = vpack.c.b16 %v3431, %v3430
    %v3466 = vpack.c.b16 %v3433, %v3432
    %v3467 = vpack.c.b16 %v3435, %v3434
    %v3468 = vpack.c.b16 %v3437, %v3436
    %v3469 = vpack.c.b16 %v3439, %v3438
    %v3470 = vpack.c.b16 %v3441, %v3440
    %v3471 = vpack.c.b16 %v3443, %v3442
    %v3472 = vpack.c.b16 %v3445, %v3444
    %v3473 = vpack.c.b16 %v3447, %v3446
    %v3474 = vpack.c.b16 %v3449, %v3448
    %v3475 = vpack.c.b16 %v3451, %v3450
    %3500 = vmatprep.subr.bf16.mxu0 0
    %3501 = vmatpush1.bf16.msra.mxu0 %v3459
    %3502 = vmatprep.subr.bf16.mxu0 0
    %3503 = vmatpush1.bf16.msra.mxu0 %v3458
    %3504 = vmatprep.subr.bf16.mxu0 0
    %3505 = vmatpush1.bf16.msra.mxu0 %v3457
    %3506 = vmatprep.subr.bf16.mxu0 0
    %3507 = vmatpush1.bf16.msra.mxu0 %v3456
    %3508 = vmatprep.subr.bf16.mxu0 0
    %3509 = vmatpush1.bf16.msra.mxu0 %v3455
    %3510 = vmatprep.subr.bf16.mxu0 0
    %3511 = vmatpush1.bf16.msra.mxu0 %v3454
    %3512 = vmatprep.subr.bf16.mxu0 0
    %3513 = vmatpush1.bf16.msra.mxu0 %v3453
    %3514 = vmatprep.subr.bf16.mxu0 0
    %3515 = vmatpush1.bf16.msra.mxu0 %v3452
    %3516 = vmatprep.subr.bf16.mxu0 0
    %3517 = vmatpush2.bf16.msra.mxu0 %v3467
    %3518 = vmatprep.subr.bf16.mxu0 0
    %3519 = vmatpush2.bf16.msra.mxu0 %v3466
    %3520 = vmatprep.subr.bf16.mxu0 0
    %3521 = vmatpush2.bf16.msra.mxu0 %v3465
    %3522 = vmatprep.subr.bf16.mxu0 0
    %3523 = vmatpush2.bf16.msra.mxu0 %v3464
    %3524 = vmatprep.subr.bf16.mxu0 0
    %3525 = vmatpush2.bf16.msra.mxu0 %v3463
    %3526 = vmatprep.subr.bf16.mxu0 0
    %3527 = vmatpush2.bf16.msra.mxu0 %v3462
    %3528 = vmatprep.subr.bf16.mxu0 0
    %3529 = vmatpush2.bf16.msra.mxu0 %v3461
    %3530 = vmatprep.subr.bf16.mxu0 0
    %3531 = vmatpush2.bf16.msra.mxu0 %v3460
    %3532 = vmatprep.mubr.bf16.mxu0 %v1837
    %3533 = vmatmul.mubr.bf16.gmra.mxu0 %v1836
    %v3534 = vpop.f32.mrf.mxu0
    %v3535 = vadd.f32 %v3102, %v3534
    %v3536 = vpop.f32.mrf.mxu0
    %v3537 = vpop.f32.mrf.mxu0
    %v3538 = vadd.f32 %v3105, %v3537
    %v3539 = vpop.f32.mrf.mxu0
    %3540 = vmatprep.mubr.bf16.mxu0 %v1838
    %3541 = vmatmul.mubr.bf16.gmra.mxu0 %v1837
    %v3542 = vpop.f32.mrf.mxu0
    %v3543 = vadd.f32 %v3110, %v3542
    %v3544 = vpop.f32.mrf.mxu0
    %v3545 = vpop.f32.mrf.mxu0
    %v3546 = vadd.f32 %v3113, %v3545
    %v3547 = vpop.f32.mrf.mxu0
    %3548 = vmatprep.mubr.bf16.mxu0 %v1839
    %3549 = vmatmul.mubr.bf16.gmra.mxu0 %v1838
    %v3550 = vpop.f32.mrf.mxu0
    %v3551 = vadd.f32 %v3118, %v3550
    %v3552 = vpop.f32.mrf.mxu0
    %v3553 = vpop.f32.mrf.mxu0
    %v3554 = vadd.f32 %v3121, %v3553
    %v3555 = vpop.f32.mrf.mxu0
    %3556 = vmatprep.mubr.bf16.mxu0 %v1840
    %3557 = vmatmul.mubr.bf16.gmra.mxu0 %v1839
    %v3558 = vpop.f32.mrf.mxu0
    %v3559 = vadd.f32 %v3126, %v3558
    %v3560 = vpop.f32.mrf.mxu0
    %v3561 = vpop.f32.mrf.mxu0
    %v3562 = vadd.f32 %v3129, %v3561
    %v3563 = vpop.f32.mrf.mxu0
    %3564 = vmatprep.mubr.bf16.mxu0 %v1841
    %3565 = vmatmul.mubr.bf16.gmra.mxu0 %v1840
    %v3566 = vpop.f32.mrf.mxu0
    %v3567 = vadd.f32 %v3134, %v3566
    %v3568 = vpop.f32.mrf.mxu0
    %v3569 = vpop.f32.mrf.mxu0
    %v3570 = vadd.f32 %v3137, %v3569
    %v3571 = vpop.f32.mrf.mxu0
    %3572 = vmatprep.mubr.bf16.mxu0 %v1842
    %3573 = vmatmul.mubr.bf16.gmra.mxu0 %v1841
    %v3574 = vpop.f32.mrf.mxu0
    %v3575 = vadd.f32 %v3142, %v3574
    %v3576 = vpop.f32.mrf.mxu0
    %v3577 = vpop.f32.mrf.mxu0
    %v3578 = vadd.f32 %v3145, %v3577
    %v3579 = vpop.f32.mrf.mxu0
    %3580 = vmatprep.mubr.bf16.mxu0 %v1843
    %3581 = vmatmul.mubr.bf16.gmra.mxu0 %v1842
    %v3582 = vpop.f32.mrf.mxu0
    %v3583 = vadd.f32 %v3150, %v3582
    %v3584 = vpop.f32.mrf.mxu0
    %v3585 = vpop.f32.mrf.mxu0
    %v3586 = vadd.f32 %v3153, %v3585
    %v3587 = vpop.f32.mrf.mxu0
    %3588 = vmatprep.mubr.bf16.mxu0 %v1844
    %3589 = vmatmul.mubr.bf16.gmra.mxu0 %v1843
    %v3590 = vpop.f32.mrf.mxu0
    %v3591 = vadd.f32 %v3158, %v3590
    %v3592 = vpop.f32.mrf.mxu0
    %v3593 = vpop.f32.mrf.mxu0
    %v3594 = vadd.f32 %v3161, %v3593
    %v3595 = vpop.f32.mrf.mxu0
    %3596 = vmatprep.mubr.bf16.mxu0 %v1845
    %3597 = vmatmul.mubr.bf16.gmra.mxu0 %v1844
    %v3598 = vpop.f32.mrf.mxu0
    %v3599 = vadd.f32 %v3166, %v3598
    %v3600 = vpop.f32.mrf.mxu0
    %v3601 = vpop.f32.mrf.mxu0
    %v3602 = vadd.f32 %v3169, %v3601
    %v3603 = vpop.f32.mrf.mxu0
    %3604 = vmatprep.mubr.bf16.mxu0 %v1846
    %3605 = vmatmul.mubr.bf16.gmra.mxu0 %v1845
    %v3606 = vpop.f32.mrf.mxu0
    %v3607 = vadd.f32 %v3174, %v3606
    %v3608 = vpop.f32.mrf.mxu0
    %v3609 = vpop.f32.mrf.mxu0
    %v3610 = vadd.f32 %v3177, %v3609
    %v3611 = vpop.f32.mrf.mxu0
    %3612 = vmatprep.mubr.bf16.mxu0 %v1847
    %3613 = vmatmul.mubr.bf16.gmra.mxu0 %v1846
    %v3614 = vpop.f32.mrf.mxu0
    %v3615 = vadd.f32 %v3182, %v3614
    %v3616 = vpop.f32.mrf.mxu0
    %v3617 = vpop.f32.mrf.mxu0
    %v3618 = vadd.f32 %v3185, %v3617
    %v3619 = vpop.f32.mrf.mxu0
    %3620 = vmatprep.mubr.bf16.mxu0 %v1848
    %3621 = vmatmul.mubr.bf16.gmra.mxu0 %v1847
    %v3622 = vpop.f32.mrf.mxu0
    %v3623 = vadd.f32 %v3190, %v3622
    %v3624 = vpop.f32.mrf.mxu0
    %v3625 = vpop.f32.mrf.mxu0
    %v3626 = vadd.f32 %v3193, %v3625
    %v3627 = vpop.f32.mrf.mxu0
    %3628 = vmatprep.mubr.bf16.mxu0 %v1849
    %3629 = vmatmul.mubr.bf16.gmra.mxu0 %v1848
    %v3630 = vpop.f32.mrf.mxu0
    %v3631 = vadd.f32 %v3198, %v3630
    %v3632 = vpop.f32.mrf.mxu0
    %v3633 = vpop.f32.mrf.mxu0
    %v3634 = vadd.f32 %v3201, %v3633
    %v3635 = vpop.f32.mrf.mxu0
    %3636 = vmatprep.mubr.bf16.mxu0 %v1850
    %3637 = vmatmul.mubr.bf16.gmra.mxu0 %v1849
    %v3638 = vpop.f32.mrf.mxu0
    %v3639 = vadd.f32 %v3206, %v3638
    %v3640 = vpop.f32.mrf.mxu0
    %v3641 = vpop.f32.mrf.mxu0
    %v3642 = vadd.f32 %v3209, %v3641
    %v3643 = vpop.f32.mrf.mxu0
    %3644 = vmatprep.mubr.bf16.mxu0 %v1851
    %3645 = vmatmul.mubr.bf16.gmra.mxu0 %v1850
    %v3646 = vpop.f32.mrf.mxu0
    %v3647 = vadd.f32 %v3214, %v3646
    %v3648 = vpop.f32.mrf.mxu0
    %v3649 = vpop.f32.mrf.mxu0
    %v3650 = vadd.f32 %v3217, %v3649
    %v3651 = vpop.f32.mrf.mxu0
    %3652 = vmatprep.mubr.bf16.mxu0 %v1908
    %3653 = vmatmul.mubr.bf16.gmra.mxu0 %v1851
    %v3654 = vpop.f32.mrf.mxu0
    %v3655 = vadd.f32 %v3222, %v3654
    %v3656 = vpop.f32.mrf.mxu0
    %v3657 = vpop.f32.mrf.mxu0
    %v3658 = vadd.f32 %v3225, %v3657
    %v3659 = vpop.f32.mrf.mxu0
    %3660 = vmatprep.mubr.bf16.mxu0 %v1853
    %3661 = vmatmul.mubr.bf16.gmra.mxu0 %v1852
    %v3662 = vpop.f32.mrf.mxu0
    %v3663 = vadd.f32 %v3230, %v3662
    %v3664 = vpop.f32.mrf.mxu0
    %v3665 = vpop.f32.mrf.mxu0
    %v3666 = vadd.f32 %v3233, %v3665
    %v3667 = vpop.f32.mrf.mxu0
    %3668 = vmatprep.mubr.bf16.mxu0 %v1854
    %3669 = vmatmul.mubr.bf16.gmra.mxu0 %v1853
    %v3670 = vpop.f32.mrf.mxu0
    %v3671 = vadd.f32 %v3238, %v3670
    %v3672 = vpop.f32.mrf.mxu0
    %v3673 = vpop.f32.mrf.mxu0
    %v3674 = vadd.f32 %v3241, %v3673
    %v3675 = vpop.f32.mrf.mxu0
    %3676 = vmatprep.mubr.bf16.mxu0 %v1855
    %3677 = vmatmul.mubr.bf16.gmra.mxu0 %v1854
    %v3678 = vpop.f32.mrf.mxu0
    %v3679 = vadd.f32 %v3246, %v3678
    %v3680 = vpop.f32.mrf.mxu0
    %v3681 = vpop.f32.mrf.mxu0
    %v3682 = vadd.f32 %v3249, %v3681
    %v3683 = vpop.f32.mrf.mxu0
    %3684 = vmatprep.mubr.bf16.mxu0 %v1856
    %3685 = vmatmul.mubr.bf16.gmra.mxu0 %v1855
    %v3686 = vpop.f32.mrf.mxu0
    %v3687 = vadd.f32 %v3254, %v3686
    %v3688 = vpop.f32.mrf.mxu0
    %v3689 = vpop.f32.mrf.mxu0
    %v3690 = vadd.f32 %v3257, %v3689
    %v3691 = vpop.f32.mrf.mxu0
    %3692 = vmatprep.mubr.bf16.mxu0 %v1857
    %3693 = vmatmul.mubr.bf16.gmra.mxu0 %v1856
    %v3694 = vpop.f32.mrf.mxu0
    %v3695 = vadd.f32 %v3262, %v3694
    %v3696 = vpop.f32.mrf.mxu0
    %v3697 = vpop.f32.mrf.mxu0
    %v3698 = vadd.f32 %v3265, %v3697
    %v3699 = vpop.f32.mrf.mxu0
    %3700 = vmatprep.mubr.bf16.mxu0 %v1858
    %3701 = vmatmul.mubr.bf16.gmra.mxu0 %v1857
    %v3702 = vpop.f32.mrf.mxu0
    %v3703 = vadd.f32 %v3270, %v3702
    %v3704 = vpop.f32.mrf.mxu0
    %v3705 = vpop.f32.mrf.mxu0
    %v3706 = vadd.f32 %v3273, %v3705
    %v3707 = vpop.f32.mrf.mxu0
    %3708 = vmatprep.mubr.bf16.mxu0 %v1859
    %3709 = vmatmul.mubr.bf16.gmra.mxu0 %v1858
    %v3710 = vpop.f32.mrf.mxu0
    %v3711 = vadd.f32 %v3278, %v3710
    %v3712 = vpop.f32.mrf.mxu0
    %v3713 = vpop.f32.mrf.mxu0
    %v3714 = vadd.f32 %v3281, %v3713
    %v3715 = vpop.f32.mrf.mxu0
    %3716 = vmatprep.mubr.bf16.mxu0 %v1860
    %3717 = vmatmul.mubr.bf16.gmra.mxu0 %v1859
    %v3718 = vpop.f32.mrf.mxu0
    %v3719 = vadd.f32 %v3286, %v3718
    %v3720 = vpop.f32.mrf.mxu0
    %v3721 = vpop.f32.mrf.mxu0
    %v3722 = vadd.f32 %v3289, %v3721
    %v3723 = vpop.f32.mrf.mxu0
    %3724 = vmatprep.mubr.bf16.mxu0 %v1861
    %3725 = vmatmul.mubr.bf16.gmra.mxu0 %v1860
    %v3726 = vpop.f32.mrf.mxu0
    %v3727 = vadd.f32 %v3294, %v3726
    %v3728 = vpop.f32.mrf.mxu0
    %v3729 = vpop.f32.mrf.mxu0
    %v3730 = vadd.f32 %v3297, %v3729
    %v3731 = vpop.f32.mrf.mxu0
    %3732 = vmatprep.mubr.bf16.mxu0 %v1862
    %3733 = vmatmul.mubr.bf16.gmra.mxu0 %v1861
    %v3734 = vpop.f32.mrf.mxu0
    %v3735 = vadd.f32 %v3302, %v3734
    %v3736 = vpop.f32.mrf.mxu0
    %v3737 = vpop.f32.mrf.mxu0
    %v3738 = vadd.f32 %v3305, %v3737
    %v3739 = vpop.f32.mrf.mxu0
    %3740 = vmatprep.mubr.bf16.mxu0 %v1863
    %3741 = vmatmul.mubr.bf16.gmra.mxu0 %v1862
    %v3742 = vpop.f32.mrf.mxu0
    %v3743 = vadd.f32 %v3310, %v3742
    %v3744 = vpop.f32.mrf.mxu0
    %v3745 = vpop.f32.mrf.mxu0
    %v3746 = vadd.f32 %v3313, %v3745
    %v3747 = vpop.f32.mrf.mxu0
    %3748 = vmatprep.mubr.bf16.mxu0 %v1864
    %3749 = vmatmul.mubr.bf16.gmra.mxu0 %v1863
    %v3750 = vpop.f32.mrf.mxu0
    %v3751 = vadd.f32 %v3318, %v3750
    %v3752 = vpop.f32.mrf.mxu0
    %v3753 = vpop.f32.mrf.mxu0
    %v3754 = vadd.f32 %v3321, %v3753
    %v3755 = vpop.f32.mrf.mxu0
    %3756 = vmatprep.mubr.bf16.mxu0 %v1865
    %3757 = vmatmul.mubr.bf16.gmra.mxu0 %v1864
    %v3758 = vpop.f32.mrf.mxu0
    %v3759 = vadd.f32 %v3326, %v3758
    %v3760 = vpop.f32.mrf.mxu0
    %v3761 = vpop.f32.mrf.mxu0
    %v3762 = vadd.f32 %v3329, %v3761
    %v3763 = vpop.f32.mrf.mxu0
    %3764 = vmatprep.mubr.bf16.mxu0 %v1866
    %3765 = vmatmul.mubr.bf16.gmra.mxu0 %v1865
    %v3766 = vpop.f32.mrf.mxu0
    %v3767 = vadd.f32 %v3334, %v3766
    %v3768 = vpop.f32.mrf.mxu0
    %v3769 = vpop.f32.mrf.mxu0
    %v3770 = vadd.f32 %v3337, %v3769
    %v3771 = vpop.f32.mrf.mxu0
    %3772 = vmatprep.mubr.bf16.mxu0 %v1867
    %3773 = vmatmul.mubr.bf16.gmra.mxu0 %v1866
    %v3774 = vpop.f32.mrf.mxu0
    %v3775 = vadd.f32 %v3342, %v3774
    %v3776 = vpop.f32.mrf.mxu0
    %v3777 = vpop.f32.mrf.mxu0
    %v3778 = vadd.f32 %v3345, %v3777
    %v3779 = vpop.f32.mrf.mxu0
    %3780 = vmatprep.mubr.bf16.mxu0 %v1909
    %3781 = vmatmul.mubr.bf16.gmra.mxu0 %v1867
    %v3782 = vpop.f32.mrf.mxu0
    %v3783 = vadd.f32 %v3350, %v3782
    %v3784 = vpop.f32.mrf.mxu0
    %v3785 = vpop.f32.mrf.mxu0
    %v3786 = vadd.f32 %v3353, %v3785
    %v3787 = vpop.f32.mrf.mxu0
    %3788 = vdwg.mxu0
    %3789 = vmatprep.subr.bf16.mxu0 0
    %3790 = vmatpush1.bf16.msra.mxu0 %v3475
    %3791 = vmatprep.subr.bf16.mxu0 0
    %3792 = vmatpush1.bf16.msra.mxu0 %v3474
    %3793 = vmatprep.subr.bf16.mxu0 0
    %3794 = vmatpush1.bf16.msra.mxu0 %v3473
    %3795 = vmatprep.subr.bf16.mxu0 0
    %3796 = vmatpush1.bf16.msra.mxu0 %v3472
    %3797 = vmatprep.subr.bf16.mxu0 0
    %3798 = vmatpush1.bf16.msra.mxu0 %v3471
    %3799 = vmatprep.subr.bf16.mxu0 0
    %3800 = vmatpush1.bf16.msra.mxu0 %v3470
    %3801 = vmatprep.subr.bf16.mxu0 0
    %3802 = vmatpush1.bf16.msra.mxu0 %v3469
    %3803 = vmatprep.subr.bf16.mxu0 0
    %3804 = vmatpush1.bf16.msra.mxu0 %v3468
    %3805 = vmatprep.subr.bf16.mxu0 0
    %3806 = vmatpush2.bf16.msra.mxu0 0
    %3807 = vmatprep.subr.bf16.mxu0 0
    %3808 = vmatpush2.bf16.msra.mxu0 0
    %3809 = vmatprep.subr.bf16.mxu0 0
    %3810 = vmatpush2.bf16.msra.mxu0 0
    %3811 = vmatprep.subr.bf16.mxu0 0
    %3812 = vmatpush2.bf16.msra.mxu0 0
    %3813 = vmatprep.subr.bf16.mxu0 0
    %3814 = vmatpush2.bf16.msra.mxu0 0
    %3815 = vmatprep.subr.bf16.mxu0 0
    %3816 = vmatpush2.bf16.msra.mxu0 0
    %3817 = vmatprep.subr.bf16.mxu0 0
    %3818 = vmatpush2.bf16.msra.mxu0 0
    %3819 = vmatprep.subr.bf16.mxu0 0
    %3820 = vmatpush2.bf16.msra.mxu0 0
    %3821 = vmatprep.mubr.bf16.mxu0 0
    %3822 = vmatmul.mubr.bf16.gmra.mxu0 %v1838
    %v3823 = vpop.f32.mrf.mxu0
    %v3824 = vadd.f32 %v3535, %v3823
    %v3825 = vpop.f32.mrf.mxu0
    %v3826 = vpop.f32.mrf.mxu0
    %v3827 = vadd.f32 %v3538, %v3826
    %v3828 = vpop.f32.mrf.mxu0
    %3829 = vmatprep.mubr.bf16.mxu0 0
    %3830 = vmatmul.mubr.bf16.gmra.mxu0 %v1839
    %v3831 = vpop.f32.mrf.mxu0
    %v3832 = vadd.f32 %v3543, %v3831
    %v3833 = vpop.f32.mrf.mxu0
    %v3834 = vpop.f32.mrf.mxu0
    %v3835 = vadd.f32 %v3546, %v3834
    %v3836 = vpop.f32.mrf.mxu0
    %3837 = vmatprep.mubr.bf16.mxu0 0
    %3838 = vmatmul.mubr.bf16.gmra.mxu0 %v1840
    %v3839 = vpop.f32.mrf.mxu0
    %v3840 = vadd.f32 %v3551, %v3839
    %v3841 = vpop.f32.mrf.mxu0
    %v3842 = vpop.f32.mrf.mxu0
    %v3843 = vadd.f32 %v3554, %v3842
    %v3844 = vpop.f32.mrf.mxu0
    %3845 = vmatprep.mubr.bf16.mxu0 0
    %3846 = vmatmul.mubr.bf16.gmra.mxu0 %v1841
    %v3847 = vpop.f32.mrf.mxu0
    %v3848 = vadd.f32 %v3559, %v3847
    %v3849 = vpop.f32.mrf.mxu0
    %v3850 = vpop.f32.mrf.mxu0
    %v3851 = vadd.f32 %v3562, %v3850
    %v3852 = vpop.f32.mrf.mxu0
    %3853 = vmatprep.mubr.bf16.mxu0 0
    %3854 = vmatmul.mubr.bf16.gmra.mxu0 %v1842
    %v3855 = vpop.f32.mrf.mxu0
    %v3856 = vadd.f32 %v3567, %v3855
    %v3857 = vpop.f32.mrf.mxu0
    %v3858 = vpop.f32.mrf.mxu0
    %v3859 = vadd.f32 %v3570, %v3858
    %v3860 = vpop.f32.mrf.mxu0
    %3861 = vmatprep.mubr.bf16.mxu0 0
    %3862 = vmatmul.mubr.bf16.gmra.mxu0 %v1843
    %v3863 = vpop.f32.mrf.mxu0
    %v3864 = vadd.f32 %v3575, %v3863
    %v3865 = vpop.f32.mrf.mxu0
    %v3866 = vpop.f32.mrf.mxu0
    %v3867 = vadd.f32 %v3578, %v3866
    %v3868 = vpop.f32.mrf.mxu0
    %3869 = vmatprep.mubr.bf16.mxu0 0
    %3870 = vmatmul.mubr.bf16.gmra.mxu0 %v1844
    %v3871 = vpop.f32.mrf.mxu0
    %v3872 = vadd.f32 %v3583, %v3871
    %v3873 = vpop.f32.mrf.mxu0
    %v3874 = vpop.f32.mrf.mxu0
    %v3875 = vadd.f32 %v3586, %v3874
    %v3876 = vpop.f32.mrf.mxu0
    %3877 = vmatprep.mubr.bf16.mxu0 0
    %3878 = vmatmul.mubr.bf16.gmra.mxu0 %v1845
    %v3879 = vpop.f32.mrf.mxu0
    %v3880 = vadd.f32 %v3591, %v3879
    %v3881 = vpop.f32.mrf.mxu0
    %v3882 = vpop.f32.mrf.mxu0
    %v3883 = vadd.f32 %v3594, %v3882
    %v3884 = vpop.f32.mrf.mxu0
    %3885 = vmatprep.mubr.bf16.mxu0 0
    %3886 = vmatmul.mubr.bf16.gmra.mxu0 %v1846
    %v3887 = vpop.f32.mrf.mxu0
    %v3888 = vadd.f32 %v3599, %v3887
    %v3889 = vpop.f32.mrf.mxu0
    %v3890 = vpop.f32.mrf.mxu0
    %v3891 = vadd.f32 %v3602, %v3890
    %v3892 = vpop.f32.mrf.mxu0
    %3893 = vmatprep.mubr.bf16.mxu0 0
    %3894 = vmatmul.mubr.bf16.gmra.mxu0 %v1847
    %v3895 = vpop.f32.mrf.mxu0
    %v3896 = vadd.f32 %v3607, %v3895
    %v3897 = vpop.f32.mrf.mxu0
    %v3898 = vpop.f32.mrf.mxu0
    %v3899 = vadd.f32 %v3610, %v3898
    %v3900 = vpop.f32.mrf.mxu0
    %3901 = vmatprep.mubr.bf16.mxu0 0
    %3902 = vmatmul.mubr.bf16.gmra.mxu0 %v1848
    %v3903 = vpop.f32.mrf.mxu0
    %v3904 = vadd.f32 %v3615, %v3903
    %v3905 = vpop.f32.mrf.mxu0
    %v3906 = vpop.f32.mrf.mxu0
    %v3907 = vadd.f32 %v3618, %v3906
    %v3908 = vpop.f32.mrf.mxu0
    %3909 = vmatprep.mubr.bf16.mxu0 0
    %3910 = vmatmul.mubr.bf16.gmra.mxu0 %v1849
    %v3911 = vpop.f32.mrf.mxu0
    %v3912 = vadd.f32 %v3623, %v3911
    %v3913 = vpop.f32.mrf.mxu0
    %v3914 = vpop.f32.mrf.mxu0
    %v3915 = vadd.f32 %v3626, %v3914
    %v3916 = vpop.f32.mrf.mxu0
    %3917 = vmatprep.mubr.bf16.mxu0 0
    %3918 = vmatmul.mubr.bf16.gmra.mxu0 %v1850
    %v3919 = vpop.f32.mrf.mxu0
    %v3920 = vadd.f32 %v3631, %v3919
    %v3921 = vpop.f32.mrf.mxu0
    %v3922 = vpop.f32.mrf.mxu0
    %v3923 = vadd.f32 %v3634, %v3922
    %v3924 = vpop.f32.mrf.mxu0
    %3925 = vmatprep.mubr.bf16.mxu0 0
    %3926 = vmatmul.mubr.bf16.gmra.mxu0 %v1851
    %v3927 = vpop.f32.mrf.mxu0
    %v3928 = vadd.f32 %v3639, %v3927
    %v3929 = vpop.f32.mrf.mxu0
    %v3930 = vpop.f32.mrf.mxu0
    %v3931 = vadd.f32 %v3642, %v3930
    %v3932 = vpop.f32.mrf.mxu0
    %3933 = vmatprep.mubr.bf16.mxu0 0
    %3934 = vmatmul.mubr.bf16.gmra.mxu0 %v1908
    %v3935 = vpop.f32.mrf.mxu0
    %v3936 = vadd.f32 %v3647, %v3935
    %v3937 = vpop.f32.mrf.mxu0
    %v3938 = vpop.f32.mrf.mxu0
    %v3939 = vadd.f32 %v3650, %v3938
    %v3940 = vpop.f32.mrf.mxu0
    %3941 = vmatprep.mubr.bf16.mxu0 0
    %3942 = vmatmul.mubr.bf16.gmra.mxu0 %v1920
    %v3943 = vpop.f32.mrf.mxu0
    %v3944 = vadd.f32 %v3655, %v3943
    %v3945 = vpop.f32.mrf.mxu0
    %v3946 = vpop.f32.mrf.mxu0
    %v3947 = vadd.f32 %v3658, %v3946
    %v3948 = vpop.f32.mrf.mxu0
    %3949 = vmatprep.mubr.bf16.mxu0 0
    %3950 = vmatmul.mubr.bf16.gmra.mxu0 %v1854
    %v3951 = vpop.f32.mrf.mxu0
    %v3952 = vadd.f32 %v3663, %v3951
    %v3953 = vpop.f32.mrf.mxu0
    %v3954 = vpop.f32.mrf.mxu0
    %v3955 = vadd.f32 %v3666, %v3954
    %v3956 = vpop.f32.mrf.mxu0
    %3957 = vmatprep.mubr.bf16.mxu0 0
    %3958 = vmatmul.mubr.bf16.gmra.mxu0 %v1855
    %v3959 = vpop.f32.mrf.mxu0
    %v3960 = vadd.f32 %v3671, %v3959
    %v3961 = vpop.f32.mrf.mxu0
    %v3962 = vpop.f32.mrf.mxu0
    %v3963 = vadd.f32 %v3674, %v3962
    %v3964 = vpop.f32.mrf.mxu0
    %3965 = vmatprep.mubr.bf16.mxu0 0
    %3966 = vmatmul.mubr.bf16.gmra.mxu0 %v1856
    %v3967 = vpop.f32.mrf.mxu0
    %v3968 = vadd.f32 %v3679, %v3967
    %v3969 = vpop.f32.mrf.mxu0
    %v3970 = vpop.f32.mrf.mxu0
    %v3971 = vadd.f32 %v3682, %v3970
    %v3972 = vpop.f32.mrf.mxu0
    %3973 = vmatprep.mubr.bf16.mxu0 0
    %3974 = vmatmul.mubr.bf16.gmra.mxu0 %v1857
    %v3975 = vpop.f32.mrf.mxu0
    %v3976 = vadd.f32 %v3687, %v3975
    %v3977 = vpop.f32.mrf.mxu0
    %v3978 = vpop.f32.mrf.mxu0
    %v3979 = vadd.f32 %v3690, %v3978
    %v3980 = vpop.f32.mrf.mxu0
    %3981 = vmatprep.mubr.bf16.mxu0 0
    %3982 = vmatmul.mubr.bf16.gmra.mxu0 %v1858
    %v3983 = vpop.f32.mrf.mxu0
    %v3984 = vadd.f32 %v3695, %v3983
    %v3985 = vpop.f32.mrf.mxu0
    %v3986 = vpop.f32.mrf.mxu0
    %v3987 = vadd.f32 %v3698, %v3986
    %v3988 = vpop.f32.mrf.mxu0
    %3989 = vmatprep.mubr.bf16.mxu0 0
    %3990 = vmatmul.mubr.bf16.gmra.mxu0 %v1859
    %v3991 = vpop.f32.mrf.mxu0
    %v3992 = vadd.f32 %v3703, %v3991
    %v3993 = vpop.f32.mrf.mxu0
    %v3994 = vpop.f32.mrf.mxu0
    %v3995 = vadd.f32 %v3706, %v3994
    %v3996 = vpop.f32.mrf.mxu0
    %3997 = vmatprep.mubr.bf16.mxu0 0
    %3998 = vmatmul.mubr.bf16.gmra.mxu0 %v1860
    %v3999 = vpop.f32.mrf.mxu0
    %v4000 = vadd.f32 %v3711, %v3999
    %v4001 = vpop.f32.mrf.mxu0
    %v4002 = vpop.f32.mrf.mxu0
    %v4003 = vadd.f32 %v3714, %v4002
    %v4004 = vpop.f32.mrf.mxu0
    %4005 = vmatprep.mubr.bf16.mxu0 0
    %4006 = vmatmul.mubr.bf16.gmra.mxu0 %v1861
    %v4007 = vpop.f32.mrf.mxu0
    %v4008 = vadd.f32 %v3719, %v4007
    %v4009 = vpop.f32.mrf.mxu0
    %v4010 = vpop.f32.mrf.mxu0
    %v4011 = vadd.f32 %v3722, %v4010
    %v4012 = vpop.f32.mrf.mxu0
    %4013 = vmatprep.mubr.bf16.mxu0 0
    %4014 = vmatmul.mubr.bf16.gmra.mxu0 %v1862
    %v4015 = vpop.f32.mrf.mxu0
    %v4016 = vadd.f32 %v3727, %v4015
    %v4017 = vpop.f32.mrf.mxu0
    %v4018 = vpop.f32.mrf.mxu0
    %v4019 = vadd.f32 %v3730, %v4018
    %v4020 = vpop.f32.mrf.mxu0
    %4021 = vmatprep.mubr.bf16.mxu0 0
    %4022 = vmatmul.mubr.bf16.gmra.mxu0 %v1863
    %v4023 = vpop.f32.mrf.mxu0
    %v4024 = vadd.f32 %v3735, %v4023
    %v4025 = vpop.f32.mrf.mxu0
    %v4026 = vpop.f32.mrf.mxu0
    %v4027 = vadd.f32 %v3738, %v4026
    %v4028 = vpop.f32.mrf.mxu0
    %4029 = vmatprep.mubr.bf16.mxu0 0
    %4030 = vmatmul.mubr.bf16.gmra.mxu0 %v1864
    %v4031 = vpop.f32.mrf.mxu0
    %v4032 = vadd.f32 %v3743, %v4031
    %v4033 = vpop.f32.mrf.mxu0
    %v4034 = vpop.f32.mrf.mxu0
    %v4035 = vadd.f32 %v3746, %v4034
    %v4036 = vpop.f32.mrf.mxu0
    %4037 = vmatprep.mubr.bf16.mxu0 0
    %4038 = vmatmul.mubr.bf16.gmra.mxu0 %v1865
    %v4039 = vpop.f32.mrf.mxu0
    %v4040 = vadd.f32 %v3751, %v4039
    %v4041 = vpop.f32.mrf.mxu0
    %v4042 = vpop.f32.mrf.mxu0
    %v4043 = vadd.f32 %v3754, %v4042
    %v4044 = vpop.f32.mrf.mxu0
    %4045 = vmatprep.mubr.bf16.mxu0 0
    %4046 = vmatmul.mubr.bf16.gmra.mxu0 %v1866
    %v4047 = vpop.f32.mrf.mxu0
    %v4048 = vadd.f32 %v3759, %v4047
    %v4049 = vpop.f32.mrf.mxu0
    %v4050 = vpop.f32.mrf.mxu0
    %v4051 = vadd.f32 %v3762, %v4050
    %v4052 = vpop.f32.mrf.mxu0
    %4053 = vmatprep.mubr.bf16.mxu0 0
    %4054 = vmatmul.mubr.bf16.gmra.mxu0 %v1867
    %v4055 = vpop.f32.mrf.mxu0
    %v4056 = vadd.f32 %v3767, %v4055
    %v4057 = vpop.f32.mrf.mxu0
    %v4058 = vpop.f32.mrf.mxu0
    %v4059 = vadd.f32 %v3770, %v4058
    %v4060 = vpop.f32.mrf.mxu0
    %4061 = vmatprep.mubr.bf16.mxu0 0
    %4062 = vmatmul.mubr.bf16.gmra.mxu0 %v1909
    %v4063 = vpop.f32.mrf.mxu0
    %v4064 = vadd.f32 %v3775, %v4063
    %v4065 = vpop.f32.mrf.mxu0
    %v4066 = vpop.f32.mrf.mxu0
    %v4067 = vadd.f32 %v3778, %v4066
    %v4068 = vpop.f32.mrf.mxu0
    %4069 = vmatprep.mubr.bf16.mxu0 0
    %4070 = vmatmul.mubr.bf16.gmra.mxu0 %v1921
    %v4071 = vpop.f32.mrf.mxu0
    %v4072 = vadd.f32 %v3783, %v4071
    %v4073 = vpop.f32.mrf.mxu0
    %v4074 = vpop.f32.mrf.mxu0
    %v4075 = vadd.f32 %v3786, %v4074
    %v4076 = vpop.f32.mrf.mxu0
    %4077 = vdwg.mxu0
    %v4078 = vld [vmem:[#allocation2] sm:$0xe]
    %v4079 = vld [vmem:[#allocation2 + $0xc] sm:$0xe]
    %v4080 = vld [vmem:[#allocation2 + $0x18] sm:$0xe]
    %v4081 = vld [vmem:[#allocation2 + $0x24] sm:$0xe]
    %v4082 = vld [vmem:[#allocation2 + $0x30] sm:$0xe]
    %v4083 = vld [vmem:[#allocation2 + $0x3c] sm:$0xe]
    %v4084 = vld [vmem:[#allocation2 + $0x48] sm:$0xe]
    %v4085 = vld [vmem:[#allocation2 + $0x54] sm:$0xe]
    %v4086 = vld [vmem:[#allocation2 + $0x60] sm:$0xe]
    %v4087 = vld [vmem:[#allocation2 + $0x6c] sm:$0xe]
    %v4088 = vld [vmem:[#allocation2 + $0x78] sm:$0xe]
    %v4089 = vld [vmem:[#allocation2 + $0x84] sm:$0xe]
    %v4090 = vld [vmem:[#allocation2 + $0x90] sm:$0xe]
    %v4091 = vld [vmem:[#allocation2 + $0x9c] sm:$0xe]
    %v4092 = vld [vmem:[#allocation2 + $0xa8] sm:$0xe]
    %v4093 = vld [vmem:[#allocation2 + $0xb4] sm:$0xe]
    %v4094 = vld [vmem:[#allocation2 + $0xc0] sm:$0xe]
    %v4095 = vld [vmem:[#allocation2 + $0xcc] sm:$0xe]
    %v4096 = vld [vmem:[#allocation2 + $0xd8] sm:$0xe]
    %v4097 = vld [vmem:[#allocation2 + $0xe4] sm:$0xe]
    %v4098 = vld [vmem:[#allocation2 + $0xf0] sm:$0xe]
    %v4099 = vld [vmem:[#allocation2 + $0xfc] sm:$0xe]
    %v4100 = vld [vmem:[#allocation2 + $0x108] sm:$0xe]
    %v4101 = vld [vmem:[#allocation2 + $0x114] sm:$0xe]
    %v4102 = vld [vmem:[#allocation2 + $0x120] sm:$0xe]
    %v4103 = vld [vmem:[#allocation2 + $0x12c] sm:$0xe]
    %v4104 = vld [vmem:[#allocation2 + $0x138] sm:$0xe]
    %v4105 = vld [vmem:[#allocation2 + $0x144] sm:$0xe]
    %v4106 = vld [vmem:[#allocation2 + $0x150] sm:$0xe]
    %v4107 = vld [vmem:[#allocation2 + $0x15c] sm:$0xe]
    %v4108 = vld [vmem:[#allocation2 + $0x168] sm:$0xe]
    %v4109 = vld [vmem:[#allocation2 + $0x174] sm:$0xe]
    %v4110 = vld [vmem:[#allocation2 + $0x180] sm:$0xe]
    %v4111 = vld [vmem:[#allocation2 + $0x18c] sm:$0xe]
    %v4112 = vld [vmem:[#allocation2 + $0x198] sm:$0xe]
    %v4113 = vld [vmem:[#allocation2 + $0x1a4] sm:$0xe]
    %v4146 = vunpack.c.l.b16 %v4078
    %v4147 = vunpack.c.l.b16 %v4079
    %v4148 = vunpack.c.l.b16 %v4080
    %v4149 = vunpack.c.l.b16 %v4081
    %v4150 = vunpack.c.l.b16 %v4082
    %v4151 = vunpack.c.l.b16 %v4083
    %v4152 = vunpack.c.l.b16 %v4084
    %v4153 = vunpack.c.l.b16 %v4085
    %v4154 = vunpack.c.l.b16 %v4086
    %v4155 = vunpack.c.l.b16 %v4087
    %v4156 = vunpack.c.l.b16 %v4088
    %v4157 = vunpack.c.l.b16 %v4089
    %v4158 = vunpack.c.l.b16 %v4090
    %v4159 = vunpack.c.l.b16 %v4091
    %v4160 = vunpack.c.l.b16 %v4092
    %v4161 = vunpack.c.l.b16 %v4093
    %v4162 = vunpack.c.l.b16 %v4096
    %v4163 = vunpack.c.l.b16 %v4097
    %v4164 = vunpack.c.l.b16 %v4098
    %v4165 = vunpack.c.l.b16 %v4099
    %v4166 = vunpack.c.l.b16 %v4100
    %v4167 = vunpack.c.l.b16 %v4101
    %v4168 = vunpack.c.l.b16 %v4102
    %v4169 = vunpack.c.l.b16 %v4103
    %v4170 = vunpack.c.l.b16 %v4104
    %v4171 = vunpack.c.l.b16 %v4105
    %v4172 = vunpack.c.l.b16 %v4106
    %v4173 = vunpack.c.l.b16 %v4107
    %v4174 = vunpack.c.l.b16 %v4108
    %v4175 = vunpack.c.l.b16 %v4109
    %v4176 = vunpack.c.l.b16 %v4110
    %v4177 = vunpack.c.l.b16 %v4111
    %v4178 = vpack.c.b16 %v1773, %v4146
    %v4179 = vpack.c.b16 %v1775, %v4147
    %v4180 = vpack.c.b16 %v1777, %v4148
    %v4181 = vpack.c.b16 %v1779, %v4149
    %v4182 = vpack.c.b16 %v1781, %v4150
    %v4183 = vpack.c.b16 %v1783, %v4151
    %v4184 = vpack.c.b16 %v1785, %v4152
    %v4185 = vpack.c.b16 %v1787, %v4153
    %v4186 = vpack.c.b16 %v1789, %v4154
    %v4187 = vpack.c.b16 %v1791, %v4155
    %v4188 = vpack.c.b16 %v1793, %v4156
    %v4189 = vpack.c.b16 %v1795, %v4157
    %v4190 = vpack.c.b16 %v1797, %v4158
    %v4191 = vpack.c.b16 %v1799, %v4159
    %v4192 = vpack.c.b16 %v1801, %v4160
    %v4193 = vpack.c.b16 %v1803, %v4161
    %v4194 = vpack.c.b16 %v1805, %v4162
    %v4195 = vpack.c.b16 %v1807, %v4163
    %v4196 = vpack.c.b16 %v1809, %v4164
    %v4197 = vpack.c.b16 %v1811, %v4165
    %v4198 = vpack.c.b16 %v1813, %v4166
    %v4199 = vpack.c.b16 %v1815, %v4167
    %v4200 = vpack.c.b16 %v1817, %v4168
    %v4201 = vpack.c.b16 %v1819, %v4169
    %v4202 = vpack.c.b16 %v1821, %v4170
    %v4203 = vpack.c.b16 %v1823, %v4171
    %v4204 = vpack.c.b16 %v1825, %v4172
    %v4205 = vpack.c.b16 %v1827, %v4173
    %v4206 = vpack.c.b16 %v1829, %v4174
    %v4207 = vpack.c.b16 %v1831, %v4175
    %v4208 = vpack.c.b16 %v1833, %v4176
    %v4209 = vpack.c.b16 %v1835, %v4177
    %v4212 = vunpack.c.l.b16 %v4094
    %v4213 = vunpack.c.l.b16 %v4112
    %v4214 = vpack.c.b16 %v1905, %v4212
    %v4215 = vpack.c.b16 %v1907, %v4213
    %v4218 = vunpack.c.l.b16 %v4095
    %v4219 = vunpack.c.l.b16 %v4113
    %v4220 = vpack.c.b16 %v1917, %v4218
    %v4221 = vpack.c.b16 %v1919, %v4219
    %vm4222 = vcmask 1046528
    %v4223 = vrot.slane %v4178, 1
    %v4224 = vrot.slane %v2072, 1
    %v4225 = vsel %vm4222, %v4223, %v4224
    %v4226 = vrot.slane %v4179, 1
    %v4227 = vrot.slane %v2073, 1
    %v4228 = vsel %vm4222, %v4226, %v4227
    %v4229 = vrot.slane %v4180, 1
    %v4230 = vrot.slane %v2074, 1
    %v4231 = vsel %vm4222, %v4229, %v4230
    %v4232 = vrot.slane %v4181, 1
    %v4233 = vrot.slane %v2075, 1
    %v4234 = vsel %vm4222, %v4232, %v4233
    %v4235 = vrot.slane %v4182, 1
    %v4236 = vrot.slane %v2076, 1
    %v4237 = vsel %vm4222, %v4235, %v4236
    %v4238 = vrot.slane %v4183, 1
    %v4239 = vrot.slane %v2077, 1
    %v4240 = vsel %vm4222, %v4238, %v4239
    %v4241 = vrot.slane %v4184, 1
    %v4242 = vrot.slane %v2078, 1
    %v4243 = vsel %vm4222, %v4241, %v4242
    %v4244 = vrot.slane %v4185, 1
    %v4245 = vrot.slane %v2079, 1
    %v4246 = vsel %vm4222, %v4244, %v4245
    %v4247 = vrot.slane %v4186, 1
    %v4248 = vrot.slane %v2080, 1
    %v4249 = vsel %vm4222, %v4247, %v4248
    %v4250 = vrot.slane %v4187, 1
    %v4251 = vrot.slane %v2081, 1
    %v4252 = vsel %vm4222, %v4250, %v4251
    %v4253 = vrot.slane %v4188, 1
    %v4254 = vrot.slane %v2082, 1
    %v4255 = vsel %vm4222, %v4253, %v4254
    %v4256 = vrot.slane %v4189, 1
    %v4257 = vrot.slane %v2083, 1
    %v4258 = vsel %vm4222, %v4256, %v4257
    %v4259 = vrot.slane %v4190, 1
    %v4260 = vrot.slane %v2084, 1
    %v4261 = vsel %vm4222, %v4259, %v4260
    %v4262 = vrot.slane %v4191, 1
    %v4263 = vrot.slane %v2085, 1
    %v4264 = vsel %vm4222, %v4262, %v4263
    %v4265 = vrot.slane %v4192, 1
    %v4266 = vrot.slane %v2086, 1
    %v4267 = vsel %vm4222, %v4265, %v4266
    %v4268 = vrot.slane %v4193, 1
    %v4269 = vrot.slane %v2087, 1
    %v4270 = vsel %vm4222, %v4268, %v4269
    %v4271 = vrot.slane %v4214, 1
    %v4272 = vrot.slane %v2108, 1
    %v4273 = vsel %vm4222, %v4271, %v4272
    %v4274 = vrot.slane %v4220, 1
    %v4275 = vrot.slane %v2114, 1
    %v4276 = vsel %vm4222, %v4274, %v4275
    %v4277 = vrot.slane %v4194, 1
    %v4278 = vrot.slane %v2088, 1
    %v4279 = vsel %vm4222, %v4277, %v4278
    %v4280 = vrot.slane %v4195, 1
    %v4281 = vrot.slane %v2089, 1
    %v4282 = vsel %vm4222, %v4280, %v4281
    %v4283 = vrot.slane %v4196, 1
    %v4284 = vrot.slane %v2090, 1
    %v4285 = vsel %vm4222, %v4283, %v4284
    %v4286 = vrot.slane %v4197, 1
    %v4287 = vrot.slane %v2091, 1
    %v4288 = vsel %vm4222, %v4286, %v4287
    %v4289 = vrot.slane %v4198, 1
    %v4290 = vrot.slane %v2092, 1
    %v4291 = vsel %vm4222, %v4289, %v4290
    %v4292 = vrot.slane %v4199, 1
    %v4293 = vrot.slane %v2093, 1
    %v4294 = vsel %vm4222, %v4292, %v4293
    %v4295 = vrot.slane %v4200, 1
    %v4296 = vrot.slane %v2094, 1
    %v4297 = vsel %vm4222, %v4295, %v4296
    %v4298 = vrot.slane %v4201, 1
    %v4299 = vrot.slane %v2095, 1
    %v4300 = vsel %vm4222, %v4298, %v4299
    %v4301 = vrot.slane %v4202, 1
    %v4302 = vrot.slane %v2096, 1
    %v4303 = vsel %vm4222, %v4301, %v4302
    %v4304 = vrot.slane %v4203, 1
    %v4305 = vrot.slane %v2097, 1
    %v4306 = vsel %vm4222, %v4304, %v4305
    %v4307 = vrot.slane %v4204, 1
    %v4308 = vrot.slane %v2098, 1
    %v4309 = vsel %vm4222, %v4307, %v4308
    %v4310 = vrot.slane %v4205, 1
    %v4311 = vrot.slane %v2099, 1
    %v4312 = vsel %vm4222, %v4310, %v4311
    %v4313 = vrot.slane %v4206, 1
    %v4314 = vrot.slane %v2100, 1
    %v4315 = vsel %vm4222, %v4313, %v4314
    %v4316 = vrot.slane %v4207, 1
    %v4317 = vrot.slane %v2101, 1
    %v4318 = vsel %vm4222, %v4316, %v4317
    %v4319 = vrot.slane %v4208, 1
    %v4320 = vrot.slane %v2102, 1
    %v4321 = vsel %vm4222, %v4319, %v4320
    %v4322 = vrot.slane %v4209, 1
    %v4323 = vrot.slane %v2103, 1
    %v4324 = vsel %vm4222, %v4322, %v4323
    %v4325 = vrot.slane %v4215, 1
    %v4326 = vrot.slane %v2109, 1
    %v4327 = vsel %vm4222, %v4325, %v4326
    %v4328 = vrot.slane %v4221, 1
    %v4329 = vrot.slane %v2115, 1
    %v4330 = vsel %vm4222, %v4328, %v4329
    %s4367 = scalar_lea.vmem [#allocation6], 384
    %v4368 = vld [vmem:[%s4367] sm:$0xf]
    %v4369 = vld [vmem:[%s4367 + $0x4] sm:$0xf]
    %v4370 = vld [vmem:[%s4367 + $0x8] sm:$0xf]
    %v4371 = vld [vmem:[%s4367 + $0xc] sm:$0xf]
    %v4372 = vld [vmem:[%s4367 + $0x10] sm:$0xf]
    %v4373 = vld [vmem:[%s4367 + $0x14] sm:$0xf]
    %v4374 = vld [vmem:[%s4367 + $0x18] sm:$0xf]
    %v4375 = vld [vmem:[%s4367 + $0x1c] sm:$0xf]
    %v4376 = vld [vmem:[%s4367 + $0x20] sm:$0xf]
    %v4377 = vld [vmem:[%s4367 + $0x24] sm:$0xf]
    %v4378 = vld [vmem:[%s4367 + $0x28] sm:$0xf]
    %v4379 = vld [vmem:[%s4367 + $0x2c] sm:$0xf]
    %v4380 = vld [vmem:[%s4367 + $0x30] sm:$0xf]
    %v4381 = vld [vmem:[%s4367 + $0x34] sm:$0xf]
    %v4382 = vld [vmem:[%s4367 + $0x38] sm:$0xf]
    %v4383 = vld [vmem:[%s4367 + $0x3c] sm:$0xf]
    %v4384 = vld [vmem:[%s4367 + $0x40] sm:$0xf]
    %v4385 = vld [vmem:[%s4367 + $0x44] sm:$0xf]
    %v4386 = vld [vmem:[%s4367 + $0x48] sm:$0xf]
    %v4387 = vld [vmem:[%s4367 + $0x4c] sm:$0xf]
    %v4388 = vld [vmem:[%s4367 + $0x50] sm:$0xf]
    %v4389 = vld [vmem:[%s4367 + $0x54] sm:$0xf]
    %v4390 = vld [vmem:[%s4367 + $0x58] sm:$0xf]
    %v4391 = vld [vmem:[%s4367 + $0x5c] sm:$0xf]
    %v4392 = vld [vmem:[%s4367 + $0x60] sm:$0xf]
    %v4393 = vld [vmem:[%s4367 + $0x64] sm:$0xf]
    %v4394 = vld [vmem:[%s4367 + $0x68] sm:$0xf]
    %v4395 = vld [vmem:[%s4367 + $0x6c] sm:$0xf]
    %v4396 = vld [vmem:[%s4367 + $0x70] sm:$0xf]
    %v4397 = vld [vmem:[%s4367 + $0x74] sm:$0xf]
    %v4398 = vld [vmem:[%s4367 + $0x78] sm:$0xf]
    %v4399 = vld [vmem:[%s4367 + $0x7c] sm:$0xf]
    %v4400 = vld [vmem:[%s4367 + $0x80] sm:$0xf]
    %v4401 = vld [vmem:[%s4367 + $0x84] sm:$0xf]
    %v4402 = vld [vmem:[%s4367 + $0x88] sm:$0xf]
    %v4403 = vld [vmem:[%s4367 + $0x8c] sm:$0xf]
    %v4404 = vld [vmem:[%s4367 + $0x90] sm:$0xf]
    %v4405 = vld [vmem:[%s4367 + $0x94] sm:$0xf]
    %v4406 = vld [vmem:[%s4367 + $0x98] sm:$0xf]
    %v4407 = vld [vmem:[%s4367 + $0x9c] sm:$0xf]
    %v4408 = vld [vmem:[%s4367 + $0xa0] sm:$0xf]
    %v4409 = vld [vmem:[%s4367 + $0xa4] sm:$0xf]
    %v4410 = vld [vmem:[%s4367 + $0xa8] sm:$0xf]
    %v4411 = vld [vmem:[%s4367 + $0xac] sm:$0xf]
    %v4412 = vld [vmem:[%s4367 + $0xb0] sm:$0xf]
    %v4413 = vld [vmem:[%s4367 + $0xb4] sm:$0xf]
    %v4414 = vld [vmem:[%s4367 + $0xb8] sm:$0xf]
    %v4415 = vld [vmem:[%s4367 + $0xbc] sm:$0xf]
    %v4464 = vunpack.c.l.b16 %v4368
    %v4465 = vunpack.c.l.b16 %v4369
    %v4466 = vunpack.c.l.b16 %v4370
    %v4467 = vunpack.c.l.b16 %v4371
    %v4468 = vunpack.c.l.b16 %v4372
    %v4469 = vunpack.c.l.b16 %v4373
    %v4470 = vunpack.c.l.b16 %v4374
    %v4471 = vunpack.c.l.b16 %v4375
    %v4472 = vunpack.c.l.b16 %v4376
    %v4473 = vunpack.c.l.b16 %v4377
    %v4474 = vunpack.c.l.b16 %v4378
    %v4475 = vunpack.c.l.b16 %v4379
    %v4476 = vunpack.c.l.b16 %v4380
    %v4477 = vunpack.c.l.b16 %v4381
    %v4478 = vunpack.c.l.b16 %v4382
    %v4479 = vunpack.c.l.b16 %v4383
    %v4480 = vunpack.c.l.b16 %v4384
    %v4481 = vunpack.c.l.b16 %v4385
    %v4482 = vunpack.c.l.b16 %v4386
    %v4483 = vunpack.c.l.b16 %v4387
    %v4484 = vunpack.c.l.b16 %v4388
    %v4485 = vunpack.c.l.b16 %v4389
    %v4486 = vunpack.c.l.b16 %v4390
    %v4487 = vunpack.c.l.b16 %v4391
    %v4488 = vunpack.c.l.b16 %v4392
    %v4489 = vunpack.c.l.b16 %v4393
    %v4490 = vunpack.c.l.b16 %v4394
    %v4491 = vunpack.c.l.b16 %v4395
    %v4492 = vunpack.c.l.b16 %v4396
    %v4493 = vunpack.c.l.b16 %v4397
    %v4494 = vunpack.c.l.b16 %v4398
    %v4495 = vunpack.c.l.b16 %v4399
    %v4496 = vunpack.c.l.b16 %v4400
    %v4497 = vunpack.c.l.b16 %v4401
    %v4498 = vunpack.c.l.b16 %v4402
    %v4499 = vunpack.c.l.b16 %v4403
    %v4500 = vunpack.c.l.b16 %v4404
    %v4501 = vunpack.c.l.b16 %v4405
    %v4502 = vunpack.c.l.b16 %v4406
    %v4503 = vunpack.c.l.b16 %v4407
    %v4504 = vunpack.c.l.b16 %v4408
    %v4505 = vunpack.c.l.b16 %v4409
    %v4506 = vunpack.c.l.b16 %v4410
    %v4507 = vunpack.c.l.b16 %v4411
    %v4508 = vunpack.c.l.b16 %v4412
    %v4509 = vunpack.c.l.b16 %v4413
    %v4510 = vunpack.c.l.b16 %v4414
    %v4511 = vunpack.c.l.b16 %v4415
    %v4512 = vpack.c.b16 %v4465, %v4464
    %v4513 = vpack.c.b16 %v4467, %v4466
    %v4514 = vpack.c.b16 %v4469, %v4468
    %v4515 = vpack.c.b16 %v4471, %v4470
    %v4516 = vpack.c.b16 %v4473, %v4472
    %v4517 = vpack.c.b16 %v4475, %v4474
    %v4518 = vpack.c.b16 %v4477, %v4476
    %v4519 = vpack.c.b16 %v4479, %v4478
    %v4520 = vpack.c.b16 %v4481, %v4480
    %v4521 = vpack.c.b16 %v4483, %v4482
    %v4522 = vpack.c.b16 %v4485, %v4484
    %v4523 = vpack.c.b16 %v4487, %v4486
    %v4524 = vpack.c.b16 %v4489, %v4488
    %v4525 = vpack.c.b16 %v4491, %v4490
    %v4526 = vpack.c.b16 %v4493, %v4492
    %v4527 = vpack.c.b16 %v4495, %v4494
    %v4528 = vpack.c.b16 %v4497, %v4496
    %v4529 = vpack.c.b16 %v4499, %v4498
    %v4530 = vpack.c.b16 %v4501, %v4500
    %v4531 = vpack.c.b16 %v4503, %v4502
    %v4532 = vpack.c.b16 %v4505, %v4504
    %v4533 = vpack.c.b16 %v4507, %v4506
    %v4534 = vpack.c.b16 %v4509, %v4508
    %v4535 = vpack.c.b16 %v4511, %v4510
    %4560 = vmatprep.subr.bf16.mxu0 0
    %4561 = vmatpush1.bf16.msra.mxu0 %v4519
    %4562 = vmatprep.subr.bf16.mxu0 0
    %4563 = vmatpush1.bf16.msra.mxu0 %v4518
    %4564 = vmatprep.subr.bf16.mxu0 0
    %4565 = vmatpush1.bf16.msra.mxu0 %v4517
    %4566 = vmatprep.subr.bf16.mxu0 0
    %4567 = vmatpush1.bf16.msra.mxu0 %v4516
    %4568 = vmatprep.subr.bf16.mxu0 0
    %4569 = vmatpush1.bf16.msra.mxu0 %v4515
    %4570 = vmatprep.subr.bf16.mxu0 0
    %4571 = vmatpush1.bf16.msra.mxu0 %v4514
    %4572 = vmatprep.subr.bf16.mxu0 0
    %4573 = vmatpush1.bf16.msra.mxu0 %v4513
    %4574 = vmatprep.subr.bf16.mxu0 0
    %4575 = vmatpush1.bf16.msra.mxu0 %v4512
    %4576 = vmatprep.subr.bf16.mxu0 0
    %4577 = vmatpush2.bf16.msra.mxu0 %v4527
    %4578 = vmatprep.subr.bf16.mxu0 0
    %4579 = vmatpush2.bf16.msra.mxu0 %v4526
    %4580 = vmatprep.subr.bf16.mxu0 0
    %4581 = vmatpush2.bf16.msra.mxu0 %v4525
    %4582 = vmatprep.subr.bf16.mxu0 0
    %4583 = vmatpush2.bf16.msra.mxu0 %v4524
    %4584 = vmatprep.subr.bf16.mxu0 0
    %4585 = vmatpush2.bf16.msra.mxu0 %v4523
    %4586 = vmatprep.subr.bf16.mxu0 0
    %4587 = vmatpush2.bf16.msra.mxu0 %v4522
    %4588 = vmatprep.subr.bf16.mxu0 0
    %4589 = vmatpush2.bf16.msra.mxu0 %v4521
    %4590 = vmatprep.subr.bf16.mxu0 0
    %4591 = vmatpush2.bf16.msra.mxu0 %v4520
    %4592 = vmatprep.mubr.bf16.mxu0 %v4228
    %4593 = vmatmul.mubr.bf16.gmra.mxu0 %v4225
    %v4594 = vpop.f32.mrf.mxu0
    %v4595 = vadd.f32 0.0, %v4594
    %v4596 = vpop.f32.mrf.mxu0
    %v4597 = vpop.f32.mrf.mxu0
    %v4598 = vadd.f32 0.0, %v4597
    %v4599 = vpop.f32.mrf.mxu0
    %4600 = vmatprep.mubr.bf16.mxu0 %v4231
    %4601 = vmatmul.mubr.bf16.gmra.mxu0 %v4228
    %v4602 = vpop.f32.mrf.mxu0
    %v4603 = vadd.f32 0.0, %v4602
    %v4604 = vpop.f32.mrf.mxu0
    %v4605 = vpop.f32.mrf.mxu0
    %v4606 = vadd.f32 0.0, %v4605
    %v4607 = vpop.f32.mrf.mxu0
    %4608 = vmatprep.mubr.bf16.mxu0 %v4234
    %4609 = vmatmul.mubr.bf16.gmra.mxu0 %v4231
    %v4610 = vpop.f32.mrf.mxu0
    %v4611 = vadd.f32 0.0, %v4610
    %v4612 = vpop.f32.mrf.mxu0
    %v4613 = vpop.f32.mrf.mxu0
    %v4614 = vadd.f32 0.0, %v4613
    %v4615 = vpop.f32.mrf.mxu0
    %4616 = vmatprep.mubr.bf16.mxu0 %v4237
    %4617 = vmatmul.mubr.bf16.gmra.mxu0 %v4234
    %v4618 = vpop.f32.mrf.mxu0
    %v4619 = vadd.f32 0.0, %v4618
    %v4620 = vpop.f32.mrf.mxu0
    %v4621 = vpop.f32.mrf.mxu0
    %v4622 = vadd.f32 0.0, %v4621
    %v4623 = vpop.f32.mrf.mxu0
    %4624 = vmatprep.mubr.bf16.mxu0 %v4240
    %4625 = vmatmul.mubr.bf16.gmra.mxu0 %v4237
    %v4626 = vpop.f32.mrf.mxu0
    %v4627 = vadd.f32 0.0, %v4626
    %v4628 = vpop.f32.mrf.mxu0
    %v4629 = vpop.f32.mrf.mxu0
    %v4630 = vadd.f32 0.0, %v4629
    %v4631 = vpop.f32.mrf.mxu0
    %4632 = vmatprep.mubr.bf16.mxu0 %v4243
    %4633 = vmatmul.mubr.bf16.gmra.mxu0 %v4240
    %v4634 = vpop.f32.mrf.mxu0
    %v4635 = vadd.f32 0.0, %v4634
    %v4636 = vpop.f32.mrf.mxu0
    %v4637 = vpop.f32.mrf.mxu0
    %v4638 = vadd.f32 0.0, %v4637
    %v4639 = vpop.f32.mrf.mxu0
    %4640 = vmatprep.mubr.bf16.mxu0 %v4246
    %4641 = vmatmul.mubr.bf16.gmra.mxu0 %v4243
    %v4642 = vpop.f32.mrf.mxu0
    %v4643 = vadd.f32 0.0, %v4642
    %v4644 = vpop.f32.mrf.mxu0
    %v4645 = vpop.f32.mrf.mxu0
    %v4646 = vadd.f32 0.0, %v4645
    %v4647 = vpop.f32.mrf.mxu0
    %4648 = vmatprep.mubr.bf16.mxu0 %v4249
    %4649 = vmatmul.mubr.bf16.gmra.mxu0 %v4246
    %v4650 = vpop.f32.mrf.mxu0
    %v4651 = vadd.f32 0.0, %v4650
    %v4652 = vpop.f32.mrf.mxu0
    %v4653 = vpop.f32.mrf.mxu0
    %v4654 = vadd.f32 0.0, %v4653
    %v4655 = vpop.f32.mrf.mxu0
    %4656 = vmatprep.mubr.bf16.mxu0 %v4252
    %4657 = vmatmul.mubr.bf16.gmra.mxu0 %v4249
    %v4658 = vpop.f32.mrf.mxu0
    %v4659 = vadd.f32 0.0, %v4658
    %v4660 = vpop.f32.mrf.mxu0
    %v4661 = vpop.f32.mrf.mxu0
    %v4662 = vadd.f32 0.0, %v4661
    %v4663 = vpop.f32.mrf.mxu0
    %4664 = vmatprep.mubr.bf16.mxu0 %v4255
    %4665 = vmatmul.mubr.bf16.gmra.mxu0 %v4252
    %v4666 = vpop.f32.mrf.mxu0
    %v4667 = vadd.f32 0.0, %v4666
    %v4668 = vpop.f32.mrf.mxu0
    %v4669 = vpop.f32.mrf.mxu0
    %v4670 = vadd.f32 0.0, %v4669
    %v4671 = vpop.f32.mrf.mxu0
    %4672 = vmatprep.mubr.bf16.mxu0 %v4258
    %4673 = vmatmul.mubr.bf16.gmra.mxu0 %v4255
    %v4674 = vpop.f32.mrf.mxu0
    %v4675 = vadd.f32 0.0, %v4674
    %v4676 = vpop.f32.mrf.mxu0
    %v4677 = vpop.f32.mrf.mxu0
    %v4678 = vadd.f32 0.0, %v4677
    %v4679 = vpop.f32.mrf.mxu0
    %4680 = vmatprep.mubr.bf16.mxu0 %v4261
    %4681 = vmatmul.mubr.bf16.gmra.mxu0 %v4258
    %v4682 = vpop.f32.mrf.mxu0
    %v4683 = vadd.f32 0.0, %v4682
    %v4684 = vpop.f32.mrf.mxu0
    %v4685 = vpop.f32.mrf.mxu0
    %v4686 = vadd.f32 0.0, %v4685
    %v4687 = vpop.f32.mrf.mxu0
    %4688 = vmatprep.mubr.bf16.mxu0 %v4264
    %4689 = vmatmul.mubr.bf16.gmra.mxu0 %v4261
    %v4690 = vpop.f32.mrf.mxu0
    %v4691 = vadd.f32 0.0, %v4690
    %v4692 = vpop.f32.mrf.mxu0
    %v4693 = vpop.f32.mrf.mxu0
    %v4694 = vadd.f32 0.0, %v4693
    %v4695 = vpop.f32.mrf.mxu0
    %4696 = vmatprep.mubr.bf16.mxu0 %v4267
    %4697 = vmatmul.mubr.bf16.gmra.mxu0 %v4264
    %v4698 = vpop.f32.mrf.mxu0
    %v4699 = vadd.f32 0.0, %v4698
    %v4700 = vpop.f32.mrf.mxu0
    %v4701 = vpop.f32.mrf.mxu0
    %v4702 = vadd.f32 0.0, %v4701
    %v4703 = vpop.f32.mrf.mxu0
    %4704 = vmatprep.mubr.bf16.mxu0 %v4270
    %4705 = vmatmul.mubr.bf16.gmra.mxu0 %v4267
    %v4706 = vpop.f32.mrf.mxu0
    %v4707 = vadd.f32 0.0, %v4706
    %v4708 = vpop.f32.mrf.mxu0
    %v4709 = vpop.f32.mrf.mxu0
    %v4710 = vadd.f32 0.0, %v4709
    %v4711 = vpop.f32.mrf.mxu0
    %4712 = vmatprep.mubr.bf16.mxu0 %v4273
    %4713 = vmatmul.mubr.bf16.gmra.mxu0 %v4270
    %v4714 = vpop.f32.mrf.mxu0
    %v4715 = vadd.f32 0.0, %v4714
    %v4716 = vpop.f32.mrf.mxu0
    %v4717 = vpop.f32.mrf.mxu0
    %v4718 = vadd.f32 0.0, %v4717
    %v4719 = vpop.f32.mrf.mxu0
    %4720 = vmatprep.mubr.bf16.mxu0 %v4282
    %4721 = vmatmul.mubr.bf16.gmra.mxu0 %v4279
    %v4722 = vpop.f32.mrf.mxu0
    %v4723 = vadd.f32 0.0, %v4722
    %v4724 = vpop.f32.mrf.mxu0
    %v4725 = vpop.f32.mrf.mxu0
    %v4726 = vadd.f32 0.0, %v4725
    %v4727 = vpop.f32.mrf.mxu0
    %4728 = vmatprep.mubr.bf16.mxu0 %v4285
    %4729 = vmatmul.mubr.bf16.gmra.mxu0 %v4282
    %v4730 = vpop.f32.mrf.mxu0
    %v4731 = vadd.f32 0.0, %v4730
    %v4732 = vpop.f32.mrf.mxu0
    %v4733 = vpop.f32.mrf.mxu0
    %v4734 = vadd.f32 0.0, %v4733
    %v4735 = vpop.f32.mrf.mxu0
    %4736 = vmatprep.mubr.bf16.mxu0 %v4288
    %4737 = vmatmul.mubr.bf16.gmra.mxu0 %v4285
    %v4738 = vpop.f32.mrf.mxu0
    %v4739 = vadd.f32 0.0, %v4738
    %v4740 = vpop.f32.mrf.mxu0
    %v4741 = vpop.f32.mrf.mxu0
    %v4742 = vadd.f32 0.0, %v4741
    %v4743 = vpop.f32.mrf.mxu0
    %4744 = vmatprep.mubr.bf16.mxu0 %v4291
    %4745 = vmatmul.mubr.bf16.gmra.mxu0 %v4288
    %v4746 = vpop.f32.mrf.mxu0
    %v4747 = vadd.f32 0.0, %v4746
    %v4748 = vpop.f32.mrf.mxu0
    %v4749 = vpop.f32.mrf.mxu0
    %v4750 = vadd.f32 0.0, %v4749
    %v4751 = vpop.f32.mrf.mxu0
    %4752 = vmatprep.mubr.bf16.mxu0 %v4294
    %4753 = vmatmul.mubr.bf16.gmra.mxu0 %v4291
    %v4754 = vpop.f32.mrf.mxu0
    %v4755 = vadd.f32 0.0, %v4754
    %v4756 = vpop.f32.mrf.mxu0
    %v4757 = vpop.f32.mrf.mxu0
    %v4758 = vadd.f32 0.0, %v4757
    %v4759 = vpop.f32.mrf.mxu0
    %4760 = vmatprep.mubr.bf16.mxu0 %v4297
    %4761 = vmatmul.mubr.bf16.gmra.mxu0 %v4294
    %v4762 = vpop.f32.mrf.mxu0
    %v4763 = vadd.f32 0.0, %v4762
    %v4764 = vpop.f32.mrf.mxu0
    %v4765 = vpop.f32.mrf.mxu0
    %v4766 = vadd.f32 0.0, %v4765
    %v4767 = vpop.f32.mrf.mxu0
    %4768 = vmatprep.mubr.bf16.mxu0 %v4300
    %4769 = vmatmul.mubr.bf16.gmra.mxu0 %v4297
    %v4770 = vpop.f32.mrf.mxu0
    %v4771 = vadd.f32 0.0, %v4770
    %v4772 = vpop.f32.mrf.mxu0
    %v4773 = vpop.f32.mrf.mxu0
    %v4774 = vadd.f32 0.0, %v4773
    %v4775 = vpop.f32.mrf.mxu0
    %4776 = vmatprep.mubr.bf16.mxu0 %v4303
    %4777 = vmatmul.mubr.bf16.gmra.mxu0 %v4300
    %v4778 = vpop.f32.mrf.mxu0
    %v4779 = vadd.f32 0.0, %v4778
    %v4780 = vpop.f32.mrf.mxu0
    %v4781 = vpop.f32.mrf.mxu0
    %v4782 = vadd.f32 0.0, %v4781
    %v4783 = vpop.f32.mrf.mxu0
    %4784 = vmatprep.mubr.bf16.mxu0 %v4306
    %4785 = vmatmul.mubr.bf16.gmra.mxu0 %v4303
    %v4786 = vpop.f32.mrf.mxu0
    %v4787 = vadd.f32 0.0, %v4786
    %v4788 = vpop.f32.mrf.mxu0
    %v4789 = vpop.f32.mrf.mxu0
    %v4790 = vadd.f32 0.0, %v4789
    %v4791 = vpop.f32.mrf.mxu0
    %4792 = vmatprep.mubr.bf16.mxu0 %v4309
    %4793 = vmatmul.mubr.bf16.gmra.mxu0 %v4306
    %v4794 = vpop.f32.mrf.mxu0
    %v4795 = vadd.f32 0.0, %v4794
    %v4796 = vpop.f32.mrf.mxu0
    %v4797 = vpop.f32.mrf.mxu0
    %v4798 = vadd.f32 0.0, %v4797
    %v4799 = vpop.f32.mrf.mxu0
    %4800 = vmatprep.mubr.bf16.mxu0 %v4312
    %4801 = vmatmul.mubr.bf16.gmra.mxu0 %v4309
    %v4802 = vpop.f32.mrf.mxu0
    %v4803 = vadd.f32 0.0, %v4802
    %v4804 = vpop.f32.mrf.mxu0
    %v4805 = vpop.f32.mrf.mxu0
    %v4806 = vadd.f32 0.0, %v4805
    %v4807 = vpop.f32.mrf.mxu0
    %4808 = vmatprep.mubr.bf16.mxu0 %v4315
    %4809 = vmatmul.mubr.bf16.gmra.mxu0 %v4312
    %v4810 = vpop.f32.mrf.mxu0
    %v4811 = vadd.f32 0.0, %v4810
    %v4812 = vpop.f32.mrf.mxu0
    %v4813 = vpop.f32.mrf.mxu0
    %v4814 = vadd.f32 0.0, %v4813
    %v4815 = vpop.f32.mrf.mxu0
    %4816 = vmatprep.mubr.bf16.mxu0 %v4318
    %4817 = vmatmul.mubr.bf16.gmra.mxu0 %v4315
    %v4818 = vpop.f32.mrf.mxu0
    %v4819 = vadd.f32 0.0, %v4818
    %v4820 = vpop.f32.mrf.mxu0
    %v4821 = vpop.f32.mrf.mxu0
    %v4822 = vadd.f32 0.0, %v4821
    %v4823 = vpop.f32.mrf.mxu0
    %4824 = vmatprep.mubr.bf16.mxu0 %v4321
    %4825 = vmatmul.mubr.bf16.gmra.mxu0 %v4318
    %v4826 = vpop.f32.mrf.mxu0
    %v4827 = vadd.f32 0.0, %v4826
    %v4828 = vpop.f32.mrf.mxu0
    %v4829 = vpop.f32.mrf.mxu0
    %v4830 = vadd.f32 0.0, %v4829
    %v4831 = vpop.f32.mrf.mxu0
    %4832 = vmatprep.mubr.bf16.mxu0 %v4324
    %4833 = vmatmul.mubr.bf16.gmra.mxu0 %v4321
    %v4834 = vpop.f32.mrf.mxu0
    %v4835 = vadd.f32 0.0, %v4834
    %v4836 = vpop.f32.mrf.mxu0
    %v4837 = vpop.f32.mrf.mxu0
    %v4838 = vadd.f32 0.0, %v4837
    %v4839 = vpop.f32.mrf.mxu0
    %4840 = vmatprep.mubr.bf16.mxu0 %v4327
    %4841 = vmatmul.mubr.bf16.gmra.mxu0 %v4324
    %v4842 = vpop.f32.mrf.mxu0
    %v4843 = vadd.f32 0.0, %v4842
    %v4844 = vpop.f32.mrf.mxu0
    %v4845 = vpop.f32.mrf.mxu0
    %v4846 = vadd.f32 0.0, %v4845
    %v4847 = vpop.f32.mrf.mxu0
    %4848 = vdwg.mxu0
    %4849 = vmatprep.subr.bf16.mxu0 0
    %4850 = vmatpush1.bf16.msra.mxu0 %v4535
    %4851 = vmatprep.subr.bf16.mxu0 0
    %4852 = vmatpush1.bf16.msra.mxu0 %v4534
    %4853 = vmatprep.subr.bf16.mxu0 0
    %4854 = vmatpush1.bf16.msra.mxu0 %v4533
    %4855 = vmatprep.subr.bf16.mxu0 0
    %4856 = vmatpush1.bf16.msra.mxu0 %v4532
    %4857 = vmatprep.subr.bf16.mxu0 0
    %4858 = vmatpush1.bf16.msra.mxu0 %v4531
    %4859 = vmatprep.subr.bf16.mxu0 0
    %4860 = vmatpush1.bf16.msra.mxu0 %v4530
    %4861 = vmatprep.subr.bf16.mxu0 0
    %4862 = vmatpush1.bf16.msra.mxu0 %v4529
    %4863 = vmatprep.subr.bf16.mxu0 0
    %4864 = vmatpush1.bf16.msra.mxu0 %v4528
    %4865 = vmatprep.subr.bf16.mxu0 0
    %4866 = vmatpush2.bf16.msra.mxu0 0
    %4867 = vmatprep.subr.bf16.mxu0 0
    %4868 = vmatpush2.bf16.msra.mxu0 0
    %4869 = vmatprep.subr.bf16.mxu0 0
    %4870 = vmatpush2.bf16.msra.mxu0 0
    %4871 = vmatprep.subr.bf16.mxu0 0
    %4872 = vmatpush2.bf16.msra.mxu0 0
    %4873 = vmatprep.subr.bf16.mxu0 0
    %4874 = vmatpush2.bf16.msra.mxu0 0
    %4875 = vmatprep.subr.bf16.mxu0 0
    %4876 = vmatpush2.bf16.msra.mxu0 0
    %4877 = vmatprep.subr.bf16.mxu0 0
    %4878 = vmatpush2.bf16.msra.mxu0 0
    %4879 = vmatprep.subr.bf16.mxu0 0
    %4880 = vmatpush2.bf16.msra.mxu0 0
    %4881 = vmatprep.mubr.bf16.mxu0 0
    %4882 = vmatmul.mubr.bf16.gmra.mxu0 %v4231
    %v4883 = vpop.f32.mrf.mxu0
    %v4884 = vadd.f32 %v4595, %v4883
    %v4885 = vpop.f32.mrf.mxu0
    %v4886 = vpop.f32.mrf.mxu0
    %v4887 = vadd.f32 %v4598, %v4886
    %v4888 = vpop.f32.mrf.mxu0
    %4889 = vmatprep.mubr.bf16.mxu0 0
    %4890 = vmatmul.mubr.bf16.gmra.mxu0 %v4234
    %v4891 = vpop.f32.mrf.mxu0
    %v4892 = vadd.f32 %v4603, %v4891
    %v4893 = vpop.f32.mrf.mxu0
    %v4894 = vpop.f32.mrf.mxu0
    %v4895 = vadd.f32 %v4606, %v4894
    %v4896 = vpop.f32.mrf.mxu0
    %4897 = vmatprep.mubr.bf16.mxu0 0
    %4898 = vmatmul.mubr.bf16.gmra.mxu0 %v4237
    %v4899 = vpop.f32.mrf.mxu0
    %v4900 = vadd.f32 %v4611, %v4899
    %v4901 = vpop.f32.mrf.mxu0
    %v4902 = vpop.f32.mrf.mxu0
    %v4903 = vadd.f32 %v4614, %v4902
    %v4904 = vpop.f32.mrf.mxu0
    %4905 = vmatprep.mubr.bf16.mxu0 0
    %4906 = vmatmul.mubr.bf16.gmra.mxu0 %v4240
    %v4907 = vpop.f32.mrf.mxu0
    %v4908 = vadd.f32 %v4619, %v4907
    %v4909 = vpop.f32.mrf.mxu0
    %v4910 = vpop.f32.mrf.mxu0
    %v4911 = vadd.f32 %v4622, %v4910
    %v4912 = vpop.f32.mrf.mxu0
    %4913 = vmatprep.mubr.bf16.mxu0 0
    %4914 = vmatmul.mubr.bf16.gmra.mxu0 %v4243
    %v4915 = vpop.f32.mrf.mxu0
    %v4916 = vadd.f32 %v4627, %v4915
    %v4917 = vpop.f32.mrf.mxu0
    %v4918 = vpop.f32.mrf.mxu0
    %v4919 = vadd.f32 %v4630, %v4918
    %v4920 = vpop.f32.mrf.mxu0
    %4921 = vmatprep.mubr.bf16.mxu0 0
    %4922 = vmatmul.mubr.bf16.gmra.mxu0 %v4246
    %v4923 = vpop.f32.mrf.mxu0
    %v4924 = vadd.f32 %v4635, %v4923
    %v4925 = vpop.f32.mrf.mxu0
    %v4926 = vpop.f32.mrf.mxu0
    %v4927 = vadd.f32 %v4638, %v4926
    %v4928 = vpop.f32.mrf.mxu0
    %4929 = vmatprep.mubr.bf16.mxu0 0
    %4930 = vmatmul.mubr.bf16.gmra.mxu0 %v4249
    %v4931 = vpop.f32.mrf.mxu0
    %v4932 = vadd.f32 %v4643, %v4931
    %v4933 = vpop.f32.mrf.mxu0
    %v4934 = vpop.f32.mrf.mxu0
    %v4935 = vadd.f32 %v4646, %v4934
    %v4936 = vpop.f32.mrf.mxu0
    %4937 = vmatprep.mubr.bf16.mxu0 0
    %4938 = vmatmul.mubr.bf16.gmra.mxu0 %v4252
    %v4939 = vpop.f32.mrf.mxu0
    %v4940 = vadd.f32 %v4651, %v4939
    %v4941 = vpop.f32.mrf.mxu0
    %v4942 = vpop.f32.mrf.mxu0
    %v4943 = vadd.f32 %v4654, %v4942
    %v4944 = vpop.f32.mrf.mxu0
    %4945 = vmatprep.mubr.bf16.mxu0 0
    %4946 = vmatmul.mubr.bf16.gmra.mxu0 %v4255
    %v4947 = vpop.f32.mrf.mxu0
    %v4948 = vadd.f32 %v4659, %v4947
    %v4949 = vpop.f32.mrf.mxu0
    %v4950 = vpop.f32.mrf.mxu0
    %v4951 = vadd.f32 %v4662, %v4950
    %v4952 = vpop.f32.mrf.mxu0
    %4953 = vmatprep.mubr.bf16.mxu0 0
    %4954 = vmatmul.mubr.bf16.gmra.mxu0 %v4258
    %v4955 = vpop.f32.mrf.mxu0
    %v4956 = vadd.f32 %v4667, %v4955
    %v4957 = vpop.f32.mrf.mxu0
    %v4958 = vpop.f32.mrf.mxu0
    %v4959 = vadd.f32 %v4670, %v4958
    %v4960 = vpop.f32.mrf.mxu0
    %4961 = vmatprep.mubr.bf16.mxu0 0
    %4962 = vmatmul.mubr.bf16.gmra.mxu0 %v4261
    %v4963 = vpop.f32.mrf.mxu0
    %v4964 = vadd.f32 %v4675, %v4963
    %v4965 = vpop.f32.mrf.mxu0
    %v4966 = vpop.f32.mrf.mxu0
    %v4967 = vadd.f32 %v4678, %v4966
    %v4968 = vpop.f32.mrf.mxu0
    %4969 = vmatprep.mubr.bf16.mxu0 0
    %4970 = vmatmul.mubr.bf16.gmra.mxu0 %v4264
    %v4971 = vpop.f32.mrf.mxu0
    %v4972 = vadd.f32 %v4683, %v4971
    %v4973 = vpop.f32.mrf.mxu0
    %v4974 = vpop.f32.mrf.mxu0
    %v4975 = vadd.f32 %v4686, %v4974
    %v4976 = vpop.f32.mrf.mxu0
    %4977 = vmatprep.mubr.bf16.mxu0 0
    %4978 = vmatmul.mubr.bf16.gmra.mxu0 %v4267
    %v4979 = vpop.f32.mrf.mxu0
    %v4980 = vadd.f32 %v4691, %v4979
    %v4981 = vpop.f32.mrf.mxu0
    %v4982 = vpop.f32.mrf.mxu0
    %v4983 = vadd.f32 %v4694, %v4982
    %v4984 = vpop.f32.mrf.mxu0
    %4985 = vmatprep.mubr.bf16.mxu0 0
    %4986 = vmatmul.mubr.bf16.gmra.mxu0 %v4270
    %v4987 = vpop.f32.mrf.mxu0
    %v4988 = vadd.f32 %v4699, %v4987
    %v4989 = vpop.f32.mrf.mxu0
    %v4990 = vpop.f32.mrf.mxu0
    %v4991 = vadd.f32 %v4702, %v4990
    %v4992 = vpop.f32.mrf.mxu0
    %4993 = vmatprep.mubr.bf16.mxu0 0
    %4994 = vmatmul.mubr.bf16.gmra.mxu0 %v4273
    %v4995 = vpop.f32.mrf.mxu0
    %v4996 = vadd.f32 %v4707, %v4995
    %v4997 = vpop.f32.mrf.mxu0
    %v4998 = vpop.f32.mrf.mxu0
    %v4999 = vadd.f32 %v4710, %v4998
    %v5000 = vpop.f32.mrf.mxu0
    %5001 = vmatprep.mubr.bf16.mxu0 0
    %5002 = vmatmul.mubr.bf16.gmra.mxu0 %v4276
    %v5003 = vpop.f32.mrf.mxu0
    %v5004 = vadd.f32 %v4715, %v5003
    %v5005 = vpop.f32.mrf.mxu0
    %v5006 = vpop.f32.mrf.mxu0
    %v5007 = vadd.f32 %v4718, %v5006
    %v5008 = vpop.f32.mrf.mxu0
    %5009 = vmatprep.mubr.bf16.mxu0 0
    %5010 = vmatmul.mubr.bf16.gmra.mxu0 %v4285
    %v5011 = vpop.f32.mrf.mxu0
    %v5012 = vadd.f32 %v4723, %v5011
    %v5013 = vpop.f32.mrf.mxu0
    %v5014 = vpop.f32.mrf.mxu0
    %v5015 = vadd.f32 %v4726, %v5014
    %v5016 = vpop.f32.mrf.mxu0
    %5017 = vmatprep.mubr.bf16.mxu0 0
    %5018 = vmatmul.mubr.bf16.gmra.mxu0 %v4288
    %v5019 = vpop.f32.mrf.mxu0
    %v5020 = vadd.f32 %v4731, %v5019
    %v5021 = vpop.f32.mrf.mxu0
    %v5022 = vpop.f32.mrf.mxu0
    %v5023 = vadd.f32 %v4734, %v5022
    %v5024 = vpop.f32.mrf.mxu0
    %5025 = vmatprep.mubr.bf16.mxu0 0
    %5026 = vmatmul.mubr.bf16.gmra.mxu0 %v4291
    %v5027 = vpop.f32.mrf.mxu0
    %v5028 = vadd.f32 %v4739, %v5027
    %v5029 = vpop.f32.mrf.mxu0
    %v5030 = vpop.f32.mrf.mxu0
    %v5031 = vadd.f32 %v4742, %v5030
    %v5032 = vpop.f32.mrf.mxu0
    %5033 = vmatprep.mubr.bf16.mxu0 0
    %5034 = vmatmul.mubr.bf16.gmra.mxu0 %v4294
    %v5035 = vpop.f32.mrf.mxu0
    %v5036 = vadd.f32 %v4747, %v5035
    %v5037 = vpop.f32.mrf.mxu0
    %v5038 = vpop.f32.mrf.mxu0
    %v5039 = vadd.f32 %v4750, %v5038
    %v5040 = vpop.f32.mrf.mxu0
    %5041 = vmatprep.mubr.bf16.mxu0 0
    %5042 = vmatmul.mubr.bf16.gmra.mxu0 %v4297
    %v5043 = vpop.f32.mrf.mxu0
    %v5044 = vadd.f32 %v4755, %v5043
    %v5045 = vpop.f32.mrf.mxu0
    %v5046 = vpop.f32.mrf.mxu0
    %v5047 = vadd.f32 %v4758, %v5046
    %v5048 = vpop.f32.mrf.mxu0
    %5049 = vmatprep.mubr.bf16.mxu0 0
    %5050 = vmatmul.mubr.bf16.gmra.mxu0 %v4300
    %v5051 = vpop.f32.mrf.mxu0
    %v5052 = vadd.f32 %v4763, %v5051
    %v5053 = vpop.f32.mrf.mxu0
    %v5054 = vpop.f32.mrf.mxu0
    %v5055 = vadd.f32 %v4766, %v5054
    %v5056 = vpop.f32.mrf.mxu0
    %5057 = vmatprep.mubr.bf16.mxu0 0
    %5058 = vmatmul.mubr.bf16.gmra.mxu0 %v4303
    %v5059 = vpop.f32.mrf.mxu0
    %v5060 = vadd.f32 %v4771, %v5059
    %v5061 = vpop.f32.mrf.mxu0
    %v5062 = vpop.f32.mrf.mxu0
    %v5063 = vadd.f32 %v4774, %v5062
    %v5064 = vpop.f32.mrf.mxu0
    %5065 = vmatprep.mubr.bf16.mxu0 0
    %5066 = vmatmul.mubr.bf16.gmra.mxu0 %v4306
    %v5067 = vpop.f32.mrf.mxu0
    %v5068 = vadd.f32 %v4779, %v5067
    %v5069 = vpop.f32.mrf.mxu0
    %v5070 = vpop.f32.mrf.mxu0
    %v5071 = vadd.f32 %v4782, %v5070
    %v5072 = vpop.f32.mrf.mxu0
    %5073 = vmatprep.mubr.bf16.mxu0 0
    %5074 = vmatmul.mubr.bf16.gmra.mxu0 %v4309
    %v5075 = vpop.f32.mrf.mxu0
    %v5076 = vadd.f32 %v4787, %v5075
    %v5077 = vpop.f32.mrf.mxu0
    %v5078 = vpop.f32.mrf.mxu0
    %v5079 = vadd.f32 %v4790, %v5078
    %v5080 = vpop.f32.mrf.mxu0
    %5081 = vmatprep.mubr.bf16.mxu0 0
    %5082 = vmatmul.mubr.bf16.gmra.mxu0 %v4312
    %v5083 = vpop.f32.mrf.mxu0
    %v5084 = vadd.f32 %v4795, %v5083
    %v5085 = vpop.f32.mrf.mxu0
    %v5086 = vpop.f32.mrf.mxu0
    %v5087 = vadd.f32 %v4798, %v5086
    %v5088 = vpop.f32.mrf.mxu0
    %5089 = vmatprep.mubr.bf16.mxu0 0
    %5090 = vmatmul.mubr.bf16.gmra.mxu0 %v4315
    %v5091 = vpop.f32.mrf.mxu0
    %v5092 = vadd.f32 %v4803, %v5091
    %v5093 = vpop.f32.mrf.mxu0
    %v5094 = vpop.f32.mrf.mxu0
    %v5095 = vadd.f32 %v4806, %v5094
    %v5096 = vpop.f32.mrf.mxu0
    %5097 = vmatprep.mubr.bf16.mxu0 0
    %5098 = vmatmul.mubr.bf16.gmra.mxu0 %v4318
    %v5099 = vpop.f32.mrf.mxu0
    %v5100 = vadd.f32 %v4811, %v5099
    %v5101 = vpop.f32.mrf.mxu0
    %v5102 = vpop.f32.mrf.mxu0
    %v5103 = vadd.f32 %v4814, %v5102
    %v5104 = vpop.f32.mrf.mxu0
    %5105 = vmatprep.mubr.bf16.mxu0 0
    %5106 = vmatmul.mubr.bf16.gmra.mxu0 %v4321
    %v5107 = vpop.f32.mrf.mxu0
    %v5108 = vadd.f32 %v4819, %v5107
    %v5109 = vpop.f32.mrf.mxu0
    %v5110 = vpop.f32.mrf.mxu0
    %v5111 = vadd.f32 %v4822, %v5110
    %v5112 = vpop.f32.mrf.mxu0
    %5113 = vmatprep.mubr.bf16.mxu0 0
    %5114 = vmatmul.mubr.bf16.gmra.mxu0 %v4324
    %v5115 = vpop.f32.mrf.mxu0
    %v5116 = vadd.f32 %v4827, %v5115
    %v5117 = vpop.f32.mrf.mxu0
    %v5118 = vpop.f32.mrf.mxu0
    %v5119 = vadd.f32 %v4830, %v5118
    %v5120 = vpop.f32.mrf.mxu0
    %5121 = vmatprep.mubr.bf16.mxu0 0
    %5122 = vmatmul.mubr.bf16.gmra.mxu0 %v4327
    %v5123 = vpop.f32.mrf.mxu0
    %v5124 = vadd.f32 %v4835, %v5123
    %v5125 = vpop.f32.mrf.mxu0
    %v5126 = vpop.f32.mrf.mxu0
    %v5127 = vadd.f32 %v4838, %v5126
    %v5128 = vpop.f32.mrf.mxu0
    %5129 = vmatprep.mubr.bf16.mxu0 0
    %5130 = vmatmul.mubr.bf16.gmra.mxu0 %v4330
    %v5131 = vpop.f32.mrf.mxu0
    %v5132 = vadd.f32 %v4843, %v5131
    %v5133 = vpop.f32.mrf.mxu0
    %v5134 = vpop.f32.mrf.mxu0
    %v5135 = vadd.f32 %v4846, %v5134
    %v5136 = vpop.f32.mrf.mxu0
    %5137 = vdwg.mxu0
    %v5138 = vadd.f32 %v3824, %v4884
    %v5139 = vadd.f32 %v3827, %v4887
    %v5140 = vadd.f32 %v3832, %v4892
    %v5141 = vadd.f32 %v3835, %v4895
    %v5142 = vadd.f32 %v3840, %v4900
    %v5143 = vadd.f32 %v3843, %v4903
    %v5144 = vadd.f32 %v3848, %v4908
    %v5145 = vadd.f32 %v3851, %v4911
    %v5146 = vadd.f32 %v3856, %v4916
    %v5147 = vadd.f32 %v3859, %v4919
    %v5148 = vadd.f32 %v3864, %v4924
    %v5149 = vadd.f32 %v3867, %v4927
    %v5150 = vadd.f32 %v3872, %v4932
    %v5151 = vadd.f32 %v3875, %v4935
    %v5152 = vadd.f32 %v3880, %v4940
    %v5153 = vadd.f32 %v3883, %v4943
    %v5154 = vadd.f32 %v3888, %v4948
    %v5155 = vadd.f32 %v3891, %v4951
    %v5156 = vadd.f32 %v3896, %v4956
    %v5157 = vadd.f32 %v3899, %v4959
    %v5158 = vadd.f32 %v3904, %v4964
    %v5159 = vadd.f32 %v3907, %v4967
    %v5160 = vadd.f32 %v3912, %v4972
    %v5161 = vadd.f32 %v3915, %v4975
    %v5162 = vadd.f32 %v3920, %v4980
    %v5163 = vadd.f32 %v3923, %v4983
    %v5164 = vadd.f32 %v3928, %v4988
    %v5165 = vadd.f32 %v3931, %v4991
    %v5166 = vadd.f32 %v3936, %v4996
    %v5167 = vadd.f32 %v3939, %v4999
    %v5168 = vadd.f32 %v3944, %v5004
    %v5169 = vadd.f32 %v3947, %v5007
    %v5170 = vadd.f32 %v3952, %v5012
    %v5171 = vadd.f32 %v3955, %v5015
    %v5172 = vadd.f32 %v3960, %v5020
    %v5173 = vadd.f32 %v3963, %v5023
    %v5174 = vadd.f32 %v3968, %v5028
    %v5175 = vadd.f32 %v3971, %v5031
    %v5176 = vadd.f32 %v3976, %v5036
    %v5177 = vadd.f32 %v3979, %v5039
    %v5178 = vadd.f32 %v3984, %v5044
    %v5179 = vadd.f32 %v3987, %v5047
    %v5180 = vadd.f32 %v3992, %v5052
    %v5181 = vadd.f32 %v3995, %v5055
    %v5182 = vadd.f32 %v4000, %v5060
    %v5183 = vadd.f32 %v4003, %v5063
    %v5184 = vadd.f32 %v4008, %v5068
    %v5185 = vadd.f32 %v4011, %v5071
    %v5186 = vadd.f32 %v4016, %v5076
    %v5187 = vadd.f32 %v4019, %v5079
    %v5188 = vadd.f32 %v4024, %v5084
    %v5189 = vadd.f32 %v4027, %v5087
    %v5190 = vadd.f32 %v4032, %v5092
    %v5191 = vadd.f32 %v4035, %v5095
    %v5192 = vadd.f32 %v4040, %v5100
    %v5193 = vadd.f32 %v4043, %v5103
    %v5194 = vadd.f32 %v4048, %v5108
    %v5195 = vadd.f32 %v4051, %v5111
    %v5196 = vadd.f32 %v4056, %v5116
    %v5197 = vadd.f32 %v4059, %v5119
    %v5198 = vadd.f32 %v4064, %v5124
    %v5199 = vadd.f32 %v4067, %v5127
    %v5200 = vadd.f32 %v4072, %v5132
    %v5201 = vadd.f32 %v4075, %v5135
    %v5202 = vadd.f32 %v5138, %v5139
    %v5203 = vadd.f32 %v5202, %v5140
    %v5204 = vadd.f32 %v5203, %v5141
    %v5205 = vadd.f32 %v5204, %v5142
    %v5206 = vadd.f32 %v5205, %v5143
    %v5207 = vadd.f32 %v5206, %v5144
    %v5208 = vadd.f32 %v5207, %v5145
    %v5209 = vadd.f32 %v5208, %v5146
    %v5210 = vadd.f32 %v5209, %v5147
    %v5211 = vadd.f32 %v5210, %v5148
    %v5212 = vadd.f32 %v5211, %v5149
    %v5213 = vadd.f32 %v5212, %v5150
    %v5214 = vadd.f32 %v5213, %v5151
    %v5215 = vadd.f32 %v5214, %v5152
    %v5216 = vadd.f32 %v5215, %v5153
    %v5217 = vadd.f32 %v5216, %v5154
    %v5218 = vadd.f32 %v5217, %v5155
    %v5219 = vadd.f32 %v5218, %v5156
    %v5220 = vadd.f32 %v5219, %v5157
    %v5221 = vadd.f32 %v5220, %v5158
    %v5222 = vadd.f32 %v5221, %v5159
    %v5223 = vadd.f32 %v5222, %v5160
    %v5224 = vadd.f32 %v5223, %v5161
    %v5225 = vadd.f32 %v5224, %v5162
    %v5226 = vadd.f32 %v5225, %v5163
    %v5227 = vadd.f32 %v5226, %v5164
    %v5228 = vadd.f32 %v5227, %v5165
    %v5229 = vadd.f32 %v5228, %v5166
    %v5230 = vadd.f32 %v5229, %v5167
    %v5231 = vadd.f32 %v5230, %v5168
    %v5232 = vadd.f32 %v5231, %v5169
    %v5233 = vadd.f32 %v5232, %v5170
    %v5234 = vadd.f32 %v5233, %v5171
    %v5235 = vadd.f32 %v5234, %v5172
    %v5236 = vadd.f32 %v5235, %v5173
    %v5237 = vadd.f32 %v5236, %v5174
    %v5238 = vadd.f32 %v5237, %v5175
    %v5239 = vadd.f32 %v5238, %v5176
    %v5240 = vadd.f32 %v5239, %v5177
    %v5241 = vadd.f32 %v5240, %v5178
    %v5242 = vadd.f32 %v5241, %v5179
    %v5243 = vadd.f32 %v5242, %v5180
    %v5244 = vadd.f32 %v5243, %v5181
    %v5245 = vadd.f32 %v5244, %v5182
    %v5246 = vadd.f32 %v5245, %v5183
    %v5247 = vadd.f32 %v5246, %v5184
    %v5248 = vadd.f32 %v5247, %v5185
    %v5249 = vadd.f32 %v5248, %v5186
    %v5250 = vadd.f32 %v5249, %v5187
    %v5251 = vadd.f32 %v5250, %v5188
    %v5252 = vadd.f32 %v5251, %v5189
    %v5253 = vadd.f32 %v5252, %v5190
    %v5254 = vadd.f32 %v5253, %v5191
    %v5255 = vadd.f32 %v5254, %v5192
    %v5256 = vadd.f32 %v5255, %v5193
    %v5257 = vadd.f32 %v5256, %v5194
    %v5258 = vadd.f32 %v5257, %v5195
    %v5259 = vadd.f32 %v5258, %v5196
    %v5260 = vadd.f32 %v5259, %v5197
    %v5261 = vadd.f32 %v5260, %v5198
    %v5262 = vadd.f32 %v5261, %v5199
    %v5263 = vadd.f32 %v5262, %v5200
    %v5264 = vadd.f32 %v5263, %v5201
    %v5265 = vrot.slane %v5264, 4
    %v5266 = vadd.f32 %v5264, %v5265
    %v5267 = vrot.slane %v5266, 2
    %v5268 = vadd.f32 %v5266, %v5267
    %v5269 = vrot.slane %v5268, 1
    %v5270 = vadd.f32 %v5268, %v5269
    %v5271 = vrcp.pop 512.0
    %v5272 = vmul.f32 %v5270, %v5271
    %v5273 = vmul.f32 %v5138, %v5138
    %v5274 = vmul.f32 %v5139, %v5139
    %v5275 = vmul.f32 %v5140, %v5140
    %v5276 = vmul.f32 %v5141, %v5141
    %v5277 = vmul.f32 %v5142, %v5142
    %v5278 = vmul.f32 %v5143, %v5143
    %v5279 = vmul.f32 %v5144, %v5144
    %v5280 = vmul.f32 %v5145, %v5145
    %v5281 = vmul.f32 %v5146, %v5146
    %v5282 = vmul.f32 %v5147, %v5147
    %v5283 = vmul.f32 %v5148, %v5148
    %v5284 = vmul.f32 %v5149, %v5149
    %v5285 = vmul.f32 %v5150, %v5150
    %v5286 = vmul.f32 %v5151, %v5151
    %v5287 = vmul.f32 %v5152, %v5152
    %v5288 = vmul.f32 %v5153, %v5153
    %v5289 = vmul.f32 %v5154, %v5154
    %v5290 = vmul.f32 %v5155, %v5155
    %v5291 = vmul.f32 %v5156, %v5156
    %v5292 = vmul.f32 %v5157, %v5157
    %v5293 = vmul.f32 %v5158, %v5158
    %v5294 = vmul.f32 %v5159, %v5159
    %v5295 = vmul.f32 %v5160, %v5160
    %v5296 = vmul.f32 %v5161, %v5161
    %v5297 = vmul.f32 %v5162, %v5162
    %v5298 = vmul.f32 %v5163, %v5163
    %v5299 = vmul.f32 %v5164, %v5164
    %v5300 = vmul.f32 %v5165, %v5165
    %v5301 = vmul.f32 %v5166, %v5166
    %v5302 = vmul.f32 %v5167, %v5167
    %v5303 = vmul.f32 %v5168, %v5168
    %v5304 = vmul.f32 %v5169, %v5169
    %v5305 = vmul.f32 %v5170, %v5170
    %v5306 = vmul.f32 %v5171, %v5171
    %v5307 = vmul.f32 %v5172, %v5172
    %v5308 = vmul.f32 %v5173, %v5173
    %v5309 = vmul.f32 %v5174, %v5174
    %v5310 = vmul.f32 %v5175, %v5175
    %v5311 = vmul.f32 %v5176, %v5176
    %v5312 = vmul.f32 %v5177, %v5177
    %v5313 = vmul.f32 %v5178, %v5178
    %v5314 = vmul.f32 %v5179, %v5179
    %v5315 = vmul.f32 %v5180, %v5180
    %v5316 = vmul.f32 %v5181, %v5181
    %v5317 = vmul.f32 %v5182, %v5182
    %v5318 = vmul.f32 %v5183, %v5183
    %v5319 = vmul.f32 %v5184, %v5184
    %v5320 = vmul.f32 %v5185, %v5185
    %v5321 = vmul.f32 %v5186, %v5186
    %v5322 = vmul.f32 %v5187, %v5187
    %v5323 = vmul.f32 %v5188, %v5188
    %v5324 = vmul.f32 %v5189, %v5189
    %v5325 = vmul.f32 %v5190, %v5190
    %v5326 = vmul.f32 %v5191, %v5191
    %v5327 = vmul.f32 %v5192, %v5192
    %v5328 = vmul.f32 %v5193, %v5193
    %v5329 = vmul.f32 %v5194, %v5194
    %v5330 = vmul.f32 %v5195, %v5195
    %v5331 = vmul.f32 %v5196, %v5196
    %v5332 = vmul.f32 %v5197, %v5197
    %v5333 = vmul.f32 %v5198, %v5198
    %v5334 = vmul.f32 %v5199, %v5199
    %v5335 = vmul.f32 %v5200, %v5200
    %v5336 = vmul.f32 %v5201, %v5201
    %v5337 = vadd.f32 %v5273, %v5274
    %v5338 = vadd.f32 %v5337, %v5275
    %v5339 = vadd.f32 %v5338, %v5276
    %v5340 = vadd.f32 %v5339, %v5277
    %v5341 = vadd.f32 %v5340, %v5278
    %v5342 = vadd.f32 %v5341, %v5279
    %v5343 = vadd.f32 %v5342, %v5280
    %v5344 = vadd.f32 %v5343, %v5281
    %v5345 = vadd.f32 %v5344, %v5282
    %v5346 = vadd.f32 %v5345, %v5283
    %v5347 = vadd.f32 %v5346, %v5284
    %v5348 = vadd.f32 %v5347, %v5285
    %v5349 = vadd.f32 %v5348, %v5286
    %v5350 = vadd.f32 %v5349, %v5287
    %v5351 = vadd.f32 %v5350, %v5288
    %v5352 = vadd.f32 %v5351, %v5289
    %v5353 = vadd.f32 %v5352, %v5290
    %v5354 = vadd.f32 %v5353, %v5291
    %v5355 = vadd.f32 %v5354, %v5292
    %v5356 = vadd.f32 %v5355, %v5293
    %v5357 = vadd.f32 %v5356, %v5294
    %v5358 = vadd.f32 %v5357, %v5295
    %v5359 = vadd.f32 %v5358, %v5296
    %v5360 = vadd.f32 %v5359, %v5297
    %v5361 = vadd.f32 %v5360, %v5298
    %v5362 = vadd.f32 %v5361, %v5299
    %v5363 = vadd.f32 %v5362, %v5300
    %v5364 = vadd.f32 %v5363, %v5301
    %v5365 = vadd.f32 %v5364, %v5302
    %v5366 = vadd.f32 %v5365, %v5303
    %v5367 = vadd.f32 %v5366, %v5304
    %v5368 = vadd.f32 %v5367, %v5305
    %v5369 = vadd.f32 %v5368, %v5306
    %v5370 = vadd.f32 %v5369, %v5307
    %v5371 = vadd.f32 %v5370, %v5308
    %v5372 = vadd.f32 %v5371, %v5309
    %v5373 = vadd.f32 %v5372, %v5310
    %v5374 = vadd.f32 %v5373, %v5311
    %v5375 = vadd.f32 %v5374, %v5312
    %v5376 = vadd.f32 %v5375, %v5313
    %v5377 = vadd.f32 %v5376, %v5314
    %v5378 = vadd.f32 %v5377, %v5315
    %v5379 = vadd.f32 %v5378, %v5316
    %v5380 = vadd.f32 %v5379, %v5317
    %v5381 = vadd.f32 %v5380, %v5318
    %v5382 = vadd.f32 %v5381, %v5319
    %v5383 = vadd.f32 %v5382, %v5320
    %v5384 = vadd.f32 %v5383, %v5321
    %v5385 = vadd.f32 %v5384, %v5322
    %v5386 = vadd.f32 %v5385, %v5323
    %v5387 = vadd.f32 %v5386, %v5324
    %v5388 = vadd.f32 %v5387, %v5325
    %v5389 = vadd.f32 %v5388, %v5326
    %v5390 = vadd.f32 %v5389, %v5327
    %v5391 = vadd.f32 %v5390, %v5328
    %v5392 = vadd.f32 %v5391, %v5329
    %v5393 = vadd.f32 %v5392, %v5330
    %v5394 = vadd.f32 %v5393, %v5331
    %v5395 = vadd.f32 %v5394, %v5332
    %v5396 = vadd.f32 %v5395, %v5333
    %v5397 = vadd.f32 %v5396, %v5334
    %v5398 = vadd.f32 %v5397, %v5335
    %v5399 = vadd.f32 %v5398, %v5336
    %v5400 = vrot.slane %v5399, 4
    %v5401 = vadd.f32 %v5399, %v5400
    %v5402 = vrot.slane %v5401, 2
    %v5403 = vadd.f32 %v5401, %v5402
    %v5404 = vrot.slane %v5403, 1
    %v5405 = vadd.f32 %v5403, %v5404
    %v5406 = vmul.f32 %v5405, %v5271
    %v5407 = vmul.f32 %v5272, %v5272
    %v5408 = vsub.f32 %v5406, %v5407
    %v5409 = vld [vmem:[%s2] sm:$0x1]
    %v5410 = vadd.f32 %v5408, 1e-05
    %v5411 = vrsqrt.pop %v5410
    %v5412 = vmul.f32 %v5409, %v5411
    %v5413 = vld [vmem:[%s3] sm:$0x1]
    %v5414 = vmul.f32 %v5272, %v5412
    %v5415 = vsub.f32 %v5413, %v5414
    %v5417 = vlaneseq
    %v5418 = vshrl.u32 %v5417, 7
    %v5419 = vsub.s32 0, %v5418
    %v5420 = vrot.slane %v5412, %v5419
    %v5422 = vmul.f32 %v5138, %v5420
    %v5423 = vmul.f32 %v5139, %v5420
    %v5424 = vmul.f32 %v5140, %v5420
    %v5425 = vmul.f32 %v5141, %v5420
    %v5426 = vmul.f32 %v5142, %v5420
    %v5427 = vmul.f32 %v5143, %v5420
    %v5428 = vmul.f32 %v5144, %v5420
    %v5429 = vmul.f32 %v5145, %v5420
    %v5430 = vmul.f32 %v5146, %v5420
    %v5431 = vmul.f32 %v5147, %v5420
    %v5432 = vmul.f32 %v5148, %v5420
    %v5433 = vmul.f32 %v5149, %v5420
    %v5434 = vmul.f32 %v5150, %v5420
    %v5435 = vmul.f32 %v5151, %v5420
    %v5436 = vmul.f32 %v5152, %v5420
    %v5437 = vmul.f32 %v5153, %v5420
    %v5438 = vmul.f32 %v5154, %v5420
    %v5439 = vmul.f32 %v5155, %v5420
    %v5440 = vmul.f32 %v5156, %v5420
    %v5441 = vmul.f32 %v5157, %v5420
    %v5442 = vmul.f32 %v5158, %v5420
    %v5443 = vmul.f32 %v5159, %v5420
    %v5444 = vmul.f32 %v5160, %v5420
    %v5445 = vmul.f32 %v5161, %v5420
    %v5446 = vmul.f32 %v5162, %v5420
    %v5447 = vmul.f32 %v5163, %v5420
    %v5448 = vmul.f32 %v5164, %v5420
    %v5449 = vmul.f32 %v5165, %v5420
    %v5450 = vmul.f32 %v5166, %v5420
    %v5451 = vmul.f32 %v5167, %v5420
    %v5452 = vmul.f32 %v5168, %v5420
    %v5453 = vmul.f32 %v5169, %v5420
    %v5454 = vmul.f32 %v5170, %v5420
    %v5455 = vmul.f32 %v5171, %v5420
    %v5456 = vmul.f32 %v5172, %v5420
    %v5457 = vmul.f32 %v5173, %v5420
    %v5458 = vmul.f32 %v5174, %v5420
    %v5459 = vmul.f32 %v5175, %v5420
    %v5460 = vmul.f32 %v5176, %v5420
    %v5461 = vmul.f32 %v5177, %v5420
    %v5462 = vmul.f32 %v5178, %v5420
    %v5463 = vmul.f32 %v5179, %v5420
    %v5464 = vmul.f32 %v5180, %v5420
    %v5465 = vmul.f32 %v5181, %v5420
    %v5466 = vmul.f32 %v5182, %v5420
    %v5467 = vmul.f32 %v5183, %v5420
    %v5468 = vmul.f32 %v5184, %v5420
    %v5469 = vmul.f32 %v5185, %v5420
    %v5470 = vmul.f32 %v5186, %v5420
    %v5471 = vmul.f32 %v5187, %v5420
    %v5472 = vmul.f32 %v5188, %v5420
    %v5473 = vmul.f32 %v5189, %v5420
    %v5474 = vmul.f32 %v5190, %v5420
    %v5475 = vmul.f32 %v5191, %v5420
    %v5476 = vmul.f32 %v5192, %v5420
    %v5477 = vmul.f32 %v5193, %v5420
    %v5478 = vmul.f32 %v5194, %v5420
    %v5479 = vmul.f32 %v5195, %v5420
    %v5480 = vmul.f32 %v5196, %v5420
    %v5481 = vmul.f32 %v5197, %v5420
    %v5482 = vmul.f32 %v5198, %v5420
    %v5483 = vmul.f32 %v5199, %v5420
    %v5484 = vmul.f32 %v5200, %v5420
    %v5485 = vmul.f32 %v5201, %v5420
    %v5487 = vlaneseq
    %v5488 = vshrl.u32 %v5487, 7
    %v5489 = vsub.s32 0, %v5488
    %v5490 = vrot.slane %v5415, %v5489
    %v5492 = vadd.f32 %v5422, %v5490
    %v5493 = vadd.f32 %v5423, %v5490
    %v5494 = vadd.f32 %v5424, %v5490
    %v5495 = vadd.f32 %v5425, %v5490
    %v5496 = vadd.f32 %v5426, %v5490
    %v5497 = vadd.f32 %v5427, %v5490
    %v5498 = vadd.f32 %v5428, %v5490
    %v5499 = vadd.f32 %v5429, %v5490
    %v5500 = vadd.f32 %v5430, %v5490
    %v5501 = vadd.f32 %v5431, %v5490
    %v5502 = vadd.f32 %v5432, %v5490
    %v5503 = vadd.f32 %v5433, %v5490
    %v5504 = vadd.f32 %v5434, %v5490
    %v5505 = vadd.f32 %v5435, %v5490
    %v5506 = vadd.f32 %v5436, %v5490
    %v5507 = vadd.f32 %v5437, %v5490
    %v5508 = vadd.f32 %v5438, %v5490
    %v5509 = vadd.f32 %v5439, %v5490
    %v5510 = vadd.f32 %v5440, %v5490
    %v5511 = vadd.f32 %v5441, %v5490
    %v5512 = vadd.f32 %v5442, %v5490
    %v5513 = vadd.f32 %v5443, %v5490
    %v5514 = vadd.f32 %v5444, %v5490
    %v5515 = vadd.f32 %v5445, %v5490
    %v5516 = vadd.f32 %v5446, %v5490
    %v5517 = vadd.f32 %v5447, %v5490
    %v5518 = vadd.f32 %v5448, %v5490
    %v5519 = vadd.f32 %v5449, %v5490
    %v5520 = vadd.f32 %v5450, %v5490
    %v5521 = vadd.f32 %v5451, %v5490
    %v5522 = vadd.f32 %v5452, %v5490
    %v5523 = vadd.f32 %v5453, %v5490
    %v5524 = vadd.f32 %v5454, %v5490
    %v5525 = vadd.f32 %v5455, %v5490
    %v5526 = vadd.f32 %v5456, %v5490
    %v5527 = vadd.f32 %v5457, %v5490
    %v5528 = vadd.f32 %v5458, %v5490
    %v5529 = vadd.f32 %v5459, %v5490
    %v5530 = vadd.f32 %v5460, %v5490
    %v5531 = vadd.f32 %v5461, %v5490
    %v5532 = vadd.f32 %v5462, %v5490
    %v5533 = vadd.f32 %v5463, %v5490
    %v5534 = vadd.f32 %v5464, %v5490
    %v5535 = vadd.f32 %v5465, %v5490
    %v5536 = vadd.f32 %v5466, %v5490
    %v5537 = vadd.f32 %v5467, %v5490
    %v5538 = vadd.f32 %v5468, %v5490
    %v5539 = vadd.f32 %v5469, %v5490
    %v5540 = vadd.f32 %v5470, %v5490
    %v5541 = vadd.f32 %v5471, %v5490
    %v5542 = vadd.f32 %v5472, %v5490
    %v5543 = vadd.f32 %v5473, %v5490
    %v5544 = vadd.f32 %v5474, %v5490
    %v5545 = vadd.f32 %v5475, %v5490
    %v5546 = vadd.f32 %v5476, %v5490
    %v5547 = vadd.f32 %v5477, %v5490
    %v5548 = vadd.f32 %v5478, %v5490
    %v5549 = vadd.f32 %v5479, %v5490
    %v5550 = vadd.f32 %v5480, %v5490
    %v5551 = vadd.f32 %v5481, %v5490
    %v5552 = vadd.f32 %v5482, %v5490
    %v5553 = vadd.f32 %v5483, %v5490
    %v5554 = vadd.f32 %v5484, %v5490
    %v5555 = vadd.f32 %v5485, %v5490
    %v5556 = vmax.f32 %v5492, 0.0
    %v5557 = vmax.f32 %v5493, 0.0
    %v5558 = vmax.f32 %v5494, 0.0
    %v5559 = vmax.f32 %v5495, 0.0
    %v5560 = vmax.f32 %v5496, 0.0
    %v5561 = vmax.f32 %v5497, 0.0
    %v5562 = vmax.f32 %v5498, 0.0
    %v5563 = vmax.f32 %v5499, 0.0
    %v5564 = vmax.f32 %v5500, 0.0
    %v5565 = vmax.f32 %v5501, 0.0
    %v5566 = vmax.f32 %v5502, 0.0
    %v5567 = vmax.f32 %v5503, 0.0
    %v5568 = vmax.f32 %v5504, 0.0
    %v5569 = vmax.f32 %v5505, 0.0
    %v5570 = vmax.f32 %v5506, 0.0
    %v5571 = vmax.f32 %v5507, 0.0
    %v5572 = vmax.f32 %v5508, 0.0
    %v5573 = vmax.f32 %v5509, 0.0
    %v5574 = vmax.f32 %v5510, 0.0
    %v5575 = vmax.f32 %v5511, 0.0
    %v5576 = vmax.f32 %v5512, 0.0
    %v5577 = vmax.f32 %v5513, 0.0
    %v5578 = vmax.f32 %v5514, 0.0
    %v5579 = vmax.f32 %v5515, 0.0
    %v5580 = vmax.f32 %v5516, 0.0
    %v5581 = vmax.f32 %v5517, 0.0
    %v5582 = vmax.f32 %v5518, 0.0
    %v5583 = vmax.f32 %v5519, 0.0
    %v5584 = vmax.f32 %v5520, 0.0
    %v5585 = vmax.f32 %v5521, 0.0
    %v5586 = vmax.f32 %v5522, 0.0
    %v5587 = vmax.f32 %v5523, 0.0
    %v5588 = vmax.f32 %v5524, 0.0
    %v5589 = vmax.f32 %v5525, 0.0
    %v5590 = vmax.f32 %v5526, 0.0
    %v5591 = vmax.f32 %v5527, 0.0
    %v5592 = vmax.f32 %v5528, 0.0
    %v5593 = vmax.f32 %v5529, 0.0
    %v5594 = vmax.f32 %v5530, 0.0
    %v5595 = vmax.f32 %v5531, 0.0
    %v5596 = vmax.f32 %v5532, 0.0
    %v5597 = vmax.f32 %v5533, 0.0
    %v5598 = vmax.f32 %v5534, 0.0
    %v5599 = vmax.f32 %v5535, 0.0
    %v5600 = vmax.f32 %v5536, 0.0
    %v5601 = vmax.f32 %v5537, 0.0
    %v5602 = vmax.f32 %v5538, 0.0
    %v5603 = vmax.f32 %v5539, 0.0
    %v5604 = vmax.f32 %v5540, 0.0
    %v5605 = vmax.f32 %v5541, 0.0
    %v5606 = vmax.f32 %v5542, 0.0
    %v5607 = vmax.f32 %v5543, 0.0
    %v5608 = vmax.f32 %v5544, 0.0
    %v5609 = vmax.f32 %v5545, 0.0
    %v5610 = vmax.f32 %v5546, 0.0
    %v5611 = vmax.f32 %v5547, 0.0
    %v5612 = vmax.f32 %v5548, 0.0
    %v5613 = vmax.f32 %v5549, 0.0
    %v5614 = vmax.f32 %v5550, 0.0
    %v5615 = vmax.f32 %v5551, 0.0
    %v5616 = vmax.f32 %v5552, 0.0
    %v5617 = vmax.f32 %v5553, 0.0
    %v5618 = vmax.f32 %v5554, 0.0
    %v5619 = vmax.f32 %v5555, 0.0
    %v5620 = vpack.c.bf16 %v5557, %v5556
    %v5621 = vpack.c.bf16 %v5559, %v5558
    %v5622 = vpack.c.bf16 %v5561, %v5560
    %v5623 = vpack.c.bf16 %v5563, %v5562
    %v5624 = vpack.c.bf16 %v5565, %v5564
    %v5625 = vpack.c.bf16 %v5567, %v5566
    %v5626 = vpack.c.bf16 %v5569, %v5568
    %v5627 = vpack.c.bf16 %v5571, %v5570
    %v5628 = vpack.c.bf16 %v5573, %v5572
    %v5629 = vpack.c.bf16 %v5575, %v5574
    %v5630 = vpack.c.bf16 %v5577, %v5576
    %v5631 = vpack.c.bf16 %v5579, %v5578
    %v5632 = vpack.c.bf16 %v5581, %v5580
    %v5633 = vpack.c.bf16 %v5583, %v5582
    %v5634 = vpack.c.bf16 %v5585, %v5584
    %v5635 = vpack.c.bf16 %v5587, %v5586
    %v5636 = vpack.c.bf16 %v5589, %v5588
    %v5637 = vpack.c.bf16 %v5591, %v5590
    %v5638 = vpack.c.bf16 %v5593, %v5592
    %v5639 = vpack.c.bf16 %v5595, %v5594
    %v5640 = vpack.c.bf16 %v5597, %v5596
    %v5641 = vpack.c.bf16 %v5599, %v5598
    %v5642 = vpack.c.bf16 %v5601, %v5600
    %v5643 = vpack.c.bf16 %v5603, %v5602
    %v5644 = vpack.c.bf16 %v5605, %v5604
    %v5645 = vpack.c.bf16 %v5607, %v5606
    %v5646 = vpack.c.bf16 %v5609, %v5608
    %v5647 = vpack.c.bf16 %v5611, %v5610
    %v5648 = vpack.c.bf16 %v5613, %v5612
    %v5649 = vpack.c.bf16 %v5615, %v5614
    %v5650 = vpack.c.bf16 %v5617, %v5616
    %v5651 = vpack.c.bf16 %v5619, %v5618
    %v5684 = vunpack.c.l.b16 %v5620
    %v5685 = vunpack.c.h.b16 %v5620
    %v5686 = vunpack.c.l.b16 %v5621
    %v5687 = vunpack.c.h.b16 %v5621
    %v5688 = vunpack.c.l.b16 %v5622
    %v5689 = vunpack.c.h.b16 %v5622
    %v5690 = vunpack.c.l.b16 %v5623
    %v5691 = vunpack.c.h.b16 %v5623
    %v5692 = vunpack.c.l.b16 %v5624
    %v5693 = vunpack.c.h.b16 %v5624
    %v5694 = vunpack.c.l.b16 %v5625
    %v5695 = vunpack.c.h.b16 %v5625
    %v5696 = vunpack.c.l.b16 %v5626
    %v5697 = vunpack.c.h.b16 %v5626
    %v5698 = vunpack.c.l.b16 %v5627
    %v5699 = vunpack.c.h.b16 %v5627
    %v5700 = vunpack.c.l.b16 %v5628
    %v5701 = vunpack.c.h.b16 %v5628
    %v5702 = vunpack.c.l.b16 %v5629
    %v5703 = vunpack.c.h.b16 %v5629
    %v5704 = vunpack.c.l.b16 %v5630
    %v5705 = vunpack.c.h.b16 %v5630
    %v5706 = vunpack.c.l.b16 %v5631
    %v5707 = vunpack.c.h.b16 %v5631
    %v5708 = vunpack.c.l.b16 %v5632
    %v5709 = vunpack.c.h.b16 %v5632
    %v5710 = vunpack.c.l.b16 %v5633
    %v5711 = vunpack.c.h.b16 %v5633
    %v5712 = vunpack.c.l.b16 %v5634
    %v5713 = vunpack.c.h.b16 %v5634
    %v5714 = vunpack.c.l.b16 %v5635
    %v5715 = vunpack.c.h.b16 %v5635
    %v5716 = vunpack.c.l.b16 %v5636
    %v5717 = vunpack.c.h.b16 %v5636
    %v5718 = vunpack.c.l.b16 %v5637
    %v5719 = vunpack.c.h.b16 %v5637
    %v5720 = vunpack.c.l.b16 %v5638
    %v5721 = vunpack.c.h.b16 %v5638
    %v5722 = vunpack.c.l.b16 %v5639
    %v5723 = vunpack.c.h.b16 %v5639
    %v5724 = vunpack.c.l.b16 %v5640
    %v5725 = vunpack.c.h.b16 %v5640
    %v5726 = vunpack.c.l.b16 %v5641
    %v5727 = vunpack.c.h.b16 %v5641
    %v5728 = vunpack.c.l.b16 %v5642
    %v5729 = vunpack.c.h.b16 %v5642
    %v5730 = vunpack.c.l.b16 %v5643
    %v5731 = vunpack.c.h.b16 %v5643
    %v5732 = vunpack.c.l.b16 %v5644
    %v5733 = vunpack.c.h.b16 %v5644
    %v5734 = vunpack.c.l.b16 %v5645
    %v5735 = vunpack.c.h.b16 %v5645
    %v5736 = vunpack.c.l.b16 %v5646
    %v5737 = vunpack.c.h.b16 %v5646
    %v5738 = vunpack.c.l.b16 %v5647
    %v5739 = vunpack.c.h.b16 %v5647
    %v5740 = vunpack.c.l.b16 %v5648
    %v5741 = vunpack.c.h.b16 %v5648
    %v5742 = vunpack.c.l.b16 %v5649
    %v5743 = vunpack.c.h.b16 %v5649
    %v5744 = vunpack.c.l.b16 %v5650
    %v5745 = vunpack.c.h.b16 %v5650
    %v5746 = vunpack.c.l.b16 %v5651
    %v5747 = vunpack.c.h.b16 %v5651
    %v5748 = vpack.c.b16 %v5684, %v5684
    %v5749 = vpack.c.b16 %v5685, %v5685
    %v5750 = vpack.c.b16 %v5686, %v5686
    %v5751 = vpack.c.b16 %v5687, %v5687
    %v5752 = vpack.c.b16 %v5688, %v5688
    %v5753 = vpack.c.b16 %v5689, %v5689
    %v5754 = vpack.c.b16 %v5690, %v5690
    %v5755 = vpack.c.b16 %v5691, %v5691
    %v5756 = vpack.c.b16 %v5692, %v5692
    %v5757 = vpack.c.b16 %v5693, %v5693
    %v5758 = vpack.c.b16 %v5694, %v5694
    %v5759 = vpack.c.b16 %v5695, %v5695
    %v5760 = vpack.c.b16 %v5696, %v5696
    %v5761 = vpack.c.b16 %v5697, %v5697
    %v5762 = vpack.c.b16 %v5698, %v5698
    %v5763 = vpack.c.b16 %v5699, %v5699
    %v5764 = vpack.c.b16 %v5700, %v5700
    %v5765 = vpack.c.b16 %v5701, %v5701
    %v5766 = vpack.c.b16 %v5702, %v5702
    %v5767 = vpack.c.b16 %v5703, %v5703
    %v5768 = vpack.c.b16 %v5704, %v5704
    %v5769 = vpack.c.b16 %v5705, %v5705
    %v5770 = vpack.c.b16 %v5706, %v5706
    %v5771 = vpack.c.b16 %v5707, %v5707
    %v5772 = vpack.c.b16 %v5708, %v5708
    %v5773 = vpack.c.b16 %v5709, %v5709
    %v5774 = vpack.c.b16 %v5710, %v5710
    %v5775 = vpack.c.b16 %v5711, %v5711
    %v5776 = vpack.c.b16 %v5712, %v5712
    %v5777 = vpack.c.b16 %v5713, %v5713
    %v5778 = vpack.c.b16 %v5714, %v5714
    %v5779 = vpack.c.b16 %v5715, %v5715
    %v5780 = vpack.c.b16 %v5716, %v5716
    %v5781 = vpack.c.b16 %v5717, %v5717
    %v5782 = vpack.c.b16 %v5718, %v5718
    %v5783 = vpack.c.b16 %v5719, %v5719
    %v5784 = vpack.c.b16 %v5720, %v5720
    %v5785 = vpack.c.b16 %v5721, %v5721
    %v5786 = vpack.c.b16 %v5722, %v5722
    %v5787 = vpack.c.b16 %v5723, %v5723
    %v5788 = vpack.c.b16 %v5724, %v5724
    %v5789 = vpack.c.b16 %v5725, %v5725
    %v5790 = vpack.c.b16 %v5726, %v5726
    %v5791 = vpack.c.b16 %v5727, %v5727
    %v5792 = vpack.c.b16 %v5728, %v5728
    %v5793 = vpack.c.b16 %v5729, %v5729
    %v5794 = vpack.c.b16 %v5730, %v5730
    %v5795 = vpack.c.b16 %v5731, %v5731
    %v5796 = vpack.c.b16 %v5732, %v5732
    %v5797 = vpack.c.b16 %v5733, %v5733
    %v5798 = vpack.c.b16 %v5734, %v5734
    %v5799 = vpack.c.b16 %v5735, %v5735
    %v5800 = vpack.c.b16 %v5736, %v5736
    %v5801 = vpack.c.b16 %v5737, %v5737
    %v5802 = vpack.c.b16 %v5738, %v5738
    %v5803 = vpack.c.b16 %v5739, %v5739
    %v5804 = vpack.c.b16 %v5740, %v5740
    %v5805 = vpack.c.b16 %v5741, %v5741
    %v5806 = vpack.c.b16 %v5742, %v5742
    %v5807 = vpack.c.b16 %v5743, %v5743
    %v5808 = vpack.c.b16 %v5744, %v5744
    %v5809 = vpack.c.b16 %v5745, %v5745
    %v5810 = vpack.c.b16 %v5746, %v5746
    %v5811 = vpack.c.b16 %v5747, %v5747
    %v5813 = vshrl.u32 %v5748, 16
    %v5815 = vrot.slane %v5813, 7
    %v5816 = vshll.u32 %v5748, 16
    %v5818 = vor.u32 %v5815, %v5816
    %v5819 = vrot.slane %v5815, 4
    %v5821 = vshrl.u32 %v5749, 16
    %v5823 = vrot.slane %v5821, 7
    %v5824 = vshll.u32 %v5749, 16
    %v5826 = vor.u32 %v5823, %v5824
    %v5827 = vsel %vm327, %v5819, %v5826
    %v5828 = vrot.slane %v5823, 4
    %v5830 = vshrl.u32 %v5750, 16
    %v5832 = vrot.slane %v5830, 7
    %v5833 = vshll.u32 %v5750, 16
    %v5835 = vor.u32 %v5832, %v5833
    %v5836 = vrot.slane %v5832, 4
    %v5838 = vshrl.u32 %v5751, 16
    %v5840 = vrot.slane %v5838, 7
    %v5841 = vshll.u32 %v5751, 16
    %v5843 = vor.u32 %v5840, %v5841
    %v5844 = vsel %vm327, %v5836, %v5843
    %v5845 = vrot.slane %v5840, 4
    %v5847 = vshrl.u32 %v5752, 16
    %v5849 = vrot.slane %v5847, 7
    %v5850 = vshll.u32 %v5752, 16
    %v5852 = vor.u32 %v5849, %v5850
    %v5853 = vrot.slane %v5849, 4
    %v5855 = vshrl.u32 %v5753, 16
    %v5857 = vrot.slane %v5855, 7
    %v5858 = vshll.u32 %v5753, 16
    %v5860 = vor.u32 %v5857, %v5858
    %v5861 = vsel %vm327, %v5853, %v5860
    %v5862 = vrot.slane %v5857, 4
    %v5864 = vshrl.u32 %v5754, 16
    %v5866 = vrot.slane %v5864, 7
    %v5867 = vshll.u32 %v5754, 16
    %v5869 = vor.u32 %v5866, %v5867
    %v5870 = vrot.slane %v5866, 4
    %v5872 = vshrl.u32 %v5755, 16
    %v5874 = vrot.slane %v5872, 7
    %v5875 = vshll.u32 %v5755, 16
    %v5877 = vor.u32 %v5874, %v5875
    %v5878 = vsel %vm327, %v5870, %v5877
    %v5879 = vrot.slane %v5874, 4
    %v5881 = vshrl.u32 %v5756, 16
    %v5883 = vrot.slane %v5881, 7
    %v5884 = vshll.u32 %v5756, 16
    %v5886 = vor.u32 %v5883, %v5884
    %v5887 = vrot.slane %v5883, 4
    %v5889 = vshrl.u32 %v5757, 16
    %v5891 = vrot.slane %v5889, 7
    %v5892 = vshll.u32 %v5757, 16
    %v5894 = vor.u32 %v5891, %v5892
    %v5895 = vsel %vm327, %v5887, %v5894
    %v5896 = vrot.slane %v5891, 4
    %v5898 = vshrl.u32 %v5758, 16
    %v5900 = vrot.slane %v5898, 7
    %v5901 = vshll.u32 %v5758, 16
    %v5903 = vor.u32 %v5900, %v5901
    %v5904 = vrot.slane %v5900, 4
    %v5906 = vshrl.u32 %v5759, 16
    %v5908 = vrot.slane %v5906, 7
    %v5909 = vshll.u32 %v5759, 16
    %v5911 = vor.u32 %v5908, %v5909
    %v5912 = vsel %vm327, %v5904, %v5911
    %v5913 = vrot.slane %v5908, 4
    %v5915 = vshrl.u32 %v5760, 16
    %v5917 = vrot.slane %v5915, 7
    %v5918 = vshll.u32 %v5760, 16
    %v5920 = vor.u32 %v5917, %v5918
    %v5921 = vrot.slane %v5917, 4
    %v5923 = vshrl.u32 %v5761, 16
    %v5925 = vrot.slane %v5923, 7
    %v5926 = vshll.u32 %v5761, 16
    %v5928 = vor.u32 %v5925, %v5926
    %v5929 = vsel %vm327, %v5921, %v5928
    %v5930 = vrot.slane %v5925, 4
    %v5932 = vshrl.u32 %v5762, 16
    %v5934 = vrot.slane %v5932, 7
    %v5935 = vshll.u32 %v5762, 16
    %v5937 = vor.u32 %v5934, %v5935
    %v5938 = vrot.slane %v5934, 4
    %v5940 = vshrl.u32 %v5763, 16
    %v5942 = vrot.slane %v5940, 7
    %v5943 = vshll.u32 %v5763, 16
    %v5945 = vor.u32 %v5942, %v5943
    %v5946 = vsel %vm327, %v5938, %v5945
    %v5947 = vrot.slane %v5942, 4
    %v5949 = vshrl.u32 %v5764, 16
    %v5951 = vrot.slane %v5949, 7
    %v5952 = vshll.u32 %v5764, 16
    %v5954 = vor.u32 %v5951, %v5952
    %v5955 = vrot.slane %v5951, 4
    %v5957 = vshrl.u32 %v5765, 16
    %v5959 = vrot.slane %v5957, 7
    %v5960 = vshll.u32 %v5765, 16
    %v5962 = vor.u32 %v5959, %v5960
    %v5963 = vsel %vm327, %v5955, %v5962
    %v5964 = vrot.slane %v5959, 4
    %v5966 = vshrl.u32 %v5766, 16
    %v5968 = vrot.slane %v5966, 7
    %v5969 = vshll.u32 %v5766, 16
    %v5971 = vor.u32 %v5968, %v5969
    %v5972 = vrot.slane %v5968, 4
    %v5974 = vshrl.u32 %v5767, 16
    %v5976 = vrot.slane %v5974, 7
    %v5977 = vshll.u32 %v5767, 16
    %v5979 = vor.u32 %v5976, %v5977
    %v5980 = vsel %vm327, %v5972, %v5979
    %v5981 = vrot.slane %v5976, 4
    %v5983 = vshrl.u32 %v5768, 16
    %v5985 = vrot.slane %v5983, 7
    %v5986 = vshll.u32 %v5768, 16
    %v5988 = vor.u32 %v5985, %v5986
    %v5989 = vrot.slane %v5985, 4
    %v5991 = vshrl.u32 %v5769, 16
    %v5993 = vrot.slane %v5991, 7
    %v5994 = vshll.u32 %v5769, 16
    %v5996 = vor.u32 %v5993, %v5994
    %v5997 = vsel %vm327, %v5989, %v5996
    %v5998 = vrot.slane %v5993, 4
    %v6000 = vshrl.u32 %v5770, 16
    %v6002 = vrot.slane %v6000, 7
    %v6003 = vshll.u32 %v5770, 16
    %v6005 = vor.u32 %v6002, %v6003
    %v6006 = vrot.slane %v6002, 4
    %v6008 = vshrl.u32 %v5771, 16
    %v6010 = vrot.slane %v6008, 7
    %v6011 = vshll.u32 %v5771, 16
    %v6013 = vor.u32 %v6010, %v6011
    %v6014 = vsel %vm327, %v6006, %v6013
    %v6015 = vrot.slane %v6010, 4
    %v6017 = vshrl.u32 %v5772, 16
    %v6019 = vrot.slane %v6017, 7
    %v6020 = vshll.u32 %v5772, 16
    %v6022 = vor.u32 %v6019, %v6020
    %v6023 = vrot.slane %v6019, 4
    %v6025 = vshrl.u32 %v5773, 16
    %v6027 = vrot.slane %v6025, 7
    %v6028 = vshll.u32 %v5773, 16
    %v6030 = vor.u32 %v6027, %v6028
    %v6031 = vsel %vm327, %v6023, %v6030
    %v6032 = vrot.slane %v6027, 4
    %v6034 = vshrl.u32 %v5774, 16
    %v6036 = vrot.slane %v6034, 7
    %v6037 = vshll.u32 %v5774, 16
    %v6039 = vor.u32 %v6036, %v6037
    %v6040 = vrot.slane %v6036, 4
    %v6042 = vshrl.u32 %v5775, 16
    %v6044 = vrot.slane %v6042, 7
    %v6045 = vshll.u32 %v5775, 16
    %v6047 = vor.u32 %v6044, %v6045
    %v6048 = vsel %vm327, %v6040, %v6047
    %v6049 = vrot.slane %v6044, 4
    %v6051 = vshrl.u32 %v5776, 16
    %v6053 = vrot.slane %v6051, 7
    %v6054 = vshll.u32 %v5776, 16
    %v6056 = vor.u32 %v6053, %v6054
    %v6057 = vrot.slane %v6053, 4
    %v6059 = vshrl.u32 %v5777, 16
    %v6061 = vrot.slane %v6059, 7
    %v6062 = vshll.u32 %v5777, 16
    %v6064 = vor.u32 %v6061, %v6062
    %v6065 = vsel %vm327, %v6057, %v6064
    %v6066 = vrot.slane %v6061, 4
    %v6068 = vshrl.u32 %v5778, 16
    %v6070 = vrot.slane %v6068, 7
    %v6071 = vshll.u32 %v5778, 16
    %v6073 = vor.u32 %v6070, %v6071
    %v6074 = vrot.slane %v6070, 4
    %v6076 = vshrl.u32 %v5779, 16
    %v6078 = vrot.slane %v6076, 7
    %v6079 = vshll.u32 %v5779, 16
    %v6081 = vor.u32 %v6078, %v6079
    %v6082 = vsel %vm327, %v6074, %v6081
    %v6083 = vrot.slane %v6078, 4
    %v6085 = vshrl.u32 %v5780, 16
    %v6087 = vrot.slane %v6085, 7
    %v6088 = vshll.u32 %v5780, 16
    %v6090 = vor.u32 %v6087, %v6088
    %v6091 = vrot.slane %v6087, 4
    %v6093 = vshrl.u32 %v5781, 16
    %v6095 = vrot.slane %v6093, 7
    %v6096 = vshll.u32 %v5781, 16
    %v6098 = vor.u32 %v6095, %v6096
    %v6099 = vsel %vm327, %v6091, %v6098
    %v6100 = vrot.slane %v6095, 4
    %v6102 = vshrl.u32 %v5782, 16
    %v6104 = vrot.slane %v6102, 7
    %v6105 = vshll.u32 %v5782, 16
    %v6107 = vor.u32 %v6104, %v6105
    %v6108 = vrot.slane %v6104, 4
    %v6110 = vshrl.u32 %v5783, 16
    %v6112 = vrot.slane %v6110, 7
    %v6113 = vshll.u32 %v5783, 16
    %v6115 = vor.u32 %v6112, %v6113
    %v6116 = vsel %vm327, %v6108, %v6115
    %v6117 = vrot.slane %v6112, 4
    %v6119 = vshrl.u32 %v5784, 16
    %v6121 = vrot.slane %v6119, 7
    %v6122 = vshll.u32 %v5784, 16
    %v6124 = vor.u32 %v6121, %v6122
    %v6125 = vrot.slane %v6121, 4
    %v6127 = vshrl.u32 %v5785, 16
    %v6129 = vrot.slane %v6127, 7
    %v6130 = vshll.u32 %v5785, 16
    %v6132 = vor.u32 %v6129, %v6130
    %v6133 = vsel %vm327, %v6125, %v6132
    %v6134 = vrot.slane %v6129, 4
    %v6136 = vshrl.u32 %v5786, 16
    %v6138 = vrot.slane %v6136, 7
    %v6139 = vshll.u32 %v5786, 16
    %v6141 = vor.u32 %v6138, %v6139
    %v6142 = vrot.slane %v6138, 4
    %v6144 = vshrl.u32 %v5787, 16
    %v6146 = vrot.slane %v6144, 7
    %v6147 = vshll.u32 %v5787, 16
    %v6149 = vor.u32 %v6146, %v6147
    %v6150 = vsel %vm327, %v6142, %v6149
    %v6151 = vrot.slane %v6146, 4
    %v6153 = vshrl.u32 %v5788, 16
    %v6155 = vrot.slane %v6153, 7
    %v6156 = vshll.u32 %v5788, 16
    %v6158 = vor.u32 %v6155, %v6156
    %v6159 = vrot.slane %v6155, 4
    %v6161 = vshrl.u32 %v5789, 16
    %v6163 = vrot.slane %v6161, 7
    %v6164 = vshll.u32 %v5789, 16
    %v6166 = vor.u32 %v6163, %v6164
    %v6167 = vsel %vm327, %v6159, %v6166
    %v6168 = vrot.slane %v6163, 4
    %v6170 = vshrl.u32 %v5790, 16
    %v6172 = vrot.slane %v6170, 7
    %v6173 = vshll.u32 %v5790, 16
    %v6175 = vor.u32 %v6172, %v6173
    %v6176 = vrot.slane %v6172, 4
    %v6178 = vshrl.u32 %v5791, 16
    %v6180 = vrot.slane %v6178, 7
    %v6181 = vshll.u32 %v5791, 16
    %v6183 = vor.u32 %v6180, %v6181
    %v6184 = vsel %vm327, %v6176, %v6183
    %v6185 = vrot.slane %v6180, 4
    %v6187 = vshrl.u32 %v5792, 16
    %v6189 = vrot.slane %v6187, 7
    %v6190 = vshll.u32 %v5792, 16
    %v6192 = vor.u32 %v6189, %v6190
    %v6193 = vrot.slane %v6189, 4
    %v6195 = vshrl.u32 %v5793, 16
    %v6197 = vrot.slane %v6195, 7
    %v6198 = vshll.u32 %v5793, 16
    %v6200 = vor.u32 %v6197, %v6198
    %v6201 = vsel %vm327, %v6193, %v6200
    %v6202 = vrot.slane %v6197, 4
    %v6204 = vshrl.u32 %v5794, 16
    %v6206 = vrot.slane %v6204, 7
    %v6207 = vshll.u32 %v5794, 16
    %v6209 = vor.u32 %v6206, %v6207
    %v6210 = vrot.slane %v6206, 4
    %v6212 = vshrl.u32 %v5795, 16
    %v6214 = vrot.slane %v6212, 7
    %v6215 = vshll.u32 %v5795, 16
    %v6217 = vor.u32 %v6214, %v6215
    %v6218 = vsel %vm327, %v6210, %v6217
    %v6219 = vrot.slane %v6214, 4
    %v6221 = vshrl.u32 %v5796, 16
    %v6223 = vrot.slane %v6221, 7
    %v6224 = vshll.u32 %v5796, 16
    %v6226 = vor.u32 %v6223, %v6224
    %v6227 = vrot.slane %v6223, 4
    %v6229 = vshrl.u32 %v5797, 16
    %v6231 = vrot.slane %v6229, 7
    %v6232 = vshll.u32 %v5797, 16
    %v6234 = vor.u32 %v6231, %v6232
    %v6235 = vsel %vm327, %v6227, %v6234
    %v6236 = vrot.slane %v6231, 4
    %v6238 = vshrl.u32 %v5798, 16
    %v6240 = vrot.slane %v6238, 7
    %v6241 = vshll.u32 %v5798, 16
    %v6243 = vor.u32 %v6240, %v6241
    %v6244 = vrot.slane %v6240, 4
    %v6246 = vshrl.u32 %v5799, 16
    %v6248 = vrot.slane %v6246, 7
    %v6249 = vshll.u32 %v5799, 16
    %v6251 = vor.u32 %v6248, %v6249
    %v6252 = vsel %vm327, %v6244, %v6251
    %v6253 = vrot.slane %v6248, 4
    %v6255 = vshrl.u32 %v5800, 16
    %v6257 = vrot.slane %v6255, 7
    %v6258 = vshll.u32 %v5800, 16
    %v6260 = vor.u32 %v6257, %v6258
    %v6261 = vrot.slane %v6257, 4
    %v6263 = vshrl.u32 %v5801, 16
    %v6265 = vrot.slane %v6263, 7
    %v6266 = vshll.u32 %v5801, 16
    %v6268 = vor.u32 %v6265, %v6266
    %v6269 = vsel %vm327, %v6261, %v6268
    %v6270 = vrot.slane %v6265, 4
    %v6272 = vshrl.u32 %v5802, 16
    %v6274 = vrot.slane %v6272, 7
    %v6275 = vshll.u32 %v5802, 16
    %v6277 = vor.u32 %v6274, %v6275
    %v6278 = vrot.slane %v6274, 4
    %v6280 = vshrl.u32 %v5803, 16
    %v6282 = vrot.slane %v6280, 7
    %v6283 = vshll.u32 %v5803, 16
    %v6285 = vor.u32 %v6282, %v6283
    %v6286 = vsel %vm327, %v6278, %v6285
    %v6287 = vrot.slane %v6282, 4
    %v6289 = vshrl.u32 %v5804, 16
    %v6291 = vrot.slane %v6289, 7
    %v6292 = vshll.u32 %v5804, 16
    %v6294 = vor.u32 %v6291, %v6292
    %v6295 = vrot.slane %v6291, 4
    %v6297 = vshrl.u32 %v5805, 16
    %v6299 = vrot.slane %v6297, 7
    %v6300 = vshll.u32 %v5805, 16
    %v6302 = vor.u32 %v6299, %v6300
    %v6303 = vsel %vm327, %v6295, %v6302
    %v6304 = vrot.slane %v6299, 4
    %v6306 = vshrl.u32 %v5806, 16
    %v6308 = vrot.slane %v6306, 7
    %v6309 = vshll.u32 %v5806, 16
    %v6311 = vor.u32 %v6308, %v6309
    %v6312 = vrot.slane %v6308, 4
    %v6314 = vshrl.u32 %v5807, 16
    %v6316 = vrot.slane %v6314, 7
    %v6317 = vshll.u32 %v5807, 16
    %v6319 = vor.u32 %v6316, %v6317
    %v6320 = vsel %vm327, %v6312, %v6319
    %v6321 = vrot.slane %v6316, 4
    %v6323 = vshrl.u32 %v5808, 16
    %v6325 = vrot.slane %v6323, 7
    %v6326 = vshll.u32 %v5808, 16
    %v6328 = vor.u32 %v6325, %v6326
    %v6329 = vrot.slane %v6325, 4
    %v6331 = vshrl.u32 %v5809, 16
    %v6333 = vrot.slane %v6331, 7
    %v6334 = vshll.u32 %v5809, 16
    %v6336 = vor.u32 %v6333, %v6334
    %v6337 = vsel %vm327, %v6329, %v6336
    %v6338 = vrot.slane %v6333, 4
    %v6340 = vshrl.u32 %v5810, 16
    %v6342 = vrot.slane %v6340, 7
    %v6343 = vshll.u32 %v5810, 16
    %v6345 = vor.u32 %v6342, %v6343
    %v6346 = vrot.slane %v6342, 4
    %v6348 = vshrl.u32 %v5811, 16
    %v6350 = vrot.slane %v6348, 7
    %v6351 = vshll.u32 %v5811, 16
    %v6353 = vor.u32 %v6350, %v6351
    %v6354 = vsel %vm327, %v6346, %v6353
    %v6355 = vrot.slane %v6350, 4
    %v6452 = vld [vmem:[%s968] sm:$0xf]
    %v6453 = vsel %vm971, %v5818, %v6452
    %6454 = vst [vmem:[%s968] sm:$0xf] %v6453
    %6455 = vst [vmem:[%s968 + $0x4] sm:$0xf] %v5827
    %v6456 = vld [vmem:[%s968 + $0x8] sm:$0x1]
    %v6457 = vsel %vm977, %v5828, %v6456
    %6458 = vst [vmem:[%s968 + $0x8] sm:$0x1] %v6457
    %v6459 = vld [vmem:[%s968 + $0xc] sm:$0xf]
    %v6460 = vsel %vm971, %v5835, %v6459
    %6461 = vst [vmem:[%s968 + $0xc] sm:$0xf] %v6460
    %6462 = vst [vmem:[%s968 + $0x10] sm:$0xf] %v5844
    %v6463 = vld [vmem:[%s968 + $0x14] sm:$0x1]
    %v6464 = vsel %vm977, %v5845, %v6463
    %6465 = vst [vmem:[%s968 + $0x14] sm:$0x1] %v6464
    %v6466 = vld [vmem:[%s968 + $0x18] sm:$0xf]
    %v6467 = vsel %vm971, %v5852, %v6466
    %6468 = vst [vmem:[%s968 + $0x18] sm:$0xf] %v6467
    %6469 = vst [vmem:[%s968 + $0x1c] sm:$0xf] %v5861
    %v6470 = vld [vmem:[%s968 + $0x20] sm:$0x1]
    %v6471 = vsel %vm977, %v5862, %v6470
    %6472 = vst [vmem:[%s968 + $0x20] sm:$0x1] %v6471
    %v6473 = vld [vmem:[%s968 + $0x24] sm:$0xf]
    %v6474 = vsel %vm971, %v5869, %v6473
    %6475 = vst [vmem:[%s968 + $0x24] sm:$0xf] %v6474
    %6476 = vst [vmem:[%s968 + $0x28] sm:$0xf] %v5878
    %v6477 = vld [vmem:[%s968 + $0x2c] sm:$0x1]
    %v6478 = vsel %vm977, %v5879, %v6477
    %6479 = vst [vmem:[%s968 + $0x2c] sm:$0x1] %v6478
    %v6480 = vld [vmem:[%s968 + $0x30] sm:$0xf]
    %v6481 = vsel %vm971, %v5886, %v6480
    %6482 = vst [vmem:[%s968 + $0x30] sm:$0xf] %v6481
    %6483 = vst [vmem:[%s968 + $0x34] sm:$0xf] %v5895
    %v6484 = vld [vmem:[%s968 + $0x38] sm:$0x1]
    %v6485 = vsel %vm977, %v5896, %v6484
    %6486 = vst [vmem:[%s968 + $0x38] sm:$0x1] %v6485
    %v6487 = vld [vmem:[%s968 + $0x3c] sm:$0xf]
    %v6488 = vsel %vm971, %v5903, %v6487
    %6489 = vst [vmem:[%s968 + $0x3c] sm:$0xf] %v6488
    %6490 = vst [vmem:[%s968 + $0x40] sm:$0xf] %v5912
    %v6491 = vld [vmem:[%s968 + $0x44] sm:$0x1]
    %v6492 = vsel %vm977, %v5913, %v6491
    %6493 = vst [vmem:[%s968 + $0x44] sm:$0x1] %v6492
    %v6494 = vld [vmem:[%s968 + $0x48] sm:$0xf]
    %v6495 = vsel %vm971, %v5920, %v6494
    %6496 = vst [vmem:[%s968 + $0x48] sm:$0xf] %v6495
    %6497 = vst [vmem:[%s968 + $0x4c] sm:$0xf] %v5929
    %v6498 = vld [vmem:[%s968 + $0x50] sm:$0x1]
    %v6499 = vsel %vm977, %v5930, %v6498
    %6500 = vst [vmem:[%s968 + $0x50] sm:$0x1] %v6499
    %v6501 = vld [vmem:[%s968 + $0x54] sm:$0xf]
    %v6502 = vsel %vm971, %v5937, %v6501
    %6503 = vst [vmem:[%s968 + $0x54] sm:$0xf] %v6502
    %6504 = vst [vmem:[%s968 + $0x58] sm:$0xf] %v5946
    %v6505 = vld [vmem:[%s968 + $0x5c] sm:$0x1]
    %v6506 = vsel %vm977, %v5947, %v6505
    %6507 = vst [vmem:[%s968 + $0x5c] sm:$0x1] %v6506
    %v6508 = vld [vmem:[%s968 + $0x60] sm:$0xf]
    %v6509 = vsel %vm971, %v5954, %v6508
    %6510 = vst [vmem:[%s968 + $0x60] sm:$0xf] %v6509
    %6511 = vst [vmem:[%s968 + $0x64] sm:$0xf] %v5963
    %v6512 = vld [vmem:[%s968 + $0x68] sm:$0x1]
    %v6513 = vsel %vm977, %v5964, %v6512
    %6514 = vst [vmem:[%s968 + $0x68] sm:$0x1] %v6513
    %v6515 = vld [vmem:[%s968 + $0x6c] sm:$0xf]
    %v6516 = vsel %vm971, %v5971, %v6515
    %6517 = vst [vmem:[%s968 + $0x6c] sm:$0xf] %v6516
    %6518 = vst [vmem:[%s968 + $0x70] sm:$0xf] %v5980
    %v6519 = vld [vmem:[%s968 + $0x74] sm:$0x1]
    %v6520 = vsel %vm977, %v5981, %v6519
    %6521 = vst [vmem:[%s968 + $0x74] sm:$0x1] %v6520
    %v6522 = vld [vmem:[%s968 + $0x78] sm:$0xf]
    %v6523 = vsel %vm971, %v5988, %v6522
    %6524 = vst [vmem:[%s968 + $0x78] sm:$0xf] %v6523
    %6525 = vst [vmem:[%s968 + $0x7c] sm:$0xf] %v5997
    %v6526 = vld [vmem:[%s968 + $0x80] sm:$0x1]
    %v6527 = vsel %vm977, %v5998, %v6526
    %6528 = vst [vmem:[%s968 + $0x80] sm:$0x1] %v6527
    %v6529 = vld [vmem:[%s968 + $0x84] sm:$0xf]
    %v6530 = vsel %vm971, %v6005, %v6529
    %6531 = vst [vmem:[%s968 + $0x84] sm:$0xf] %v6530
    %6532 = vst [vmem:[%s968 + $0x88] sm:$0xf] %v6014
    %v6533 = vld [vmem:[%s968 + $0x8c] sm:$0x1]
    %v6534 = vsel %vm977, %v6015, %v6533
    %6535 = vst [vmem:[%s968 + $0x8c] sm:$0x1] %v6534
    %v6536 = vld [vmem:[%s968 + $0x90] sm:$0xf]
    %v6537 = vsel %vm971, %v6022, %v6536
    %6538 = vst [vmem:[%s968 + $0x90] sm:$0xf] %v6537
    %6539 = vst [vmem:[%s968 + $0x94] sm:$0xf] %v6031
    %v6540 = vld [vmem:[%s968 + $0x98] sm:$0x1]
    %v6541 = vsel %vm977, %v6032, %v6540
    %6542 = vst [vmem:[%s968 + $0x98] sm:$0x1] %v6541
    %v6543 = vld [vmem:[%s968 + $0x9c] sm:$0xf]
    %v6544 = vsel %vm971, %v6039, %v6543
    %6545 = vst [vmem:[%s968 + $0x9c] sm:$0xf] %v6544
    %6546 = vst [vmem:[%s968 + $0xa0] sm:$0xf] %v6048
    %v6547 = vld [vmem:[%s968 + $0xa4] sm:$0x1]
    %v6548 = vsel %vm977, %v6049, %v6547
    %6549 = vst [vmem:[%s968 + $0xa4] sm:$0x1] %v6548
    %v6550 = vld [vmem:[%s968 + $0xa8] sm:$0xf]
    %v6551 = vsel %vm971, %v6056, %v6550
    %6552 = vst [vmem:[%s968 + $0xa8] sm:$0xf] %v6551
    %6553 = vst [vmem:[%s968 + $0xac] sm:$0xf] %v6065
    %v6554 = vld [vmem:[%s968 + $0xb0] sm:$0x1]
    %v6555 = vsel %vm977, %v6066, %v6554
    %6556 = vst [vmem:[%s968 + $0xb0] sm:$0x1] %v6555
    %v6557 = vld [vmem:[%s968 + $0xb4] sm:$0xf]
    %v6558 = vsel %vm971, %v6073, %v6557
    %6559 = vst [vmem:[%s968 + $0xb4] sm:$0xf] %v6558
    %6560 = vst [vmem:[%s968 + $0xb8] sm:$0xf] %v6082
    %v6561 = vld [vmem:[%s968 + $0xbc] sm:$0x1]
    %v6562 = vsel %vm977, %v6083, %v6561
    %6563 = vst [vmem:[%s968 + $0xbc] sm:$0x1] %v6562
    %v6564 = vld [vmem:[%s968 + $0xd8] sm:$0xf]
    %v6565 = vsel %vm971, %v6090, %v6564
    %6566 = vst [vmem:[%s968 + $0xd8] sm:$0xf] %v6565
    %6567 = vst [vmem:[%s968 + $0xdc] sm:$0xf] %v6099
    %v6568 = vld [vmem:[%s968 + $0xe0] sm:$0x1]
    %v6569 = vsel %vm977, %v6100, %v6568
    %6570 = vst [vmem:[%s968 + $0xe0] sm:$0x1] %v6569
    %v6571 = vld [vmem:[%s968 + $0xe4] sm:$0xf]
    %v6572 = vsel %vm971, %v6107, %v6571
    %6573 = vst [vmem:[%s968 + $0xe4] sm:$0xf] %v6572
    %6574 = vst [vmem:[%s968 + $0xe8] sm:$0xf] %v6116
    %v6575 = vld [vmem:[%s968 + $0xec] sm:$0x1]
    %v6576 = vsel %vm977, %v6117, %v6575
    %6577 = vst [vmem:[%s968 + $0xec] sm:$0x1] %v6576
    %v6578 = vld [vmem:[%s968 + $0xf0] sm:$0xf]
    %v6579 = vsel %vm971, %v6124, %v6578
    %6580 = vst [vmem:[%s968 + $0xf0] sm:$0xf] %v6579
    %6581 = vst [vmem:[%s968 + $0xf4] sm:$0xf] %v6133
    %v6582 = vld [vmem:[%s968 + $0xf8] sm:$0x1]
    %v6583 = vsel %vm977, %v6134, %v6582
    %6584 = vst [vmem:[%s968 + $0xf8] sm:$0x1] %v6583
    %v6585 = vld [vmem:[%s968 + $0xfc] sm:$0xf]
    %v6586 = vsel %vm971, %v6141, %v6585
    %6587 = vst [vmem:[%s968 + $0xfc] sm:$0xf] %v6586
    %6588 = vst [vmem:[%s968 + $0x100] sm:$0xf] %v6150
    %v6589 = vld [vmem:[%s968 + $0x104] sm:$0x1]
    %v6590 = vsel %vm977, %v6151, %v6589
    %6591 = vst [vmem:[%s968 + $0x104] sm:$0x1] %v6590
    %v6592 = vld [vmem:[%s968 + $0x108] sm:$0xf]
    %v6593 = vsel %vm971, %v6158, %v6592
    %6594 = vst [vmem:[%s968 + $0x108] sm:$0xf] %v6593
    %6595 = vst [vmem:[%s968 + $0x10c] sm:$0xf] %v6167
    %v6596 = vld [vmem:[%s968 + $0x110] sm:$0x1]
    %v6597 = vsel %vm977, %v6168, %v6596
    %6598 = vst [vmem:[%s968 + $0x110] sm:$0x1] %v6597
    %v6599 = vld [vmem:[%s968 + $0x114] sm:$0xf]
    %v6600 = vsel %vm971, %v6175, %v6599
    %6601 = vst [vmem:[%s968 + $0x114] sm:$0xf] %v6600
    %6602 = vst [vmem:[%s968 + $0x118] sm:$0xf] %v6184
    %v6603 = vld [vmem:[%s968 + $0x11c] sm:$0x1]
    %v6604 = vsel %vm977, %v6185, %v6603
    %6605 = vst [vmem:[%s968 + $0x11c] sm:$0x1] %v6604
    %v6606 = vld [vmem:[%s968 + $0x120] sm:$0xf]
    %v6607 = vsel %vm971, %v6192, %v6606
    %6608 = vst [vmem:[%s968 + $0x120] sm:$0xf] %v6607
    %6609 = vst [vmem:[%s968 + $0x124] sm:$0xf] %v6201
    %v6610 = vld [vmem:[%s968 + $0x128] sm:$0x1]
    %v6611 = vsel %vm977, %v6202, %v6610
    %6612 = vst [vmem:[%s968 + $0x128] sm:$0x1] %v6611
    %v6613 = vld [vmem:[%s968 + $0x12c] sm:$0xf]
    %v6614 = vsel %vm971, %v6209, %v6613
    %6615 = vst [vmem:[%s968 + $0x12c] sm:$0xf] %v6614
    %6616 = vst [vmem:[%s968 + $0x130] sm:$0xf] %v6218
    %v6617 = vld [vmem:[%s968 + $0x134] sm:$0x1]
    %v6618 = vsel %vm977, %v6219, %v6617
    %6619 = vst [vmem:[%s968 + $0x134] sm:$0x1] %v6618
    %v6620 = vld [vmem:[%s968 + $0x138] sm:$0xf]
    %v6621 = vsel %vm971, %v6226, %v6620
    %6622 = vst [vmem:[%s968 + $0x138] sm:$0xf] %v6621
    %6623 = vst [vmem:[%s968 + $0x13c] sm:$0xf] %v6235
    %v6624 = vld [vmem:[%s968 + $0x140] sm:$0x1]
    %v6625 = vsel %vm977, %v6236, %v6624
    %6626 = vst [vmem:[%s968 + $0x140] sm:$0x1] %v6625
    %v6627 = vld [vmem:[%s968 + $0x144] sm:$0xf]
    %v6628 = vsel %vm971, %v6243, %v6627
    %6629 = vst [vmem:[%s968 + $0x144] sm:$0xf] %v6628
    %6630 = vst [vmem:[%s968 + $0x148] sm:$0xf] %v6252
    %v6631 = vld [vmem:[%s968 + $0x14c] sm:$0x1]
    %v6632 = vsel %vm977, %v6253, %v6631
    %6633 = vst [vmem:[%s968 + $0x14c] sm:$0x1] %v6632
    %v6634 = vld [vmem:[%s968 + $0x150] sm:$0xf]
    %v6635 = vsel %vm971, %v6260, %v6634
    %6636 = vst [vmem:[%s968 + $0x150] sm:$0xf] %v6635
    %6637 = vst [vmem:[%s968 + $0x154] sm:$0xf] %v6269
    %v6638 = vld [vmem:[%s968 + $0x158] sm:$0x1]
    %v6639 = vsel %vm977, %v6270, %v6638
    %6640 = vst [vmem:[%s968 + $0x158] sm:$0x1] %v6639
    %v6641 = vld [vmem:[%s968 + $0x15c] sm:$0xf]
    %v6642 = vsel %vm971, %v6277, %v6641
    %6643 = vst [vmem:[%s968 + $0x15c] sm:$0xf] %v6642
    %6644 = vst [vmem:[%s968 + $0x160] sm:$0xf] %v6286
    %v6645 = vld [vmem:[%s968 + $0x164] sm:$0x1]
    %v6646 = vsel %vm977, %v6287, %v6645
    %6647 = vst [vmem:[%s968 + $0x164] sm:$0x1] %v6646
    %v6648 = vld [vmem:[%s968 + $0x168] sm:$0xf]
    %v6649 = vsel %vm971, %v6294, %v6648
    %6650 = vst [vmem:[%s968 + $0x168] sm:$0xf] %v6649
    %6651 = vst [vmem:[%s968 + $0x16c] sm:$0xf] %v6303
    %v6652 = vld [vmem:[%s968 + $0x170] sm:$0x1]
    %v6653 = vsel %vm977, %v6304, %v6652
    %6654 = vst [vmem:[%s968 + $0x170] sm:$0x1] %v6653
    %v6655 = vld [vmem:[%s968 + $0x174] sm:$0xf]
    %v6656 = vsel %vm971, %v6311, %v6655
    %6657 = vst [vmem:[%s968 + $0x174] sm:$0xf] %v6656
    %6658 = vst [vmem:[%s968 + $0x178] sm:$0xf] %v6320
    %v6659 = vld [vmem:[%s968 + $0x17c] sm:$0x1]
    %v6660 = vsel %vm977, %v6321, %v6659
    %6661 = vst [vmem:[%s968 + $0x17c] sm:$0x1] %v6660
    %v6662 = vld [vmem:[%s968 + $0x180] sm:$0xf]
    %v6663 = vsel %vm971, %v6328, %v6662
    %6664 = vst [vmem:[%s968 + $0x180] sm:$0xf] %v6663
    %6665 = vst [vmem:[%s968 + $0x184] sm:$0xf] %v6337
    %v6666 = vld [vmem:[%s968 + $0x188] sm:$0x1]
    %v6667 = vsel %vm977, %v6338, %v6666
    %6668 = vst [vmem:[%s968 + $0x188] sm:$0x1] %v6667
    %v6669 = vld [vmem:[%s968 + $0x18c] sm:$0xf]
    %v6670 = vsel %vm971, %v6345, %v6669
    %6671 = vst [vmem:[%s968 + $0x18c] sm:$0xf] %v6670
    %6672 = vst [vmem:[%s968 + $0x190] sm:$0xf] %v6354
    %v6673 = vld [vmem:[%s968 + $0x194] sm:$0x1]
    %v6674 = vsel %vm977, %v6355, %v6673
    %6675 = vst [vmem:[%s968 + $0x194] sm:$0x1] %v6674
    %v6676 = vld [vmem:[#allocation2] sm:$0xf]
    %v6677 = vsel %vm971, %v5835, %v6676
    %6678 = vst [vmem:[#allocation2] sm:$0xf] %v6677
    %6679 = vst [vmem:[#allocation2 + $0x4] sm:$0xf] %v5844
    %v6680 = vld [vmem:[#allocation2 + $0x8] sm:$0x1]
    %v6681 = vsel %vm977, %v5845, %v6680
    %6682 = vst [vmem:[#allocation2 + $0x8] sm:$0x1] %v6681
    %v6683 = vld [vmem:[#allocation2 + $0xd8] sm:$0xf]
    %v6684 = vsel %vm971, %v6107, %v6683
    %6685 = vst [vmem:[#allocation2 + $0xd8] sm:$0xf] %v6684
    %6686 = vst [vmem:[#allocation2 + $0xdc] sm:$0xf] %v6116
    %v6687 = vld [vmem:[#allocation2 + $0xe0] sm:$0x1]
    %v6688 = vsel %vm977, %v6117, %v6687
    %6689 = vst [vmem:[#allocation2 + $0xe0] sm:$0x1] %v6688
    %v6690 = vld [vmem:[%s1212] sm:$0xf]
    %v6691 = vsel %vm971, %v6056, %v6690
    %6692 = vst [vmem:[%s1212] sm:$0xf] %v6691
    %6693 = vst [vmem:[%s1212 + $0x4] sm:$0xf] %v6065
    %v6694 = vld [vmem:[%s1212 + $0x8] sm:$0x1]
    %v6695 = vsel %vm977, %v6066, %v6694
    %6696 = vst [vmem:[%s1212 + $0x8] sm:$0x1] %v6695
    %v6697 = vld [vmem:[%s1212 + $0xd8] sm:$0xf]
    %v6698 = vsel %vm971, %v6328, %v6697
    %6699 = vst [vmem:[%s1212 + $0xd8] sm:$0xf] %v6698
    %6700 = vst [vmem:[%s1212 + $0xdc] sm:$0xf] %v6337
    %v6701 = vld [vmem:[%s1212 + $0xe0] sm:$0x1]
    %v6702 = vsel %vm977, %v6338, %v6701
    %6703 = vst [vmem:[%s1212 + $0xe0] sm:$0x1] %v6702
    %v6704 = vrot.slane %v5813, 4
    %v6705 = vrot.slane %v6704, 4
    %v6706 = vrot.slane %v5830, 4
    %v6707 = vrot.slane %v6706, 4
    %v6708 = vrot.slane %v5847, 4
    %v6709 = vrot.slane %v6708, 4
    %v6710 = vrot.slane %v5864, 4
    %v6711 = vrot.slane %v6710, 4
    %v6712 = vrot.slane %v5881, 4
    %v6713 = vrot.slane %v6712, 4
    %v6714 = vrot.slane %v5898, 4
    %v6715 = vrot.slane %v6714, 4
    %v6716 = vrot.slane %v5915, 4
    %v6717 = vrot.slane %v6716, 4
    %v6718 = vrot.slane %v5932, 4
    %v6719 = vrot.slane %v6718, 4
    %v6720 = vrot.slane %v5949, 4
    %v6721 = vrot.slane %v6720, 4
    %v6722 = vrot.slane %v5966, 4
    %v6723 = vrot.slane %v6722, 4
    %v6724 = vrot.slane %v5983, 4
    %v6725 = vrot.slane %v6724, 4
    %v6726 = vrot.slane %v6000, 4
    %v6727 = vrot.slane %v6726, 4
    %v6728 = vrot.slane %v6017, 4
    %v6729 = vrot.slane %v6728, 4
    %v6730 = vrot.slane %v6034, 4
    %v6731 = vrot.slane %v6730, 4
    %v6732 = vrot.slane %v6051, 4
    %v6733 = vrot.slane %v6732, 4
    %v6734 = vrot.slane %v6068, 4
    %v6735 = vrot.slane %v6734, 4
    %v6736 = vrot.slane %v6085, 4
    %v6737 = vrot.slane %v6736, 4
    %v6738 = vrot.slane %v6102, 4
    %v6739 = vrot.slane %v6738, 4
    %v6740 = vrot.slane %v6119, 4
    %v6741 = vrot.slane %v6740, 4
    %v6742 = vrot.slane %v6136, 4
    %v6743 = vrot.slane %v6742, 4
    %v6744 = vrot.slane %v6153, 4
    %v6745 = vrot.slane %v6744, 4
    %v6746 = vrot.slane %v6170, 4
    %v6747 = vrot.slane %v6746, 4
    %v6748 = vrot.slane %v6187, 4
    %v6749 = vrot.slane %v6748, 4
    %v6750 = vrot.slane %v6204, 4
    %v6751 = vrot.slane %v6750, 4
    %v6752 = vrot.slane %v6221, 4
    %v6753 = vrot.slane %v6752, 4
    %v6754 = vrot.slane %v6238, 4
    %v6755 = vrot.slane %v6754, 4
    %v6756 = vrot.slane %v6255, 4
    %v6757 = vrot.slane %v6756, 4
    %v6758 = vrot.slane %v6272, 4
    %v6759 = vrot.slane %v6758, 4
    %v6760 = vrot.slane %v6289, 4
    %v6761 = vrot.slane %v6760, 4
    %v6762 = vrot.slane %v6306, 4
    %v6763 = vrot.slane %v6762, 4
    %v6764 = vrot.slane %v6323, 4
    %v6765 = vrot.slane %v6764, 4
    %v6766 = vrot.slane %v6340, 4
    %v6767 = vrot.slane %v6766, 4
    %v6800 = vld [vmem:[%s968] sm:$0x1]
    %v6801 = vsel %vm977, %v6705, %v6800
    %6802 = vst [vmem:[%s968] sm:$0x1] %v6801
    %v6803 = vld [vmem:[%s968 + $0xc] sm:$0x1]
    %v6804 = vsel %vm977, %v6707, %v6803
    %6805 = vst [vmem:[%s968 + $0xc] sm:$0x1] %v6804
    %v6806 = vld [vmem:[%s968 + $0x18] sm:$0x1]
    %v6807 = vsel %vm977, %v6709, %v6806
    %6808 = vst [vmem:[%s968 + $0x18] sm:$0x1] %v6807
    %v6809 = vld [vmem:[%s968 + $0x24] sm:$0x1]
    %v6810 = vsel %vm977, %v6711, %v6809
    %6811 = vst [vmem:[%s968 + $0x24] sm:$0x1] %v6810
    %v6812 = vld [vmem:[%s968 + $0x30] sm:$0x1]
    %v6813 = vsel %vm977, %v6713, %v6812
    %6814 = vst [vmem:[%s968 + $0x30] sm:$0x1] %v6813
    %v6815 = vld [vmem:[%s968 + $0x3c] sm:$0x1]
    %v6816 = vsel %vm977, %v6715, %v6815
    %6817 = vst [vmem:[%s968 + $0x3c] sm:$0x1] %v6816
    %v6818 = vld [vmem:[%s968 + $0x48] sm:$0x1]
    %v6819 = vsel %vm977, %v6717, %v6818
    %6820 = vst [vmem:[%s968 + $0x48] sm:$0x1] %v6819
    %v6821 = vld [vmem:[%s968 + $0x54] sm:$0x1]
    %v6822 = vsel %vm977, %v6719, %v6821
    %6823 = vst [vmem:[%s968 + $0x54] sm:$0x1] %v6822
    %v6824 = vld [vmem:[%s968 + $0x60] sm:$0x1]
    %v6825 = vsel %vm977, %v6721, %v6824
    %6826 = vst [vmem:[%s968 + $0x60] sm:$0x1] %v6825
    %v6827 = vld [vmem:[%s968 + $0x6c] sm:$0x1]
    %v6828 = vsel %vm977, %v6723, %v6827
    %6829 = vst [vmem:[%s968 + $0x6c] sm:$0x1] %v6828
    %v6830 = vld [vmem:[%s968 + $0x78] sm:$0x1]
    %v6831 = vsel %vm977, %v6725, %v6830
    %6832 = vst [vmem:[%s968 + $0x78] sm:$0x1] %v6831
    %v6833 = vld [vmem:[%s968 + $0x84] sm:$0x1]
    %v6834 = vsel %vm977, %v6727, %v6833
    %6835 = vst [vmem:[%s968 + $0x84] sm:$0x1] %v6834
    %v6836 = vld [vmem:[%s968 + $0x90] sm:$0x1]
    %v6837 = vsel %vm977, %v6729, %v6836
    %6838 = vst [vmem:[%s968 + $0x90] sm:$0x1] %v6837
    %v6839 = vld [vmem:[%s968 + $0x9c] sm:$0x1]
    %v6840 = vsel %vm977, %v6731, %v6839
    %6841 = vst [vmem:[%s968 + $0x9c] sm:$0x1] %v6840
    %v6842 = vld [vmem:[%s968 + $0xa8] sm:$0x1]
    %v6843 = vsel %vm977, %v6733, %v6842
    %6844 = vst [vmem:[%s968 + $0xa8] sm:$0x1] %v6843
    %v6845 = vld [vmem:[%s968 + $0xb4] sm:$0x1]
    %v6846 = vsel %vm977, %v6735, %v6845
    %6847 = vst [vmem:[%s968 + $0xb4] sm:$0x1] %v6846
    %v6848 = vld [vmem:[%s968 + $0xd8] sm:$0x1]
    %v6849 = vsel %vm977, %v6737, %v6848
    %6850 = vst [vmem:[%s968 + $0xd8] sm:$0x1] %v6849
    %v6851 = vld [vmem:[%s968 + $0xe4] sm:$0x1]
    %v6852 = vsel %vm977, %v6739, %v6851
    %6853 = vst [vmem:[%s968 + $0xe4] sm:$0x1] %v6852
    %v6854 = vld [vmem:[%s968 + $0xf0] sm:$0x1]
    %v6855 = vsel %vm977, %v6741, %v6854
    %6856 = vst [vmem:[%s968 + $0xf0] sm:$0x1] %v6855
    %v6857 = vld [vmem:[%s968 + $0xfc] sm:$0x1]
    %v6858 = vsel %vm977, %v6743, %v6857
    %6859 = vst [vmem:[%s968 + $0xfc] sm:$0x1] %v6858
    %v6860 = vld [vmem:[%s968 + $0x108] sm:$0x1]
    %v6861 = vsel %vm977, %v6745, %v6860
    %6862 = vst [vmem:[%s968 + $0x108] sm:$0x1] %v6861
    %v6863 = vld [vmem:[%s968 + $0x114] sm:$0x1]
    %v6864 = vsel %vm977, %v6747, %v6863
    %6865 = vst [vmem:[%s968 + $0x114] sm:$0x1] %v6864
    %v6866 = vld [vmem:[%s968 + $0x120] sm:$0x1]
    %v6867 = vsel %vm977, %v6749, %v6866
    %6868 = vst [vmem:[%s968 + $0x120] sm:$0x1] %v6867
    %v6869 = vld [vmem:[%s968 + $0x12c] sm:$0x1]
    %v6870 = vsel %vm977, %v6751, %v6869
    %6871 = vst [vmem:[%s968 + $0x12c] sm:$0x1] %v6870
    %v6872 = vld [vmem:[%s968 + $0x138] sm:$0x1]
    %v6873 = vsel %vm977, %v6753, %v6872
    %6874 = vst [vmem:[%s968 + $0x138] sm:$0x1] %v6873
    %v6875 = vld [vmem:[%s968 + $0x144] sm:$0x1]
    %v6876 = vsel %vm977, %v6755, %v6875
    %6877 = vst [vmem:[%s968 + $0x144] sm:$0x1] %v6876
    %v6878 = vld [vmem:[%s968 + $0x150] sm:$0x1]
    %v6879 = vsel %vm977, %v6757, %v6878
    %6880 = vst [vmem:[%s968 + $0x150] sm:$0x1] %v6879
    %v6881 = vld [vmem:[%s968 + $0x15c] sm:$0x1]
    %v6882 = vsel %vm977, %v6759, %v6881
    %6883 = vst [vmem:[%s968 + $0x15c] sm:$0x1] %v6882
    %v6884 = vld [vmem:[%s968 + $0x168] sm:$0x1]
    %v6885 = vsel %vm977, %v6761, %v6884
    %6886 = vst [vmem:[%s968 + $0x168] sm:$0x1] %v6885
    %v6887 = vld [vmem:[%s968 + $0x174] sm:$0x1]
    %v6888 = vsel %vm977, %v6763, %v6887
    %6889 = vst [vmem:[%s968 + $0x174] sm:$0x1] %v6888
    %v6890 = vld [vmem:[%s968 + $0x180] sm:$0x1]
    %v6891 = vsel %vm977, %v6765, %v6890
    %6892 = vst [vmem:[%s968 + $0x180] sm:$0x1] %v6891
    %v6893 = vld [vmem:[%s968 + $0x18c] sm:$0x1]
    %v6894 = vsel %vm977, %v6767, %v6893
    %6895 = vst [vmem:[%s968 + $0x18c] sm:$0x1] %v6894
    %v6896 = vrot.slane %v5824, 7
    %v6897 = vrot.slane %v6896, 4
    %v6898 = vrot.slane %v5841, 7
    %v6899 = vrot.slane %v6898, 4
    %v6900 = vrot.slane %v5858, 7
    %v6901 = vrot.slane %v6900, 4
    %v6902 = vrot.slane %v5875, 7
    %v6903 = vrot.slane %v6902, 4
    %v6904 = vrot.slane %v5892, 7
    %v6905 = vrot.slane %v6904, 4
    %v6906 = vrot.slane %v5909, 7
    %v6907 = vrot.slane %v6906, 4
    %v6908 = vrot.slane %v5926, 7
    %v6909 = vrot.slane %v6908, 4
    %v6910 = vrot.slane %v5943, 7
    %v6911 = vrot.slane %v6910, 4
    %v6912 = vrot.slane %v5960, 7
    %v6913 = vrot.slane %v6912, 4
    %v6914 = vrot.slane %v5977, 7
    %v6915 = vrot.slane %v6914, 4
    %v6916 = vrot.slane %v5994, 7
    %v6917 = vrot.slane %v6916, 4
    %v6918 = vrot.slane %v6011, 7
    %v6919 = vrot.slane %v6918, 4
    %v6920 = vrot.slane %v6028, 7
    %v6921 = vrot.slane %v6920, 4
    %v6922 = vrot.slane %v6045, 7
    %v6923 = vrot.slane %v6922, 4
    %v6924 = vrot.slane %v6062, 7
    %v6925 = vrot.slane %v6924, 4
    %v6926 = vrot.slane %v6079, 7
    %v6927 = vrot.slane %v6926, 4
    %v6928 = vrot.slane %v6096, 7
    %v6929 = vrot.slane %v6928, 4
    %v6930 = vrot.slane %v6113, 7
    %v6931 = vrot.slane %v6930, 4
    %v6932 = vrot.slane %v6130, 7
    %v6933 = vrot.slane %v6932, 4
    %v6934 = vrot.slane %v6147, 7
    %v6935 = vrot.slane %v6934, 4
    %v6936 = vrot.slane %v6164, 7
    %v6937 = vrot.slane %v6936, 4
    %v6938 = vrot.slane %v6181, 7
    %v6939 = vrot.slane %v6938, 4
    %v6940 = vrot.slane %v6198, 7
    %v6941 = vrot.slane %v6940, 4
    %v6942 = vrot.slane %v6215, 7
    %v6943 = vrot.slane %v6942, 4
    %v6944 = vrot.slane %v6232, 7
    %v6945 = vrot.slane %v6944, 4
    %v6946 = vrot.slane %v6249, 7
    %v6947 = vrot.slane %v6946, 4
    %v6948 = vrot.slane %v6266, 7
    %v6949 = vrot.slane %v6948, 4
    %v6950 = vrot.slane %v6283, 7
    %v6951 = vrot.slane %v6950, 4
    %v6952 = vrot.slane %v6300, 7
    %v6953 = vrot.slane %v6952, 4
    %v6954 = vrot.slane %v6317, 7
    %v6955 = vrot.slane %v6954, 4
    %v6956 = vrot.slane %v6334, 7
    %v6957 = vrot.slane %v6956, 4
    %v6958 = vrot.slane %v6351, 7
    %v6959 = vrot.slane %v6958, 4
    %v6992 = vld [vmem:[%s968 + $0x8] sm:$0x1]
    %v6993 = vsel %vm1515, %v6897, %v6992
    %6994 = vst [vmem:[%s968 + $0x8] sm:$0x1] %v6993
    %v6995 = vld [vmem:[%s968 + $0x14] sm:$0x1]
    %v6996 = vsel %vm1515, %v6899, %v6995
    %6997 = vst [vmem:[%s968 + $0x14] sm:$0x1] %v6996
    %v6998 = vld [vmem:[%s968 + $0x20] sm:$0x1]
    %v6999 = vsel %vm1515, %v6901, %v6998
    %7000 = vst [vmem:[%s968 + $0x20] sm:$0x1] %v6999
    %v7001 = vld [vmem:[%s968 + $0x2c] sm:$0x1]
    %v7002 = vsel %vm1515, %v6903, %v7001
    %7003 = vst [vmem:[%s968 + $0x2c] sm:$0x1] %v7002
    %v7004 = vld [vmem:[%s968 + $0x38] sm:$0x1]
    %v7005 = vsel %vm1515, %v6905, %v7004
    %7006 = vst [vmem:[%s968 + $0x38] sm:$0x1] %v7005
    %v7007 = vld [vmem:[%s968 + $0x44] sm:$0x1]
    %v7008 = vsel %vm1515, %v6907, %v7007
    %7009 = vst [vmem:[%s968 + $0x44] sm:$0x1] %v7008
    %v7010 = vld [vmem:[%s968 + $0x50] sm:$0x1]
    %v7011 = vsel %vm1515, %v6909, %v7010
    %7012 = vst [vmem:[%s968 + $0x50] sm:$0x1] %v7011
    %v7013 = vld [vmem:[%s968 + $0x5c] sm:$0x1]
    %v7014 = vsel %vm1515, %v6911, %v7013
    %7015 = vst [vmem:[%s968 + $0x5c] sm:$0x1] %v7014
    %v7016 = vld [vmem:[%s968 + $0x68] sm:$0x1]
    %v7017 = vsel %vm1515, %v6913, %v7016
    %7018 = vst [vmem:[%s968 + $0x68] sm:$0x1] %v7017
    %v7019 = vld [vmem:[%s968 + $0x74] sm:$0x1]
    %v7020 = vsel %vm1515, %v6915, %v7019
    %7021 = vst [vmem:[%s968 + $0x74] sm:$0x1] %v7020
    %v7022 = vld [vmem:[%s968 + $0x80] sm:$0x1]
    %v7023 = vsel %vm1515, %v6917, %v7022
    %7024 = vst [vmem:[%s968 + $0x80] sm:$0x1] %v7023
    %v7025 = vld [vmem:[%s968 + $0x8c] sm:$0x1]
    %v7026 = vsel %vm1515, %v6919, %v7025
    %7027 = vst [vmem:[%s968 + $0x8c] sm:$0x1] %v7026
    %v7028 = vld [vmem:[%s968 + $0x98] sm:$0x1]
    %v7029 = vsel %vm1515, %v6921, %v7028
    %7030 = vst [vmem:[%s968 + $0x98] sm:$0x1] %v7029
    %v7031 = vld [vmem:[%s968 + $0xa4] sm:$0x1]
    %v7032 = vsel %vm1515, %v6923, %v7031
    %7033 = vst [vmem:[%s968 + $0xa4] sm:$0x1] %v7032
    %v7034 = vld [vmem:[%s968 + $0xb0] sm:$0x1]
    %v7035 = vsel %vm1515, %v6925, %v7034
    %7036 = vst [vmem:[%s968 + $0xb0] sm:$0x1] %v7035
    %v7037 = vld [vmem:[%s968 + $0xbc] sm:$0x1]
    %v7038 = vsel %vm1515, %v6927, %v7037
    %7039 = vst [vmem:[%s968 + $0xbc] sm:$0x1] %v7038
    %v7040 = vld [vmem:[%s968 + $0xe0] sm:$0x1]
    %v7041 = vsel %vm1515, %v6929, %v7040
    %7042 = vst [vmem:[%s968 + $0xe0] sm:$0x1] %v7041
    %v7043 = vld [vmem:[%s968 + $0xec] sm:$0x1]
    %v7044 = vsel %vm1515, %v6931, %v7043
    %7045 = vst [vmem:[%s968 + $0xec] sm:$0x1] %v7044
    %v7046 = vld [vmem:[%s968 + $0xf8] sm:$0x1]
    %v7047 = vsel %vm1515, %v6933, %v7046
    %7048 = vst [vmem:[%s968 + $0xf8] sm:$0x1] %v7047
    %v7049 = vld [vmem:[%s968 + $0x104] sm:$0x1]
    %v7050 = vsel %vm1515, %v6935, %v7049
    %7051 = vst [vmem:[%s968 + $0x104] sm:$0x1] %v7050
    %v7052 = vld [vmem:[%s968 + $0x110] sm:$0x1]
    %v7053 = vsel %vm1515, %v6937, %v7052
    %7054 = vst [vmem:[%s968 + $0x110] sm:$0x1] %v7053
    %v7055 = vld [vmem:[%s968 + $0x11c] sm:$0x1]
    %v7056 = vsel %vm1515, %v6939, %v7055
    %7057 = vst [vmem:[%s968 + $0x11c] sm:$0x1] %v7056
    %v7058 = vld [vmem:[%s968 + $0x128] sm:$0x1]
    %v7059 = vsel %vm1515, %v6941, %v7058
    %7060 = vst [vmem:[%s968 + $0x128] sm:$0x1] %v7059
    %v7061 = vld [vmem:[%s968 + $0x134] sm:$0x1]
    %v7062 = vsel %vm1515, %v6943, %v7061
    %7063 = vst [vmem:[%s968 + $0x134] sm:$0x1] %v7062
    %v7064 = vld [vmem:[%s968 + $0x140] sm:$0x1]
    %v7065 = vsel %vm1515, %v6945, %v7064
    %7066 = vst [vmem:[%s968 + $0x140] sm:$0x1] %v7065
    %v7067 = vld [vmem:[%s968 + $0x14c] sm:$0x1]
    %v7068 = vsel %vm1515, %v6947, %v7067
    %7069 = vst [vmem:[%s968 + $0x14c] sm:$0x1] %v7068
    %v7070 = vld [vmem:[%s968 + $0x158] sm:$0x1]
    %v7071 = vsel %vm1515, %v6949, %v7070
    %7072 = vst [vmem:[%s968 + $0x158] sm:$0x1] %v7071
    %v7073 = vld [vmem:[%s968 + $0x164] sm:$0x1]
    %v7074 = vsel %vm1515, %v6951, %v7073
    %7075 = vst [vmem:[%s968 + $0x164] sm:$0x1] %v7074
    %v7076 = vld [vmem:[%s968 + $0x170] sm:$0x1]
    %v7077 = vsel %vm1515, %v6953, %v7076
    %7078 = vst [vmem:[%s968 + $0x170] sm:$0x1] %v7077
    %v7079 = vld [vmem:[%s968 + $0x17c] sm:$0x1]
    %v7080 = vsel %vm1515, %v6955, %v7079
    %7081 = vst [vmem:[%s968 + $0x17c] sm:$0x1] %v7080
    %v7082 = vld [vmem:[%s968 + $0x188] sm:$0x1]
    %v7083 = vsel %vm1515, %v6957, %v7082
    %7084 = vst [vmem:[%s968 + $0x188] sm:$0x1] %v7083
    %v7085 = vld [vmem:[%s968 + $0x194] sm:$0x1]
    %v7086 = vsel %vm1515, %v6959, %v7085
    %7087 = vst [vmem:[%s968 + $0x194] sm:$0x1] %v7086
    %v7088 = vld [vmem:[#allocation2] sm:$0x1]
    %v7089 = vsel %vm977, %v6707, %v7088
    %7090 = vst [vmem:[#allocation2] sm:$0x1] %v7089
    %v7091 = vld [vmem:[#allocation2 + $0xd8] sm:$0x1]
    %v7092 = vsel %vm977, %v6739, %v7091
    %7093 = vst [vmem:[#allocation2 + $0xd8] sm:$0x1] %v7092
    %v7094 = vld [vmem:[#allocation2 + $0x8] sm:$0x1]
    %v7095 = vsel %vm1515, %v6899, %v7094
    %7096 = vst [vmem:[#allocation2 + $0x8] sm:$0x1] %v7095
    %v7097 = vld [vmem:[#allocation2 + $0xe0] sm:$0x1]
    %v7098 = vsel %vm1515, %v6931, %v7097
    %7099 = vst [vmem:[#allocation2 + $0xe0] sm:$0x1] %v7098
    %v7100 = vld [vmem:[%s1212] sm:$0x1]
    %v7101 = vsel %vm977, %v6733, %v7100
    %7102 = vst [vmem:[%s1212] sm:$0x1] %v7101
    %v7103 = vld [vmem:[%s1212 + $0xd8] sm:$0x1]
    %v7104 = vsel %vm977, %v6765, %v7103
    %7105 = vst [vmem:[%s1212 + $0xd8] sm:$0x1] %v7104
    %v7106 = vld [vmem:[%s1212 + $0x8] sm:$0x1]
    %v7107 = vsel %vm1515, %v6925, %v7106
    %7108 = vst [vmem:[%s1212 + $0x8] sm:$0x1] %v7107
    %v7109 = vld [vmem:[%s1212 + $0xe0] sm:$0x1]
    %v7110 = vsel %vm1515, %v6957, %v7109
    %7111 = vst [vmem:[%s1212 + $0xe0] sm:$0x1] %v7110
    %v7112 = vld [vmem:[#allocation2] sm:$0xf]
    %v7113 = vld [vmem:[#allocation2 + $0x4] sm:$0xf]
    %v7114 = vld [vmem:[#allocation2 + $0xc] sm:$0xf]
    %v7115 = vld [vmem:[#allocation2 + $0x10] sm:$0xf]
    %v7116 = vld [vmem:[#allocation2 + $0x18] sm:$0xf]
    %v7117 = vld [vmem:[#allocation2 + $0x1c] sm:$0xf]
    %v7118 = vld [vmem:[#allocation2 + $0x24] sm:$0xf]
    %v7119 = vld [vmem:[#allocation2 + $0x28] sm:$0xf]
    %v7120 = vld [vmem:[#allocation2 + $0x30] sm:$0xf]
    %v7121 = vld [vmem:[#allocation2 + $0x34] sm:$0xf]
    %v7122 = vld [vmem:[#allocation2 + $0x3c] sm:$0xf]
    %v7123 = vld [vmem:[#allocation2 + $0x40] sm:$0xf]
    %v7124 = vld [vmem:[#allocation2 + $0x48] sm:$0xf]
    %v7125 = vld [vmem:[#allocation2 + $0x4c] sm:$0xf]
    %v7126 = vld [vmem:[#allocation2 + $0x54] sm:$0xf]
    %v7127 = vld [vmem:[#allocation2 + $0x58] sm:$0xf]
    %v7128 = vld [vmem:[#allocation2 + $0x60] sm:$0xf]
    %v7129 = vld [vmem:[#allocation2 + $0x64] sm:$0xf]
    %v7130 = vld [vmem:[#allocation2 + $0x6c] sm:$0xf]
    %v7131 = vld [vmem:[#allocation2 + $0x70] sm:$0xf]
    %v7132 = vld [vmem:[#allocation2 + $0x78] sm:$0xf]
    %v7133 = vld [vmem:[#allocation2 + $0x7c] sm:$0xf]
    %v7134 = vld [vmem:[#allocation2 + $0x84] sm:$0xf]
    %v7135 = vld [vmem:[#allocation2 + $0x88] sm:$0xf]
    %v7136 = vld [vmem:[#allocation2 + $0x90] sm:$0xf]
    %v7137 = vld [vmem:[#allocation2 + $0x94] sm:$0xf]
    %v7138 = vld [vmem:[#allocation2 + $0x9c] sm:$0xf]
    %v7139 = vld [vmem:[#allocation2 + $0xa0] sm:$0xf]
    %v7140 = vld [vmem:[#allocation2 + $0xa8] sm:$0xf]
    %v7141 = vld [vmem:[#allocation2 + $0xac] sm:$0xf]
    %v7142 = vld [vmem:[#allocation2 + $0xb4] sm:$0xf]
    %v7143 = vld [vmem:[#allocation2 + $0xb8] sm:$0xf]
    %v7144 = vld [vmem:[#allocation2 + $0xc0] sm:$0xf]
    %v7145 = vld [vmem:[#allocation2 + $0xc4] sm:$0xf]
    %v7146 = vld [vmem:[#allocation2 + $0xcc] sm:$0xf]
    %v7147 = vld [vmem:[#allocation2 + $0xd0] sm:$0xf]
    %v7148 = vld [vmem:[#allocation2 + $0xd8] sm:$0xf]
    %v7149 = vld [vmem:[#allocation2 + $0xdc] sm:$0xf]
    %v7150 = vld [vmem:[#allocation2 + $0xe4] sm:$0xf]
    %v7151 = vld [vmem:[#allocation2 + $0xe8] sm:$0xf]
    %v7152 = vld [vmem:[#allocation2 + $0xf0] sm:$0xf]
    %v7153 = vld [vmem:[#allocation2 + $0xf4] sm:$0xf]
    %v7154 = vld [vmem:[#allocation2 + $0xfc] sm:$0xf]
    %v7155 = vld [vmem:[#allocation2 + $0x100] sm:$0xf]
    %v7156 = vld [vmem:[#allocation2 + $0x108] sm:$0xf]
    %v7157 = vld [vmem:[#allocation2 + $0x10c] sm:$0xf]
    %v7158 = vld [vmem:[#allocation2 + $0x114] sm:$0xf]
    %v7159 = vld [vmem:[#allocation2 + $0x118] sm:$0xf]
    %v7160 = vld [vmem:[#allocation2 + $0x120] sm:$0xf]
    %v7161 = vld [vmem:[#allocation2 + $0x124] sm:$0xf]
    %v7162 = vld [vmem:[#allocation2 + $0x12c] sm:$0xf]
    %v7163 = vld [vmem:[#allocation2 + $0x130] sm:$0xf]
    %v7164 = vld [vmem:[#allocation2 + $0x138] sm:$0xf]
    %v7165 = vld [vmem:[#allocation2 + $0x13c] sm:$0xf]
    %v7166 = vld [vmem:[#allocation2 + $0x144] sm:$0xf]
    %v7167 = vld [vmem:[#allocation2 + $0x148] sm:$0xf]
    %v7168 = vld [vmem:[#allocation2 + $0x150] sm:$0xf]
    %v7169 = vld [vmem:[#allocation2 + $0x154] sm:$0xf]
    %v7170 = vld [vmem:[#allocation2 + $0x15c] sm:$0xf]
    %v7171 = vld [vmem:[#allocation2 + $0x160] sm:$0xf]
    %v7172 = vld [vmem:[#allocation2 + $0x168] sm:$0xf]
    %v7173 = vld [vmem:[#allocation2 + $0x16c] sm:$0xf]
    %v7174 = vld [vmem:[#allocation2 + $0x174] sm:$0xf]
    %v7175 = vld [vmem:[#allocation2 + $0x178] sm:$0xf]
    %v7176 = vld [vmem:[#allocation2 + $0x180] sm:$0xf]
    %v7177 = vld [vmem:[#allocation2 + $0x184] sm:$0xf]
    %v7178 = vld [vmem:[#allocation2 + $0x18c] sm:$0xf]
    %v7179 = vld [vmem:[#allocation2 + $0x190] sm:$0xf]
    %v7180 = vld [vmem:[#allocation2 + $0x198] sm:$0xf]
    %v7181 = vld [vmem:[#allocation2 + $0x19c] sm:$0xf]
    %v7182 = vld [vmem:[#allocation2 + $0x1a4] sm:$0xf]
    %v7183 = vld [vmem:[#allocation2 + $0x1a8] sm:$0xf]
    %v7248 = vunpack.c.l.b16 %v7112
    %v7249 = vunpack.c.l.b16 %v7113
    %v7250 = vunpack.c.l.b16 %v7114
    %v7251 = vunpack.c.l.b16 %v7115
    %v7252 = vunpack.c.l.b16 %v7116
    %v7253 = vunpack.c.l.b16 %v7117
    %v7254 = vunpack.c.l.b16 %v7118
    %v7255 = vunpack.c.l.b16 %v7119
    %v7256 = vunpack.c.l.b16 %v7120
    %v7257 = vunpack.c.l.b16 %v7121
    %v7258 = vunpack.c.l.b16 %v7122
    %v7259 = vunpack.c.l.b16 %v7123
    %v7260 = vunpack.c.l.b16 %v7124
    %v7261 = vunpack.c.l.b16 %v7125
    %v7262 = vunpack.c.l.b16 %v7126
    %v7263 = vunpack.c.l.b16 %v7127
    %v7264 = vunpack.c.l.b16 %v7128
    %v7265 = vunpack.c.l.b16 %v7129
    %v7266 = vunpack.c.l.b16 %v7130
    %v7267 = vunpack.c.l.b16 %v7131
    %v7268 = vunpack.c.l.b16 %v7132
    %v7269 = vunpack.c.l.b16 %v7133
    %v7270 = vunpack.c.l.b16 %v7134
    %v7271 = vunpack.c.l.b16 %v7135
    %v7272 = vunpack.c.l.b16 %v7136
    %v7273 = vunpack.c.l.b16 %v7137
    %v7274 = vunpack.c.l.b16 %v7138
    %v7275 = vunpack.c.l.b16 %v7139
    %v7276 = vunpack.c.l.b16 %v7140
    %v7277 = vunpack.c.l.b16 %v7141
    %v7278 = vunpack.c.l.b16 %v7142
    %v7279 = vunpack.c.l.b16 %v7143
    %v7280 = vunpack.c.l.b16 %v7148
    %v7281 = vunpack.c.l.b16 %v7149
    %v7282 = vunpack.c.l.b16 %v7150
    %v7283 = vunpack.c.l.b16 %v7151
    %v7284 = vunpack.c.l.b16 %v7152
    %v7285 = vunpack.c.l.b16 %v7153
    %v7286 = vunpack.c.l.b16 %v7154
    %v7287 = vunpack.c.l.b16 %v7155
    %v7288 = vunpack.c.l.b16 %v7156
    %v7289 = vunpack.c.l.b16 %v7157
    %v7290 = vunpack.c.l.b16 %v7158
    %v7291 = vunpack.c.l.b16 %v7159
    %v7292 = vunpack.c.l.b16 %v7160
    %v7293 = vunpack.c.l.b16 %v7161
    %v7294 = vunpack.c.l.b16 %v7162
    %v7295 = vunpack.c.l.b16 %v7163
    %v7296 = vunpack.c.l.b16 %v7164
    %v7297 = vunpack.c.l.b16 %v7165
    %v7298 = vunpack.c.l.b16 %v7166
    %v7299 = vunpack.c.l.b16 %v7167
    %v7300 = vunpack.c.l.b16 %v7168
    %v7301 = vunpack.c.l.b16 %v7169
    %v7302 = vunpack.c.l.b16 %v7170
    %v7303 = vunpack.c.l.b16 %v7171
    %v7304 = vunpack.c.l.b16 %v7172
    %v7305 = vunpack.c.l.b16 %v7173
    %v7306 = vunpack.c.l.b16 %v7174
    %v7307 = vunpack.c.l.b16 %v7175
    %v7308 = vunpack.c.l.b16 %v7176
    %v7309 = vunpack.c.l.b16 %v7177
    %v7310 = vunpack.c.l.b16 %v7178
    %v7311 = vunpack.c.l.b16 %v7179
    %v7312 = vpack.c.b16 %v7249, %v7248
    %v7313 = vpack.c.b16 %v7251, %v7250
    %v7314 = vpack.c.b16 %v7253, %v7252
    %v7315 = vpack.c.b16 %v7255, %v7254
    %v7316 = vpack.c.b16 %v7257, %v7256
    %v7317 = vpack.c.b16 %v7259, %v7258
    %v7318 = vpack.c.b16 %v7261, %v7260
    %v7319 = vpack.c.b16 %v7263, %v7262
    %v7320 = vpack.c.b16 %v7265, %v7264
    %v7321 = vpack.c.b16 %v7267, %v7266
    %v7322 = vpack.c.b16 %v7269, %v7268
    %v7323 = vpack.c.b16 %v7271, %v7270
    %v7324 = vpack.c.b16 %v7273, %v7272
    %v7325 = vpack.c.b16 %v7275, %v7274
    %v7326 = vpack.c.b16 %v7277, %v7276
    %v7327 = vpack.c.b16 %v7279, %v7278
    %v7328 = vpack.c.b16 %v7281, %v7280
    %v7329 = vpack.c.b16 %v7283, %v7282
    %v7330 = vpack.c.b16 %v7285, %v7284
    %v7331 = vpack.c.b16 %v7287, %v7286
    %v7332 = vpack.c.b16 %v7289, %v7288
    %v7333 = vpack.c.b16 %v7291, %v7290
    %v7334 = vpack.c.b16 %v7293, %v7292
    %v7335 = vpack.c.b16 %v7295, %v7294
    %v7336 = vpack.c.b16 %v7297, %v7296
    %v7337 = vpack.c.b16 %v7299, %v7298
    %v7338 = vpack.c.b16 %v7301, %v7300
    %v7339 = vpack.c.b16 %v7303, %v7302
    %v7340 = vpack.c.b16 %v7305, %v7304
    %v7341 = vpack.c.b16 %v7307, %v7306
    %v7342 = vpack.c.b16 %v7309, %v7308
    %v7343 = vpack.c.b16 %v7311, %v7310
    %v7380 = vunpack.c.l.b16 %v7144
    %v7381 = vunpack.c.l.b16 %v7145
    %v7382 = vunpack.c.l.b16 %v7180
    %v7383 = vunpack.c.l.b16 %v7181
    %v7384 = vpack.c.b16 %v7381, %v7380
    %v7385 = vpack.c.b16 %v7383, %v7382
    %v7392 = vunpack.c.l.b16 %v7146
    %v7393 = vunpack.c.l.b16 %v7147
    %v7394 = vunpack.c.l.b16 %v7182
    %v7395 = vunpack.c.l.b16 %v7183
    %v7396 = vpack.c.b16 %v7393, %v7392
    %v7397 = vpack.c.b16 %v7395, %v7394
    %v7400 = vld [vmem:[#allocation8] sm:$0xf]
    %v7401 = vld [vmem:[#allocation8 + $0x4] sm:$0xf]
    %v7402 = vld [vmem:[#allocation8 + $0x8] sm:$0xf]
    %v7403 = vld [vmem:[#allocation8 + $0xc] sm:$0xf]
    %v7404 = vld [vmem:[#allocation8 + $0x10] sm:$0xf]
    %v7405 = vld [vmem:[#allocation8 + $0x14] sm:$0xf]
    %v7406 = vld [vmem:[#allocation8 + $0x18] sm:$0xf]
    %v7407 = vld [vmem:[#allocation8 + $0x1c] sm:$0xf]
    %v7408 = vld [vmem:[#allocation8 + $0x20] sm:$0xf]
    %v7409 = vld [vmem:[#allocation8 + $0x24] sm:$0xf]
    %v7410 = vld [vmem:[#allocation8 + $0x28] sm:$0xf]
    %v7411 = vld [vmem:[#allocation8 + $0x2c] sm:$0xf]
    %v7412 = vld [vmem:[#allocation8 + $0x30] sm:$0xf]
    %v7413 = vld [vmem:[#allocation8 + $0x34] sm:$0xf]
    %v7414 = vld [vmem:[#allocation8 + $0x38] sm:$0xf]
    %v7415 = vld [vmem:[#allocation8 + $0x3c] sm:$0xf]
    %v7416 = vld [vmem:[#allocation8 + $0x40] sm:$0xf]
    %v7417 = vld [vmem:[#allocation8 + $0x44] sm:$0xf]
    %v7418 = vld [vmem:[#allocation8 + $0x48] sm:$0xf]
    %v7419 = vld [vmem:[#allocation8 + $0x4c] sm:$0xf]
    %v7420 = vld [vmem:[#allocation8 + $0x50] sm:$0xf]
    %v7421 = vld [vmem:[#allocation8 + $0x54] sm:$0xf]
    %v7422 = vld [vmem:[#allocation8 + $0x58] sm:$0xf]
    %v7423 = vld [vmem:[#allocation8 + $0x5c] sm:$0xf]
    %v7424 = vld [vmem:[#allocation8 + $0x60] sm:$0xf]
    %v7425 = vld [vmem:[#allocation8 + $0x64] sm:$0xf]
    %v7426 = vld [vmem:[#allocation8 + $0x68] sm:$0xf]
    %v7427 = vld [vmem:[#allocation8 + $0x6c] sm:$0xf]
    %v7428 = vld [vmem:[#allocation8 + $0x70] sm:$0xf]
    %v7429 = vld [vmem:[#allocation8 + $0x74] sm:$0xf]
    %v7430 = vld [vmem:[#allocation8 + $0x78] sm:$0xf]
    %v7431 = vld [vmem:[#allocation8 + $0x7c] sm:$0xf]
    %v7432 = vld [vmem:[#allocation8 + $0x80] sm:$0xf]
    %v7433 = vld [vmem:[#allocation8 + $0x84] sm:$0xf]
    %v7434 = vld [vmem:[#allocation8 + $0x88] sm:$0xf]
    %v7435 = vld [vmem:[#allocation8 + $0x8c] sm:$0xf]
    %v7436 = vld [vmem:[#allocation8 + $0x90] sm:$0xf]
    %v7437 = vld [vmem:[#allocation8 + $0x94] sm:$0xf]
    %v7438 = vld [vmem:[#allocation8 + $0x98] sm:$0xf]
    %v7439 = vld [vmem:[#allocation8 + $0x9c] sm:$0xf]
    %v7440 = vld [vmem:[#allocation8 + $0xa0] sm:$0xf]
    %v7441 = vld [vmem:[#allocation8 + $0xa4] sm:$0xf]
    %v7442 = vld [vmem:[#allocation8 + $0xa8] sm:$0xf]
    %v7443 = vld [vmem:[#allocation8 + $0xac] sm:$0xf]
    %v7444 = vld [vmem:[#allocation8 + $0xb0] sm:$0xf]
    %v7445 = vld [vmem:[#allocation8 + $0xb4] sm:$0xf]
    %v7446 = vld [vmem:[#allocation8 + $0xb8] sm:$0xf]
    %v7447 = vld [vmem:[#allocation8 + $0xbc] sm:$0xf]
    %v7448 = vld [vmem:[#allocation2 + $0x8] sm:$0x1]
    %v7449 = vld [vmem:[#allocation2 + $0x14] sm:$0x1]
    %v7450 = vld [vmem:[#allocation2 + $0x20] sm:$0x1]
    %v7451 = vld [vmem:[#allocation2 + $0x2c] sm:$0x1]
    %v7452 = vld [vmem:[#allocation2 + $0x38] sm:$0x1]
    %v7453 = vld [vmem:[#allocation2 + $0x44] sm:$0x1]
    %v7454 = vld [vmem:[#allocation2 + $0x50] sm:$0x1]
    %v7455 = vld [vmem:[#allocation2 + $0x5c] sm:$0x1]
    %v7456 = vld [vmem:[#allocation2 + $0x68] sm:$0x1]
    %v7457 = vld [vmem:[#allocation2 + $0x74] sm:$0x1]
    %v7458 = vld [vmem:[#allocation2 + $0x80] sm:$0x1]
    %v7459 = vld [vmem:[#allocation2 + $0x8c] sm:$0x1]
    %v7460 = vld [vmem:[#allocation2 + $0x98] sm:$0x1]
    %v7461 = vld [vmem:[#allocation2 + $0xa4] sm:$0x1]
    %v7462 = vld [vmem:[#allocation2 + $0xb0] sm:$0x1]
    %v7463 = vld [vmem:[#allocation2 + $0xbc] sm:$0x1]
    %v7464 = vld [vmem:[#allocation2 + $0xc8] sm:$0x1]
    %v7465 = vld [vmem:[#allocation2 + $0xd4] sm:$0x1]
    %v7466 = vld [vmem:[#allocation2 + $0xe0] sm:$0x1]
    %v7467 = vld [vmem:[#allocation2 + $0xec] sm:$0x1]
    %v7468 = vld [vmem:[#allocation2 + $0xf8] sm:$0x1]
    %v7469 = vld [vmem:[#allocation2 + $0x104] sm:$0x1]
    %v7470 = vld [vmem:[#allocation2 + $0x110] sm:$0x1]
    %v7471 = vld [vmem:[#allocation2 + $0x11c] sm:$0x1]
    %v7472 = vld [vmem:[#allocation2 + $0x128] sm:$0x1]
    %v7473 = vld [vmem:[#allocation2 + $0x134] sm:$0x1]
    %v7474 = vld [vmem:[#allocation2 + $0x140] sm:$0x1]
    %v7475 = vld [vmem:[#allocation2 + $0x14c] sm:$0x1]
    %v7476 = vld [vmem:[#allocation2 + $0x158] sm:$0x1]
    %v7477 = vld [vmem:[#allocation2 + $0x164] sm:$0x1]
    %v7478 = vld [vmem:[#allocation2 + $0x170] sm:$0x1]
    %v7479 = vld [vmem:[#allocation2 + $0x17c] sm:$0x1]
    %v7480 = vld [vmem:[#allocation2 + $0x188] sm:$0x1]
    %v7481 = vld [vmem:[#allocation2 + $0x194] sm:$0x1]
    %v7482 = vld [vmem:[#allocation2 + $0x1a0] sm:$0x1]
    %v7483 = vld [vmem:[#allocation2 + $0x1ac] sm:$0x1]
    %v7516 = vunpack.c.l.b16 %v7448
    %v7517 = vunpack.c.l.b16 %v7449
    %v7518 = vunpack.c.l.b16 %v7450
    %v7519 = vunpack.c.l.b16 %v7451
    %v7520 = vunpack.c.l.b16 %v7452
    %v7521 = vunpack.c.l.b16 %v7453
    %v7522 = vunpack.c.l.b16 %v7454
    %v7523 = vunpack.c.l.b16 %v7455
    %v7524 = vunpack.c.l.b16 %v7456
    %v7525 = vunpack.c.l.b16 %v7457
    %v7526 = vunpack.c.l.b16 %v7458
    %v7527 = vunpack.c.l.b16 %v7459
    %v7528 = vunpack.c.l.b16 %v7460
    %v7529 = vunpack.c.l.b16 %v7461
    %v7530 = vunpack.c.l.b16 %v7462
    %v7531 = vunpack.c.l.b16 %v7463
    %v7532 = vunpack.c.l.b16 %v7466
    %v7533 = vunpack.c.l.b16 %v7467
    %v7534 = vunpack.c.l.b16 %v7468
    %v7535 = vunpack.c.l.b16 %v7469
    %v7536 = vunpack.c.l.b16 %v7470
    %v7537 = vunpack.c.l.b16 %v7471
    %v7538 = vunpack.c.l.b16 %v7472
    %v7539 = vunpack.c.l.b16 %v7473
    %v7540 = vunpack.c.l.b16 %v7474
    %v7541 = vunpack.c.l.b16 %v7475
    %v7542 = vunpack.c.l.b16 %v7476
    %v7543 = vunpack.c.l.b16 %v7477
    %v7544 = vunpack.c.l.b16 %v7478
    %v7545 = vunpack.c.l.b16 %v7479
    %v7546 = vunpack.c.l.b16 %v7480
    %v7547 = vunpack.c.l.b16 %v7481
    %v7548 = vpack.c.b16 %v7516, %v7516
    %v7549 = vpack.c.b16 %v7517, %v7517
    %v7550 = vpack.c.b16 %v7518, %v7518
    %v7551 = vpack.c.b16 %v7519, %v7519
    %v7552 = vpack.c.b16 %v7520, %v7520
    %v7553 = vpack.c.b16 %v7521, %v7521
    %v7554 = vpack.c.b16 %v7522, %v7522
    %v7555 = vpack.c.b16 %v7523, %v7523
    %v7556 = vpack.c.b16 %v7524, %v7524
    %v7557 = vpack.c.b16 %v7525, %v7525
    %v7558 = vpack.c.b16 %v7526, %v7526
    %v7559 = vpack.c.b16 %v7527, %v7527
    %v7560 = vpack.c.b16 %v7528, %v7528
    %v7561 = vpack.c.b16 %v7529, %v7529
    %v7562 = vpack.c.b16 %v7530, %v7530
    %v7563 = vpack.c.b16 %v7531, %v7531
    %v7564 = vpack.c.b16 %v7532, %v7532
    %v7565 = vpack.c.b16 %v7533, %v7533
    %v7566 = vpack.c.b16 %v7534, %v7534
    %v7567 = vpack.c.b16 %v7535, %v7535
    %v7568 = vpack.c.b16 %v7536, %v7536
    %v7569 = vpack.c.b16 %v7537, %v7537
    %v7570 = vpack.c.b16 %v7538, %v7538
    %v7571 = vpack.c.b16 %v7539, %v7539
    %v7572 = vpack.c.b16 %v7540, %v7540
    %v7573 = vpack.c.b16 %v7541, %v7541
    %v7574 = vpack.c.b16 %v7542, %v7542
    %v7575 = vpack.c.b16 %v7543, %v7543
    %v7576 = vpack.c.b16 %v7544, %v7544
    %v7577 = vpack.c.b16 %v7545, %v7545
    %v7578 = vpack.c.b16 %v7546, %v7546
    %v7579 = vpack.c.b16 %v7547, %v7547
    %v7582 = vunpack.c.l.b16 %v7464
    %v7583 = vunpack.c.l.b16 %v7482
    %v7584 = vpack.c.b16 %v7582, %v7582
    %v7585 = vpack.c.b16 %v7583, %v7583
    %v7588 = vunpack.c.l.b16 %v7465
    %v7589 = vunpack.c.l.b16 %v7483
    %v7590 = vpack.c.b16 %v7588, %v7588
    %v7591 = vpack.c.b16 %v7589, %v7589
    %v7593 = vshrl.u32 %v7312, 16
    %v7595 = vshll.u32 %v7312, 16
    %v7597 = vrot.slane %v7595, 1
    %v7598 = vor.u32 %v7593, %v7597
    %v7600 = vshll.u32 %v7548, 16
    %v7602 = vrot.slane %v7600, 1
    %v7603 = vsel %vm2116, %v7598, %v7602
    %v7605 = vshrl.u32 %v7313, 16
    %v7607 = vshll.u32 %v7313, 16
    %v7609 = vrot.slane %v7607, 1
    %v7610 = vor.u32 %v7605, %v7609
    %v7612 = vshll.u32 %v7549, 16
    %v7614 = vrot.slane %v7612, 1
    %v7615 = vsel %vm2116, %v7610, %v7614
    %v7617 = vshrl.u32 %v7314, 16
    %v7619 = vshll.u32 %v7314, 16
    %v7621 = vrot.slane %v7619, 1
    %v7622 = vor.u32 %v7617, %v7621
    %v7624 = vshll.u32 %v7550, 16
    %v7626 = vrot.slane %v7624, 1
    %v7627 = vsel %vm2116, %v7622, %v7626
    %v7629 = vshrl.u32 %v7315, 16
    %v7631 = vshll.u32 %v7315, 16
    %v7633 = vrot.slane %v7631, 1
    %v7634 = vor.u32 %v7629, %v7633
    %v7636 = vshll.u32 %v7551, 16
    %v7638 = vrot.slane %v7636, 1
    %v7639 = vsel %vm2116, %v7634, %v7638
    %v7641 = vshrl.u32 %v7316, 16
    %v7643 = vshll.u32 %v7316, 16
    %v7645 = vrot.slane %v7643, 1
    %v7646 = vor.u32 %v7641, %v7645
    %v7648 = vshll.u32 %v7552, 16
    %v7650 = vrot.slane %v7648, 1
    %v7651 = vsel %vm2116, %v7646, %v7650
    %v7653 = vshrl.u32 %v7317, 16
    %v7655 = vshll.u32 %v7317, 16
    %v7657 = vrot.slane %v7655, 1
    %v7658 = vor.u32 %v7653, %v7657
    %v7660 = vshll.u32 %v7553, 16
    %v7662 = vrot.slane %v7660, 1
    %v7663 = vsel %vm2116, %v7658, %v7662
    %v7665 = vshrl.u32 %v7318, 16
    %v7667 = vshll.u32 %v7318, 16
    %v7669 = vrot.slane %v7667, 1
    %v7670 = vor.u32 %v7665, %v7669
    %v7672 = vshll.u32 %v7554, 16
    %v7674 = vrot.slane %v7672, 1
    %v7675 = vsel %vm2116, %v7670, %v7674
    %v7677 = vshrl.u32 %v7319, 16
    %v7679 = vshll.u32 %v7319, 16
    %v7681 = vrot.slane %v7679, 1
    %v7682 = vor.u32 %v7677, %v7681
    %v7684 = vshll.u32 %v7555, 16
    %v7686 = vrot.slane %v7684, 1
    %v7687 = vsel %vm2116, %v7682, %v7686
    %v7689 = vshrl.u32 %v7320, 16
    %v7691 = vshll.u32 %v7320, 16
    %v7693 = vrot.slane %v7691, 1
    %v7694 = vor.u32 %v7689, %v7693
    %v7696 = vshll.u32 %v7556, 16
    %v7698 = vrot.slane %v7696, 1
    %v7699 = vsel %vm2116, %v7694, %v7698
    %v7701 = vshrl.u32 %v7321, 16
    %v7703 = vshll.u32 %v7321, 16
    %v7705 = vrot.slane %v7703, 1
    %v7706 = vor.u32 %v7701, %v7705
    %v7708 = vshll.u32 %v7557, 16
    %v7710 = vrot.slane %v7708, 1
    %v7711 = vsel %vm2116, %v7706, %v7710
    %v7713 = vshrl.u32 %v7322, 16
    %v7715 = vshll.u32 %v7322, 16
    %v7717 = vrot.slane %v7715, 1
    %v7718 = vor.u32 %v7713, %v7717
    %v7720 = vshll.u32 %v7558, 16
    %v7722 = vrot.slane %v7720, 1
    %v7723 = vsel %vm2116, %v7718, %v7722
    %v7725 = vshrl.u32 %v7323, 16
    %v7727 = vshll.u32 %v7323, 16
    %v7729 = vrot.slane %v7727, 1
    %v7730 = vor.u32 %v7725, %v7729
    %v7732 = vshll.u32 %v7559, 16
    %v7734 = vrot.slane %v7732, 1
    %v7735 = vsel %vm2116, %v7730, %v7734
    %v7737 = vshrl.u32 %v7324, 16
    %v7739 = vshll.u32 %v7324, 16
    %v7741 = vrot.slane %v7739, 1
    %v7742 = vor.u32 %v7737, %v7741
    %v7744 = vshll.u32 %v7560, 16
    %v7746 = vrot.slane %v7744, 1
    %v7747 = vsel %vm2116, %v7742, %v7746
    %v7749 = vshrl.u32 %v7325, 16
    %v7751 = vshll.u32 %v7325, 16
    %v7753 = vrot.slane %v7751, 1
    %v7754 = vor.u32 %v7749, %v7753
    %v7756 = vshll.u32 %v7561, 16
    %v7758 = vrot.slane %v7756, 1
    %v7759 = vsel %vm2116, %v7754, %v7758
    %v7761 = vshrl.u32 %v7326, 16
    %v7763 = vshll.u32 %v7326, 16
    %v7765 = vrot.slane %v7763, 1
    %v7766 = vor.u32 %v7761, %v7765
    %v7768 = vshll.u32 %v7562, 16
    %v7770 = vrot.slane %v7768, 1
    %v7771 = vsel %vm2116, %v7766, %v7770
    %v7773 = vshrl.u32 %v7327, 16
    %v7775 = vshll.u32 %v7327, 16
    %v7777 = vrot.slane %v7775, 1
    %v7778 = vor.u32 %v7773, %v7777
    %v7780 = vshll.u32 %v7563, 16
    %v7782 = vrot.slane %v7780, 1
    %v7783 = vsel %vm2116, %v7778, %v7782
    %v7785 = vshrl.u32 %v7384, 16
    %v7787 = vshll.u32 %v7384, 16
    %v7789 = vrot.slane %v7787, 1
    %v7790 = vor.u32 %v7785, %v7789
    %v7792 = vshll.u32 %v7584, 16
    %v7794 = vrot.slane %v7792, 1
    %v7795 = vsel %vm2116, %v7790, %v7794
    %v7797 = vshrl.u32 %v7396, 16
    %v7799 = vshll.u32 %v7396, 16
    %v7801 = vrot.slane %v7799, 1
    %v7802 = vor.u32 %v7797, %v7801
    %v7804 = vshll.u32 %v7590, 16
    %v7806 = vrot.slane %v7804, 1
    %v7807 = vsel %vm2116, %v7802, %v7806
    %v7809 = vshrl.u32 %v7328, 16
    %v7811 = vshll.u32 %v7328, 16
    %v7813 = vrot.slane %v7811, 1
    %v7814 = vor.u32 %v7809, %v7813
    %v7816 = vshll.u32 %v7564, 16
    %v7818 = vrot.slane %v7816, 1
    %v7819 = vsel %vm2116, %v7814, %v7818
    %v7821 = vshrl.u32 %v7329, 16
    %v7823 = vshll.u32 %v7329, 16
    %v7825 = vrot.slane %v7823, 1
    %v7826 = vor.u32 %v7821, %v7825
    %v7828 = vshll.u32 %v7565, 16
    %v7830 = vrot.slane %v7828, 1
    %v7831 = vsel %vm2116, %v7826, %v7830
    %v7833 = vshrl.u32 %v7330, 16
    %v7835 = vshll.u32 %v7330, 16
    %v7837 = vrot.slane %v7835, 1
    %v7838 = vor.u32 %v7833, %v7837
    %v7840 = vshll.u32 %v7566, 16
    %v7842 = vrot.slane %v7840, 1
    %v7843 = vsel %vm2116, %v7838, %v7842
    %v7845 = vshrl.u32 %v7331, 16
    %v7847 = vshll.u32 %v7331, 16
    %v7849 = vrot.slane %v7847, 1
    %v7850 = vor.u32 %v7845, %v7849
    %v7852 = vshll.u32 %v7567, 16
    %v7854 = vrot.slane %v7852, 1
    %v7855 = vsel %vm2116, %v7850, %v7854
    %v7857 = vshrl.u32 %v7332, 16
    %v7859 = vshll.u32 %v7332, 16
    %v7861 = vrot.slane %v7859, 1
    %v7862 = vor.u32 %v7857, %v7861
    %v7864 = vshll.u32 %v7568, 16
    %v7866 = vrot.slane %v7864, 1
    %v7867 = vsel %vm2116, %v7862, %v7866
    %v7869 = vshrl.u32 %v7333, 16
    %v7871 = vshll.u32 %v7333, 16
    %v7873 = vrot.slane %v7871, 1
    %v7874 = vor.u32 %v7869, %v7873
    %v7876 = vshll.u32 %v7569, 16
    %v7878 = vrot.slane %v7876, 1
    %v7879 = vsel %vm2116, %v7874, %v7878
    %v7881 = vshrl.u32 %v7334, 16
    %v7883 = vshll.u32 %v7334, 16
    %v7885 = vrot.slane %v7883, 1
    %v7886 = vor.u32 %v7881, %v7885
    %v7888 = vshll.u32 %v7570, 16
    %v7890 = vrot.slane %v7888, 1
    %v7891 = vsel %vm2116, %v7886, %v7890
    %v7893 = vshrl.u32 %v7335, 16
    %v7895 = vshll.u32 %v7335, 16
    %v7897 = vrot.slane %v7895, 1
    %v7898 = vor.u32 %v7893, %v7897
    %v7900 = vshll.u32 %v7571, 16
    %v7902 = vrot.slane %v7900, 1
    %v7903 = vsel %vm2116, %v7898, %v7902
    %v7905 = vshrl.u32 %v7336, 16
    %v7907 = vshll.u32 %v7336, 16
    %v7909 = vrot.slane %v7907, 1
    %v7910 = vor.u32 %v7905, %v7909
    %v7912 = vshll.u32 %v7572, 16
    %v7914 = vrot.slane %v7912, 1
    %v7915 = vsel %vm2116, %v7910, %v7914
    %v7917 = vshrl.u32 %v7337, 16
    %v7919 = vshll.u32 %v7337, 16
    %v7921 = vrot.slane %v7919, 1
    %v7922 = vor.u32 %v7917, %v7921
    %v7924 = vshll.u32 %v7573, 16
    %v7926 = vrot.slane %v7924, 1
    %v7927 = vsel %vm2116, %v7922, %v7926
    %v7929 = vshrl.u32 %v7338, 16
    %v7931 = vshll.u32 %v7338, 16
    %v7933 = vrot.slane %v7931, 1
    %v7934 = vor.u32 %v7929, %v7933
    %v7936 = vshll.u32 %v7574, 16
    %v7938 = vrot.slane %v7936, 1
    %v7939 = vsel %vm2116, %v7934, %v7938
    %v7941 = vshrl.u32 %v7339, 16
    %v7943 = vshll.u32 %v7339, 16
    %v7945 = vrot.slane %v7943, 1
    %v7946 = vor.u32 %v7941, %v7945
    %v7948 = vshll.u32 %v7575, 16
    %v7950 = vrot.slane %v7948, 1
    %v7951 = vsel %vm2116, %v7946, %v7950
    %v7953 = vshrl.u32 %v7340, 16
    %v7955 = vshll.u32 %v7340, 16
    %v7957 = vrot.slane %v7955, 1
    %v7958 = vor.u32 %v7953, %v7957
    %v7960 = vshll.u32 %v7576, 16
    %v7962 = vrot.slane %v7960, 1
    %v7963 = vsel %vm2116, %v7958, %v7962
    %v7965 = vshrl.u32 %v7341, 16
    %v7967 = vshll.u32 %v7341, 16
    %v7969 = vrot.slane %v7967, 1
    %v7970 = vor.u32 %v7965, %v7969
    %v7972 = vshll.u32 %v7577, 16
    %v7974 = vrot.slane %v7972, 1
    %v7975 = vsel %vm2116, %v7970, %v7974
    %v7977 = vshrl.u32 %v7342, 16
    %v7979 = vshll.u32 %v7342, 16
    %v7981 = vrot.slane %v7979, 1
    %v7982 = vor.u32 %v7977, %v7981
    %v7984 = vshll.u32 %v7578, 16
    %v7986 = vrot.slane %v7984, 1
    %v7987 = vsel %vm2116, %v7982, %v7986
    %v7989 = vshrl.u32 %v7343, 16
    %v7991 = vshll.u32 %v7343, 16
    %v7993 = vrot.slane %v7991, 1
    %v7994 = vor.u32 %v7989, %v7993
    %v7996 = vshll.u32 %v7579, 16
    %v7998 = vrot.slane %v7996, 1
    %v7999 = vsel %vm2116, %v7994, %v7998
    %v8001 = vshrl.u32 %v7385, 16
    %v8003 = vshll.u32 %v7385, 16
    %v8005 = vrot.slane %v8003, 1
    %v8006 = vor.u32 %v8001, %v8005
    %v8008 = vshll.u32 %v7585, 16
    %v8010 = vrot.slane %v8008, 1
    %v8011 = vsel %vm2116, %v8006, %v8010
    %v8013 = vshrl.u32 %v7397, 16
    %v8015 = vshll.u32 %v7397, 16
    %v8017 = vrot.slane %v8015, 1
    %v8018 = vor.u32 %v8013, %v8017
    %v8020 = vshll.u32 %v7591, 16
    %v8022 = vrot.slane %v8020, 1
    %v8023 = vsel %vm2116, %v8018, %v8022
    %s8060 = scalar_lea.vmem [#allocation8], 192
    %v8061 = vld [vmem:[%s8060] sm:$0xf]
    %v8062 = vld [vmem:[%s8060 + $0x4] sm:$0xf]
    %v8063 = vld [vmem:[%s8060 + $0x8] sm:$0xf]
    %v8064 = vld [vmem:[%s8060 + $0xc] sm:$0xf]
    %v8065 = vld [vmem:[%s8060 + $0x10] sm:$0xf]
    %v8066 = vld [vmem:[%s8060 + $0x14] sm:$0xf]
    %v8067 = vld [vmem:[%s8060 + $0x18] sm:$0xf]
    %v8068 = vld [vmem:[%s8060 + $0x1c] sm:$0xf]
    %v8069 = vld [vmem:[%s8060 + $0x20] sm:$0xf]
    %v8070 = vld [vmem:[%s8060 + $0x24] sm:$0xf]
    %v8071 = vld [vmem:[%s8060 + $0x28] sm:$0xf]
    %v8072 = vld [vmem:[%s8060 + $0x2c] sm:$0xf]
    %v8073 = vld [vmem:[%s8060 + $0x30] sm:$0xf]
    %v8074 = vld [vmem:[%s8060 + $0x34] sm:$0xf]
    %v8075 = vld [vmem:[%s8060 + $0x38] sm:$0xf]
    %v8076 = vld [vmem:[%s8060 + $0x3c] sm:$0xf]
    %v8077 = vld [vmem:[%s8060 + $0x40] sm:$0xf]
    %v8078 = vld [vmem:[%s8060 + $0x44] sm:$0xf]
    %v8079 = vld [vmem:[%s8060 + $0x48] sm:$0xf]
    %v8080 = vld [vmem:[%s8060 + $0x4c] sm:$0xf]
    %v8081 = vld [vmem:[%s8060 + $0x50] sm:$0xf]
    %v8082 = vld [vmem:[%s8060 + $0x54] sm:$0xf]
    %v8083 = vld [vmem:[%s8060 + $0x58] sm:$0xf]
    %v8084 = vld [vmem:[%s8060 + $0x5c] sm:$0xf]
    %v8085 = vld [vmem:[%s8060 + $0x60] sm:$0xf]
    %v8086 = vld [vmem:[%s8060 + $0x64] sm:$0xf]
    %v8087 = vld [vmem:[%s8060 + $0x68] sm:$0xf]
    %v8088 = vld [vmem:[%s8060 + $0x6c] sm:$0xf]
    %v8089 = vld [vmem:[%s8060 + $0x70] sm:$0xf]
    %v8090 = vld [vmem:[%s8060 + $0x74] sm:$0xf]
    %v8091 = vld [vmem:[%s8060 + $0x78] sm:$0xf]
    %v8092 = vld [vmem:[%s8060 + $0x7c] sm:$0xf]
    %v8093 = vld [vmem:[%s8060 + $0x80] sm:$0xf]
    %v8094 = vld [vmem:[%s8060 + $0x84] sm:$0xf]
    %v8095 = vld [vmem:[%s8060 + $0x88] sm:$0xf]
    %v8096 = vld [vmem:[%s8060 + $0x8c] sm:$0xf]
    %v8097 = vld [vmem:[%s8060 + $0x90] sm:$0xf]
    %v8098 = vld [vmem:[%s8060 + $0x94] sm:$0xf]
    %v8099 = vld [vmem:[%s8060 + $0x98] sm:$0xf]
    %v8100 = vld [vmem:[%s8060 + $0x9c] sm:$0xf]
    %v8101 = vld [vmem:[%s8060 + $0xa0] sm:$0xf]
    %v8102 = vld [vmem:[%s8060 + $0xa4] sm:$0xf]
    %v8103 = vld [vmem:[%s8060 + $0xa8] sm:$0xf]
    %v8104 = vld [vmem:[%s8060 + $0xac] sm:$0xf]
    %v8105 = vld [vmem:[%s8060 + $0xb0] sm:$0xf]
    %v8106 = vld [vmem:[%s8060 + $0xb4] sm:$0xf]
    %v8107 = vld [vmem:[%s8060 + $0xb8] sm:$0xf]
    %v8108 = vld [vmem:[%s8060 + $0xbc] sm:$0xf]
    %v8157 = vunpack.c.l.b16 %v8061
    %v8158 = vunpack.c.l.b16 %v8062
    %v8159 = vunpack.c.l.b16 %v8063
    %v8160 = vunpack.c.l.b16 %v8064
    %v8161 = vunpack.c.l.b16 %v8065
    %v8162 = vunpack.c.l.b16 %v8066
    %v8163 = vunpack.c.l.b16 %v8067
    %v8164 = vunpack.c.l.b16 %v8068
    %v8165 = vunpack.c.l.b16 %v8069
    %v8166 = vunpack.c.l.b16 %v8070
    %v8167 = vunpack.c.l.b16 %v8071
    %v8168 = vunpack.c.l.b16 %v8072
    %v8169 = vunpack.c.l.b16 %v8073
    %v8170 = vunpack.c.l.b16 %v8074
    %v8171 = vunpack.c.l.b16 %v8075
    %v8172 = vunpack.c.l.b16 %v8076
    %v8173 = vunpack.c.l.b16 %v8077
    %v8174 = vunpack.c.l.b16 %v8078
    %v8175 = vunpack.c.l.b16 %v8079
    %v8176 = vunpack.c.l.b16 %v8080
    %v8177 = vunpack.c.l.b16 %v8081
    %v8178 = vunpack.c.l.b16 %v8082
    %v8179 = vunpack.c.l.b16 %v8083
    %v8180 = vunpack.c.l.b16 %v8084
    %v8181 = vunpack.c.l.b16 %v8085
    %v8182 = vunpack.c.l.b16 %v8086
    %v8183 = vunpack.c.l.b16 %v8087
    %v8184 = vunpack.c.l.b16 %v8088
    %v8185 = vunpack.c.l.b16 %v8089
    %v8186 = vunpack.c.l.b16 %v8090
    %v8187 = vunpack.c.l.b16 %v8091
    %v8188 = vunpack.c.l.b16 %v8092
    %v8189 = vunpack.c.l.b16 %v8093
    %v8190 = vunpack.c.l.b16 %v8094
    %v8191 = vunpack.c.l.b16 %v8095
    %v8192 = vunpack.c.l.b16 %v8096
    %v8193 = vunpack.c.l.b16 %v8097
    %v8194 = vunpack.c.l.b16 %v8098
    %v8195 = vunpack.c.l.b16 %v8099
    %v8196 = vunpack.c.l.b16 %v8100
    %v8197 = vunpack.c.l.b16 %v8101
    %v8198 = vunpack.c.l.b16 %v8102
    %v8199 = vunpack.c.l.b16 %v8103
    %v8200 = vunpack.c.l.b16 %v8104
    %v8201 = vunpack.c.l.b16 %v8105
    %v8202 = vunpack.c.l.b16 %v8106
    %v8203 = vunpack.c.l.b16 %v8107
    %v8204 = vunpack.c.l.b16 %v8108
    %v8205 = vpack.c.b16 %v8158, %v8157
    %v8206 = vpack.c.b16 %v8160, %v8159
    %v8207 = vpack.c.b16 %v8162, %v8161
    %v8208 = vpack.c.b16 %v8164, %v8163
    %v8209 = vpack.c.b16 %v8166, %v8165
    %v8210 = vpack.c.b16 %v8168, %v8167
    %v8211 = vpack.c.b16 %v8170, %v8169
    %v8212 = vpack.c.b16 %v8172, %v8171
    %v8213 = vpack.c.b16 %v8174, %v8173
    %v8214 = vpack.c.b16 %v8176, %v8175
    %v8215 = vpack.c.b16 %v8178, %v8177
    %v8216 = vpack.c.b16 %v8180, %v8179
    %v8217 = vpack.c.b16 %v8182, %v8181
    %v8218 = vpack.c.b16 %v8184, %v8183
    %v8219 = vpack.c.b16 %v8186, %v8185
    %v8220 = vpack.c.b16 %v8188, %v8187
    %v8221 = vpack.c.b16 %v8190, %v8189
    %v8222 = vpack.c.b16 %v8192, %v8191
    %v8223 = vpack.c.b16 %v8194, %v8193
    %v8224 = vpack.c.b16 %v8196, %v8195
    %v8225 = vpack.c.b16 %v8198, %v8197
    %v8226 = vpack.c.b16 %v8200, %v8199
    %v8227 = vpack.c.b16 %v8202, %v8201
    %v8228 = vpack.c.b16 %v8204, %v8203
    %8253 = vmatprep.subr.bf16.mxu0 0
    %8254 = vmatpush1.bf16.msra.mxu0 %v8212
    %8255 = vmatprep.subr.bf16.mxu0 0
    %8256 = vmatpush1.bf16.msra.mxu0 %v8211
    %8257 = vmatprep.subr.bf16.mxu0 0
    %8258 = vmatpush1.bf16.msra.mxu0 %v8210
    %8259 = vmatprep.subr.bf16.mxu0 0
    %8260 = vmatpush1.bf16.msra.mxu0 %v8209
    %8261 = vmatprep.subr.bf16.mxu0 0
    %8262 = vmatpush1.bf16.msra.mxu0 %v8208
    %8263 = vmatprep.subr.bf16.mxu0 0
    %8264 = vmatpush1.bf16.msra.mxu0 %v8207
    %8265 = vmatprep.subr.bf16.mxu0 0
    %8266 = vmatpush1.bf16.msra.mxu0 %v8206
    %8267 = vmatprep.subr.bf16.mxu0 0
    %8268 = vmatpush1.bf16.msra.mxu0 %v8205
    %8269 = vmatprep.subr.bf16.mxu0 0
    %8270 = vmatpush2.bf16.msra.mxu0 %v8220
    %8271 = vmatprep.subr.bf16.mxu0 0
    %8272 = vmatpush2.bf16.msra.mxu0 %v8219
    %8273 = vmatprep.subr.bf16.mxu0 0
    %8274 = vmatpush2.bf16.msra.mxu0 %v8218
    %8275 = vmatprep.subr.bf16.mxu0 0
    %8276 = vmatpush2.bf16.msra.mxu0 %v8217
    %8277 = vmatprep.subr.bf16.mxu0 0
    %8278 = vmatpush2.bf16.msra.mxu0 %v8216
    %8279 = vmatprep.subr.bf16.mxu0 0
    %8280 = vmatpush2.bf16.msra.mxu0 %v8215
    %8281 = vmatprep.subr.bf16.mxu0 0
    %8282 = vmatpush2.bf16.msra.mxu0 %v8214
    %8283 = vmatprep.subr.bf16.mxu0 0
    %8284 = vmatpush2.bf16.msra.mxu0 %v8213
    %8285 = vmatprep.mubr.bf16.mxu0 %v7615
    %8286 = vmatmul.mubr.bf16.gmra.mxu0 %v7603
    %v8287 = vpop.f32.mrf.mxu0
    %v8288 = vadd.f32 0.0, %v8287
    %v8289 = vpop.f32.mrf.mxu0
    %v8290 = vpop.f32.mrf.mxu0
    %v8291 = vadd.f32 0.0, %v8290
    %v8292 = vpop.f32.mrf.mxu0
    %8293 = vmatprep.mubr.bf16.mxu0 %v7627
    %8294 = vmatmul.mubr.bf16.gmra.mxu0 %v7615
    %v8295 = vpop.f32.mrf.mxu0
    %v8296 = vadd.f32 0.0, %v8295
    %v8297 = vpop.f32.mrf.mxu0
    %v8298 = vpop.f32.mrf.mxu0
    %v8299 = vadd.f32 0.0, %v8298
    %v8300 = vpop.f32.mrf.mxu0
    %8301 = vmatprep.mubr.bf16.mxu0 %v7639
    %8302 = vmatmul.mubr.bf16.gmra.mxu0 %v7627
    %v8303 = vpop.f32.mrf.mxu0
    %v8304 = vadd.f32 0.0, %v8303
    %v8305 = vpop.f32.mrf.mxu0
    %v8306 = vpop.f32.mrf.mxu0
    %v8307 = vadd.f32 0.0, %v8306
    %v8308 = vpop.f32.mrf.mxu0
    %8309 = vmatprep.mubr.bf16.mxu0 %v7651
    %8310 = vmatmul.mubr.bf16.gmra.mxu0 %v7639
    %v8311 = vpop.f32.mrf.mxu0
    %v8312 = vadd.f32 0.0, %v8311
    %v8313 = vpop.f32.mrf.mxu0
    %v8314 = vpop.f32.mrf.mxu0
    %v8315 = vadd.f32 0.0, %v8314
    %v8316 = vpop.f32.mrf.mxu0
    %8317 = vmatprep.mubr.bf16.mxu0 %v7663
    %8318 = vmatmul.mubr.bf16.gmra.mxu0 %v7651
    %v8319 = vpop.f32.mrf.mxu0
    %v8320 = vadd.f32 0.0, %v8319
    %v8321 = vpop.f32.mrf.mxu0
    %v8322 = vpop.f32.mrf.mxu0
    %v8323 = vadd.f32 0.0, %v8322
    %v8324 = vpop.f32.mrf.mxu0
    %8325 = vmatprep.mubr.bf16.mxu0 %v7675
    %8326 = vmatmul.mubr.bf16.gmra.mxu0 %v7663
    %v8327 = vpop.f32.mrf.mxu0
    %v8328 = vadd.f32 0.0, %v8327
    %v8329 = vpop.f32.mrf.mxu0
    %v8330 = vpop.f32.mrf.mxu0
    %v8331 = vadd.f32 0.0, %v8330
    %v8332 = vpop.f32.mrf.mxu0
    %8333 = vmatprep.mubr.bf16.mxu0 %v7687
    %8334 = vmatmul.mubr.bf16.gmra.mxu0 %v7675
    %v8335 = vpop.f32.mrf.mxu0
    %v8336 = vadd.f32 0.0, %v8335
    %v8337 = vpop.f32.mrf.mxu0
    %v8338 = vpop.f32.mrf.mxu0
    %v8339 = vadd.f32 0.0, %v8338
    %v8340 = vpop.f32.mrf.mxu0
    %8341 = vmatprep.mubr.bf16.mxu0 %v7699
    %8342 = vmatmul.mubr.bf16.gmra.mxu0 %v7687
    %v8343 = vpop.f32.mrf.mxu0
    %v8344 = vadd.f32 0.0, %v8343
    %v8345 = vpop.f32.mrf.mxu0
    %v8346 = vpop.f32.mrf.mxu0
    %v8347 = vadd.f32 0.0, %v8346
    %v8348 = vpop.f32.mrf.mxu0
    %8349 = vmatprep.mubr.bf16.mxu0 %v7711
    %8350 = vmatmul.mubr.bf16.gmra.mxu0 %v7699
    %v8351 = vpop.f32.mrf.mxu0
    %v8352 = vadd.f32 0.0, %v8351
    %v8353 = vpop.f32.mrf.mxu0
    %v8354 = vpop.f32.mrf.mxu0
    %v8355 = vadd.f32 0.0, %v8354
    %v8356 = vpop.f32.mrf.mxu0
    %8357 = vmatprep.mubr.bf16.mxu0 %v7723
    %8358 = vmatmul.mubr.bf16.gmra.mxu0 %v7711
    %v8359 = vpop.f32.mrf.mxu0
    %v8360 = vadd.f32 0.0, %v8359
    %v8361 = vpop.f32.mrf.mxu0
    %v8362 = vpop.f32.mrf.mxu0
    %v8363 = vadd.f32 0.0, %v8362
    %v8364 = vpop.f32.mrf.mxu0
    %8365 = vmatprep.mubr.bf16.mxu0 %v7735
    %8366 = vmatmul.mubr.bf16.gmra.mxu0 %v7723
    %v8367 = vpop.f32.mrf.mxu0
    %v8368 = vadd.f32 0.0, %v8367
    %v8369 = vpop.f32.mrf.mxu0
    %v8370 = vpop.f32.mrf.mxu0
    %v8371 = vadd.f32 0.0, %v8370
    %v8372 = vpop.f32.mrf.mxu0
    %8373 = vmatprep.mubr.bf16.mxu0 %v7747
    %8374 = vmatmul.mubr.bf16.gmra.mxu0 %v7735
    %v8375 = vpop.f32.mrf.mxu0
    %v8376 = vadd.f32 0.0, %v8375
    %v8377 = vpop.f32.mrf.mxu0
    %v8378 = vpop.f32.mrf.mxu0
    %v8379 = vadd.f32 0.0, %v8378
    %v8380 = vpop.f32.mrf.mxu0
    %8381 = vmatprep.mubr.bf16.mxu0 %v7759
    %8382 = vmatmul.mubr.bf16.gmra.mxu0 %v7747
    %v8383 = vpop.f32.mrf.mxu0
    %v8384 = vadd.f32 0.0, %v8383
    %v8385 = vpop.f32.mrf.mxu0
    %v8386 = vpop.f32.mrf.mxu0
    %v8387 = vadd.f32 0.0, %v8386
    %v8388 = vpop.f32.mrf.mxu0
    %8389 = vmatprep.mubr.bf16.mxu0 %v7771
    %8390 = vmatmul.mubr.bf16.gmra.mxu0 %v7759
    %v8391 = vpop.f32.mrf.mxu0
    %v8392 = vadd.f32 0.0, %v8391
    %v8393 = vpop.f32.mrf.mxu0
    %v8394 = vpop.f32.mrf.mxu0
    %v8395 = vadd.f32 0.0, %v8394
    %v8396 = vpop.f32.mrf.mxu0
    %8397 = vmatprep.mubr.bf16.mxu0 %v7783
    %8398 = vmatmul.mubr.bf16.gmra.mxu0 %v7771
    %v8399 = vpop.f32.mrf.mxu0
    %v8400 = vadd.f32 0.0, %v8399
    %v8401 = vpop.f32.mrf.mxu0
    %v8402 = vpop.f32.mrf.mxu0
    %v8403 = vadd.f32 0.0, %v8402
    %v8404 = vpop.f32.mrf.mxu0
    %8405 = vmatprep.mubr.bf16.mxu0 %v7795
    %8406 = vmatmul.mubr.bf16.gmra.mxu0 %v7783
    %v8407 = vpop.f32.mrf.mxu0
    %v8408 = vadd.f32 0.0, %v8407
    %v8409 = vpop.f32.mrf.mxu0
    %v8410 = vpop.f32.mrf.mxu0
    %v8411 = vadd.f32 0.0, %v8410
    %v8412 = vpop.f32.mrf.mxu0
    %8413 = vmatprep.mubr.bf16.mxu0 %v7831
    %8414 = vmatmul.mubr.bf16.gmra.mxu0 %v7819
    %v8415 = vpop.f32.mrf.mxu0
    %v8416 = vadd.f32 0.0, %v8415
    %v8417 = vpop.f32.mrf.mxu0
    %v8418 = vpop.f32.mrf.mxu0
    %v8419 = vadd.f32 0.0, %v8418
    %v8420 = vpop.f32.mrf.mxu0
    %8421 = vmatprep.mubr.bf16.mxu0 %v7843
    %8422 = vmatmul.mubr.bf16.gmra.mxu0 %v7831
    %v8423 = vpop.f32.mrf.mxu0
    %v8424 = vadd.f32 0.0, %v8423
    %v8425 = vpop.f32.mrf.mxu0
    %v8426 = vpop.f32.mrf.mxu0
    %v8427 = vadd.f32 0.0, %v8426
    %v8428 = vpop.f32.mrf.mxu0
    %8429 = vmatprep.mubr.bf16.mxu0 %v7855
    %8430 = vmatmul.mubr.bf16.gmra.mxu0 %v7843
    %v8431 = vpop.f32.mrf.mxu0
    %v8432 = vadd.f32 0.0, %v8431
    %v8433 = vpop.f32.mrf.mxu0
    %v8434 = vpop.f32.mrf.mxu0
    %v8435 = vadd.f32 0.0, %v8434
    %v8436 = vpop.f32.mrf.mxu0
    %8437 = vmatprep.mubr.bf16.mxu0 %v7867
    %8438 = vmatmul.mubr.bf16.gmra.mxu0 %v7855
    %v8439 = vpop.f32.mrf.mxu0
    %v8440 = vadd.f32 0.0, %v8439
    %v8441 = vpop.f32.mrf.mxu0
    %v8442 = vpop.f32.mrf.mxu0
    %v8443 = vadd.f32 0.0, %v8442
    %v8444 = vpop.f32.mrf.mxu0
    %8445 = vmatprep.mubr.bf16.mxu0 %v7879
    %8446 = vmatmul.mubr.bf16.gmra.mxu0 %v7867
    %v8447 = vpop.f32.mrf.mxu0
    %v8448 = vadd.f32 0.0, %v8447
    %v8449 = vpop.f32.mrf.mxu0
    %v8450 = vpop.f32.mrf.mxu0
    %v8451 = vadd.f32 0.0, %v8450
    %v8452 = vpop.f32.mrf.mxu0
    %8453 = vmatprep.mubr.bf16.mxu0 %v7891
    %8454 = vmatmul.mubr.bf16.gmra.mxu0 %v7879
    %v8455 = vpop.f32.mrf.mxu0
    %v8456 = vadd.f32 0.0, %v8455
    %v8457 = vpop.f32.mrf.mxu0
    %v8458 = vpop.f32.mrf.mxu0
    %v8459 = vadd.f32 0.0, %v8458
    %v8460 = vpop.f32.mrf.mxu0
    %8461 = vmatprep.mubr.bf16.mxu0 %v7903
    %8462 = vmatmul.mubr.bf16.gmra.mxu0 %v7891
    %v8463 = vpop.f32.mrf.mxu0
    %v8464 = vadd.f32 0.0, %v8463
    %v8465 = vpop.f32.mrf.mxu0
    %v8466 = vpop.f32.mrf.mxu0
    %v8467 = vadd.f32 0.0, %v8466
    %v8468 = vpop.f32.mrf.mxu0
    %8469 = vmatprep.mubr.bf16.mxu0 %v7915
    %8470 = vmatmul.mubr.bf16.gmra.mxu0 %v7903
    %v8471 = vpop.f32.mrf.mxu0
    %v8472 = vadd.f32 0.0, %v8471
    %v8473 = vpop.f32.mrf.mxu0
    %v8474 = vpop.f32.mrf.mxu0
    %v8475 = vadd.f32 0.0, %v8474
    %v8476 = vpop.f32.mrf.mxu0
    %8477 = vmatprep.mubr.bf16.mxu0 %v7927
    %8478 = vmatmul.mubr.bf16.gmra.mxu0 %v7915
    %v8479 = vpop.f32.mrf.mxu0
    %v8480 = vadd.f32 0.0, %v8479
    %v8481 = vpop.f32.mrf.mxu0
    %v8482 = vpop.f32.mrf.mxu0
    %v8483 = vadd.f32 0.0, %v8482
    %v8484 = vpop.f32.mrf.mxu0
    %8485 = vmatprep.mubr.bf16.mxu0 %v7939
    %8486 = vmatmul.mubr.bf16.gmra.mxu0 %v7927
    %v8487 = vpop.f32.mrf.mxu0
    %v8488 = vadd.f32 0.0, %v8487
    %v8489 = vpop.f32.mrf.mxu0
    %v8490 = vpop.f32.mrf.mxu0
    %v8491 = vadd.f32 0.0, %v8490
    %v8492 = vpop.f32.mrf.mxu0
    %8493 = vmatprep.mubr.bf16.mxu0 %v7951
    %8494 = vmatmul.mubr.bf16.gmra.mxu0 %v7939
    %v8495 = vpop.f32.mrf.mxu0
    %v8496 = vadd.f32 0.0, %v8495
    %v8497 = vpop.f32.mrf.mxu0
    %v8498 = vpop.f32.mrf.mxu0
    %v8499 = vadd.f32 0.0, %v8498
    %v8500 = vpop.f32.mrf.mxu0
    %8501 = vmatprep.mubr.bf16.mxu0 %v7963
    %8502 = vmatmul.mubr.bf16.gmra.mxu0 %v7951
    %v8503 = vpop.f32.mrf.mxu0
    %v8504 = vadd.f32 0.0, %v8503
    %v8505 = vpop.f32.mrf.mxu0
    %v8506 = vpop.f32.mrf.mxu0
    %v8507 = vadd.f32 0.0, %v8506
    %v8508 = vpop.f32.mrf.mxu0
    %8509 = vmatprep.mubr.bf16.mxu0 %v7975
    %8510 = vmatmul.mubr.bf16.gmra.mxu0 %v7963
    %v8511 = vpop.f32.mrf.mxu0
    %v8512 = vadd.f32 0.0, %v8511
    %v8513 = vpop.f32.mrf.mxu0
    %v8514 = vpop.f32.mrf.mxu0
    %v8515 = vadd.f32 0.0, %v8514
    %v8516 = vpop.f32.mrf.mxu0
    %8517 = vmatprep.mubr.bf16.mxu0 %v7987
    %8518 = vmatmul.mubr.bf16.gmra.mxu0 %v7975
    %v8519 = vpop.f32.mrf.mxu0
    %v8520 = vadd.f32 0.0, %v8519
    %v8521 = vpop.f32.mrf.mxu0
    %v8522 = vpop.f32.mrf.mxu0
    %v8523 = vadd.f32 0.0, %v8522
    %v8524 = vpop.f32.mrf.mxu0
    %8525 = vmatprep.mubr.bf16.mxu0 %v7999
    %8526 = vmatmul.mubr.bf16.gmra.mxu0 %v7987
    %v8527 = vpop.f32.mrf.mxu0
    %v8528 = vadd.f32 0.0, %v8527
    %v8529 = vpop.f32.mrf.mxu0
    %v8530 = vpop.f32.mrf.mxu0
    %v8531 = vadd.f32 0.0, %v8530
    %v8532 = vpop.f32.mrf.mxu0
    %8533 = vmatprep.mubr.bf16.mxu0 %v8011
    %8534 = vmatmul.mubr.bf16.gmra.mxu0 %v7999
    %v8535 = vpop.f32.mrf.mxu0
    %v8536 = vadd.f32 0.0, %v8535
    %v8537 = vpop.f32.mrf.mxu0
    %v8538 = vpop.f32.mrf.mxu0
    %v8539 = vadd.f32 0.0, %v8538
    %v8540 = vpop.f32.mrf.mxu0
    %8541 = vdwg.mxu0
    %8542 = vmatprep.subr.bf16.mxu0 0
    %8543 = vmatpush1.bf16.msra.mxu0 %v8228
    %8544 = vmatprep.subr.bf16.mxu0 0
    %8545 = vmatpush1.bf16.msra.mxu0 %v8227
    %8546 = vmatprep.subr.bf16.mxu0 0
    %8547 = vmatpush1.bf16.msra.mxu0 %v8226
    %8548 = vmatprep.subr.bf16.mxu0 0
    %8549 = vmatpush1.bf16.msra.mxu0 %v8225
    %8550 = vmatprep.subr.bf16.mxu0 0
    %8551 = vmatpush1.bf16.msra.mxu0 %v8224
    %8552 = vmatprep.subr.bf16.mxu0 0
    %8553 = vmatpush1.bf16.msra.mxu0 %v8223
    %8554 = vmatprep.subr.bf16.mxu0 0
    %8555 = vmatpush1.bf16.msra.mxu0 %v8222
    %8556 = vmatprep.subr.bf16.mxu0 0
    %8557 = vmatpush1.bf16.msra.mxu0 %v8221
    %8558 = vmatprep.subr.bf16.mxu0 0
    %8559 = vmatpush2.bf16.msra.mxu0 0
    %8560 = vmatprep.subr.bf16.mxu0 0
    %8561 = vmatpush2.bf16.msra.mxu0 0
    %8562 = vmatprep.subr.bf16.mxu0 0
    %8563 = vmatpush2.bf16.msra.mxu0 0
    %8564 = vmatprep.subr.bf16.mxu0 0
    %8565 = vmatpush2.bf16.msra.mxu0 0
    %8566 = vmatprep.subr.bf16.mxu0 0
    %8567 = vmatpush2.bf16.msra.mxu0 0
    %8568 = vmatprep.subr.bf16.mxu0 0
    %8569 = vmatpush2.bf16.msra.mxu0 0
    %8570 = vmatprep.subr.bf16.mxu0 0
    %8571 = vmatpush2.bf16.msra.mxu0 0
    %8572 = vmatprep.subr.bf16.mxu0 0
    %8573 = vmatpush2.bf16.msra.mxu0 0
    %8574 = vmatprep.mubr.bf16.mxu0 0
    %8575 = vmatmul.mubr.bf16.gmra.mxu0 %v7627
    %v8576 = vpop.f32.mrf.mxu0
    %v8577 = vadd.f32 %v8288, %v8576
    %v8578 = vpop.f32.mrf.mxu0
    %v8579 = vpop.f32.mrf.mxu0
    %v8580 = vadd.f32 %v8291, %v8579
    %v8581 = vpop.f32.mrf.mxu0
    %8582 = vmatprep.mubr.bf16.mxu0 0
    %8583 = vmatmul.mubr.bf16.gmra.mxu0 %v7639
    %v8584 = vpop.f32.mrf.mxu0
    %v8585 = vadd.f32 %v8296, %v8584
    %v8586 = vpop.f32.mrf.mxu0
    %v8587 = vpop.f32.mrf.mxu0
    %v8588 = vadd.f32 %v8299, %v8587
    %v8589 = vpop.f32.mrf.mxu0
    %8590 = vmatprep.mubr.bf16.mxu0 0
    %8591 = vmatmul.mubr.bf16.gmra.mxu0 %v7651
    %v8592 = vpop.f32.mrf.mxu0
    %v8593 = vadd.f32 %v8304, %v8592
    %v8594 = vpop.f32.mrf.mxu0
    %v8595 = vpop.f32.mrf.mxu0
    %v8596 = vadd.f32 %v8307, %v8595
    %v8597 = vpop.f32.mrf.mxu0
    %8598 = vmatprep.mubr.bf16.mxu0 0
    %8599 = vmatmul.mubr.bf16.gmra.mxu0 %v7663
    %v8600 = vpop.f32.mrf.mxu0
    %v8601 = vadd.f32 %v8312, %v8600
    %v8602 = vpop.f32.mrf.mxu0
    %v8603 = vpop.f32.mrf.mxu0
    %v8604 = vadd.f32 %v8315, %v8603
    %v8605 = vpop.f32.mrf.mxu0
    %8606 = vmatprep.mubr.bf16.mxu0 0
    %8607 = vmatmul.mubr.bf16.gmra.mxu0 %v7675
    %v8608 = vpop.f32.mrf.mxu0
    %v8609 = vadd.f32 %v8320, %v8608
    %v8610 = vpop.f32.mrf.mxu0
    %v8611 = vpop.f32.mrf.mxu0
    %v8612 = vadd.f32 %v8323, %v8611
    %v8613 = vpop.f32.mrf.mxu0
    %8614 = vmatprep.mubr.bf16.mxu0 0
    %8615 = vmatmul.mubr.bf16.gmra.mxu0 %v7687
    %v8616 = vpop.f32.mrf.mxu0
    %v8617 = vadd.f32 %v8328, %v8616
    %v8618 = vpop.f32.mrf.mxu0
    %v8619 = vpop.f32.mrf.mxu0
    %v8620 = vadd.f32 %v8331, %v8619
    %v8621 = vpop.f32.mrf.mxu0
    %8622 = vmatprep.mubr.bf16.mxu0 0
    %8623 = vmatmul.mubr.bf16.gmra.mxu0 %v7699
    %v8624 = vpop.f32.mrf.mxu0
    %v8625 = vadd.f32 %v8336, %v8624
    %v8626 = vpop.f32.mrf.mxu0
    %v8627 = vpop.f32.mrf.mxu0
    %v8628 = vadd.f32 %v8339, %v8627
    %v8629 = vpop.f32.mrf.mxu0
    %8630 = vmatprep.mubr.bf16.mxu0 0
    %8631 = vmatmul.mubr.bf16.gmra.mxu0 %v7711
    %v8632 = vpop.f32.mrf.mxu0
    %v8633 = vadd.f32 %v8344, %v8632
    %v8634 = vpop.f32.mrf.mxu0
    %v8635 = vpop.f32.mrf.mxu0
    %v8636 = vadd.f32 %v8347, %v8635
    %v8637 = vpop.f32.mrf.mxu0
    %8638 = vmatprep.mubr.bf16.mxu0 0
    %8639 = vmatmul.mubr.bf16.gmra.mxu0 %v7723
    %v8640 = vpop.f32.mrf.mxu0
    %v8641 = vadd.f32 %v8352, %v8640
    %v8642 = vpop.f32.mrf.mxu0
    %v8643 = vpop.f32.mrf.mxu0
    %v8644 = vadd.f32 %v8355, %v8643
    %v8645 = vpop.f32.mrf.mxu0
    %8646 = vmatprep.mubr.bf16.mxu0 0
    %8647 = vmatmul.mubr.bf16.gmra.mxu0 %v7735
    %v8648 = vpop.f32.mrf.mxu0
    %v8649 = vadd.f32 %v8360, %v8648
    %v8650 = vpop.f32.mrf.mxu0
    %v8651 = vpop.f32.mrf.mxu0
    %v8652 = vadd.f32 %v8363, %v8651
    %v8653 = vpop.f32.mrf.mxu0
    %8654 = vmatprep.mubr.bf16.mxu0 0
    %8655 = vmatmul.mubr.bf16.gmra.mxu0 %v7747
    %v8656 = vpop.f32.mrf.mxu0
    %v8657 = vadd.f32 %v8368, %v8656
    %v8658 = vpop.f32.mrf.mxu0
    %v8659 = vpop.f32.mrf.mxu0
    %v8660 = vadd.f32 %v8371, %v8659
    %v8661 = vpop.f32.mrf.mxu0
    %8662 = vmatprep.mubr.bf16.mxu0 0
    %8663 = vmatmul.mubr.bf16.gmra.mxu0 %v7759
    %v8664 = vpop.f32.mrf.mxu0
    %v8665 = vadd.f32 %v8376, %v8664
    %v8666 = vpop.f32.mrf.mxu0
    %v8667 = vpop.f32.mrf.mxu0
    %v8668 = vadd.f32 %v8379, %v8667
    %v8669 = vpop.f32.mrf.mxu0
    %8670 = vmatprep.mubr.bf16.mxu0 0
    %8671 = vmatmul.mubr.bf16.gmra.mxu0 %v7771
    %v8672 = vpop.f32.mrf.mxu0
    %v8673 = vadd.f32 %v8384, %v8672
    %v8674 = vpop.f32.mrf.mxu0
    %v8675 = vpop.f32.mrf.mxu0
    %v8676 = vadd.f32 %v8387, %v8675
    %v8677 = vpop.f32.mrf.mxu0
    %8678 = vmatprep.mubr.bf16.mxu0 0
    %8679 = vmatmul.mubr.bf16.gmra.mxu0 %v7783
    %v8680 = vpop.f32.mrf.mxu0
    %v8681 = vadd.f32 %v8392, %v8680
    %v8682 = vpop.f32.mrf.mxu0
    %v8683 = vpop.f32.mrf.mxu0
    %v8684 = vadd.f32 %v8395, %v8683
    %v8685 = vpop.f32.mrf.mxu0
    %8686 = vmatprep.mubr.bf16.mxu0 0
    %8687 = vmatmul.mubr.bf16.gmra.mxu0 %v7795
    %v8688 = vpop.f32.mrf.mxu0
    %v8689 = vadd.f32 %v8400, %v8688
    %v8690 = vpop.f32.mrf.mxu0
    %v8691 = vpop.f32.mrf.mxu0
    %v8692 = vadd.f32 %v8403, %v8691
    %v8693 = vpop.f32.mrf.mxu0
    %8694 = vmatprep.mubr.bf16.mxu0 0
    %8695 = vmatmul.mubr.bf16.gmra.mxu0 %v7807
    %v8696 = vpop.f32.mrf.mxu0
    %v8697 = vadd.f32 %v8408, %v8696
    %v8698 = vpop.f32.mrf.mxu0
    %v8699 = vpop.f32.mrf.mxu0
    %v8700 = vadd.f32 %v8411, %v8699
    %v8701 = vpop.f32.mrf.mxu0
    %8702 = vmatprep.mubr.bf16.mxu0 0
    %8703 = vmatmul.mubr.bf16.gmra.mxu0 %v7843
    %v8704 = vpop.f32.mrf.mxu0
    %v8705 = vadd.f32 %v8416, %v8704
    %v8706 = vpop.f32.mrf.mxu0
    %v8707 = vpop.f32.mrf.mxu0
    %v8708 = vadd.f32 %v8419, %v8707
    %v8709 = vpop.f32.mrf.mxu0
    %8710 = vmatprep.mubr.bf16.mxu0 0
    %8711 = vmatmul.mubr.bf16.gmra.mxu0 %v7855
    %v8712 = vpop.f32.mrf.mxu0
    %v8713 = vadd.f32 %v8424, %v8712
    %v8714 = vpop.f32.mrf.mxu0
    %v8715 = vpop.f32.mrf.mxu0
    %v8716 = vadd.f32 %v8427, %v8715
    %v8717 = vpop.f32.mrf.mxu0
    %8718 = vmatprep.mubr.bf16.mxu0 0
    %8719 = vmatmul.mubr.bf16.gmra.mxu0 %v7867
    %v8720 = vpop.f32.mrf.mxu0
    %v8721 = vadd.f32 %v8432, %v8720
    %v8722 = vpop.f32.mrf.mxu0
    %v8723 = vpop.f32.mrf.mxu0
    %v8724 = vadd.f32 %v8435, %v8723
    %v8725 = vpop.f32.mrf.mxu0
    %8726 = vmatprep.mubr.bf16.mxu0 0
    %8727 = vmatmul.mubr.bf16.gmra.mxu0 %v7879
    %v8728 = vpop.f32.mrf.mxu0
    %v8729 = vadd.f32 %v8440, %v8728
    %v8730 = vpop.f32.mrf.mxu0
    %v8731 = vpop.f32.mrf.mxu0
    %v8732 = vadd.f32 %v8443, %v8731
    %v8733 = vpop.f32.mrf.mxu0
    %8734 = vmatprep.mubr.bf16.mxu0 0
    %8735 = vmatmul.mubr.bf16.gmra.mxu0 %v7891
    %v8736 = vpop.f32.mrf.mxu0
    %v8737 = vadd.f32 %v8448, %v8736
    %v8738 = vpop.f32.mrf.mxu0
    %v8739 = vpop.f32.mrf.mxu0
    %v8740 = vadd.f32 %v8451, %v8739
    %v8741 = vpop.f32.mrf.mxu0
    %8742 = vmatprep.mubr.bf16.mxu0 0
    %8743 = vmatmul.mubr.bf16.gmra.mxu0 %v7903
    %v8744 = vpop.f32.mrf.mxu0
    %v8745 = vadd.f32 %v8456, %v8744
    %v8746 = vpop.f32.mrf.mxu0
    %v8747 = vpop.f32.mrf.mxu0
    %v8748 = vadd.f32 %v8459, %v8747
    %v8749 = vpop.f32.mrf.mxu0
    %8750 = vmatprep.mubr.bf16.mxu0 0
    %8751 = vmatmul.mubr.bf16.gmra.mxu0 %v7915
    %v8752 = vpop.f32.mrf.mxu0
    %v8753 = vadd.f32 %v8464, %v8752
    %v8754 = vpop.f32.mrf.mxu0
    %v8755 = vpop.f32.mrf.mxu0
    %v8756 = vadd.f32 %v8467, %v8755
    %v8757 = vpop.f32.mrf.mxu0
    %8758 = vmatprep.mubr.bf16.mxu0 0
    %8759 = vmatmul.mubr.bf16.gmra.mxu0 %v7927
    %v8760 = vpop.f32.mrf.mxu0
    %v8761 = vadd.f32 %v8472, %v8760
    %v8762 = vpop.f32.mrf.mxu0
    %v8763 = vpop.f32.mrf.mxu0
    %v8764 = vadd.f32 %v8475, %v8763
    %v8765 = vpop.f32.mrf.mxu0
    %8766 = vmatprep.mubr.bf16.mxu0 0
    %8767 = vmatmul.mubr.bf16.gmra.mxu0 %v7939
    %v8768 = vpop.f32.mrf.mxu0
    %v8769 = vadd.f32 %v8480, %v8768
    %v8770 = vpop.f32.mrf.mxu0
    %v8771 = vpop.f32.mrf.mxu0
    %v8772 = vadd.f32 %v8483, %v8771
    %v8773 = vpop.f32.mrf.mxu0
    %8774 = vmatprep.mubr.bf16.mxu0 0
    %8775 = vmatmul.mubr.bf16.gmra.mxu0 %v7951
    %v8776 = vpop.f32.mrf.mxu0
    %v8777 = vadd.f32 %v8488, %v8776
    %v8778 = vpop.f32.mrf.mxu0
    %v8779 = vpop.f32.mrf.mxu0
    %v8780 = vadd.f32 %v8491, %v8779
    %v8781 = vpop.f32.mrf.mxu0
    %8782 = vmatprep.mubr.bf16.mxu0 0
    %8783 = vmatmul.mubr.bf16.gmra.mxu0 %v7963
    %v8784 = vpop.f32.mrf.mxu0
    %v8785 = vadd.f32 %v8496, %v8784
    %v8786 = vpop.f32.mrf.mxu0
    %v8787 = vpop.f32.mrf.mxu0
    %v8788 = vadd.f32 %v8499, %v8787
    %v8789 = vpop.f32.mrf.mxu0
    %8790 = vmatprep.mubr.bf16.mxu0 0
    %8791 = vmatmul.mubr.bf16.gmra.mxu0 %v7975
    %v8792 = vpop.f32.mrf.mxu0
    %v8793 = vadd.f32 %v8504, %v8792
    %v8794 = vpop.f32.mrf.mxu0
    %v8795 = vpop.f32.mrf.mxu0
    %v8796 = vadd.f32 %v8507, %v8795
    %v8797 = vpop.f32.mrf.mxu0
    %8798 = vmatprep.mubr.bf16.mxu0 0
    %8799 = vmatmul.mubr.bf16.gmra.mxu0 %v7987
    %v8800 = vpop.f32.mrf.mxu0
    %v8801 = vadd.f32 %v8512, %v8800
    %v8802 = vpop.f32.mrf.mxu0
    %v8803 = vpop.f32.mrf.mxu0
    %v8804 = vadd.f32 %v8515, %v8803
    %v8805 = vpop.f32.mrf.mxu0
    %8806 = vmatprep.mubr.bf16.mxu0 0
    %8807 = vmatmul.mubr.bf16.gmra.mxu0 %v7999
    %v8808 = vpop.f32.mrf.mxu0
    %v8809 = vadd.f32 %v8520, %v8808
    %v8810 = vpop.f32.mrf.mxu0
    %v8811 = vpop.f32.mrf.mxu0
    %v8812 = vadd.f32 %v8523, %v8811
    %v8813 = vpop.f32.mrf.mxu0
    %8814 = vmatprep.mubr.bf16.mxu0 0
    %8815 = vmatmul.mubr.bf16.gmra.mxu0 %v8011
    %v8816 = vpop.f32.mrf.mxu0
    %v8817 = vadd.f32 %v8528, %v8816
    %v8818 = vpop.f32.mrf.mxu0
    %v8819 = vpop.f32.mrf.mxu0
    %v8820 = vadd.f32 %v8531, %v8819
    %v8821 = vpop.f32.mrf.mxu0
    %8822 = vmatprep.mubr.bf16.mxu0 0
    %8823 = vmatmul.mubr.bf16.gmra.mxu0 %v8023
    %v8824 = vpop.f32.mrf.mxu0
    %v8825 = vadd.f32 %v8536, %v8824
    %v8826 = vpop.f32.mrf.mxu0
    %v8827 = vpop.f32.mrf.mxu0
    %v8828 = vadd.f32 %v8539, %v8827
    %v8829 = vpop.f32.mrf.mxu0
    %8830 = vdwg.mxu0
    %v8879 = vunpack.c.l.b16 %v7400
    %v8880 = vunpack.c.l.b16 %v7401
    %v8881 = vunpack.c.l.b16 %v7402
    %v8882 = vunpack.c.l.b16 %v7403
    %v8883 = vunpack.c.l.b16 %v7404
    %v8884 = vunpack.c.l.b16 %v7405
    %v8885 = vunpack.c.l.b16 %v7406
    %v8886 = vunpack.c.l.b16 %v7407
    %v8887 = vunpack.c.l.b16 %v7408
    %v8888 = vunpack.c.l.b16 %v7409
    %v8889 = vunpack.c.l.b16 %v7410
    %v8890 = vunpack.c.l.b16 %v7411
    %v8891 = vunpack.c.l.b16 %v7412
    %v8892 = vunpack.c.l.b16 %v7413
    %v8893 = vunpack.c.l.b16 %v7414
    %v8894 = vunpack.c.l.b16 %v7415
    %v8895 = vunpack.c.l.b16 %v7416
    %v8896 = vunpack.c.l.b16 %v7417
    %v8897 = vunpack.c.l.b16 %v7418
    %v8898 = vunpack.c.l.b16 %v7419
    %v8899 = vunpack.c.l.b16 %v7420
    %v8900 = vunpack.c.l.b16 %v7421
    %v8901 = vunpack.c.l.b16 %v7422
    %v8902 = vunpack.c.l.b16 %v7423
    %v8903 = vunpack.c.l.b16 %v7424
    %v8904 = vunpack.c.l.b16 %v7425
    %v8905 = vunpack.c.l.b16 %v7426
    %v8906 = vunpack.c.l.b16 %v7427
    %v8907 = vunpack.c.l.b16 %v7428
    %v8908 = vunpack.c.l.b16 %v7429
    %v8909 = vunpack.c.l.b16 %v7430
    %v8910 = vunpack.c.l.b16 %v7431
    %v8911 = vunpack.c.l.b16 %v7432
    %v8912 = vunpack.c.l.b16 %v7433
    %v8913 = vunpack.c.l.b16 %v7434
    %v8914 = vunpack.c.l.b16 %v7435
    %v8915 = vunpack.c.l.b16 %v7436
    %v8916 = vunpack.c.l.b16 %v7437
    %v8917 = vunpack.c.l.b16 %v7438
    %v8918 = vunpack.c.l.b16 %v7439
    %v8919 = vunpack.c.l.b16 %v7440
    %v8920 = vunpack.c.l.b16 %v7441
    %v8921 = vunpack.c.l.b16 %v7442
    %v8922 = vunpack.c.l.b16 %v7443
    %v8923 = vunpack.c.l.b16 %v7444
    %v8924 = vunpack.c.l.b16 %v7445
    %v8925 = vunpack.c.l.b16 %v7446
    %v8926 = vunpack.c.l.b16 %v7447
    %v8927 = vpack.c.b16 %v8880, %v8879
    %v8928 = vpack.c.b16 %v8882, %v8881
    %v8929 = vpack.c.b16 %v8884, %v8883
    %v8930 = vpack.c.b16 %v8886, %v8885
    %v8931 = vpack.c.b16 %v8888, %v8887
    %v8932 = vpack.c.b16 %v8890, %v8889
    %v8933 = vpack.c.b16 %v8892, %v8891
    %v8934 = vpack.c.b16 %v8894, %v8893
    %v8935 = vpack.c.b16 %v8896, %v8895
    %v8936 = vpack.c.b16 %v8898, %v8897
    %v8937 = vpack.c.b16 %v8900, %v8899
    %v8938 = vpack.c.b16 %v8902, %v8901
    %v8939 = vpack.c.b16 %v8904, %v8903
    %v8940 = vpack.c.b16 %v8906, %v8905
    %v8941 = vpack.c.b16 %v8908, %v8907
    %v8942 = vpack.c.b16 %v8910, %v8909
    %v8943 = vpack.c.b16 %v8912, %v8911
    %v8944 = vpack.c.b16 %v8914, %v8913
    %v8945 = vpack.c.b16 %v8916, %v8915
    %v8946 = vpack.c.b16 %v8918, %v8917
    %v8947 = vpack.c.b16 %v8920, %v8919
    %v8948 = vpack.c.b16 %v8922, %v8921
    %v8949 = vpack.c.b16 %v8924, %v8923
    %v8950 = vpack.c.b16 %v8926, %v8925
    %8975 = vmatprep.subr.bf16.mxu0 0
    %8976 = vmatpush1.bf16.msra.mxu0 %v8934
    %8977 = vmatprep.subr.bf16.mxu0 0
    %8978 = vmatpush1.bf16.msra.mxu0 %v8933
    %8979 = vmatprep.subr.bf16.mxu0 0
    %8980 = vmatpush1.bf16.msra.mxu0 %v8932
    %8981 = vmatprep.subr.bf16.mxu0 0
    %8982 = vmatpush1.bf16.msra.mxu0 %v8931
    %8983 = vmatprep.subr.bf16.mxu0 0
    %8984 = vmatpush1.bf16.msra.mxu0 %v8930
    %8985 = vmatprep.subr.bf16.mxu0 0
    %8986 = vmatpush1.bf16.msra.mxu0 %v8929
    %8987 = vmatprep.subr.bf16.mxu0 0
    %8988 = vmatpush1.bf16.msra.mxu0 %v8928
    %8989 = vmatprep.subr.bf16.mxu0 0
    %8990 = vmatpush1.bf16.msra.mxu0 %v8927
    %8991 = vmatprep.subr.bf16.mxu0 0
    %8992 = vmatpush2.bf16.msra.mxu0 %v8942
    %8993 = vmatprep.subr.bf16.mxu0 0
    %8994 = vmatpush2.bf16.msra.mxu0 %v8941
    %8995 = vmatprep.subr.bf16.mxu0 0
    %8996 = vmatpush2.bf16.msra.mxu0 %v8940
    %8997 = vmatprep.subr.bf16.mxu0 0
    %8998 = vmatpush2.bf16.msra.mxu0 %v8939
    %8999 = vmatprep.subr.bf16.mxu0 0
    %9000 = vmatpush2.bf16.msra.mxu0 %v8938
    %9001 = vmatprep.subr.bf16.mxu0 0
    %9002 = vmatpush2.bf16.msra.mxu0 %v8937
    %9003 = vmatprep.subr.bf16.mxu0 0
    %9004 = vmatpush2.bf16.msra.mxu0 %v8936
    %9005 = vmatprep.subr.bf16.mxu0 0
    %9006 = vmatpush2.bf16.msra.mxu0 %v8935
    %9007 = vmatprep.mubr.bf16.mxu0 %v7313
    %9008 = vmatmul.mubr.bf16.gmra.mxu0 %v7312
    %v9009 = vpop.f32.mrf.mxu0
    %v9010 = vadd.f32 %v8577, %v9009
    %v9011 = vpop.f32.mrf.mxu0
    %v9012 = vpop.f32.mrf.mxu0
    %v9013 = vadd.f32 %v8580, %v9012
    %v9014 = vpop.f32.mrf.mxu0
    %9015 = vmatprep.mubr.bf16.mxu0 %v7314
    %9016 = vmatmul.mubr.bf16.gmra.mxu0 %v7313
    %v9017 = vpop.f32.mrf.mxu0
    %v9018 = vadd.f32 %v8585, %v9017
    %v9019 = vpop.f32.mrf.mxu0
    %v9020 = vpop.f32.mrf.mxu0
    %v9021 = vadd.f32 %v8588, %v9020
    %v9022 = vpop.f32.mrf.mxu0
    %9023 = vmatprep.mubr.bf16.mxu0 %v7315
    %9024 = vmatmul.mubr.bf16.gmra.mxu0 %v7314
    %v9025 = vpop.f32.mrf.mxu0
    %v9026 = vadd.f32 %v8593, %v9025
    %v9027 = vpop.f32.mrf.mxu0
    %v9028 = vpop.f32.mrf.mxu0
    %v9029 = vadd.f32 %v8596, %v9028
    %v9030 = vpop.f32.mrf.mxu0
    %9031 = vmatprep.mubr.bf16.mxu0 %v7316
    %9032 = vmatmul.mubr.bf16.gmra.mxu0 %v7315
    %v9033 = vpop.f32.mrf.mxu0
    %v9034 = vadd.f32 %v8601, %v9033
    %v9035 = vpop.f32.mrf.mxu0
    %v9036 = vpop.f32.mrf.mxu0
    %v9037 = vadd.f32 %v8604, %v9036
    %v9038 = vpop.f32.mrf.mxu0
    %9039 = vmatprep.mubr.bf16.mxu0 %v7317
    %9040 = vmatmul.mubr.bf16.gmra.mxu0 %v7316
    %v9041 = vpop.f32.mrf.mxu0
    %v9042 = vadd.f32 %v8609, %v9041
    %v9043 = vpop.f32.mrf.mxu0
    %v9044 = vpop.f32.mrf.mxu0
    %v9045 = vadd.f32 %v8612, %v9044
    %v9046 = vpop.f32.mrf.mxu0
    %9047 = vmatprep.mubr.bf16.mxu0 %v7318
    %9048 = vmatmul.mubr.bf16.gmra.mxu0 %v7317
    %v9049 = vpop.f32.mrf.mxu0
    %v9050 = vadd.f32 %v8617, %v9049
    %v9051 = vpop.f32.mrf.mxu0
    %v9052 = vpop.f32.mrf.mxu0
    %v9053 = vadd.f32 %v8620, %v9052
    %v9054 = vpop.f32.mrf.mxu0
    %9055 = vmatprep.mubr.bf16.mxu0 %v7319
    %9056 = vmatmul.mubr.bf16.gmra.mxu0 %v7318
    %v9057 = vpop.f32.mrf.mxu0
    %v9058 = vadd.f32 %v8625, %v9057
    %v9059 = vpop.f32.mrf.mxu0
    %v9060 = vpop.f32.mrf.mxu0
    %v9061 = vadd.f32 %v8628, %v9060
    %v9062 = vpop.f32.mrf.mxu0
    %9063 = vmatprep.mubr.bf16.mxu0 %v7320
    %9064 = vmatmul.mubr.bf16.gmra.mxu0 %v7319
    %v9065 = vpop.f32.mrf.mxu0
    %v9066 = vadd.f32 %v8633, %v9065
    %v9067 = vpop.f32.mrf.mxu0
    %v9068 = vpop.f32.mrf.mxu0
    %v9069 = vadd.f32 %v8636, %v9068
    %v9070 = vpop.f32.mrf.mxu0
    %9071 = vmatprep.mubr.bf16.mxu0 %v7321
    %9072 = vmatmul.mubr.bf16.gmra.mxu0 %v7320
    %v9073 = vpop.f32.mrf.mxu0
    %v9074 = vadd.f32 %v8641, %v9073
    %v9075 = vpop.f32.mrf.mxu0
    %v9076 = vpop.f32.mrf.mxu0
    %v9077 = vadd.f32 %v8644, %v9076
    %v9078 = vpop.f32.mrf.mxu0
    %9079 = vmatprep.mubr.bf16.mxu0 %v7322
    %9080 = vmatmul.mubr.bf16.gmra.mxu0 %v7321
    %v9081 = vpop.f32.mrf.mxu0
    %v9082 = vadd.f32 %v8649, %v9081
    %v9083 = vpop.f32.mrf.mxu0
    %v9084 = vpop.f32.mrf.mxu0
    %v9085 = vadd.f32 %v8652, %v9084
    %v9086 = vpop.f32.mrf.mxu0
    %9087 = vmatprep.mubr.bf16.mxu0 %v7323
    %9088 = vmatmul.mubr.bf16.gmra.mxu0 %v7322
    %v9089 = vpop.f32.mrf.mxu0
    %v9090 = vadd.f32 %v8657, %v9089
    %v9091 = vpop.f32.mrf.mxu0
    %v9092 = vpop.f32.mrf.mxu0
    %v9093 = vadd.f32 %v8660, %v9092
    %v9094 = vpop.f32.mrf.mxu0
    %9095 = vmatprep.mubr.bf16.mxu0 %v7324
    %9096 = vmatmul.mubr.bf16.gmra.mxu0 %v7323
    %v9097 = vpop.f32.mrf.mxu0
    %v9098 = vadd.f32 %v8665, %v9097
    %v9099 = vpop.f32.mrf.mxu0
    %v9100 = vpop.f32.mrf.mxu0
    %v9101 = vadd.f32 %v8668, %v9100
    %v9102 = vpop.f32.mrf.mxu0
    %9103 = vmatprep.mubr.bf16.mxu0 %v7325
    %9104 = vmatmul.mubr.bf16.gmra.mxu0 %v7324
    %v9105 = vpop.f32.mrf.mxu0
    %v9106 = vadd.f32 %v8673, %v9105
    %v9107 = vpop.f32.mrf.mxu0
    %v9108 = vpop.f32.mrf.mxu0
    %v9109 = vadd.f32 %v8676, %v9108
    %v9110 = vpop.f32.mrf.mxu0
    %9111 = vmatprep.mubr.bf16.mxu0 %v7326
    %9112 = vmatmul.mubr.bf16.gmra.mxu0 %v7325
    %v9113 = vpop.f32.mrf.mxu0
    %v9114 = vadd.f32 %v8681, %v9113
    %v9115 = vpop.f32.mrf.mxu0
    %v9116 = vpop.f32.mrf.mxu0
    %v9117 = vadd.f32 %v8684, %v9116
    %v9118 = vpop.f32.mrf.mxu0
    %9119 = vmatprep.mubr.bf16.mxu0 %v7327
    %9120 = vmatmul.mubr.bf16.gmra.mxu0 %v7326
    %v9121 = vpop.f32.mrf.mxu0
    %v9122 = vadd.f32 %v8689, %v9121
    %v9123 = vpop.f32.mrf.mxu0
    %v9124 = vpop.f32.mrf.mxu0
    %v9125 = vadd.f32 %v8692, %v9124
    %v9126 = vpop.f32.mrf.mxu0
    %9127 = vmatprep.mubr.bf16.mxu0 %v7384
    %9128 = vmatmul.mubr.bf16.gmra.mxu0 %v7327
    %v9129 = vpop.f32.mrf.mxu0
    %v9130 = vadd.f32 %v8697, %v9129
    %v9131 = vpop.f32.mrf.mxu0
    %v9132 = vpop.f32.mrf.mxu0
    %v9133 = vadd.f32 %v8700, %v9132
    %v9134 = vpop.f32.mrf.mxu0
    %9135 = vmatprep.mubr.bf16.mxu0 %v7329
    %9136 = vmatmul.mubr.bf16.gmra.mxu0 %v7328
    %v9137 = vpop.f32.mrf.mxu0
    %v9138 = vadd.f32 %v8705, %v9137
    %v9139 = vpop.f32.mrf.mxu0
    %v9140 = vpop.f32.mrf.mxu0
    %v9141 = vadd.f32 %v8708, %v9140
    %v9142 = vpop.f32.mrf.mxu0
    %9143 = vmatprep.mubr.bf16.mxu0 %v7330
    %9144 = vmatmul.mubr.bf16.gmra.mxu0 %v7329
    %v9145 = vpop.f32.mrf.mxu0
    %v9146 = vadd.f32 %v8713, %v9145
    %v9147 = vpop.f32.mrf.mxu0
    %v9148 = vpop.f32.mrf.mxu0
    %v9149 = vadd.f32 %v8716, %v9148
    %v9150 = vpop.f32.mrf.mxu0
    %9151 = vmatprep.mubr.bf16.mxu0 %v7331
    %9152 = vmatmul.mubr.bf16.gmra.mxu0 %v7330
    %v9153 = vpop.f32.mrf.mxu0
    %v9154 = vadd.f32 %v8721, %v9153
    %v9155 = vpop.f32.mrf.mxu0
    %v9156 = vpop.f32.mrf.mxu0
    %v9157 = vadd.f32 %v8724, %v9156
    %v9158 = vpop.f32.mrf.mxu0
    %9159 = vmatprep.mubr.bf16.mxu0 %v7332
    %9160 = vmatmul.mubr.bf16.gmra.mxu0 %v7331
    %v9161 = vpop.f32.mrf.mxu0
    %v9162 = vadd.f32 %v8729, %v9161
    %v9163 = vpop.f32.mrf.mxu0
    %v9164 = vpop.f32.mrf.mxu0
    %v9165 = vadd.f32 %v8732, %v9164
    %v9166 = vpop.f32.mrf.mxu0
    %9167 = vmatprep.mubr.bf16.mxu0 %v7333
    %9168 = vmatmul.mubr.bf16.gmra.mxu0 %v7332
    %v9169 = vpop.f32.mrf.mxu0
    %v9170 = vadd.f32 %v8737, %v9169
    %v9171 = vpop.f32.mrf.mxu0
    %v9172 = vpop.f32.mrf.mxu0
    %v9173 = vadd.f32 %v8740, %v9172
    %v9174 = vpop.f32.mrf.mxu0
    %9175 = vmatprep.mubr.bf16.mxu0 %v7334
    %9176 = vmatmul.mubr.bf16.gmra.mxu0 %v7333
    %v9177 = vpop.f32.mrf.mxu0
    %v9178 = vadd.f32 %v8745, %v9177
    %v9179 = vpop.f32.mrf.mxu0
    %v9180 = vpop.f32.mrf.mxu0
    %v9181 = vadd.f32 %v8748, %v9180
    %v9182 = vpop.f32.mrf.mxu0
    %9183 = vmatprep.mubr.bf16.mxu0 %v7335
    %9184 = vmatmul.mubr.bf16.gmra.mxu0 %v7334
    %v9185 = vpop.f32.mrf.mxu0
    %v9186 = vadd.f32 %v8753, %v9185
    %v9187 = vpop.f32.mrf.mxu0
    %v9188 = vpop.f32.mrf.mxu0
    %v9189 = vadd.f32 %v8756, %v9188
    %v9190 = vpop.f32.mrf.mxu0
    %9191 = vmatprep.mubr.bf16.mxu0 %v7336
    %9192 = vmatmul.mubr.bf16.gmra.mxu0 %v7335
    %v9193 = vpop.f32.mrf.mxu0
    %v9194 = vadd.f32 %v8761, %v9193
    %v9195 = vpop.f32.mrf.mxu0
    %v9196 = vpop.f32.mrf.mxu0
    %v9197 = vadd.f32 %v8764, %v9196
    %v9198 = vpop.f32.mrf.mxu0
    %9199 = vmatprep.mubr.bf16.mxu0 %v7337
    %9200 = vmatmul.mubr.bf16.gmra.mxu0 %v7336
    %v9201 = vpop.f32.mrf.mxu0
    %v9202 = vadd.f32 %v8769, %v9201
    %v9203 = vpop.f32.mrf.mxu0
    %v9204 = vpop.f32.mrf.mxu0
    %v9205 = vadd.f32 %v8772, %v9204
    %v9206 = vpop.f32.mrf.mxu0
    %9207 = vmatprep.mubr.bf16.mxu0 %v7338
    %9208 = vmatmul.mubr.bf16.gmra.mxu0 %v7337
    %v9209 = vpop.f32.mrf.mxu0
    %v9210 = vadd.f32 %v8777, %v9209
    %v9211 = vpop.f32.mrf.mxu0
    %v9212 = vpop.f32.mrf.mxu0
    %v9213 = vadd.f32 %v8780, %v9212
    %v9214 = vpop.f32.mrf.mxu0
    %9215 = vmatprep.mubr.bf16.mxu0 %v7339
    %9216 = vmatmul.mubr.bf16.gmra.mxu0 %v7338
    %v9217 = vpop.f32.mrf.mxu0
    %v9218 = vadd.f32 %v8785, %v9217
    %v9219 = vpop.f32.mrf.mxu0
    %v9220 = vpop.f32.mrf.mxu0
    %v9221 = vadd.f32 %v8788, %v9220
    %v9222 = vpop.f32.mrf.mxu0
    %9223 = vmatprep.mubr.bf16.mxu0 %v7340
    %9224 = vmatmul.mubr.bf16.gmra.mxu0 %v7339
    %v9225 = vpop.f32.mrf.mxu0
    %v9226 = vadd.f32 %v8793, %v9225
    %v9227 = vpop.f32.mrf.mxu0
    %v9228 = vpop.f32.mrf.mxu0
    %v9229 = vadd.f32 %v8796, %v9228
    %v9230 = vpop.f32.mrf.mxu0
    %9231 = vmatprep.mubr.bf16.mxu0 %v7341
    %9232 = vmatmul.mubr.bf16.gmra.mxu0 %v7340
    %v9233 = vpop.f32.mrf.mxu0
    %v9234 = vadd.f32 %v8801, %v9233
    %v9235 = vpop.f32.mrf.mxu0
    %v9236 = vpop.f32.mrf.mxu0
    %v9237 = vadd.f32 %v8804, %v9236
    %v9238 = vpop.f32.mrf.mxu0
    %9239 = vmatprep.mubr.bf16.mxu0 %v7342
    %9240 = vmatmul.mubr.bf16.gmra.mxu0 %v7341
    %v9241 = vpop.f32.mrf.mxu0
    %v9242 = vadd.f32 %v8809, %v9241
    %v9243 = vpop.f32.mrf.mxu0
    %v9244 = vpop.f32.mrf.mxu0
    %v9245 = vadd.f32 %v8812, %v9244
    %v9246 = vpop.f32.mrf.mxu0
    %9247 = vmatprep.mubr.bf16.mxu0 %v7343
    %9248 = vmatmul.mubr.bf16.gmra.mxu0 %v7342
    %v9249 = vpop.f32.mrf.mxu0
    %v9250 = vadd.f32 %v8817, %v9249
    %v9251 = vpop.f32.mrf.mxu0
    %v9252 = vpop.f32.mrf.mxu0
    %v9253 = vadd.f32 %v8820, %v9252
    %v9254 = vpop.f32.mrf.mxu0
    %9255 = vmatprep.mubr.bf16.mxu0 %v7385
    %9256 = vmatmul.mubr.bf16.gmra.mxu0 %v7343
    %v9257 = vpop.f32.mrf.mxu0
    %v9258 = vadd.f32 %v8825, %v9257
    %v9259 = vpop.f32.mrf.mxu0
    %v9260 = vpop.f32.mrf.mxu0
    %v9261 = vadd.f32 %v8828, %v9260
    %v9262 = vpop.f32.mrf.mxu0
    %9263 = vdwg.mxu0
    %9264 = vmatprep.subr.bf16.mxu0 0
    %9265 = vmatpush1.bf16.msra.mxu0 %v8950
    %9266 = vmatprep.subr.bf16.mxu0 0
    %9267 = vmatpush1.bf16.msra.mxu0 %v8949
    %9268 = vmatprep.subr.bf16.mxu0 0
    %9269 = vmatpush1.bf16.msra.mxu0 %v8948
    %9270 = vmatprep.subr.bf16.mxu0 0
    %9271 = vmatpush1.bf16.msra.mxu0 %v8947
    %9272 = vmatprep.subr.bf16.mxu0 0
    %9273 = vmatpush1.bf16.msra.mxu0 %v8946
    %9274 = vmatprep.subr.bf16.mxu0 0
    %9275 = vmatpush1.bf16.msra.mxu0 %v8945
    %9276 = vmatprep.subr.bf16.mxu0 0
    %9277 = vmatpush1.bf16.msra.mxu0 %v8944
    %9278 = vmatprep.subr.bf16.mxu0 0
    %9279 = vmatpush1.bf16.msra.mxu0 %v8943
    %9280 = vmatprep.subr.bf16.mxu0 0
    %9281 = vmatpush2.bf16.msra.mxu0 0
    %9282 = vmatprep.subr.bf16.mxu0 0
    %9283 = vmatpush2.bf16.msra.mxu0 0
    %9284 = vmatprep.subr.bf16.mxu0 0
    %9285 = vmatpush2.bf16.msra.mxu0 0
    %9286 = vmatprep.subr.bf16.mxu0 0
    %9287 = vmatpush2.bf16.msra.mxu0 0
    %9288 = vmatprep.subr.bf16.mxu0 0
    %9289 = vmatpush2.bf16.msra.mxu0 0
    %9290 = vmatprep.subr.bf16.mxu0 0
    %9291 = vmatpush2.bf16.msra.mxu0 0
    %9292 = vmatprep.subr.bf16.mxu0 0
    %9293 = vmatpush2.bf16.msra.mxu0 0
    %9294 = vmatprep.subr.bf16.mxu0 0
    %9295 = vmatpush2.bf16.msra.mxu0 0
    %9296 = vmatprep.mubr.bf16.mxu0 0
    %9297 = vmatmul.mubr.bf16.gmra.mxu0 %v7314
    %v9298 = vpop.f32.mrf.mxu0
    %v9299 = vadd.f32 %v9010, %v9298
    %v9300 = vpop.f32.mrf.mxu0
    %v9301 = vpop.f32.mrf.mxu0
    %v9302 = vadd.f32 %v9013, %v9301
    %v9303 = vpop.f32.mrf.mxu0
    %9304 = vmatprep.mubr.bf16.mxu0 0
    %9305 = vmatmul.mubr.bf16.gmra.mxu0 %v7315
    %v9306 = vpop.f32.mrf.mxu0
    %v9307 = vadd.f32 %v9018, %v9306
    %v9308 = vpop.f32.mrf.mxu0
    %v9309 = vpop.f32.mrf.mxu0
    %v9310 = vadd.f32 %v9021, %v9309
    %v9311 = vpop.f32.mrf.mxu0
    %9312 = vmatprep.mubr.bf16.mxu0 0
    %9313 = vmatmul.mubr.bf16.gmra.mxu0 %v7316
    %v9314 = vpop.f32.mrf.mxu0
    %v9315 = vadd.f32 %v9026, %v9314
    %v9316 = vpop.f32.mrf.mxu0
    %v9317 = vpop.f32.mrf.mxu0
    %v9318 = vadd.f32 %v9029, %v9317
    %v9319 = vpop.f32.mrf.mxu0
    %9320 = vmatprep.mubr.bf16.mxu0 0
    %9321 = vmatmul.mubr.bf16.gmra.mxu0 %v7317
    %v9322 = vpop.f32.mrf.mxu0
    %v9323 = vadd.f32 %v9034, %v9322
    %v9324 = vpop.f32.mrf.mxu0
    %v9325 = vpop.f32.mrf.mxu0
    %v9326 = vadd.f32 %v9037, %v9325
    %v9327 = vpop.f32.mrf.mxu0
    %9328 = vmatprep.mubr.bf16.mxu0 0
    %9329 = vmatmul.mubr.bf16.gmra.mxu0 %v7318
    %v9330 = vpop.f32.mrf.mxu0
    %v9331 = vadd.f32 %v9042, %v9330
    %v9332 = vpop.f32.mrf.mxu0
    %v9333 = vpop.f32.mrf.mxu0
    %v9334 = vadd.f32 %v9045, %v9333
    %v9335 = vpop.f32.mrf.mxu0
    %9336 = vmatprep.mubr.bf16.mxu0 0
    %9337 = vmatmul.mubr.bf16.gmra.mxu0 %v7319
    %v9338 = vpop.f32.mrf.mxu0
    %v9339 = vadd.f32 %v9050, %v9338
    %v9340 = vpop.f32.mrf.mxu0
    %v9341 = vpop.f32.mrf.mxu0
    %v9342 = vadd.f32 %v9053, %v9341
    %v9343 = vpop.f32.mrf.mxu0
    %9344 = vmatprep.mubr.bf16.mxu0 0
    %9345 = vmatmul.mubr.bf16.gmra.mxu0 %v7320
    %v9346 = vpop.f32.mrf.mxu0
    %v9347 = vadd.f32 %v9058, %v9346
    %v9348 = vpop.f32.mrf.mxu0
    %v9349 = vpop.f32.mrf.mxu0
    %v9350 = vadd.f32 %v9061, %v9349
    %v9351 = vpop.f32.mrf.mxu0
    %9352 = vmatprep.mubr.bf16.mxu0 0
    %9353 = vmatmul.mubr.bf16.gmra.mxu0 %v7321
    %v9354 = vpop.f32.mrf.mxu0
    %v9355 = vadd.f32 %v9066, %v9354
    %v9356 = vpop.f32.mrf.mxu0
    %v9357 = vpop.f32.mrf.mxu0
    %v9358 = vadd.f32 %v9069, %v9357
    %v9359 = vpop.f32.mrf.mxu0
    %9360 = vmatprep.mubr.bf16.mxu0 0
    %9361 = vmatmul.mubr.bf16.gmra.mxu0 %v7322
    %v9362 = vpop.f32.mrf.mxu0
    %v9363 = vadd.f32 %v9074, %v9362
    %v9364 = vpop.f32.mrf.mxu0
    %v9365 = vpop.f32.mrf.mxu0
    %v9366 = vadd.f32 %v9077, %v9365
    %v9367 = vpop.f32.mrf.mxu0
    %9368 = vmatprep.mubr.bf16.mxu0 0
    %9369 = vmatmul.mubr.bf16.gmra.mxu0 %v7323
    %v9370 = vpop.f32.mrf.mxu0
    %v9371 = vadd.f32 %v9082, %v9370
    %v9372 = vpop.f32.mrf.mxu0
    %v9373 = vpop.f32.mrf.mxu0
    %v9374 = vadd.f32 %v9085, %v9373
    %v9375 = vpop.f32.mrf.mxu0
    %9376 = vmatprep.mubr.bf16.mxu0 0
    %9377 = vmatmul.mubr.bf16.gmra.mxu0 %v7324
    %v9378 = vpop.f32.mrf.mxu0
    %v9379 = vadd.f32 %v9090, %v9378
    %v9380 = vpop.f32.mrf.mxu0
    %v9381 = vpop.f32.mrf.mxu0
    %v9382 = vadd.f32 %v9093, %v9381
    %v9383 = vpop.f32.mrf.mxu0
    %9384 = vmatprep.mubr.bf16.mxu0 0
    %9385 = vmatmul.mubr.bf16.gmra.mxu0 %v7325
    %v9386 = vpop.f32.mrf.mxu0
    %v9387 = vadd.f32 %v9098, %v9386
    %v9388 = vpop.f32.mrf.mxu0
    %v9389 = vpop.f32.mrf.mxu0
    %v9390 = vadd.f32 %v9101, %v9389
    %v9391 = vpop.f32.mrf.mxu0
    %9392 = vmatprep.mubr.bf16.mxu0 0
    %9393 = vmatmul.mubr.bf16.gmra.mxu0 %v7326
    %v9394 = vpop.f32.mrf.mxu0
    %v9395 = vadd.f32 %v9106, %v9394
    %v9396 = vpop.f32.mrf.mxu0
    %v9397 = vpop.f32.mrf.mxu0
    %v9398 = vadd.f32 %v9109, %v9397
    %v9399 = vpop.f32.mrf.mxu0
    %9400 = vmatprep.mubr.bf16.mxu0 0
    %9401 = vmatmul.mubr.bf16.gmra.mxu0 %v7327
    %v9402 = vpop.f32.mrf.mxu0
    %v9403 = vadd.f32 %v9114, %v9402
    %v9404 = vpop.f32.mrf.mxu0
    %v9405 = vpop.f32.mrf.mxu0
    %v9406 = vadd.f32 %v9117, %v9405
    %v9407 = vpop.f32.mrf.mxu0
    %9408 = vmatprep.mubr.bf16.mxu0 0
    %9409 = vmatmul.mubr.bf16.gmra.mxu0 %v7384
    %v9410 = vpop.f32.mrf.mxu0
    %v9411 = vadd.f32 %v9122, %v9410
    %v9412 = vpop.f32.mrf.mxu0
    %v9413 = vpop.f32.mrf.mxu0
    %v9414 = vadd.f32 %v9125, %v9413
    %v9415 = vpop.f32.mrf.mxu0
    %9416 = vmatprep.mubr.bf16.mxu0 0
    %9417 = vmatmul.mubr.bf16.gmra.mxu0 %v7396
    %v9418 = vpop.f32.mrf.mxu0
    %v9419 = vadd.f32 %v9130, %v9418
    %v9420 = vpop.f32.mrf.mxu0
    %v9421 = vpop.f32.mrf.mxu0
    %v9422 = vadd.f32 %v9133, %v9421
    %v9423 = vpop.f32.mrf.mxu0
    %9424 = vmatprep.mubr.bf16.mxu0 0
    %9425 = vmatmul.mubr.bf16.gmra.mxu0 %v7330
    %v9426 = vpop.f32.mrf.mxu0
    %v9427 = vadd.f32 %v9138, %v9426
    %v9428 = vpop.f32.mrf.mxu0
    %v9429 = vpop.f32.mrf.mxu0
    %v9430 = vadd.f32 %v9141, %v9429
    %v9431 = vpop.f32.mrf.mxu0
    %9432 = vmatprep.mubr.bf16.mxu0 0
    %9433 = vmatmul.mubr.bf16.gmra.mxu0 %v7331
    %v9434 = vpop.f32.mrf.mxu0
    %v9435 = vadd.f32 %v9146, %v9434
    %v9436 = vpop.f32.mrf.mxu0
    %v9437 = vpop.f32.mrf.mxu0
    %v9438 = vadd.f32 %v9149, %v9437
    %v9439 = vpop.f32.mrf.mxu0
    %9440 = vmatprep.mubr.bf16.mxu0 0
    %9441 = vmatmul.mubr.bf16.gmra.mxu0 %v7332
    %v9442 = vpop.f32.mrf.mxu0
    %v9443 = vadd.f32 %v9154, %v9442
    %v9444 = vpop.f32.mrf.mxu0
    %v9445 = vpop.f32.mrf.mxu0
    %v9446 = vadd.f32 %v9157, %v9445
    %v9447 = vpop.f32.mrf.mxu0
    %9448 = vmatprep.mubr.bf16.mxu0 0
    %9449 = vmatmul.mubr.bf16.gmra.mxu0 %v7333
    %v9450 = vpop.f32.mrf.mxu0
    %v9451 = vadd.f32 %v9162, %v9450
    %v9452 = vpop.f32.mrf.mxu0
    %v9453 = vpop.f32.mrf.mxu0
    %v9454 = vadd.f32 %v9165, %v9453
    %v9455 = vpop.f32.mrf.mxu0
    %9456 = vmatprep.mubr.bf16.mxu0 0
    %9457 = vmatmul.mubr.bf16.gmra.mxu0 %v7334
    %v9458 = vpop.f32.mrf.mxu0
    %v9459 = vadd.f32 %v9170, %v9458
    %v9460 = vpop.f32.mrf.mxu0
    %v9461 = vpop.f32.mrf.mxu0
    %v9462 = vadd.f32 %v9173, %v9461
    %v9463 = vpop.f32.mrf.mxu0
    %9464 = vmatprep.mubr.bf16.mxu0 0
    %9465 = vmatmul.mubr.bf16.gmra.mxu0 %v7335
    %v9466 = vpop.f32.mrf.mxu0
    %v9467 = vadd.f32 %v9178, %v9466
    %v9468 = vpop.f32.mrf.mxu0
    %v9469 = vpop.f32.mrf.mxu0
    %v9470 = vadd.f32 %v9181, %v9469
    %v9471 = vpop.f32.mrf.mxu0
    %9472 = vmatprep.mubr.bf16.mxu0 0
    %9473 = vmatmul.mubr.bf16.gmra.mxu0 %v7336
    %v9474 = vpop.f32.mrf.mxu0
    %v9475 = vadd.f32 %v9186, %v9474
    %v9476 = vpop.f32.mrf.mxu0
    %v9477 = vpop.f32.mrf.mxu0
    %v9478 = vadd.f32 %v9189, %v9477
    %v9479 = vpop.f32.mrf.mxu0
    %9480 = vmatprep.mubr.bf16.mxu0 0
    %9481 = vmatmul.mubr.bf16.gmra.mxu0 %v7337
    %v9482 = vpop.f32.mrf.mxu0
    %v9483 = vadd.f32 %v9194, %v9482
    %v9484 = vpop.f32.mrf.mxu0
    %v9485 = vpop.f32.mrf.mxu0
    %v9486 = vadd.f32 %v9197, %v9485
    %v9487 = vpop.f32.mrf.mxu0
    %9488 = vmatprep.mubr.bf16.mxu0 0
    %9489 = vmatmul.mubr.bf16.gmra.mxu0 %v7338
    %v9490 = vpop.f32.mrf.mxu0
    %v9491 = vadd.f32 %v9202, %v9490
    %v9492 = vpop.f32.mrf.mxu0
    %v9493 = vpop.f32.mrf.mxu0
    %v9494 = vadd.f32 %v9205, %v9493
    %v9495 = vpop.f32.mrf.mxu0
    %9496 = vmatprep.mubr.bf16.mxu0 0
    %9497 = vmatmul.mubr.bf16.gmra.mxu0 %v7339
    %v9498 = vpop.f32.mrf.mxu0
    %v9499 = vadd.f32 %v9210, %v9498
    %v9500 = vpop.f32.mrf.mxu0
    %v9501 = vpop.f32.mrf.mxu0
    %v9502 = vadd.f32 %v9213, %v9501
    %v9503 = vpop.f32.mrf.mxu0
    %9504 = vmatprep.mubr.bf16.mxu0 0
    %9505 = vmatmul.mubr.bf16.gmra.mxu0 %v7340
    %v9506 = vpop.f32.mrf.mxu0
    %v9507 = vadd.f32 %v9218, %v9506
    %v9508 = vpop.f32.mrf.mxu0
    %v9509 = vpop.f32.mrf.mxu0
    %v9510 = vadd.f32 %v9221, %v9509
    %v9511 = vpop.f32.mrf.mxu0
    %9512 = vmatprep.mubr.bf16.mxu0 0
    %9513 = vmatmul.mubr.bf16.gmra.mxu0 %v7341
    %v9514 = vpop.f32.mrf.mxu0
    %v9515 = vadd.f32 %v9226, %v9514
    %v9516 = vpop.f32.mrf.mxu0
    %v9517 = vpop.f32.mrf.mxu0
    %v9518 = vadd.f32 %v9229, %v9517
    %v9519 = vpop.f32.mrf.mxu0
    %9520 = vmatprep.mubr.bf16.mxu0 0
    %9521 = vmatmul.mubr.bf16.gmra.mxu0 %v7342
    %v9522 = vpop.f32.mrf.mxu0
    %v9523 = vadd.f32 %v9234, %v9522
    %v9524 = vpop.f32.mrf.mxu0
    %v9525 = vpop.f32.mrf.mxu0
    %v9526 = vadd.f32 %v9237, %v9525
    %v9527 = vpop.f32.mrf.mxu0
    %9528 = vmatprep.mubr.bf16.mxu0 0
    %9529 = vmatmul.mubr.bf16.gmra.mxu0 %v7343
    %v9530 = vpop.f32.mrf.mxu0
    %v9531 = vadd.f32 %v9242, %v9530
    %v9532 = vpop.f32.mrf.mxu0
    %v9533 = vpop.f32.mrf.mxu0
    %v9534 = vadd.f32 %v9245, %v9533
    %v9535 = vpop.f32.mrf.mxu0
    %9536 = vmatprep.mubr.bf16.mxu0 0
    %9537 = vmatmul.mubr.bf16.gmra.mxu0 %v7385
    %v9538 = vpop.f32.mrf.mxu0
    %v9539 = vadd.f32 %v9250, %v9538
    %v9540 = vpop.f32.mrf.mxu0
    %v9541 = vpop.f32.mrf.mxu0
    %v9542 = vadd.f32 %v9253, %v9541
    %v9543 = vpop.f32.mrf.mxu0
    %9544 = vmatprep.mubr.bf16.mxu0 0
    %9545 = vmatmul.mubr.bf16.gmra.mxu0 %v7397
    %v9546 = vpop.f32.mrf.mxu0
    %v9547 = vadd.f32 %v9258, %v9546
    %v9548 = vpop.f32.mrf.mxu0
    %v9549 = vpop.f32.mrf.mxu0
    %v9550 = vadd.f32 %v9261, %v9549
    %v9551 = vpop.f32.mrf.mxu0
    %9552 = vdwg.mxu0
    %v9553 = vld [vmem:[#allocation2] sm:$0xe]
    %v9554 = vld [vmem:[#allocation2 + $0xc] sm:$0xe]
    %v9555 = vld [vmem:[#allocation2 + $0x18] sm:$0xe]
    %v9556 = vld [vmem:[#allocation2 + $0x24] sm:$0xe]
    %v9557 = vld [vmem:[#allocation2 + $0x30] sm:$0xe]
    %v9558 = vld [vmem:[#allocation2 + $0x3c] sm:$0xe]
    %v9559 = vld [vmem:[#allocation2 + $0x48] sm:$0xe]
    %v9560 = vld [vmem:[#allocation2 + $0x54] sm:$0xe]
    %v9561 = vld [vmem:[#allocation2 + $0x60] sm:$0xe]
    %v9562 = vld [vmem:[#allocation2 + $0x6c] sm:$0xe]
    %v9563 = vld [vmem:[#allocation2 + $0x78] sm:$0xe]
    %v9564 = vld [vmem:[#allocation2 + $0x84] sm:$0xe]
    %v9565 = vld [vmem:[#allocation2 + $0x90] sm:$0xe]
    %v9566 = vld [vmem:[#allocation2 + $0x9c] sm:$0xe]
    %v9567 = vld [vmem:[#allocation2 + $0xa8] sm:$0xe]
    %v9568 = vld [vmem:[#allocation2 + $0xb4] sm:$0xe]
    %v9569 = vld [vmem:[#allocation2 + $0xc0] sm:$0xe]
    %v9570 = vld [vmem:[#allocation2 + $0xcc] sm:$0xe]
    %v9571 = vld [vmem:[#allocation2 + $0xd8] sm:$0xe]
    %v9572 = vld [vmem:[#allocation2 + $0xe4] sm:$0xe]
    %v9573 = vld [vmem:[#allocation2 + $0xf0] sm:$0xe]
    %v9574 = vld [vmem:[#allocation2 + $0xfc] sm:$0xe]
    %v9575 = vld [vmem:[#allocation2 + $0x108] sm:$0xe]
    %v9576 = vld [vmem:[#allocation2 + $0x114] sm:$0xe]
    %v9577 = vld [vmem:[#allocation2 + $0x120] sm:$0xe]
    %v9578 = vld [vmem:[#allocation2 + $0x12c] sm:$0xe]
    %v9579 = vld [vmem:[#allocation2 + $0x138] sm:$0xe]
    %v9580 = vld [vmem:[#allocation2 + $0x144] sm:$0xe]
    %v9581 = vld [vmem:[#allocation2 + $0x150] sm:$0xe]
    %v9582 = vld [vmem:[#allocation2 + $0x15c] sm:$0xe]
    %v9583 = vld [vmem:[#allocation2 + $0x168] sm:$0xe]
    %v9584 = vld [vmem:[#allocation2 + $0x174] sm:$0xe]
    %v9585 = vld [vmem:[#allocation2 + $0x180] sm:$0xe]
    %v9586 = vld [vmem:[#allocation2 + $0x18c] sm:$0xe]
    %v9587 = vld [vmem:[#allocation2 + $0x198] sm:$0xe]
    %v9588 = vld [vmem:[#allocation2 + $0x1a4] sm:$0xe]
    %v9621 = vunpack.c.l.b16 %v9553
    %v9622 = vunpack.c.l.b16 %v9554
    %v9623 = vunpack.c.l.b16 %v9555
    %v9624 = vunpack.c.l.b16 %v9556
    %v9625 = vunpack.c.l.b16 %v9557
    %v9626 = vunpack.c.l.b16 %v9558
    %v9627 = vunpack.c.l.b16 %v9559
    %v9628 = vunpack.c.l.b16 %v9560
    %v9629 = vunpack.c.l.b16 %v9561
    %v9630 = vunpack.c.l.b16 %v9562
    %v9631 = vunpack.c.l.b16 %v9563
    %v9632 = vunpack.c.l.b16 %v9564
    %v9633 = vunpack.c.l.b16 %v9565
    %v9634 = vunpack.c.l.b16 %v9566
    %v9635 = vunpack.c.l.b16 %v9567
    %v9636 = vunpack.c.l.b16 %v9568
    %v9637 = vunpack.c.l.b16 %v9571
    %v9638 = vunpack.c.l.b16 %v9572
    %v9639 = vunpack.c.l.b16 %v9573
    %v9640 = vunpack.c.l.b16 %v9574
    %v9641 = vunpack.c.l.b16 %v9575
    %v9642 = vunpack.c.l.b16 %v9576
    %v9643 = vunpack.c.l.b16 %v9577
    %v9644 = vunpack.c.l.b16 %v9578
    %v9645 = vunpack.c.l.b16 %v9579
    %v9646 = vunpack.c.l.b16 %v9580
    %v9647 = vunpack.c.l.b16 %v9581
    %v9648 = vunpack.c.l.b16 %v9582
    %v9649 = vunpack.c.l.b16 %v9583
    %v9650 = vunpack.c.l.b16 %v9584
    %v9651 = vunpack.c.l.b16 %v9585
    %v9652 = vunpack.c.l.b16 %v9586
    %v9653 = vpack.c.b16 %v7249, %v9621
    %v9654 = vpack.c.b16 %v7251, %v9622
    %v9655 = vpack.c.b16 %v7253, %v9623
    %v9656 = vpack.c.b16 %v7255, %v9624
    %v9657 = vpack.c.b16 %v7257, %v9625
    %v9658 = vpack.c.b16 %v7259, %v9626
    %v9659 = vpack.c.b16 %v7261, %v9627
    %v9660 = vpack.c.b16 %v7263, %v9628
    %v9661 = vpack.c.b16 %v7265, %v9629
    %v9662 = vpack.c.b16 %v7267, %v9630
    %v9663 = vpack.c.b16 %v7269, %v9631
    %v9664 = vpack.c.b16 %v7271, %v9632
    %v9665 = vpack.c.b16 %v7273, %v9633
    %v9666 = vpack.c.b16 %v7275, %v9634
    %v9667 = vpack.c.b16 %v7277, %v9635
    %v9668 = vpack.c.b16 %v7279, %v9636
    %v9669 = vpack.c.b16 %v7281, %v9637
    %v9670 = vpack.c.b16 %v7283, %v9638
    %v9671 = vpack.c.b16 %v7285, %v9639
    %v9672 = vpack.c.b16 %v7287, %v9640
    %v9673 = vpack.c.b16 %v7289, %v9641
    %v9674 = vpack.c.b16 %v7291, %v9642
    %v9675 = vpack.c.b16 %v7293, %v9643
    %v9676 = vpack.c.b16 %v7295, %v9644
    %v9677 = vpack.c.b16 %v7297, %v9645
    %v9678 = vpack.c.b16 %v7299, %v9646
    %v9679 = vpack.c.b16 %v7301, %v9647
    %v9680 = vpack.c.b16 %v7303, %v9648
    %v9681 = vpack.c.b16 %v7305, %v9649
    %v9682 = vpack.c.b16 %v7307, %v9650
    %v9683 = vpack.c.b16 %v7309, %v9651
    %v9684 = vpack.c.b16 %v7311, %v9652
    %v9687 = vunpack.c.l.b16 %v9569
    %v9688 = vunpack.c.l.b16 %v9587
    %v9689 = vpack.c.b16 %v7381, %v9687
    %v9690 = vpack.c.b16 %v7383, %v9688
    %v9693 = vunpack.c.l.b16 %v9570
    %v9694 = vunpack.c.l.b16 %v9588
    %v9695 = vpack.c.b16 %v7393, %v9693
    %v9696 = vpack.c.b16 %v7395, %v9694
    %v9697 = vrot.slane %v9653, 1
    %v9698 = vrot.slane %v7548, 1
    %v9699 = vsel %vm4222, %v9697, %v9698
    %v9700 = vrot.slane %v9654, 1
    %v9701 = vrot.slane %v7549, 1
    %v9702 = vsel %vm4222, %v9700, %v9701
    %v9703 = vrot.slane %v9655, 1
    %v9704 = vrot.slane %v7550, 1
    %v9705 = vsel %vm4222, %v9703, %v9704
    %v9706 = vrot.slane %v9656, 1
    %v9707 = vrot.slane %v7551, 1
    %v9708 = vsel %vm4222, %v9706, %v9707
    %v9709 = vrot.slane %v9657, 1
    %v9710 = vrot.slane %v7552, 1
    %v9711 = vsel %vm4222, %v9709, %v9710
    %v9712 = vrot.slane %v9658, 1
    %v9713 = vrot.slane %v7553, 1
    %v9714 = vsel %vm4222, %v9712, %v9713
    %v9715 = vrot.slane %v9659, 1
    %v9716 = vrot.slane %v7554, 1
    %v9717 = vsel %vm4222, %v9715, %v9716
    %v9718 = vrot.slane %v9660, 1
    %v9719 = vrot.slane %v7555, 1
    %v9720 = vsel %vm4222, %v9718, %v9719
    %v9721 = vrot.slane %v9661, 1
    %v9722 = vrot.slane %v7556, 1
    %v9723 = vsel %vm4222, %v9721, %v9722
    %v9724 = vrot.slane %v9662, 1
    %v9725 = vrot.slane %v7557, 1
    %v9726 = vsel %vm4222, %v9724, %v9725
    %v9727 = vrot.slane %v9663, 1
    %v9728 = vrot.slane %v7558, 1
    %v9729 = vsel %vm4222, %v9727, %v9728
    %v9730 = vrot.slane %v9664, 1
    %v9731 = vrot.slane %v7559, 1
    %v9732 = vsel %vm4222, %v9730, %v9731
    %v9733 = vrot.slane %v9665, 1
    %v9734 = vrot.slane %v7560, 1
    %v9735 = vsel %vm4222, %v9733, %v9734
    %v9736 = vrot.slane %v9666, 1
    %v9737 = vrot.slane %v7561, 1
    %v9738 = vsel %vm4222, %v9736, %v9737
    %v9739 = vrot.slane %v9667, 1
    %v9740 = vrot.slane %v7562, 1
    %v9741 = vsel %vm4222, %v9739, %v9740
    %v9742 = vrot.slane %v9668, 1
    %v9743 = vrot.slane %v7563, 1
    %v9744 = vsel %vm4222, %v9742, %v9743
    %v9745 = vrot.slane %v9689, 1
    %v9746 = vrot.slane %v7584, 1
    %v9747 = vsel %vm4222, %v9745, %v9746
    %v9748 = vrot.slane %v9695, 1
    %v9749 = vrot.slane %v7590, 1
    %v9750 = vsel %vm4222, %v9748, %v9749
    %v9751 = vrot.slane %v9669, 1
    %v9752 = vrot.slane %v7564, 1
    %v9753 = vsel %vm4222, %v9751, %v9752
    %v9754 = vrot.slane %v9670, 1
    %v9755 = vrot.slane %v7565, 1
    %v9756 = vsel %vm4222, %v9754, %v9755
    %v9757 = vrot.slane %v9671, 1
    %v9758 = vrot.slane %v7566, 1
    %v9759 = vsel %vm4222, %v9757, %v9758
    %v9760 = vrot.slane %v9672, 1
    %v9761 = vrot.slane %v7567, 1
    %v9762 = vsel %vm4222, %v9760, %v9761
    %v9763 = vrot.slane %v9673, 1
    %v9764 = vrot.slane %v7568, 1
    %v9765 = vsel %vm4222, %v9763, %v9764
    %v9766 = vrot.slane %v9674, 1
    %v9767 = vrot.slane %v7569, 1
    %v9768 = vsel %vm4222, %v9766, %v9767
    %v9769 = vrot.slane %v9675, 1
    %v9770 = vrot.slane %v7570, 1
    %v9771 = vsel %vm4222, %v9769, %v9770
    %v9772 = vrot.slane %v9676, 1
    %v9773 = vrot.slane %v7571, 1
    %v9774 = vsel %vm4222, %v9772, %v9773
    %v9775 = vrot.slane %v9677, 1
    %v9776 = vrot.slane %v7572, 1
    %v9777 = vsel %vm4222, %v9775, %v9776
    %v9778 = vrot.slane %v9678, 1
    %v9779 = vrot.slane %v7573, 1
    %v9780 = vsel %vm4222, %v9778, %v9779
    %v9781 = vrot.slane %v9679, 1
    %v9782 = vrot.slane %v7574, 1
    %v9783 = vsel %vm4222, %v9781, %v9782
    %v9784 = vrot.slane %v9680, 1
    %v9785 = vrot.slane %v7575, 1
    %v9786 = vsel %vm4222, %v9784, %v9785
    %v9787 = vrot.slane %v9681, 1
    %v9788 = vrot.slane %v7576, 1
    %v9789 = vsel %vm4222, %v9787, %v9788
    %v9790 = vrot.slane %v9682, 1
    %v9791 = vrot.slane %v7577, 1
    %v9792 = vsel %vm4222, %v9790, %v9791
    %v9793 = vrot.slane %v9683, 1
    %v9794 = vrot.slane %v7578, 1
    %v9795 = vsel %vm4222, %v9793, %v9794
    %v9796 = vrot.slane %v9684, 1
    %v9797 = vrot.slane %v7579, 1
    %v9798 = vsel %vm4222, %v9796, %v9797
    %v9799 = vrot.slane %v9690, 1
    %v9800 = vrot.slane %v7585, 1
    %v9801 = vsel %vm4222, %v9799, %v9800
    %v9802 = vrot.slane %v9696, 1
    %v9803 = vrot.slane %v7591, 1
    %v9804 = vsel %vm4222, %v9802, %v9803
    %s9841 = scalar_lea.vmem [#allocation8], 384
    %v9842 = vld [vmem:[%s9841] sm:$0xf]
    %v9843 = vld [vmem:[%s9841 + $0x4] sm:$0xf]
    %v9844 = vld [vmem:[%s9841 + $0x8] sm:$0xf]
    %v9845 = vld [vmem:[%s9841 + $0xc] sm:$0xf]
    %v9846 = vld [vmem:[%s9841 + $0x10] sm:$0xf]
    %v9847 = vld [vmem:[%s9841 + $0x14] sm:$0xf]
    %v9848 = vld [vmem:[%s9841 + $0x18] sm:$0xf]
    %v9849 = vld [vmem:[%s9841 + $0x1c] sm:$0xf]
    %v9850 = vld [vmem:[%s9841 + $0x20] sm:$0xf]
    %v9851 = vld [vmem:[%s9841 + $0x24] sm:$0xf]
    %v9852 = vld [vmem:[%s9841 + $0x28] sm:$0xf]
    %v9853 = vld [vmem:[%s9841 + $0x2c] sm:$0xf]
    %v9854 = vld [vmem:[%s9841 + $0x30] sm:$0xf]
    %v9855 = vld [vmem:[%s9841 + $0x34] sm:$0xf]
    %v9856 = vld [vmem:[%s9841 + $0x38] sm:$0xf]
    %v9857 = vld [vmem:[%s9841 + $0x3c] sm:$0xf]
    %v9858 = vld [vmem:[%s9841 + $0x40] sm:$0xf]
    %v9859 = vld [vmem:[%s9841 + $0x44] sm:$0xf]
    %v9860 = vld [vmem:[%s9841 + $0x48] sm:$0xf]
    %v9861 = vld [vmem:[%s9841 + $0x4c] sm:$0xf]
    %v9862 = vld [vmem:[%s9841 + $0x50] sm:$0xf]
    %v9863 = vld [vmem:[%s9841 + $0x54] sm:$0xf]
    %v9864 = vld [vmem:[%s9841 + $0x58] sm:$0xf]
    %v9865 = vld [vmem:[%s9841 + $0x5c] sm:$0xf]
    %v9866 = vld [vmem:[%s9841 + $0x60] sm:$0xf]
    %v9867 = vld [vmem:[%s9841 + $0x64] sm:$0xf]
    %v9868 = vld [vmem:[%s9841 + $0x68] sm:$0xf]
    %v9869 = vld [vmem:[%s9841 + $0x6c] sm:$0xf]
    %v9870 = vld [vmem:[%s9841 + $0x70] sm:$0xf]
    %v9871 = vld [vmem:[%s9841 + $0x74] sm:$0xf]
    %v9872 = vld [vmem:[%s9841 + $0x78] sm:$0xf]
    %v9873 = vld [vmem:[%s9841 + $0x7c] sm:$0xf]
    %v9874 = vld [vmem:[%s9841 + $0x80] sm:$0xf]
    %v9875 = vld [vmem:[%s9841 + $0x84] sm:$0xf]
    %v9876 = vld [vmem:[%s9841 + $0x88] sm:$0xf]
    %v9877 = vld [vmem:[%s9841 + $0x8c] sm:$0xf]
    %v9878 = vld [vmem:[%s9841 + $0x90] sm:$0xf]
    %v9879 = vld [vmem:[%s9841 + $0x94] sm:$0xf]
    %v9880 = vld [vmem:[%s9841 + $0x98] sm:$0xf]
    %v9881 = vld [vmem:[%s9841 + $0x9c] sm:$0xf]
    %v9882 = vld [vmem:[%s9841 + $0xa0] sm:$0xf]
    %v9883 = vld [vmem:[%s9841 + $0xa4] sm:$0xf]
    %v9884 = vld [vmem:[%s9841 + $0xa8] sm:$0xf]
    %v9885 = vld [vmem:[%s9841 + $0xac] sm:$0xf]
    %v9886 = vld [vmem:[%s9841 + $0xb0] sm:$0xf]
    %v9887 = vld [vmem:[%s9841 + $0xb4] sm:$0xf]
    %v9888 = vld [vmem:[%s9841 + $0xb8] sm:$0xf]
    %v9889 = vld [vmem:[%s9841 + $0xbc] sm:$0xf]
    %v9938 = vunpack.c.l.b16 %v9842
    %v9939 = vunpack.c.l.b16 %v9843
    %v9940 = vunpack.c.l.b16 %v9844
    %v9941 = vunpack.c.l.b16 %v9845
    %v9942 = vunpack.c.l.b16 %v9846
    %v9943 = vunpack.c.l.b16 %v9847
    %v9944 = vunpack.c.l.b16 %v9848
    %v9945 = vunpack.c.l.b16 %v9849
    %v9946 = vunpack.c.l.b16 %v9850
    %v9947 = vunpack.c.l.b16 %v9851
    %v9948 = vunpack.c.l.b16 %v9852
    %v9949 = vunpack.c.l.b16 %v9853
    %v9950 = vunpack.c.l.b16 %v9854
    %v9951 = vunpack.c.l.b16 %v9855
    %v9952 = vunpack.c.l.b16 %v9856
    %v9953 = vunpack.c.l.b16 %v9857
    %v9954 = vunpack.c.l.b16 %v9858
    %v9955 = vunpack.c.l.b16 %v9859
    %v9956 = vunpack.c.l.b16 %v9860
    %v9957 = vunpack.c.l.b16 %v9861
    %v9958 = vunpack.c.l.b16 %v9862
    %v9959 = vunpack.c.l.b16 %v9863
    %v9960 = vunpack.c.l.b16 %v9864
    %v9961 = vunpack.c.l.b16 %v9865
    %v9962 = vunpack.c.l.b16 %v9866
    %v9963 = vunpack.c.l.b16 %v9867
    %v9964 = vunpack.c.l.b16 %v9868
    %v9965 = vunpack.c.l.b16 %v9869
    %v9966 = vunpack.c.l.b16 %v9870
    %v9967 = vunpack.c.l.b16 %v9871
    %v9968 = vunpack.c.l.b16 %v9872
    %v9969 = vunpack.c.l.b16 %v9873
    %v9970 = vunpack.c.l.b16 %v9874
    %v9971 = vunpack.c.l.b16 %v9875
    %v9972 = vunpack.c.l.b16 %v9876
    %v9973 = vunpack.c.l.b16 %v9877
    %v9974 = vunpack.c.l.b16 %v9878
    %v9975 = vunpack.c.l.b16 %v9879
    %v9976 = vunpack.c.l.b16 %v9880
    %v9977 = vunpack.c.l.b16 %v9881
    %v9978 = vunpack.c.l.b16 %v9882
    %v9979 = vunpack.c.l.b16 %v9883
    %v9980 = vunpack.c.l.b16 %v9884
    %v9981 = vunpack.c.l.b16 %v9885
    %v9982 = vunpack.c.l.b16 %v9886
    %v9983 = vunpack.c.l.b16 %v9887
    %v9984 = vunpack.c.l.b16 %v9888
    %v9985 = vunpack.c.l.b16 %v9889
    %v9986 = vpack.c.b16 %v9939, %v9938
    %v9987 = vpack.c.b16 %v9941, %v9940
    %v9988 = vpack.c.b16 %v9943, %v9942
    %v9989 = vpack.c.b16 %v9945, %v9944
    %v9990 = vpack.c.b16 %v9947, %v9946
    %v9991 = vpack.c.b16 %v9949, %v9948
    %v9992 = vpack.c.b16 %v9951, %v9950
    %v9993 = vpack.c.b16 %v9953, %v9952
    %v9994 = vpack.c.b16 %v9955, %v9954
    %v9995 = vpack.c.b16 %v9957, %v9956
    %v9996 = vpack.c.b16 %v9959, %v9958
    %v9997 = vpack.c.b16 %v9961, %v9960
    %v9998 = vpack.c.b16 %v9963, %v9962
    %v9999 = vpack.c.b16 %v9965, %v9964
    %v10000 = vpack.c.b16 %v9967, %v9966
    %v10001 = vpack.c.b16 %v9969, %v9968
    %v10002 = vpack.c.b16 %v9971, %v9970
    %v10003 = vpack.c.b16 %v9973, %v9972
    %v10004 = vpack.c.b16 %v9975, %v9974
    %v10005 = vpack.c.b16 %v9977, %v9976
    %v10006 = vpack.c.b16 %v9979, %v9978
    %v10007 = vpack.c.b16 %v9981, %v9980
    %v10008 = vpack.c.b16 %v9983, %v9982
    %v10009 = vpack.c.b16 %v9985, %v9984
    %10034 = vmatprep.subr.bf16.mxu0 0
    %10035 = vmatpush1.bf16.msra.mxu0 %v9993
    %10036 = vmatprep.subr.bf16.mxu0 0
    %10037 = vmatpush1.bf16.msra.mxu0 %v9992
    %10038 = vmatprep.subr.bf16.mxu0 0
    %10039 = vmatpush1.bf16.msra.mxu0 %v9991
    %10040 = vmatprep.subr.bf16.mxu0 0
    %10041 = vmatpush1.bf16.msra.mxu0 %v9990
    %10042 = vmatprep.subr.bf16.mxu0 0
    %10043 = vmatpush1.bf16.msra.mxu0 %v9989
    %10044 = vmatprep.subr.bf16.mxu0 0
    %10045 = vmatpush1.bf16.msra.mxu0 %v9988
    %10046 = vmatprep.subr.bf16.mxu0 0
    %10047 = vmatpush1.bf16.msra.mxu0 %v9987
    %10048 = vmatprep.subr.bf16.mxu0 0
    %10049 = vmatpush1.bf16.msra.mxu0 %v9986
    %10050 = vmatprep.subr.bf16.mxu0 0
    %10051 = vmatpush2.bf16.msra.mxu0 %v10001
    %10052 = vmatprep.subr.bf16.mxu0 0
    %10053 = vmatpush2.bf16.msra.mxu0 %v10000
    %10054 = vmatprep.subr.bf16.mxu0 0
    %10055 = vmatpush2.bf16.msra.mxu0 %v9999
    %10056 = vmatprep.subr.bf16.mxu0 0
    %10057 = vmatpush2.bf16.msra.mxu0 %v9998
    %10058 = vmatprep.subr.bf16.mxu0 0
    %10059 = vmatpush2.bf16.msra.mxu0 %v9997
    %10060 = vmatprep.subr.bf16.mxu0 0
    %10061 = vmatpush2.bf16.msra.mxu0 %v9996
    %10062 = vmatprep.subr.bf16.mxu0 0
    %10063 = vmatpush2.bf16.msra.mxu0 %v9995
    %10064 = vmatprep.subr.bf16.mxu0 0
    %10065 = vmatpush2.bf16.msra.mxu0 %v9994
    %10066 = vmatprep.mubr.bf16.mxu0 %v9702
    %10067 = vmatmul.mubr.bf16.gmra.mxu0 %v9699
    %v10068 = vpop.f32.mrf.mxu0
    %v10069 = vadd.f32 0.0, %v10068
    %v10070 = vpop.f32.mrf.mxu0
    %v10071 = vpop.f32.mrf.mxu0
    %v10072 = vadd.f32 0.0, %v10071
    %v10073 = vpop.f32.mrf.mxu0
    %10074 = vmatprep.mubr.bf16.mxu0 %v9705
    %10075 = vmatmul.mubr.bf16.gmra.mxu0 %v9702
    %v10076 = vpop.f32.mrf.mxu0
    %v10077 = vadd.f32 0.0, %v10076
    %v10078 = vpop.f32.mrf.mxu0
    %v10079 = vpop.f32.mrf.mxu0
    %v10080 = vadd.f32 0.0, %v10079
    %v10081 = vpop.f32.mrf.mxu0
    %10082 = vmatprep.mubr.bf16.mxu0 %v9708
    %10083 = vmatmul.mubr.bf16.gmra.mxu0 %v9705
    %v10084 = vpop.f32.mrf.mxu0
    %v10085 = vadd.f32 0.0, %v10084
    %v10086 = vpop.f32.mrf.mxu0
    %v10087 = vpop.f32.mrf.mxu0
    %v10088 = vadd.f32 0.0, %v10087
    %v10089 = vpop.f32.mrf.mxu0
    %10090 = vmatprep.mubr.bf16.mxu0 %v9711
    %10091 = vmatmul.mubr.bf16.gmra.mxu0 %v9708
    %v10092 = vpop.f32.mrf.mxu0
    %v10093 = vadd.f32 0.0, %v10092
    %v10094 = vpop.f32.mrf.mxu0
    %v10095 = vpop.f32.mrf.mxu0
    %v10096 = vadd.f32 0.0, %v10095
    %v10097 = vpop.f32.mrf.mxu0
    %10098 = vmatprep.mubr.bf16.mxu0 %v9714
    %10099 = vmatmul.mubr.bf16.gmra.mxu0 %v9711
    %v10100 = vpop.f32.mrf.mxu0
    %v10101 = vadd.f32 0.0, %v10100
    %v10102 = vpop.f32.mrf.mxu0
    %v10103 = vpop.f32.mrf.mxu0
    %v10104 = vadd.f32 0.0, %v10103
    %v10105 = vpop.f32.mrf.mxu0
    %10106 = vmatprep.mubr.bf16.mxu0 %v9717
    %10107 = vmatmul.mubr.bf16.gmra.mxu0 %v9714
    %v10108 = vpop.f32.mrf.mxu0
    %v10109 = vadd.f32 0.0, %v10108
    %v10110 = vpop.f32.mrf.mxu0
    %v10111 = vpop.f32.mrf.mxu0
    %v10112 = vadd.f32 0.0, %v10111
    %v10113 = vpop.f32.mrf.mxu0
    %10114 = vmatprep.mubr.bf16.mxu0 %v9720
    %10115 = vmatmul.mubr.bf16.gmra.mxu0 %v9717
    %v10116 = vpop.f32.mrf.mxu0
    %v10117 = vadd.f32 0.0, %v10116
    %v10118 = vpop.f32.mrf.mxu0
    %v10119 = vpop.f32.mrf.mxu0
    %v10120 = vadd.f32 0.0, %v10119
    %v10121 = vpop.f32.mrf.mxu0
    %10122 = vmatprep.mubr.bf16.mxu0 %v9723
    %10123 = vmatmul.mubr.bf16.gmra.mxu0 %v9720
    %v10124 = vpop.f32.mrf.mxu0
    %v10125 = vadd.f32 0.0, %v10124
    %v10126 = vpop.f32.mrf.mxu0
    %v10127 = vpop.f32.mrf.mxu0
    %v10128 = vadd.f32 0.0, %v10127
    %v10129 = vpop.f32.mrf.mxu0
    %10130 = vmatprep.mubr.bf16.mxu0 %v9726
    %10131 = vmatmul.mubr.bf16.gmra.mxu0 %v9723
    %v10132 = vpop.f32.mrf.mxu0
    %v10133 = vadd.f32 0.0, %v10132
    %v10134 = vpop.f32.mrf.mxu0
    %v10135 = vpop.f32.mrf.mxu0
    %v10136 = vadd.f32 0.0, %v10135
    %v10137 = vpop.f32.mrf.mxu0
    %10138 = vmatprep.mubr.bf16.mxu0 %v9729
    %10139 = vmatmul.mubr.bf16.gmra.mxu0 %v9726
    %v10140 = vpop.f32.mrf.mxu0
    %v10141 = vadd.f32 0.0, %v10140
    %v10142 = vpop.f32.mrf.mxu0
    %v10143 = vpop.f32.mrf.mxu0
    %v10144 = vadd.f32 0.0, %v10143
    %v10145 = vpop.f32.mrf.mxu0
    %10146 = vmatprep.mubr.bf16.mxu0 %v9732
    %10147 = vmatmul.mubr.bf16.gmra.mxu0 %v9729
    %v10148 = vpop.f32.mrf.mxu0
    %v10149 = vadd.f32 0.0, %v10148
    %v10150 = vpop.f32.mrf.mxu0
    %v10151 = vpop.f32.mrf.mxu0
    %v10152 = vadd.f32 0.0, %v10151
    %v10153 = vpop.f32.mrf.mxu0
    %10154 = vmatprep.mubr.bf16.mxu0 %v9735
    %10155 = vmatmul.mubr.bf16.gmra.mxu0 %v9732
    %v10156 = vpop.f32.mrf.mxu0
    %v10157 = vadd.f32 0.0, %v10156
    %v10158 = vpop.f32.mrf.mxu0
    %v10159 = vpop.f32.mrf.mxu0
    %v10160 = vadd.f32 0.0, %v10159
    %v10161 = vpop.f32.mrf.mxu0
    %10162 = vmatprep.mubr.bf16.mxu0 %v9738
    %10163 = vmatmul.mubr.bf16.gmra.mxu0 %v9735
    %v10164 = vpop.f32.mrf.mxu0
    %v10165 = vadd.f32 0.0, %v10164
    %v10166 = vpop.f32.mrf.mxu0
    %v10167 = vpop.f32.mrf.mxu0
    %v10168 = vadd.f32 0.0, %v10167
    %v10169 = vpop.f32.mrf.mxu0
    %10170 = vmatprep.mubr.bf16.mxu0 %v9741
    %10171 = vmatmul.mubr.bf16.gmra.mxu0 %v9738
    %v10172 = vpop.f32.mrf.mxu0
    %v10173 = vadd.f32 0.0, %v10172
    %v10174 = vpop.f32.mrf.mxu0
    %v10175 = vpop.f32.mrf.mxu0
    %v10176 = vadd.f32 0.0, %v10175
    %v10177 = vpop.f32.mrf.mxu0
    %10178 = vmatprep.mubr.bf16.mxu0 %v9744
    %10179 = vmatmul.mubr.bf16.gmra.mxu0 %v9741
    %v10180 = vpop.f32.mrf.mxu0
    %v10181 = vadd.f32 0.0, %v10180
    %v10182 = vpop.f32.mrf.mxu0
    %v10183 = vpop.f32.mrf.mxu0
    %v10184 = vadd.f32 0.0, %v10183
    %v10185 = vpop.f32.mrf.mxu0
    %10186 = vmatprep.mubr.bf16.mxu0 %v9747
    %10187 = vmatmul.mubr.bf16.gmra.mxu0 %v9744
    %v10188 = vpop.f32.mrf.mxu0
    %v10189 = vadd.f32 0.0, %v10188
    %v10190 = vpop.f32.mrf.mxu0
    %v10191 = vpop.f32.mrf.mxu0
    %v10192 = vadd.f32 0.0, %v10191
    %v10193 = vpop.f32.mrf.mxu0
    %10194 = vmatprep.mubr.bf16.mxu0 %v9756
    %10195 = vmatmul.mubr.bf16.gmra.mxu0 %v9753
    %v10196 = vpop.f32.mrf.mxu0
    %v10197 = vadd.f32 0.0, %v10196
    %v10198 = vpop.f32.mrf.mxu0
    %v10199 = vpop.f32.mrf.mxu0
    %v10200 = vadd.f32 0.0, %v10199
    %v10201 = vpop.f32.mrf.mxu0
    %10202 = vmatprep.mubr.bf16.mxu0 %v9759
    %10203 = vmatmul.mubr.bf16.gmra.mxu0 %v9756
    %v10204 = vpop.f32.mrf.mxu0
    %v10205 = vadd.f32 0.0, %v10204
    %v10206 = vpop.f32.mrf.mxu0
    %v10207 = vpop.f32.mrf.mxu0
    %v10208 = vadd.f32 0.0, %v10207
    %v10209 = vpop.f32.mrf.mxu0
    %10210 = vmatprep.mubr.bf16.mxu0 %v9762
    %10211 = vmatmul.mubr.bf16.gmra.mxu0 %v9759
    %v10212 = vpop.f32.mrf.mxu0
    %v10213 = vadd.f32 0.0, %v10212
    %v10214 = vpop.f32.mrf.mxu0
    %v10215 = vpop.f32.mrf.mxu0
    %v10216 = vadd.f32 0.0, %v10215
    %v10217 = vpop.f32.mrf.mxu0
    %10218 = vmatprep.mubr.bf16.mxu0 %v9765
    %10219 = vmatmul.mubr.bf16.gmra.mxu0 %v9762
    %v10220 = vpop.f32.mrf.mxu0
    %v10221 = vadd.f32 0.0, %v10220
    %v10222 = vpop.f32.mrf.mxu0
    %v10223 = vpop.f32.mrf.mxu0
    %v10224 = vadd.f32 0.0, %v10223
    %v10225 = vpop.f32.mrf.mxu0
    %10226 = vmatprep.mubr.bf16.mxu0 %v9768
    %10227 = vmatmul.mubr.bf16.gmra.mxu0 %v9765
    %v10228 = vpop.f32.mrf.mxu0
    %v10229 = vadd.f32 0.0, %v10228
    %v10230 = vpop.f32.mrf.mxu0
    %v10231 = vpop.f32.mrf.mxu0
    %v10232 = vadd.f32 0.0, %v10231
    %v10233 = vpop.f32.mrf.mxu0
    %10234 = vmatprep.mubr.bf16.mxu0 %v9771
    %10235 = vmatmul.mubr.bf16.gmra.mxu0 %v9768
    %v10236 = vpop.f32.mrf.mxu0
    %v10237 = vadd.f32 0.0, %v10236
    %v10238 = vpop.f32.mrf.mxu0
    %v10239 = vpop.f32.mrf.mxu0
    %v10240 = vadd.f32 0.0, %v10239
    %v10241 = vpop.f32.mrf.mxu0
    %10242 = vmatprep.mubr.bf16.mxu0 %v9774
    %10243 = vmatmul.mubr.bf16.gmra.mxu0 %v9771
    %v10244 = vpop.f32.mrf.mxu0
    %v10245 = vadd.f32 0.0, %v10244
    %v10246 = vpop.f32.mrf.mxu0
    %v10247 = vpop.f32.mrf.mxu0
    %v10248 = vadd.f32 0.0, %v10247
    %v10249 = vpop.f32.mrf.mxu0
    %10250 = vmatprep.mubr.bf16.mxu0 %v9777
    %10251 = vmatmul.mubr.bf16.gmra.mxu0 %v9774
    %v10252 = vpop.f32.mrf.mxu0
    %v10253 = vadd.f32 0.0, %v10252
    %v10254 = vpop.f32.mrf.mxu0
    %v10255 = vpop.f32.mrf.mxu0
    %v10256 = vadd.f32 0.0, %v10255
    %v10257 = vpop.f32.mrf.mxu0
    %10258 = vmatprep.mubr.bf16.mxu0 %v9780
    %10259 = vmatmul.mubr.bf16.gmra.mxu0 %v9777
    %v10260 = vpop.f32.mrf.mxu0
    %v10261 = vadd.f32 0.0, %v10260
    %v10262 = vpop.f32.mrf.mxu0
    %v10263 = vpop.f32.mrf.mxu0
    %v10264 = vadd.f32 0.0, %v10263
    %v10265 = vpop.f32.mrf.mxu0
    %10266 = vmatprep.mubr.bf16.mxu0 %v9783
    %10267 = vmatmul.mubr.bf16.gmra.mxu0 %v9780
    %v10268 = vpop.f32.mrf.mxu0
    %v10269 = vadd.f32 0.0, %v10268
    %v10270 = vpop.f32.mrf.mxu0
    %v10271 = vpop.f32.mrf.mxu0
    %v10272 = vadd.f32 0.0, %v10271
    %v10273 = vpop.f32.mrf.mxu0
    %10274 = vmatprep.mubr.bf16.mxu0 %v9786
    %10275 = vmatmul.mubr.bf16.gmra.mxu0 %v9783
    %v10276 = vpop.f32.mrf.mxu0
    %v10277 = vadd.f32 0.0, %v10276
    %v10278 = vpop.f32.mrf.mxu0
    %v10279 = vpop.f32.mrf.mxu0
    %v10280 = vadd.f32 0.0, %v10279
    %v10281 = vpop.f32.mrf.mxu0
    %10282 = vmatprep.mubr.bf16.mxu0 %v9789
    %10283 = vmatmul.mubr.bf16.gmra.mxu0 %v9786
    %v10284 = vpop.f32.mrf.mxu0
    %v10285 = vadd.f32 0.0, %v10284
    %v10286 = vpop.f32.mrf.mxu0
    %v10287 = vpop.f32.mrf.mxu0
    %v10288 = vadd.f32 0.0, %v10287
    %v10289 = vpop.f32.mrf.mxu0
    %10290 = vmatprep.mubr.bf16.mxu0 %v9792
    %10291 = vmatmul.mubr.bf16.gmra.mxu0 %v9789
    %v10292 = vpop.f32.mrf.mxu0
    %v10293 = vadd.f32 0.0, %v10292
    %v10294 = vpop.f32.mrf.mxu0
    %v10295 = vpop.f32.mrf.mxu0
    %v10296 = vadd.f32 0.0, %v10295
    %v10297 = vpop.f32.mrf.mxu0
    %10298 = vmatprep.mubr.bf16.mxu0 %v9795
    %10299 = vmatmul.mubr.bf16.gmra.mxu0 %v9792
    %v10300 = vpop.f32.mrf.mxu0
    %v10301 = vadd.f32 0.0, %v10300
    %v10302 = vpop.f32.mrf.mxu0
    %v10303 = vpop.f32.mrf.mxu0
    %v10304 = vadd.f32 0.0, %v10303
    %v10305 = vpop.f32.mrf.mxu0
    %10306 = vmatprep.mubr.bf16.mxu0 %v9798
    %10307 = vmatmul.mubr.bf16.gmra.mxu0 %v9795
    %v10308 = vpop.f32.mrf.mxu0
    %v10309 = vadd.f32 0.0, %v10308
    %v10310 = vpop.f32.mrf.mxu0
    %v10311 = vpop.f32.mrf.mxu0
    %v10312 = vadd.f32 0.0, %v10311
    %v10313 = vpop.f32.mrf.mxu0
    %10314 = vmatprep.mubr.bf16.mxu0 %v9801
    %10315 = vmatmul.mubr.bf16.gmra.mxu0 %v9798
    %v10316 = vpop.f32.mrf.mxu0
    %v10317 = vadd.f32 0.0, %v10316
    %v10318 = vpop.f32.mrf.mxu0
    %v10319 = vpop.f32.mrf.mxu0
    %v10320 = vadd.f32 0.0, %v10319
    %v10321 = vpop.f32.mrf.mxu0
    %10322 = vdwg.mxu0
    %10323 = vmatprep.subr.bf16.mxu0 0
    %10324 = vmatpush1.bf16.msra.mxu0 %v10009
    %10325 = vmatprep.subr.bf16.mxu0 0
    %10326 = vmatpush1.bf16.msra.mxu0 %v10008
    %10327 = vmatprep.subr.bf16.mxu0 0
    %10328 = vmatpush1.bf16.msra.mxu0 %v10007
    %10329 = vmatprep.subr.bf16.mxu0 0
    %10330 = vmatpush1.bf16.msra.mxu0 %v10006
    %10331 = vmatprep.subr.bf16.mxu0 0
    %10332 = vmatpush1.bf16.msra.mxu0 %v10005
    %10333 = vmatprep.subr.bf16.mxu0 0
    %10334 = vmatpush1.bf16.msra.mxu0 %v10004
    %10335 = vmatprep.subr.bf16.mxu0 0
    %10336 = vmatpush1.bf16.msra.mxu0 %v10003
    %10337 = vmatprep.subr.bf16.mxu0 0
    %10338 = vmatpush1.bf16.msra.mxu0 %v10002
    %10339 = vmatprep.subr.bf16.mxu0 0
    %10340 = vmatpush2.bf16.msra.mxu0 0
    %10341 = vmatprep.subr.bf16.mxu0 0
    %10342 = vmatpush2.bf16.msra.mxu0 0
    %10343 = vmatprep.subr.bf16.mxu0 0
    %10344 = vmatpush2.bf16.msra.mxu0 0
    %10345 = vmatprep.subr.bf16.mxu0 0
    %10346 = vmatpush2.bf16.msra.mxu0 0
    %10347 = vmatprep.subr.bf16.mxu0 0
    %10348 = vmatpush2.bf16.msra.mxu0 0
    %10349 = vmatprep.subr.bf16.mxu0 0
    %10350 = vmatpush2.bf16.msra.mxu0 0
    %10351 = vmatprep.subr.bf16.mxu0 0
    %10352 = vmatpush2.bf16.msra.mxu0 0
    %10353 = vmatprep.subr.bf16.mxu0 0
    %10354 = vmatpush2.bf16.msra.mxu0 0
    %10355 = vmatprep.mubr.bf16.mxu0 0
    %10356 = vmatmul.mubr.bf16.gmra.mxu0 %v9705
    %v10357 = vpop.f32.mrf.mxu0
    %v10358 = vadd.f32 %v10069, %v10357
    %v10359 = vpop.f32.mrf.mxu0
    %v10360 = vpop.f32.mrf.mxu0
    %v10361 = vadd.f32 %v10072, %v10360
    %v10362 = vpop.f32.mrf.mxu0
    %10363 = vmatprep.mubr.bf16.mxu0 0
    %10364 = vmatmul.mubr.bf16.gmra.mxu0 %v9708
    %v10365 = vpop.f32.mrf.mxu0
    %v10366 = vadd.f32 %v10077, %v10365
    %v10367 = vpop.f32.mrf.mxu0
    %v10368 = vpop.f32.mrf.mxu0
    %v10369 = vadd.f32 %v10080, %v10368
    %v10370 = vpop.f32.mrf.mxu0
    %10371 = vmatprep.mubr.bf16.mxu0 0
    %10372 = vmatmul.mubr.bf16.gmra.mxu0 %v9711
    %v10373 = vpop.f32.mrf.mxu0
    %v10374 = vadd.f32 %v10085, %v10373
    %v10375 = vpop.f32.mrf.mxu0
    %v10376 = vpop.f32.mrf.mxu0
    %v10377 = vadd.f32 %v10088, %v10376
    %v10378 = vpop.f32.mrf.mxu0
    %10379 = vmatprep.mubr.bf16.mxu0 0
    %10380 = vmatmul.mubr.bf16.gmra.mxu0 %v9714
    %v10381 = vpop.f32.mrf.mxu0
    %v10382 = vadd.f32 %v10093, %v10381
    %v10383 = vpop.f32.mrf.mxu0
    %v10384 = vpop.f32.mrf.mxu0
    %v10385 = vadd.f32 %v10096, %v10384
    %v10386 = vpop.f32.mrf.mxu0
    %10387 = vmatprep.mubr.bf16.mxu0 0
    %10388 = vmatmul.mubr.bf16.gmra.mxu0 %v9717
    %v10389 = vpop.f32.mrf.mxu0
    %v10390 = vadd.f32 %v10101, %v10389
    %v10391 = vpop.f32.mrf.mxu0
    %v10392 = vpop.f32.mrf.mxu0
    %v10393 = vadd.f32 %v10104, %v10392
    %v10394 = vpop.f32.mrf.mxu0
    %10395 = vmatprep.mubr.bf16.mxu0 0
    %10396 = vmatmul.mubr.bf16.gmra.mxu0 %v9720
    %v10397 = vpop.f32.mrf.mxu0
    %v10398 = vadd.f32 %v10109, %v10397
    %v10399 = vpop.f32.mrf.mxu0
    %v10400 = vpop.f32.mrf.mxu0
    %v10401 = vadd.f32 %v10112, %v10400
    %v10402 = vpop.f32.mrf.mxu0
    %10403 = vmatprep.mubr.bf16.mxu0 0
    %10404 = vmatmul.mubr.bf16.gmra.mxu0 %v9723
    %v10405 = vpop.f32.mrf.mxu0
    %v10406 = vadd.f32 %v10117, %v10405
    %v10407 = vpop.f32.mrf.mxu0
    %v10408 = vpop.f32.mrf.mxu0
    %v10409 = vadd.f32 %v10120, %v10408
    %v10410 = vpop.f32.mrf.mxu0
    %10411 = vmatprep.mubr.bf16.mxu0 0
    %10412 = vmatmul.mubr.bf16.gmra.mxu0 %v9726
    %v10413 = vpop.f32.mrf.mxu0
    %v10414 = vadd.f32 %v10125, %v10413
    %v10415 = vpop.f32.mrf.mxu0
    %v10416 = vpop.f32.mrf.mxu0
    %v10417 = vadd.f32 %v10128, %v10416
    %v10418 = vpop.f32.mrf.mxu0
    %10419 = vmatprep.mubr.bf16.mxu0 0
    %10420 = vmatmul.mubr.bf16.gmra.mxu0 %v9729
    %v10421 = vpop.f32.mrf.mxu0
    %v10422 = vadd.f32 %v10133, %v10421
    %v10423 = vpop.f32.mrf.mxu0
    %v10424 = vpop.f32.mrf.mxu0
    %v10425 = vadd.f32 %v10136, %v10424
    %v10426 = vpop.f32.mrf.mxu0
    %10427 = vmatprep.mubr.bf16.mxu0 0
    %10428 = vmatmul.mubr.bf16.gmra.mxu0 %v9732
    %v10429 = vpop.f32.mrf.mxu0
    %v10430 = vadd.f32 %v10141, %v10429
    %v10431 = vpop.f32.mrf.mxu0
    %v10432 = vpop.f32.mrf.mxu0
    %v10433 = vadd.f32 %v10144, %v10432
    %v10434 = vpop.f32.mrf.mxu0
    %10435 = vmatprep.mubr.bf16.mxu0 0
    %10436 = vmatmul.mubr.bf16.gmra.mxu0 %v9735
    %v10437 = vpop.f32.mrf.mxu0
    %v10438 = vadd.f32 %v10149, %v10437
    %v10439 = vpop.f32.mrf.mxu0
    %v10440 = vpop.f32.mrf.mxu0
    %v10441 = vadd.f32 %v10152, %v10440
    %v10442 = vpop.f32.mrf.mxu0
    %10443 = vmatprep.mubr.bf16.mxu0 0
    %10444 = vmatmul.mubr.bf16.gmra.mxu0 %v9738
    %v10445 = vpop.f32.mrf.mxu0
    %v10446 = vadd.f32 %v10157, %v10445
    %v10447 = vpop.f32.mrf.mxu0
    %v10448 = vpop.f32.mrf.mxu0
    %v10449 = vadd.f32 %v10160, %v10448
    %v10450 = vpop.f32.mrf.mxu0
    %10451 = vmatprep.mubr.bf16.mxu0 0
    %10452 = vmatmul.mubr.bf16.gmra.mxu0 %v9741
    %v10453 = vpop.f32.mrf.mxu0
    %v10454 = vadd.f32 %v10165, %v10453
    %v10455 = vpop.f32.mrf.mxu0
    %v10456 = vpop.f32.mrf.mxu0
    %v10457 = vadd.f32 %v10168, %v10456
    %v10458 = vpop.f32.mrf.mxu0
    %10459 = vmatprep.mubr.bf16.mxu0 0
    %10460 = vmatmul.mubr.bf16.gmra.mxu0 %v9744
    %v10461 = vpop.f32.mrf.mxu0
    %v10462 = vadd.f32 %v10173, %v10461
    %v10463 = vpop.f32.mrf.mxu0
    %v10464 = vpop.f32.mrf.mxu0
    %v10465 = vadd.f32 %v10176, %v10464
    %v10466 = vpop.f32.mrf.mxu0
    %10467 = vmatprep.mubr.bf16.mxu0 0
    %10468 = vmatmul.mubr.bf16.gmra.mxu0 %v9747
    %v10469 = vpop.f32.mrf.mxu0
    %v10470 = vadd.f32 %v10181, %v10469
    %v10471 = vpop.f32.mrf.mxu0
    %v10472 = vpop.f32.mrf.mxu0
    %v10473 = vadd.f32 %v10184, %v10472
    %v10474 = vpop.f32.mrf.mxu0
    %10475 = vmatprep.mubr.bf16.mxu0 0
    %10476 = vmatmul.mubr.bf16.gmra.mxu0 %v9750
    %v10477 = vpop.f32.mrf.mxu0
    %v10478 = vadd.f32 %v10189, %v10477
    %v10479 = vpop.f32.mrf.mxu0
    %v10480 = vpop.f32.mrf.mxu0
    %v10481 = vadd.f32 %v10192, %v10480
    %v10482 = vpop.f32.mrf.mxu0
    %10483 = vmatprep.mubr.bf16.mxu0 0
    %10484 = vmatmul.mubr.bf16.gmra.mxu0 %v9759
    %v10485 = vpop.f32.mrf.mxu0
    %v10486 = vadd.f32 %v10197, %v10485
    %v10487 = vpop.f32.mrf.mxu0
    %v10488 = vpop.f32.mrf.mxu0
    %v10489 = vadd.f32 %v10200, %v10488
    %v10490 = vpop.f32.mrf.mxu0
    %10491 = vmatprep.mubr.bf16.mxu0 0
    %10492 = vmatmul.mubr.bf16.gmra.mxu0 %v9762
    %v10493 = vpop.f32.mrf.mxu0
    %v10494 = vadd.f32 %v10205, %v10493
    %v10495 = vpop.f32.mrf.mxu0
    %v10496 = vpop.f32.mrf.mxu0
    %v10497 = vadd.f32 %v10208, %v10496
    %v10498 = vpop.f32.mrf.mxu0
    %10499 = vmatprep.mubr.bf16.mxu0 0
    %10500 = vmatmul.mubr.bf16.gmra.mxu0 %v9765
    %v10501 = vpop.f32.mrf.mxu0
    %v10502 = vadd.f32 %v10213, %v10501
    %v10503 = vpop.f32.mrf.mxu0
    %v10504 = vpop.f32.mrf.mxu0
    %v10505 = vadd.f32 %v10216, %v10504
    %v10506 = vpop.f32.mrf.mxu0
    %10507 = vmatprep.mubr.bf16.mxu0 0
    %10508 = vmatmul.mubr.bf16.gmra.mxu0 %v9768
    %v10509 = vpop.f32.mrf.mxu0
    %v10510 = vadd.f32 %v10221, %v10509
    %v10511 = vpop.f32.mrf.mxu0
    %v10512 = vpop.f32.mrf.mxu0
    %v10513 = vadd.f32 %v10224, %v10512
    %v10514 = vpop.f32.mrf.mxu0
    %10515 = vmatprep.mubr.bf16.mxu0 0
    %10516 = vmatmul.mubr.bf16.gmra.mxu0 %v9771
    %v10517 = vpop.f32.mrf.mxu0
    %v10518 = vadd.f32 %v10229, %v10517
    %v10519 = vpop.f32.mrf.mxu0
    %v10520 = vpop.f32.mrf.mxu0
    %v10521 = vadd.f32 %v10232, %v10520
    %v10522 = vpop.f32.mrf.mxu0
    %10523 = vmatprep.mubr.bf16.mxu0 0
    %10524 = vmatmul.mubr.bf16.gmra.mxu0 %v9774
    %v10525 = vpop.f32.mrf.mxu0
    %v10526 = vadd.f32 %v10237, %v10525
    %v10527 = vpop.f32.mrf.mxu0
    %v10528 = vpop.f32.mrf.mxu0
    %v10529 = vadd.f32 %v10240, %v10528
    %v10530 = vpop.f32.mrf.mxu0
    %10531 = vmatprep.mubr.bf16.mxu0 0
    %10532 = vmatmul.mubr.bf16.gmra.mxu0 %v9777
    %v10533 = vpop.f32.mrf.mxu0
    %v10534 = vadd.f32 %v10245, %v10533
    %v10535 = vpop.f32.mrf.mxu0
    %v10536 = vpop.f32.mrf.mxu0
    %v10537 = vadd.f32 %v10248, %v10536
    %v10538 = vpop.f32.mrf.mxu0
    %10539 = vmatprep.mubr.bf16.mxu0 0
    %10540 = vmatmul.mubr.bf16.gmra.mxu0 %v9780
    %v10541 = vpop.f32.mrf.mxu0
    %v10542 = vadd.f32 %v10253, %v10541
    %v10543 = vpop.f32.mrf.mxu0
    %v10544 = vpop.f32.mrf.mxu0
    %v10545 = vadd.f32 %v10256, %v10544
    %v10546 = vpop.f32.mrf.mxu0
    %10547 = vmatprep.mubr.bf16.mxu0 0
    %10548 = vmatmul.mubr.bf16.gmra.mxu0 %v9783
    %v10549 = vpop.f32.mrf.mxu0
    %v10550 = vadd.f32 %v10261, %v10549
    %v10551 = vpop.f32.mrf.mxu0
    %v10552 = vpop.f32.mrf.mxu0
    %v10553 = vadd.f32 %v10264, %v10552
    %v10554 = vpop.f32.mrf.mxu0
    %10555 = vmatprep.mubr.bf16.mxu0 0
    %10556 = vmatmul.mubr.bf16.gmra.mxu0 %v9786
    %v10557 = vpop.f32.mrf.mxu0
    %v10558 = vadd.f32 %v10269, %v10557
    %v10559 = vpop.f32.mrf.mxu0
    %v10560 = vpop.f32.mrf.mxu0
    %v10561 = vadd.f32 %v10272, %v10560
    %v10562 = vpop.f32.mrf.mxu0
    %10563 = vmatprep.mubr.bf16.mxu0 0
    %10564 = vmatmul.mubr.bf16.gmra.mxu0 %v9789
    %v10565 = vpop.f32.mrf.mxu0
    %v10566 = vadd.f32 %v10277, %v10565
    %v10567 = vpop.f32.mrf.mxu0
    %v10568 = vpop.f32.mrf.mxu0
    %v10569 = vadd.f32 %v10280, %v10568
    %v10570 = vpop.f32.mrf.mxu0
    %10571 = vmatprep.mubr.bf16.mxu0 0
    %10572 = vmatmul.mubr.bf16.gmra.mxu0 %v9792
    %v10573 = vpop.f32.mrf.mxu0
    %v10574 = vadd.f32 %v10285, %v10573
    %v10575 = vpop.f32.mrf.mxu0
    %v10576 = vpop.f32.mrf.mxu0
    %v10577 = vadd.f32 %v10288, %v10576
    %v10578 = vpop.f32.mrf.mxu0
    %10579 = vmatprep.mubr.bf16.mxu0 0
    %10580 = vmatmul.mubr.bf16.gmra.mxu0 %v9795
    %v10581 = vpop.f32.mrf.mxu0
    %v10582 = vadd.f32 %v10293, %v10581
    %v10583 = vpop.f32.mrf.mxu0
    %v10584 = vpop.f32.mrf.mxu0
    %v10585 = vadd.f32 %v10296, %v10584
    %v10586 = vpop.f32.mrf.mxu0
    %10587 = vmatprep.mubr.bf16.mxu0 0
    %10588 = vmatmul.mubr.bf16.gmra.mxu0 %v9798
    %v10589 = vpop.f32.mrf.mxu0
    %v10590 = vadd.f32 %v10301, %v10589
    %v10591 = vpop.f32.mrf.mxu0
    %v10592 = vpop.f32.mrf.mxu0
    %v10593 = vadd.f32 %v10304, %v10592
    %v10594 = vpop.f32.mrf.mxu0
    %10595 = vmatprep.mubr.bf16.mxu0 0
    %10596 = vmatmul.mubr.bf16.gmra.mxu0 %v9801
    %v10597 = vpop.f32.mrf.mxu0
    %v10598 = vadd.f32 %v10309, %v10597
    %v10599 = vpop.f32.mrf.mxu0
    %v10600 = vpop.f32.mrf.mxu0
    %v10601 = vadd.f32 %v10312, %v10600
    %v10602 = vpop.f32.mrf.mxu0
    %10603 = vmatprep.mubr.bf16.mxu0 0
    %10604 = vmatmul.mubr.bf16.gmra.mxu0 %v9804
    %v10605 = vpop.f32.mrf.mxu0
    %v10606 = vadd.f32 %v10317, %v10605
    %v10607 = vpop.f32.mrf.mxu0
    %v10608 = vpop.f32.mrf.mxu0
    %v10609 = vadd.f32 %v10320, %v10608
    %v10610 = vpop.f32.mrf.mxu0
    %10611 = vdwg.mxu0
    %v10612 = vadd.f32 %v9299, %v10358
    %v10613 = vadd.f32 %v9302, %v10361
    %v10614 = vadd.f32 %v9307, %v10366
    %v10615 = vadd.f32 %v9310, %v10369
    %v10616 = vadd.f32 %v9315, %v10374
    %v10617 = vadd.f32 %v9318, %v10377
    %v10618 = vadd.f32 %v9323, %v10382
    %v10619 = vadd.f32 %v9326, %v10385
    %v10620 = vadd.f32 %v9331, %v10390
    %v10621 = vadd.f32 %v9334, %v10393
    %v10622 = vadd.f32 %v9339, %v10398
    %v10623 = vadd.f32 %v9342, %v10401
    %v10624 = vadd.f32 %v9347, %v10406
    %v10625 = vadd.f32 %v9350, %v10409
    %v10626 = vadd.f32 %v9355, %v10414
    %v10627 = vadd.f32 %v9358, %v10417
    %v10628 = vadd.f32 %v9363, %v10422
    %v10629 = vadd.f32 %v9366, %v10425
    %v10630 = vadd.f32 %v9371, %v10430
    %v10631 = vadd.f32 %v9374, %v10433
    %v10632 = vadd.f32 %v9379, %v10438
    %v10633 = vadd.f32 %v9382, %v10441
    %v10634 = vadd.f32 %v9387, %v10446
    %v10635 = vadd.f32 %v9390, %v10449
    %v10636 = vadd.f32 %v9395, %v10454
    %v10637 = vadd.f32 %v9398, %v10457
    %v10638 = vadd.f32 %v9403, %v10462
    %v10639 = vadd.f32 %v9406, %v10465
    %v10640 = vadd.f32 %v9411, %v10470
    %v10641 = vadd.f32 %v9414, %v10473
    %v10642 = vadd.f32 %v9419, %v10478
    %v10643 = vadd.f32 %v9422, %v10481
    %v10644 = vadd.f32 %v9427, %v10486
    %v10645 = vadd.f32 %v9430, %v10489
    %v10646 = vadd.f32 %v9435, %v10494
    %v10647 = vadd.f32 %v9438, %v10497
    %v10648 = vadd.f32 %v9443, %v10502
    %v10649 = vadd.f32 %v9446, %v10505
    %v10650 = vadd.f32 %v9451, %v10510
    %v10651 = vadd.f32 %v9454, %v10513
    %v10652 = vadd.f32 %v9459, %v10518
    %v10653 = vadd.f32 %v9462, %v10521
    %v10654 = vadd.f32 %v9467, %v10526
    %v10655 = vadd.f32 %v9470, %v10529
    %v10656 = vadd.f32 %v9475, %v10534
    %v10657 = vadd.f32 %v9478, %v10537
    %v10658 = vadd.f32 %v9483, %v10542
    %v10659 = vadd.f32 %v9486, %v10545
    %v10660 = vadd.f32 %v9491, %v10550
    %v10661 = vadd.f32 %v9494, %v10553
    %v10662 = vadd.f32 %v9499, %v10558
    %v10663 = vadd.f32 %v9502, %v10561
    %v10664 = vadd.f32 %v9507, %v10566
    %v10665 = vadd.f32 %v9510, %v10569
    %v10666 = vadd.f32 %v9515, %v10574
    %v10667 = vadd.f32 %v9518, %v10577
    %v10668 = vadd.f32 %v9523, %v10582
    %v10669 = vadd.f32 %v9526, %v10585
    %v10670 = vadd.f32 %v9531, %v10590
    %v10671 = vadd.f32 %v9534, %v10593
    %v10672 = vadd.f32 %v9539, %v10598
    %v10673 = vadd.f32 %v9542, %v10601
    %v10674 = vadd.f32 %v9547, %v10606
    %v10675 = vadd.f32 %v9550, %v10609
    %v10676 = vadd.f32 %v10612, %v10613
    %v10677 = vadd.f32 %v10676, %v10614
    %v10678 = vadd.f32 %v10677, %v10615
    %v10679 = vadd.f32 %v10678, %v10616
    %v10680 = vadd.f32 %v10679, %v10617
    %v10681 = vadd.f32 %v10680, %v10618
    %v10682 = vadd.f32 %v10681, %v10619
    %v10683 = vadd.f32 %v10682, %v10620
    %v10684 = vadd.f32 %v10683, %v10621
    %v10685 = vadd.f32 %v10684, %v10622
    %v10686 = vadd.f32 %v10685, %v10623
    %v10687 = vadd.f32 %v10686, %v10624
    %v10688 = vadd.f32 %v10687, %v10625
    %v10689 = vadd.f32 %v10688, %v10626
    %v10690 = vadd.f32 %v10689, %v10627
    %v10691 = vadd.f32 %v10690, %v10628
    %v10692 = vadd.f32 %v10691, %v10629
    %v10693 = vadd.f32 %v10692, %v10630
    %v10694 = vadd.f32 %v10693, %v10631
    %v10695 = vadd.f32 %v10694, %v10632
    %v10696 = vadd.f32 %v10695, %v10633
    %v10697 = vadd.f32 %v10696, %v10634
    %v10698 = vadd.f32 %v10697, %v10635
    %v10699 = vadd.f32 %v10698, %v10636
    %v10700 = vadd.f32 %v10699, %v10637
    %v10701 = vadd.f32 %v10700, %v10638
    %v10702 = vadd.f32 %v10701, %v10639
    %v10703 = vadd.f32 %v10702, %v10640
    %v10704 = vadd.f32 %v10703, %v10641
    %v10705 = vadd.f32 %v10704, %v10642
    %v10706 = vadd.f32 %v10705, %v10643
    %v10707 = vadd.f32 %v10706, %v10644
    %v10708 = vadd.f32 %v10707, %v10645
    %v10709 = vadd.f32 %v10708, %v10646
    %v10710 = vadd.f32 %v10709, %v10647
    %v10711 = vadd.f32 %v10710, %v10648
    %v10712 = vadd.f32 %v10711, %v10649
    %v10713 = vadd.f32 %v10712, %v10650
    %v10714 = vadd.f32 %v10713, %v10651
    %v10715 = vadd.f32 %v10714, %v10652
    %v10716 = vadd.f32 %v10715, %v10653
    %v10717 = vadd.f32 %v10716, %v10654
    %v10718 = vadd.f32 %v10717, %v10655
    %v10719 = vadd.f32 %v10718, %v10656
    %v10720 = vadd.f32 %v10719, %v10657
    %v10721 = vadd.f32 %v10720, %v10658
    %v10722 = vadd.f32 %v10721, %v10659
    %v10723 = vadd.f32 %v10722, %v10660
    %v10724 = vadd.f32 %v10723, %v10661
    %v10725 = vadd.f32 %v10724, %v10662
    %v10726 = vadd.f32 %v10725, %v10663
    %v10727 = vadd.f32 %v10726, %v10664
    %v10728 = vadd.f32 %v10727, %v10665
    %v10729 = vadd.f32 %v10728, %v10666
    %v10730 = vadd.f32 %v10729, %v10667
    %v10731 = vadd.f32 %v10730, %v10668
    %v10732 = vadd.f32 %v10731, %v10669
    %v10733 = vadd.f32 %v10732, %v10670
    %v10734 = vadd.f32 %v10733, %v10671
    %v10735 = vadd.f32 %v10734, %v10672
    %v10736 = vadd.f32 %v10735, %v10673
    %v10737 = vadd.f32 %v10736, %v10674
    %v10738 = vadd.f32 %v10737, %v10675
    %v10739 = vrot.slane %v10738, 4
    %v10740 = vadd.f32 %v10738, %v10739
    %v10741 = vrot.slane %v10740, 2
    %v10742 = vadd.f32 %v10740, %v10741
    %v10743 = vrot.slane %v10742, 1
    %v10744 = vadd.f32 %v10742, %v10743
    %v10745 = vmul.f32 %v10744, %v5271
    %v10746 = vmul.f32 %v10612, %v10612
    %v10747 = vmul.f32 %v10613, %v10613
    %v10748 = vmul.f32 %v10614, %v10614
    %v10749 = vmul.f32 %v10615, %v10615
    %v10750 = vmul.f32 %v10616, %v10616
    %v10751 = vmul.f32 %v10617, %v10617
    %v10752 = vmul.f32 %v10618, %v10618
    %v10753 = vmul.f32 %v10619, %v10619
    %v10754 = vmul.f32 %v10620, %v10620
    %v10755 = vmul.f32 %v10621, %v10621
    %v10756 = vmul.f32 %v10622, %v10622
    %v10757 = vmul.f32 %v10623, %v10623
    %v10758 = vmul.f32 %v10624, %v10624
    %v10759 = vmul.f32 %v10625, %v10625
    %v10760 = vmul.f32 %v10626, %v10626
    %v10761 = vmul.f32 %v10627, %v10627
    %v10762 = vmul.f32 %v10628, %v10628
    %v10763 = vmul.f32 %v10629, %v10629
    %v10764 = vmul.f32 %v10630, %v10630
    %v10765 = vmul.f32 %v10631, %v10631
    %v10766 = vmul.f32 %v10632, %v10632
    %v10767 = vmul.f32 %v10633, %v10633
    %v10768 = vmul.f32 %v10634, %v10634
    %v10769 = vmul.f32 %v10635, %v10635
    %v10770 = vmul.f32 %v10636, %v10636
    %v10771 = vmul.f32 %v10637, %v10637
    %v10772 = vmul.f32 %v10638, %v10638
    %v10773 = vmul.f32 %v10639, %v10639
    %v10774 = vmul.f32 %v10640, %v10640
    %v10775 = vmul.f32 %v10641, %v10641
    %v10776 = vmul.f32 %v10642, %v10642
    %v10777 = vmul.f32 %v10643, %v10643
    %v10778 = vmul.f32 %v10644, %v10644
    %v10779 = vmul.f32 %v10645, %v10645
    %v10780 = vmul.f32 %v10646, %v10646
    %v10781 = vmul.f32 %v10647, %v10647
    %v10782 = vmul.f32 %v10648, %v10648
    %v10783 = vmul.f32 %v10649, %v10649
    %v10784 = vmul.f32 %v10650, %v10650
    %v10785 = vmul.f32 %v10651, %v10651
    %v10786 = vmul.f32 %v10652, %v10652
    %v10787 = vmul.f32 %v10653, %v10653
    %v10788 = vmul.f32 %v10654, %v10654
    %v10789 = vmul.f32 %v10655, %v10655
    %v10790 = vmul.f32 %v10656, %v10656
    %v10791 = vmul.f32 %v10657, %v10657
    %v10792 = vmul.f32 %v10658, %v10658
    %v10793 = vmul.f32 %v10659, %v10659
    %v10794 = vmul.f32 %v10660, %v10660
    %v10795 = vmul.f32 %v10661, %v10661
    %v10796 = vmul.f32 %v10662, %v10662
    %v10797 = vmul.f32 %v10663, %v10663
    %v10798 = vmul.f32 %v10664, %v10664
    %v10799 = vmul.f32 %v10665, %v10665
    %v10800 = vmul.f32 %v10666, %v10666
    %v10801 = vmul.f32 %v10667, %v10667
    %v10802 = vmul.f32 %v10668, %v10668
    %v10803 = vmul.f32 %v10669, %v10669
    %v10804 = vmul.f32 %v10670, %v10670
    %v10805 = vmul.f32 %v10671, %v10671
    %v10806 = vmul.f32 %v10672, %v10672
    %v10807 = vmul.f32 %v10673, %v10673
    %v10808 = vmul.f32 %v10674, %v10674
    %v10809 = vmul.f32 %v10675, %v10675
    %v10810 = vadd.f32 %v10746, %v10747
    %v10811 = vadd.f32 %v10810, %v10748
    %v10812 = vadd.f32 %v10811, %v10749
    %v10813 = vadd.f32 %v10812, %v10750
    %v10814 = vadd.f32 %v10813, %v10751
    %v10815 = vadd.f32 %v10814, %v10752
    %v10816 = vadd.f32 %v10815, %v10753
    %v10817 = vadd.f32 %v10816, %v10754
    %v10818 = vadd.f32 %v10817, %v10755
    %v10819 = vadd.f32 %v10818, %v10756
    %v10820 = vadd.f32 %v10819, %v10757
    %v10821 = vadd.f32 %v10820, %v10758
    %v10822 = vadd.f32 %v10821, %v10759
    %v10823 = vadd.f32 %v10822, %v10760
    %v10824 = vadd.f32 %v10823, %v10761
    %v10825 = vadd.f32 %v10824, %v10762
    %v10826 = vadd.f32 %v10825, %v10763
    %v10827 = vadd.f32 %v10826, %v10764
    %v10828 = vadd.f32 %v10827, %v10765
    %v10829 = vadd.f32 %v10828, %v10766
    %v10830 = vadd.f32 %v10829, %v10767
    %v10831 = vadd.f32 %v10830, %v10768
    %v10832 = vadd.f32 %v10831, %v10769
    %v10833 = vadd.f32 %v10832, %v10770
    %v10834 = vadd.f32 %v10833, %v10771
    %v10835 = vadd.f32 %v10834, %v10772
    %v10836 = vadd.f32 %v10835, %v10773
    %v10837 = vadd.f32 %v10836, %v10774
    %v10838 = vadd.f32 %v10837, %v10775
    %v10839 = vadd.f32 %v10838, %v10776
    %v10840 = vadd.f32 %v10839, %v10777
    %v10841 = vadd.f32 %v10840, %v10778
    %v10842 = vadd.f32 %v10841, %v10779
    %v10843 = vadd.f32 %v10842, %v10780
    %v10844 = vadd.f32 %v10843, %v10781
    %v10845 = vadd.f32 %v10844, %v10782
    %v10846 = vadd.f32 %v10845, %v10783
    %v10847 = vadd.f32 %v10846, %v10784
    %v10848 = vadd.f32 %v10847, %v10785
    %v10849 = vadd.f32 %v10848, %v10786
    %v10850 = vadd.f32 %v10849, %v10787
    %v10851 = vadd.f32 %v10850, %v10788
    %v10852 = vadd.f32 %v10851, %v10789
    %v10853 = vadd.f32 %v10852, %v10790
    %v10854 = vadd.f32 %v10853, %v10791
    %v10855 = vadd.f32 %v10854, %v10792
    %v10856 = vadd.f32 %v10855, %v10793
    %v10857 = vadd.f32 %v10856, %v10794
    %v10858 = vadd.f32 %v10857, %v10795
    %v10859 = vadd.f32 %v10858, %v10796
    %v10860 = vadd.f32 %v10859, %v10797
    %v10861 = vadd.f32 %v10860, %v10798
    %v10862 = vadd.f32 %v10861, %v10799
    %v10863 = vadd.f32 %v10862, %v10800
    %v10864 = vadd.f32 %v10863, %v10801
    %v10865 = vadd.f32 %v10864, %v10802
    %v10866 = vadd.f32 %v10865, %v10803
    %v10867 = vadd.f32 %v10866, %v10804
    %v10868 = vadd.f32 %v10867, %v10805
    %v10869 = vadd.f32 %v10868, %v10806
    %v10870 = vadd.f32 %v10869, %v10807
    %v10871 = vadd.f32 %v10870, %v10808
    %v10872 = vadd.f32 %v10871, %v10809
    %v10873 = vrot.slane %v10872, 4
    %v10874 = vadd.f32 %v10872, %v10873
    %v10875 = vrot.slane %v10874, 2
    %v10876 = vadd.f32 %v10874, %v10875
    %v10877 = vrot.slane %v10876, 1
    %v10878 = vadd.f32 %v10876, %v10877
    %v10879 = vmul.f32 %v10878, %v5271
    %v10880 = vmul.f32 %v10745, %v10745
    %v10881 = vsub.f32 %v10879, %v10880
    %v10882 = vld [vmem:[%s5] sm:$0x1]
    %v10883 = vadd.f32 %v10881, 1e-05
    %v10884 = vrsqrt.pop %v10883
    %v10885 = vmul.f32 %v10882, %v10884
    %v10886 = vld [vmem:[%s6] sm:$0x1]
    %v10887 = vmul.f32 %v10745, %v10885
    %v10888 = vsub.f32 %v10886, %v10887
    %v10890 = vlaneseq
    %v10891 = vshrl.u32 %v10890, 7
    %v10892 = vsub.s32 0, %v10891
    %v10893 = vrot.slane %v10885, %v10892
    %v10895 = vmul.f32 %v10612, %v10893
    %v10896 = vmul.f32 %v10613, %v10893
    %v10897 = vmul.f32 %v10614, %v10893
    %v10898 = vmul.f32 %v10615, %v10893
    %v10899 = vmul.f32 %v10616, %v10893
    %v10900 = vmul.f32 %v10617, %v10893
    %v10901 = vmul.f32 %v10618, %v10893
    %v10902 = vmul.f32 %v10619, %v10893
    %v10903 = vmul.f32 %v10620, %v10893
    %v10904 = vmul.f32 %v10621, %v10893
    %v10905 = vmul.f32 %v10622, %v10893
    %v10906 = vmul.f32 %v10623, %v10893
    %v10907 = vmul.f32 %v10624, %v10893
    %v10908 = vmul.f32 %v10625, %v10893
    %v10909 = vmul.f32 %v10626, %v10893
    %v10910 = vmul.f32 %v10627, %v10893
    %v10911 = vmul.f32 %v10628, %v10893
    %v10912 = vmul.f32 %v10629, %v10893
    %v10913 = vmul.f32 %v10630, %v10893
    %v10914 = vmul.f32 %v10631, %v10893
    %v10915 = vmul.f32 %v10632, %v10893
    %v10916 = vmul.f32 %v10633, %v10893
    %v10917 = vmul.f32 %v10634, %v10893
    %v10918 = vmul.f32 %v10635, %v10893
    %v10919 = vmul.f32 %v10636, %v10893
    %v10920 = vmul.f32 %v10637, %v10893
    %v10921 = vmul.f32 %v10638, %v10893
    %v10922 = vmul.f32 %v10639, %v10893
    %v10923 = vmul.f32 %v10640, %v10893
    %v10924 = vmul.f32 %v10641, %v10893
    %v10925 = vmul.f32 %v10642, %v10893
    %v10926 = vmul.f32 %v10643, %v10893
    %v10927 = vmul.f32 %v10644, %v10893
    %v10928 = vmul.f32 %v10645, %v10893
    %v10929 = vmul.f32 %v10646, %v10893
    %v10930 = vmul.f32 %v10647, %v10893
    %v10931 = vmul.f32 %v10648, %v10893
    %v10932 = vmul.f32 %v10649, %v10893
    %v10933 = vmul.f32 %v10650, %v10893
    %v10934 = vmul.f32 %v10651, %v10893
    %v10935 = vmul.f32 %v10652, %v10893
    %v10936 = vmul.f32 %v10653, %v10893
    %v10937 = vmul.f32 %v10654, %v10893
    %v10938 = vmul.f32 %v10655, %v10893
    %v10939 = vmul.f32 %v10656, %v10893
    %v10940 = vmul.f32 %v10657, %v10893
    %v10941 = vmul.f32 %v10658, %v10893
    %v10942 = vmul.f32 %v10659, %v10893
    %v10943 = vmul.f32 %v10660, %v10893
    %v10944 = vmul.f32 %v10661, %v10893
    %v10945 = vmul.f32 %v10662, %v10893
    %v10946 = vmul.f32 %v10663, %v10893
    %v10947 = vmul.f32 %v10664, %v10893
    %v10948 = vmul.f32 %v10665, %v10893
    %v10949 = vmul.f32 %v10666, %v10893
    %v10950 = vmul.f32 %v10667, %v10893
    %v10951 = vmul.f32 %v10668, %v10893
    %v10952 = vmul.f32 %v10669, %v10893
    %v10953 = vmul.f32 %v10670, %v10893
    %v10954 = vmul.f32 %v10671, %v10893
    %v10955 = vmul.f32 %v10672, %v10893
    %v10956 = vmul.f32 %v10673, %v10893
    %v10957 = vmul.f32 %v10674, %v10893
    %v10958 = vmul.f32 %v10675, %v10893
    %v10960 = vlaneseq
    %v10961 = vshrl.u32 %v10960, 7
    %v10962 = vsub.s32 0, %v10961
    %v10963 = vrot.slane %v10888, %v10962
    %v10965 = vadd.f32 %v10895, %v10963
    %v10966 = vadd.f32 %v10896, %v10963
    %v10967 = vadd.f32 %v10897, %v10963
    %v10968 = vadd.f32 %v10898, %v10963
    %v10969 = vadd.f32 %v10899, %v10963
    %v10970 = vadd.f32 %v10900, %v10963
    %v10971 = vadd.f32 %v10901, %v10963
    %v10972 = vadd.f32 %v10902, %v10963
    %v10973 = vadd.f32 %v10903, %v10963
    %v10974 = vadd.f32 %v10904, %v10963
    %v10975 = vadd.f32 %v10905, %v10963
    %v10976 = vadd.f32 %v10906, %v10963
    %v10977 = vadd.f32 %v10907, %v10963
    %v10978 = vadd.f32 %v10908, %v10963
    %v10979 = vadd.f32 %v10909, %v10963
    %v10980 = vadd.f32 %v10910, %v10963
    %v10981 = vadd.f32 %v10911, %v10963
    %v10982 = vadd.f32 %v10912, %v10963
    %v10983 = vadd.f32 %v10913, %v10963
    %v10984 = vadd.f32 %v10914, %v10963
    %v10985 = vadd.f32 %v10915, %v10963
    %v10986 = vadd.f32 %v10916, %v10963
    %v10987 = vadd.f32 %v10917, %v10963
    %v10988 = vadd.f32 %v10918, %v10963
    %v10989 = vadd.f32 %v10919, %v10963
    %v10990 = vadd.f32 %v10920, %v10963
    %v10991 = vadd.f32 %v10921, %v10963
    %v10992 = vadd.f32 %v10922, %v10963
    %v10993 = vadd.f32 %v10923, %v10963
    %v10994 = vadd.f32 %v10924, %v10963
    %v10995 = vadd.f32 %v10925, %v10963
    %v10996 = vadd.f32 %v10926, %v10963
    %v10997 = vadd.f32 %v10927, %v10963
    %v10998 = vadd.f32 %v10928, %v10963
    %v10999 = vadd.f32 %v10929, %v10963
    %v11000 = vadd.f32 %v10930, %v10963
    %v11001 = vadd.f32 %v10931, %v10963
    %v11002 = vadd.f32 %v10932, %v10963
    %v11003 = vadd.f32 %v10933, %v10963
    %v11004 = vadd.f32 %v10934, %v10963
    %v11005 = vadd.f32 %v10935, %v10963
    %v11006 = vadd.f32 %v10936, %v10963
    %v11007 = vadd.f32 %v10937, %v10963
    %v11008 = vadd.f32 %v10938, %v10963
    %v11009 = vadd.f32 %v10939, %v10963
    %v11010 = vadd.f32 %v10940, %v10963
    %v11011 = vadd.f32 %v10941, %v10963
    %v11012 = vadd.f32 %v10942, %v10963
    %v11013 = vadd.f32 %v10943, %v10963
    %v11014 = vadd.f32 %v10944, %v10963
    %v11015 = vadd.f32 %v10945, %v10963
    %v11016 = vadd.f32 %v10946, %v10963
    %v11017 = vadd.f32 %v10947, %v10963
    %v11018 = vadd.f32 %v10948, %v10963
    %v11019 = vadd.f32 %v10949, %v10963
    %v11020 = vadd.f32 %v10950, %v10963
    %v11021 = vadd.f32 %v10951, %v10963
    %v11022 = vadd.f32 %v10952, %v10963
    %v11023 = vadd.f32 %v10953, %v10963
    %v11024 = vadd.f32 %v10954, %v10963
    %v11025 = vadd.f32 %v10955, %v10963
    %v11026 = vadd.f32 %v10956, %v10963
    %v11027 = vadd.f32 %v10957, %v10963
    %v11028 = vadd.f32 %v10958, %v10963
    %v11029 = vld [vmem:[#allocation3] sm:$0xff]
    %v11030 = vld [vmem:[#allocation3 + $0x8] sm:$0xff]
    %v11031 = vld [vmem:[#allocation3 + $0x10] sm:$0xff]
    %v11032 = vld [vmem:[#allocation3 + $0x18] sm:$0xff]
    %v11033 = vld [vmem:[#allocation3 + $0x20] sm:$0xff]
    %v11034 = vld [vmem:[#allocation3 + $0x28] sm:$0xff]
    %v11035 = vld [vmem:[#allocation3 + $0x30] sm:$0xff]
    %v11036 = vld [vmem:[#allocation3 + $0x38] sm:$0xff]
    %v11037 = vld [vmem:[#allocation3 + $0x40] sm:$0xff]
    %v11038 = vld [vmem:[#allocation3 + $0x48] sm:$0xff]
    %v11039 = vld [vmem:[#allocation3 + $0x50] sm:$0xff]
    %v11040 = vld [vmem:[#allocation3 + $0x58] sm:$0xff]
    %v11041 = vld [vmem:[#allocation3 + $0x60] sm:$0xff]
    %v11042 = vld [vmem:[#allocation3 + $0x68] sm:$0xff]
    %v11043 = vld [vmem:[#allocation3 + $0x70] sm:$0xff]
    %v11044 = vld [vmem:[#allocation3 + $0x78] sm:$0xff]
    %v11045 = vld [vmem:[#allocation3 + $0x80] sm:$0xff]
    %v11046 = vld [vmem:[#allocation3 + $0x88] sm:$0xff]
    %v11047 = vld [vmem:[#allocation3 + $0x90] sm:$0xff]
    %v11048 = vld [vmem:[#allocation3 + $0x98] sm:$0xff]
    %v11049 = vld [vmem:[#allocation3 + $0xa0] sm:$0xff]
    %v11050 = vld [vmem:[#allocation3 + $0xa8] sm:$0xff]
    %v11051 = vld [vmem:[#allocation3 + $0xb0] sm:$0xff]
    %v11052 = vld [vmem:[#allocation3 + $0xb8] sm:$0xff]
    %v11053 = vld [vmem:[#allocation3 + $0xc0] sm:$0xff]
    %v11054 = vld [vmem:[#allocation3 + $0xc8] sm:$0xff]
    %v11055 = vld [vmem:[#allocation3 + $0xd0] sm:$0xff]
    %v11056 = vld [vmem:[#allocation3 + $0xd8] sm:$0xff]
    %v11057 = vld [vmem:[#allocation3 + $0xe0] sm:$0xff]
    %v11058 = vld [vmem:[#allocation3 + $0xe8] sm:$0xff]
    %v11059 = vld [vmem:[#allocation3 + $0xf0] sm:$0xff]
    %v11060 = vld [vmem:[#allocation3 + $0xf8] sm:$0xff]
    %v11061 = vld [vmem:[#allocation3 + $0x100] sm:$0xff]
    %v11062 = vld [vmem:[#allocation3 + $0x108] sm:$0xff]
    %v11063 = vld [vmem:[#allocation3 + $0x110] sm:$0xff]
    %v11064 = vld [vmem:[#allocation3 + $0x118] sm:$0xff]
    %v11065 = vld [vmem:[#allocation3 + $0x120] sm:$0xff]
    %v11066 = vld [vmem:[#allocation3 + $0x128] sm:$0xff]
    %v11067 = vld [vmem:[#allocation3 + $0x130] sm:$0xff]
    %v11068 = vld [vmem:[#allocation3 + $0x138] sm:$0xff]
    %v11069 = vld [vmem:[#allocation3 + $0x140] sm:$0xff]
    %v11070 = vld [vmem:[#allocation3 + $0x148] sm:$0xff]
    %v11071 = vld [vmem:[#allocation3 + $0x150] sm:$0xff]
    %v11072 = vld [vmem:[#allocation3 + $0x158] sm:$0xff]
    %v11073 = vld [vmem:[#allocation3 + $0x160] sm:$0xff]
    %v11074 = vld [vmem:[#allocation3 + $0x168] sm:$0xff]
    %v11075 = vld [vmem:[#allocation3 + $0x170] sm:$0xff]
    %v11076 = vld [vmem:[#allocation3 + $0x178] sm:$0xff]
    %v11077 = vld [vmem:[#allocation3 + $0x180] sm:$0xff]
    %v11078 = vld [vmem:[#allocation3 + $0x188] sm:$0xff]
    %v11079 = vld [vmem:[#allocation3 + $0x190] sm:$0xff]
    %v11080 = vld [vmem:[#allocation3 + $0x198] sm:$0xff]
    %v11081 = vld [vmem:[#allocation3 + $0x1a0] sm:$0xff]
    %v11082 = vld [vmem:[#allocation3 + $0x1a8] sm:$0xff]
    %v11083 = vld [vmem:[#allocation3 + $0x1b0] sm:$0xff]
    %v11084 = vld [vmem:[#allocation3 + $0x1b8] sm:$0xff]
    %v11085 = vld [vmem:[#allocation3 + $0x1c0] sm:$0xff]
    %v11086 = vld [vmem:[#allocation3 + $0x1c8] sm:$0xff]
    %v11087 = vld [vmem:[#allocation3 + $0x1d0] sm:$0xff]
    %v11088 = vld [vmem:[#allocation3 + $0x1d8] sm:$0xff]
    %v11089 = vld [vmem:[#allocation3 + $0x1e0] sm:$0xff]
    %v11090 = vld [vmem:[#allocation3 + $0x1e8] sm:$0xff]
    %v11091 = vld [vmem:[#allocation3 + $0x1f0] sm:$0xff]
    %v11092 = vld [vmem:[#allocation3 + $0x1f8] sm:$0xff]
    %v11093 = vadd.f32 %v11029, %v10965
    %v11094 = vadd.f32 %v11030, %v10966
    %v11095 = vadd.f32 %v11031, %v10967
    %v11096 = vadd.f32 %v11032, %v10968
    %v11097 = vadd.f32 %v11033, %v10969
    %v11098 = vadd.f32 %v11034, %v10970
    %v11099 = vadd.f32 %v11035, %v10971
    %v11100 = vadd.f32 %v11036, %v10972
    %v11101 = vadd.f32 %v11037, %v10973
    %v11102 = vadd.f32 %v11038, %v10974
    %v11103 = vadd.f32 %v11039, %v10975
    %v11104 = vadd.f32 %v11040, %v10976
    %v11105 = vadd.f32 %v11041, %v10977
    %v11106 = vadd.f32 %v11042, %v10978
    %v11107 = vadd.f32 %v11043, %v10979
    %v11108 = vadd.f32 %v11044, %v10980
    %v11109 = vadd.f32 %v11045, %v10981
    %v11110 = vadd.f32 %v11046, %v10982
    %v11111 = vadd.f32 %v11047, %v10983
    %v11112 = vadd.f32 %v11048, %v10984
    %v11113 = vadd.f32 %v11049, %v10985
    %v11114 = vadd.f32 %v11050, %v10986
    %v11115 = vadd.f32 %v11051, %v10987
    %v11116 = vadd.f32 %v11052, %v10988
    %v11117 = vadd.f32 %v11053, %v10989
    %v11118 = vadd.f32 %v11054, %v10990
    %v11119 = vadd.f32 %v11055, %v10991
    %v11120 = vadd.f32 %v11056, %v10992
    %v11121 = vadd.f32 %v11057, %v10993
    %v11122 = vadd.f32 %v11058, %v10994
    %v11123 = vadd.f32 %v11059, %v10995
    %v11124 = vadd.f32 %v11060, %v10996
    %v11125 = vadd.f32 %v11061, %v10997
    %v11126 = vadd.f32 %v11062, %v10998
    %v11127 = vadd.f32 %v11063, %v10999
    %v11128 = vadd.f32 %v11064, %v11000
    %v11129 = vadd.f32 %v11065, %v11001
    %v11130 = vadd.f32 %v11066, %v11002
    %v11131 = vadd.f32 %v11067, %v11003
    %v11132 = vadd.f32 %v11068, %v11004
    %v11133 = vadd.f32 %v11069, %v11005
    %v11134 = vadd.f32 %v11070, %v11006
    %v11135 = vadd.f32 %v11071, %v11007
    %v11136 = vadd.f32 %v11072, %v11008
    %v11137 = vadd.f32 %v11073, %v11009
    %v11138 = vadd.f32 %v11074, %v11010
    %v11139 = vadd.f32 %v11075, %v11011
    %v11140 = vadd.f32 %v11076, %v11012
    %v11141 = vadd.f32 %v11077, %v11013
    %v11142 = vadd.f32 %v11078, %v11014
    %v11143 = vadd.f32 %v11079, %v11015
    %v11144 = vadd.f32 %v11080, %v11016
    %v11145 = vadd.f32 %v11081, %v11017
    %v11146 = vadd.f32 %v11082, %v11018
    %v11147 = vadd.f32 %v11083, %v11019
    %v11148 = vadd.f32 %v11084, %v11020
    %v11149 = vadd.f32 %v11085, %v11021
    %v11150 = vadd.f32 %v11086, %v11022
    %v11151 = vadd.f32 %v11087, %v11023
    %v11152 = vadd.f32 %v11088, %v11024
    %v11153 = vadd.f32 %v11089, %v11025
    %v11154 = vadd.f32 %v11090, %v11026
    %v11155 = vadd.f32 %v11091, %v11027
    %v11156 = vadd.f32 %v11092, %v11028
    %11157 = vst [vmem:[#allocation9] sm:$0xff] %v11093
    %11158 = vst [vmem:[#allocation9 + $0x8] sm:$0xff] %v11094
    %11159 = vst [vmem:[#allocation9 + $0x10] sm:$0xff] %v11095
    %11160 = vst [vmem:[#allocation9 + $0x18] sm:$0xff] %v11096
    %11161 = vst [vmem:[#allocation9 + $0x20] sm:$0xff] %v11097
    %11162 = vst [vmem:[#allocation9 + $0x28] sm:$0xff] %v11098
    %11163 = vst [vmem:[#allocation9 + $0x30] sm:$0xff] %v11099
    %11164 = vst [vmem:[#allocation9 + $0x38] sm:$0xff] %v11100
    %11165 = vst [vmem:[#allocation9 + $0x40] sm:$0xff] %v11101
    %11166 = vst [vmem:[#allocation9 + $0x48] sm:$0xff] %v11102
    %11167 = vst [vmem:[#allocation9 + $0x50] sm:$0xff] %v11103
    %11168 = vst [vmem:[#allocation9 + $0x58] sm:$0xff] %v11104
    %11169 = vst [vmem:[#allocation9 + $0x60] sm:$0xff] %v11105
    %11170 = vst [vmem:[#allocation9 + $0x68] sm:$0xff] %v11106
    %11171 = vst [vmem:[#allocation9 + $0x70] sm:$0xff] %v11107
    %11172 = vst [vmem:[#allocation9 + $0x78] sm:$0xff] %v11108
    %11173 = vst [vmem:[#allocation9 + $0x80] sm:$0xff] %v11109
    %11174 = vst [vmem:[#allocation9 + $0x88] sm:$0xff] %v11110
    %11175 = vst [vmem:[#allocation9 + $0x90] sm:$0xff] %v11111
    %11176 = vst [vmem:[#allocation9 + $0x98] sm:$0xff] %v11112
    %11177 = vst [vmem:[#allocation9 + $0xa0] sm:$0xff] %v11113
    %11178 = vst [vmem:[#allocation9 + $0xa8] sm:$0xff] %v11114
    %11179 = vst [vmem:[#allocation9 + $0xb0] sm:$0xff] %v11115
    %11180 = vst [vmem:[#allocation9 + $0xb8] sm:$0xff] %v11116
    %11181 = vst [vmem:[#allocation9 + $0xc0] sm:$0xff] %v11117
    %11182 = vst [vmem:[#allocation9 + $0xc8] sm:$0xff] %v11118
    %11183 = vst [vmem:[#allocation9 + $0xd0] sm:$0xff] %v11119
    %11184 = vst [vmem:[#allocation9 + $0xd8] sm:$0xff] %v11120
    %11185 = vst [vmem:[#allocation9 + $0xe0] sm:$0xff] %v11121
    %11186 = vst [vmem:[#allocation9 + $0xe8] sm:$0xff] %v11122
    %11187 = vst [vmem:[#allocation9 + $0xf0] sm:$0xff] %v11123
    %11188 = vst [vmem:[#allocation9 + $0xf8] sm:$0xff] %v11124
    %11189 = vst [vmem:[#allocation9 + $0x100] sm:$0xff] %v11125
    %11190 = vst [vmem:[#allocation9 + $0x108] sm:$0xff] %v11126
    %11191 = vst [vmem:[#allocation9 + $0x110] sm:$0xff] %v11127
    %11192 = vst [vmem:[#allocation9 + $0x118] sm:$0xff] %v11128
    %11193 = vst [vmem:[#allocation9 + $0x120] sm:$0xff] %v11129
    %11194 = vst [vmem:[#allocation9 + $0x128] sm:$0xff] %v11130
    %11195 = vst [vmem:[#allocation9 + $0x130] sm:$0xff] %v11131
    %11196 = vst [vmem:[#allocation9 + $0x138] sm:$0xff] %v11132
    %11197 = vst [vmem:[#allocation9 + $0x140] sm:$0xff] %v11133
    %11198 = vst [vmem:[#allocation9 + $0x148] sm:$0xff] %v11134
    %11199 = vst [vmem:[#allocation9 + $0x150] sm:$0xff] %v11135
    %11200 = vst [vmem:[#allocation9 + $0x158] sm:$0xff] %v11136
    %11201 = vst [vmem:[#allocation9 + $0x160] sm:$0xff] %v11137
    %11202 = vst [vmem:[#allocation9 + $0x168] sm:$0xff] %v11138
    %11203 = vst [vmem:[#allocation9 + $0x170] sm:$0xff] %v11139
    %11204 = vst [vmem:[#allocation9 + $0x178] sm:$0xff] %v11140
    %11205 = vst [vmem:[#allocation9 + $0x180] sm:$0xff] %v11141
    %11206 = vst [vmem:[#allocation9 + $0x188] sm:$0xff] %v11142
    %11207 = vst [vmem:[#allocation9 + $0x190] sm:$0xff] %v11143
    %11208 = vst [vmem:[#allocation9 + $0x198] sm:$0xff] %v11144
    %11209 = vst [vmem:[#allocation9 + $0x1a0] sm:$0xff] %v11145
    %11210 = vst [vmem:[#allocation9 + $0x1a8] sm:$0xff] %v11146
    %11211 = vst [vmem:[#allocation9 + $0x1b0] sm:$0xff] %v11147
    %11212 = vst [vmem:[#allocation9 + $0x1b8] sm:$0xff] %v11148
    %11213 = vst [vmem:[#allocation9 + $0x1c0] sm:$0xff] %v11149
    %11214 = vst [vmem:[#allocation9 + $0x1c8] sm:$0xff] %v11150
    %11215 = vst [vmem:[#allocation9 + $0x1d0] sm:$0xff] %v11151
    %11216 = vst [vmem:[#allocation9 + $0x1d8] sm:$0xff] %v11152
    %11217 = vst [vmem:[#allocation9 + $0x1e0] sm:$0xff] %v11153
    %11218 = vst [vmem:[#allocation9 + $0x1e8] sm:$0xff] %v11154
    %11219 = vst [vmem:[#allocation9 + $0x1f0] sm:$0xff] %v11155
    %11220 = vst [vmem:[#allocation9 + $0x1f8] sm:$0xff] %v11156
    // Predicated region
    $region42: #{resnet_block_nhwc.1} parent=1 // pred_check
      _
    $region43: #{resnet_block_nhwc.1} parent=1 // pred_check_branch
      %11222 = sbr.rel (0) target = $region45
    $region44: #{resnet_block_nhwc.1} parent=1 // pred_region
      %s11224 = ssub.s32 8192, 8192
      %11225 = vsyncadd [#allocation5], %s11224
      %s11226 = sshll.u32 [#allocation9], 4
      %s11227 = int_to_ptr.vmem [resolvable:$true] %s11226
      %11232 = dma.vmem_to_hbm [thread:$0]  %s11227, 8192, %s7, [#allocation5], 128, 128, 8
    $region45: #{resnet_block_nhwc.1} parent=1 // pred_fallthru
      _
    // Predicated region
    $region46: #{resnet_block_nhwc.1} parent=1 // pred_check
      _
    $region47: #{resnet_block_nhwc.1} parent=1 // pred_check_branch
      %11234 = sbr.rel (0) target = $region49
    $region48: #{resnet_block_nhwc.1} parent=1 // pred_region
      %11235 = dma.done [#allocation5], 8192
    $region49: #{resnet_block_nhwc.1} parent=1 // pred_fallthru
      _
    %11236 = vsyncpa [#allocation4], 1
    %11237 = vsyncpa [#allocation7], 1
    %11238 = vsyncpa [#allocation5], 1

</llo_original>
